<compile_context>
chip_gen: v7x
topology: tpu7x:2x2x1
jax: 0.10.0
libtpu: 0.0.40
codegen_flags: <defaults>
</compile_context>

<pallas_src>
import jax
import jax.numpy as jnp
from jax.experimental import pallas as pl
from jax.experimental.pallas import tpu as pltpu

EPS = 1e-5
VMEM_LIMIT = 64 * 1024 * 1024


# ----------------------------------------------------------------------------
# Shared in-kernel helpers
# ----------------------------------------------------------------------------

def _conv3x3_from_padded(pad_ref, w_ref, acc_ref, H, W, Cin):
    """3x3 conv (stride 1) of the padded activation held in VMEM.

    pad_ref: (H+2, W+2, Cin) f32 VMEM scratch, already filled (zero border).
    w_ref:   (3, 3*Cin, Cout) bf16 weights, index (ky, kx*Cin + c, o).
    acc_ref: (H*W, Cout) f32 VMEM accumulator (overwritten).

    The kx taps and Cin are folded into one contraction dim, so the MXU sees
    3 matmuls with K = 3*Cin instead of 9 with K = Cin.
    """
    acc_ref[...] = jnp.zeros_like(acc_ref)
    for ky in range(3):  # unrolled; static slices read straight from VMEM
        lhs = jnp.concatenate(
            [pad_ref[ky:ky + H, 0:W, :],
             pad_ref[ky:ky + H, 1:W + 1, :],
             pad_ref[ky:ky + H, 2:W + 2, :]],
            axis=-1,
        ).reshape(H * W, 3 * Cin)
        acc_ref[...] += jnp.dot(lhs.astype(jnp.bfloat16), w_ref[ky],
                                preferred_element_type=jnp.float32)


def _bn_relu_into_pad(x_val, s_val, b_val, pad_ref, H, W):
    """pad_ref[1:H+1, 1:W+1, :] = relu(x*s + b); zero border."""
    a = jnp.maximum(x_val * s_val + b_val, 0.0)        # (1, H, W, C) f32
    pad_ref[...] = jnp.zeros_like(pad_ref)
    pad_ref[1:H + 1, 1:W + 1, :] = a[0]


# ----------------------------------------------------------------------------
# Kernel A: fused BN + ReLU + 3x3 conv (+ per-channel stats of the output)
# ----------------------------------------------------------------------------

def fused_bn_relu_conv3x3(x, scale, shift, w_hwio):
    """x: (N,H,W,Cin) f32.  Returns (out (N,H,W,Cout) f32,
    per-image channel sums (N,1,Cout), per-image channel sum-of-squares)."""
    N, H, W, Cin = x.shape
    Cout = w_hwio.shape[-1]
    s = scale.reshape(1, 1, 1, Cin).astype(jnp.float32)
    b = shift.reshape(1, 1, 1, Cin).astype(jnp.float32)
    wk = w_hwio.reshape(3, 3 * Cin, Cout).astype(jnp.bfloat16)   # (ky, kx*Cin+c, o)

    def kernel(x_ref, s_ref, b_ref, w_ref, o_ref, sum_ref, sq_ref,
               pad_ref, acc_ref):
        _bn_relu_into_pad(x_ref[...], s_ref[...], b_ref[...], pad_ref, H, W)
        _conv3x3_from_padded(pad_ref, w_ref, acc_ref, H, W, Cin)
        out = acc_ref[...]                                    # (H*W, Cout) f32
        o_ref[...] = out.reshape(1, H, W, Cout).astype(o_ref.dtype)
        # per-channel partial stats of this image (finished by a tiny jnp sum)
        sum_ref[...] = jnp.sum(out, axis=0, keepdims=True).reshape(1, 1, Cout)
        sq_ref[...] = jnp.sum(out * out, axis=0, keepdims=True).reshape(1, 1, Cout)

    out, psum, psq = pl.pallas_call(
        kernel,
        out_shape=(
            jax.ShapeDtypeStruct((N, H, W, Cout), x.dtype),
            jax.ShapeDtypeStruct((N, 1, Cout), jnp.float32),
            jax.ShapeDtypeStruct((N, 1, Cout), jnp.float32),
        ),
        grid=(N,),
        in_specs=[
            pl.BlockSpec((1, H, W, Cin), lambda n: (n, 0, 0, 0)),
            pl.BlockSpec((1, 1, 1, Cin), lambda n: (0, 0, 0, 0)),
            pl.BlockSpec((1, 1, 1, Cin), lambda n: (0, 0, 0, 0)),
            pl.BlockSpec((3, 3 * Cin, Cout), lambda n: (0, 0, 0)),
        ],
        out_specs=(
            pl.BlockSpec((1, H, W, Cout), lambda n: (n, 0, 0, 0)),
            pl.BlockSpec((1, 1, Cout), lambda n: (n, 0, 0)),
            pl.BlockSpec((1, 1, Cout), lambda n: (n, 0, 0)),
        ),
        scratch_shapes=[
            pltpu.VMEM((H + 2, W + 2, Cin), jnp.float32),   # padded activation
            pltpu.VMEM((H * W, Cout), jnp.float32),          # conv accumulator
        ],
        compiler_params=pltpu.CompilerParams(
            dimension_semantics=("parallel",),
            vmem_limit_bytes=VMEM_LIMIT,
        ),
    )(x, s, b, wk)
    return out, psum, psq


# ----------------------------------------------------------------------------
# Kernel B: fused BN+ReLU+conv3  +  downsample  +  concat  +  residual add
# ----------------------------------------------------------------------------

def fused_tail(x, out1, out2, s3, b3, w3_hwio, sd=None, bd=None, wd=None):
    """Produces concat(out1, out2, conv3(relu(bn3(out2)))) + residual in one
    lane-dense write.  residual = relu(bnd(x)) @ wd if wd is given, else x."""
    N, H, W, Cin = x.shape
    C1 = out1.shape[-1]
    C2 = out2.shape[-1]
    C3 = w3_hwio.shape[-1]
    Cout = C1 + C2 + C3
    has_down = wd is not None

    s3r = s3.reshape(1, 1, 1, C2).astype(jnp.float32)
    b3r = b3.reshape(1, 1, 1, C2).astype(jnp.float32)
    w3k = w3_hwio.reshape(3, 3 * C2, C3).astype(jnp.bfloat16)

    inputs = [out2, s3r, b3r, w3k, out1, x]
    in_specs = [
        pl.BlockSpec((1, H, W, C2), lambda n: (n, 0, 0, 0)),
        pl.BlockSpec((1, 1, 1, C2), lambda n: (0, 0, 0, 0)),
        pl.BlockSpec((1, 1, 1, C2), lambda n: (0, 0, 0, 0)),
        pl.BlockSpec((3, 3 * C2, C3), lambda n: (0, 0, 0)),
        pl.BlockSpec((1, H, W, C1), lambda n: (n, 0, 0, 0)),
        pl.BlockSpec((1, H, W, Cin), lambda n: (n, 0, 0, 0)),
    ]
    if has_down:
        sdr = sd.reshape(1, 1, 1, Cin).astype(jnp.float32)
        bdr = bd.reshape(1, 1, 1, Cin).astype(jnp.float32)
        wdk = wd.astype(jnp.bfloat16)                       # (Cin, Cout)
        inputs += [sdr, bdr, wdk]
        in_specs += [
            pl.BlockSpec((1, 1, 1, Cin), lambda n: (0, 0, 0, 0)),
            pl.BlockSpec((1, 1, 1, Cin), lambda n: (0, 0, 0, 0)),
            pl.BlockSpec((Cin, Cout), lambda n: (0, 0)),
        ]

    def _body(o2_ref, s3_ref, b3_ref, w3_ref, o1_ref, x_ref, o_ref,
              pad_ref, acc_ref, sd_ref, bd_ref, wd_ref):
        o2v = o2_ref[...]                                   # (1,H,W,C2) f32
        xv = x_ref[...]                                     # (1,H,W,Cin) f32
        # branch 3: BN + ReLU + 3x3 conv
        _bn_relu_into_pad(o2v, s3_ref[...], b3_ref[...], pad_ref, H, W)
        _conv3x3_from_padded(pad_ref, w3_ref, acc_ref, H, W, C2)
        out3 = acc_ref[...]                                 # (H*W, C3) f32
        # concat of the three branch outputs (channel/lane dim)
        o1v = o1_ref[...].reshape(H * W, C1)
        o2f = o2v.reshape(H * W, C2)
        cat = jnp.concatenate([o1v, o2f, out3], axis=-1)    # (H*W, Cout) f32
        # residual
        if sd_ref is not None:
            ad = jnp.maximum(xv * sd_ref[...] + bd_ref[...], 0.0)
            ad = ad.reshape(H * W, Cin)
            res = jnp.dot(ad.astype(jnp.bfloat16), wd_ref[...],
                          preferred_element_type=jnp.float32)
        else:
            res = xv.reshape(H * W, Cin)                    # Cin == Cout here
        o_ref[...] = (cat + res).reshape(1, H, W, Cout).astype(o_ref.dtype)

    if has_down:
        def kernel(o2_ref, s3_ref, b3_ref, w3_ref, o1_ref, x_ref,
                   sd_ref, bd_ref, wd_ref, o_ref, pad_ref, acc_ref):
            _body(o2_ref, s3_ref, b3_ref, w3_ref, o1_ref, x_ref, o_ref,
                  pad_ref, acc_ref, sd_ref, bd_ref, wd_ref)
    else:
        def kernel(o2_ref, s3_ref, b3_ref, w3_ref, o1_ref, x_ref,
                   o_ref, pad_ref, acc_ref):
            _body(o2_ref, s3_ref, b3_ref, w3_ref, o1_ref, x_ref, o_ref,
                  pad_ref, acc_ref, None, None, None)

    return pl.pallas_call(
        kernel,
        out_shape=jax.ShapeDtypeStruct((N, H, W, Cout), x.dtype),
        grid=(N,),
        in_specs=in_specs,
        out_specs=pl.BlockSpec((1, H, W, Cout), lambda n: (n, 0, 0, 0)),
        scratch_shapes=[
            pltpu.VMEM((H + 2, W + 2, C2), jnp.float32),
            pltpu.VMEM((H * W, C3), jnp.float32),
        ],
        compiler_params=pltpu.CompilerParams(
            dimension_semantics=("parallel",),
            vmem_limit_bytes=VMEM_LIMIT,
        ),
    )(*inputs)


# ----------------------------------------------------------------------------
# Glue (plain JAX): BN affine from sums, parameter init
# ----------------------------------------------------------------------------

def _affine_from_sums(total_sum, total_sq, count, gamma, beta, eps=EPS):
    """Training-mode BatchNorm -> per-channel affine y = x*scale + shift,
    from per-channel sum / sum-of-squares (biased variance = E[x^2]-E[x]^2)."""
    mean = total_sum / count
    var = jnp.maximum(total_sq / count - mean * mean, 0.0)
    scale = gamma / jnp.sqrt(var + eps)
    shift = beta - mean * scale
    return scale, shift


def init_conv_block_params(key, in_planes, out_planes):
    c1, c2, c3 = out_planes // 2, out_planes // 4, out_planes // 4
    ks = jax.random.split(key, 8)
    p = {
        "bn1_gamma": 1.0 + 0.1 * jax.random.normal(ks[0], (in_planes,), jnp.float32),
        "bn1_beta": 0.1 * jax.random.normal(ks[1], (in_planes,), jnp.float32),
        "conv1_w": 0.2 * jax.random.normal(ks[2], (3, 3, in_planes, c1), jnp.float32),
        "bn2_gamma": 1.0 + 0.1 * jax.random.normal(ks[3], (c1,), jnp.float32),
        "bn2_beta": 0.1 * jax.random.normal(ks[4], (c1,), jnp.float32),
        "conv2_w": 0.2 * jax.random.normal(ks[5], (3, 3, c1, c2), jnp.float32),
        "bn3_gamma": 1.0 + 0.1 * jax.random.normal(ks[6], (c2,), jnp.float32),
        "bn3_beta": 0.1 * jax.random.normal(ks[7], (c2,), jnp.float32),
        "conv3_w": 0.2 * jax.random.normal(jax.random.fold_in(key, 100),
                                           (3, 3, c2, c3), jnp.float32),
    }
    if in_planes != out_planes:
        p["bnd_gamma"] = 1.0 + 0.1 * jax.random.normal(jax.random.fold_in(key, 101),
                                                       (in_planes,), jnp.float32)
        p["bnd_beta"] = 0.1 * jax.random.normal(jax.random.fold_in(key, 102),
                                                (in_planes,), jnp.float32)
        p["down_w"] = 0.2 * jax.random.normal(jax.random.fold_in(key, 103),
                                              (in_planes, out_planes), jnp.float32)
    return p


def conv_block_forward(x_nchw, params):
    """ConvBlock forward. Input/output: NCHW float32."""
    x = jnp.transpose(x_nchw, (0, 2, 3, 1)).astype(jnp.float32)   # NHWC
    N, H, W, _ = x.shape
    count = float(N * H * W)

    # BN1 and the downsample BN share the statistics of x; there is no
    # upstream kernel to emit them, so one fused jnp sum/sum^2 pass (glue).
    xsum = jnp.sum(x, axis=(0, 1, 2))
    xsq = jnp.sum(x * x, axis=(0, 1, 2))
    s1, b1 = _affine_from_sums(xsum, xsq, count,
                               params["bn1_gamma"], params["bn1_beta"])

    # branch 1 (emits stats of out1 for BN2)
    out1, sum1, sq1 = fused_bn_relu_conv3x3(x, s1, b1, params["conv1_w"])
    s2, b2 = _affine_from_sums(jnp.sum(sum1, axis=(0, 1)),
                               jnp.sum(sq1, axis=(0, 1)), count,
                               params["bn2_gamma"], params["bn2_beta"])

    # branch 2 (emits stats of out2 for BN3)
    out2, sum2, sq2 = fused_bn_relu_conv3x3(out1, s2, b2, params["conv2_w"])
    s3, b3 = _affine_from_sums(jnp.sum(sum2, axis=(0, 1)),
                               jnp.sum(sq2, axis=(0, 1)), count,
                               params["bn3_gamma"], params["bn3_beta"])

    # branch 3 + downsample + concat + residual add, fused
    if "down_w" in params:
        sd, bd = _affine_from_sums(xsum, xsq, count,
                                   params["bnd_gamma"], params["bnd_beta"])
        out = fused_tail(x, out1, out2, s3, b3, params["conv3_w"],
                         sd=sd, bd=bd, wd=params["down_w"])
    else:
        out = fused_tail(x, out1, out2, s3, b3, params["conv3_w"])
    return jnp.transpose(out, (0, 3, 1, 2))   # -> NCHW


# ----------------------------------------------------------------------------
# Pure-JAX reference (bf16 matmul operands, f32 accumulate — same precision
# policy as the kernels; BN uses the mathematically identical biased variance)
# ----------------------------------------------------------------------------

def conv_block_reference(x_nchw, params):
    x = jnp.transpose(x_nchw, (0, 2, 3, 1)).astype(jnp.float32)
    N, H, W, _ = x.shape
    count = float(N * H * W)

    def stats(t):
        return jnp.sum(t, axis=(0, 1, 2)), jnp.sum(t * t, axis=(0, 1, 2))

    def conv(a, w):
        return jax.lax.conv_general_dilated(
            a.astype(jnp.bfloat16), w.astype(jnp.bfloat16),
            window_strides=(1, 1), padding="SAME",
            dimension_numbers=("NHWC", "HWIO", "NHWC"),
            preferred_element_type=jnp.float32)

    xs, xq = stats(x)
    s1, b1 = _affine_from_sums(xs, xq, count, params["bn1_gamma"], params["bn1_beta"])
    out1 = conv(jnp.maximum(x * s1 + b1, 0.0), params["conv1_w"])
    o1s, o1q = stats(out1)
    s2, b2 = _affine_from_sums(o1s, o1q, count, params["bn2_gamma"], params["bn2_beta"])
    out2 = conv(jnp.maximum(out1 * s2 + b2, 0.0), params["conv2_w"])
    o2s, o2q = stats(out2)
    s3, b3 = _affine_from_sums(o2s, o2q, count, params["bn3_gamma"], params["bn3_beta"])
    out3 = conv(jnp.maximum(out2 * s3 + b3, 0.0), params["conv3_w"])
    cat = jnp.concatenate([out1, out2, out3], axis=-1)
    if "down_w" in params:
        sd, bd = _affine_from_sums(xs, xq, count,
                                   params["bnd_gamma"], params["bnd_beta"])
        ad = jnp.maximum(x * sd + bd, 0.0)
        residual = jnp.einsum("nhwc,cd->nhwd", ad.astype(jnp.bfloat16),
                              params["down_w"].astype(jnp.bfloat16),
                              preferred_element_type=jnp.float32)
    else:
        residual = x
    return jnp.transpose(cat + residual, (0, 3, 1, 2))


# ----------------------------------------------------------------------------

if __name__ == "__main__":
    key = jax.random.PRNGKey(0)
    k_x, k_p = jax.random.split(key)

    N, Cin, H, W = 2, 4, 16, 16
    out_planes = 8  # != in_planes -> downsample path exercised

    x = jax.random.normal(k_x, (N, Cin, H, W), jnp.float32)  # NCHW like PyTorch
    params = init_conv_block_params(k_p, Cin, out_planes)

    fwd = jax.jit(conv_block_forward)
    y = jax.block_until_ready(fwd(x, params))

    y_ref = jax.block_until_ready(conv_block_reference(x, params))
    assert y.shape == (N, out_planes, H, W), y.shape
    assert jnp.allclose(y, y_ref, atol=2e-3, rtol=2e-3), (
        f"mismatch vs reference, max abs diff = "
        f"{float(jnp.max(jnp.abs(y - y_ref)))}")

    print("KERNEL_OK")
</pallas_src>

<mosaic_0001>
module attributes {stable_mosaic.version = 11 : i64} {
  func.func @kernel(%arg0: i32, %arg1: memref<1x16x16x4xf32, #tpu.memory_space<vmem>>, %arg2: memref<1x1x1x4xf32, #tpu.memory_space<vmem>>, %arg3: memref<1x1x1x4xf32, #tpu.memory_space<vmem>>, %arg4: memref<3x12x4xbf16, #tpu.memory_space<vmem>>, %arg5: memref<1x16x16x4xf32, #tpu.memory_space<vmem>>, %arg6: memref<1x1x4xf32, #tpu.memory_space<vmem>>, %arg7: memref<1x1x4xf32, #tpu.memory_space<vmem>>, %arg8: memref<18x18x4xf32, #tpu.memory_space<vmem>>, %arg9: memref<256x4xf32, #tpu.memory_space<vmem>>) attributes {dimension_semantics = [#tpu.dimension_semantics<parallel>], iteration_bounds = array<i64: 2>, scalar_prefetch = 0 : i64, scratch_operands = 2 : i64, tpu.core_type = #tpu.core_type<tc>, window_params = [{transform_indices = @transform_0, window_bounds = array<i64: 1, 16, 16, 4>}, {pipeline_mode = #tpu.pipeline_mode<synchronous>, transform_indices = @transform_1, window_bounds = array<i64: 1, 1, 1, 4>}, {pipeline_mode = #tpu.pipeline_mode<synchronous>, transform_indices = @transform_2, window_bounds = array<i64: 1, 1, 1, 4>}, {pipeline_mode = #tpu.pipeline_mode<synchronous>, transform_indices = @transform_3, window_bounds = array<i64: 3, 12, 4>}, {transform_indices = @transform_4, window_bounds = array<i64: 1, 16, 16, 4>}, {transform_indices = @transform_5, window_bounds = array<i64: 1, 1, 4>}, {transform_indices = @transform_6, window_bounds = array<i64: 1, 1, 4>}]} {
    %c0 = arith.constant 0 : index
    %c0_0 = arith.constant 0 : index
    %c0_1 = arith.constant 0 : index
    %c0_2 = arith.constant 0 : index
    %0 = vector.load %arg1[%c0, %c0_0, %c0_1, %c0_2] : memref<1x16x16x4xf32, #tpu.memory_space<vmem>>, vector<1x16x16x4xf32>
    %c0_3 = arith.constant 0 : index
    %c0_4 = arith.constant 0 : index
    %c0_5 = arith.constant 0 : index
    %c0_6 = arith.constant 0 : index
    %1 = vector.load %arg2[%c0_3, %c0_4, %c0_5, %c0_6] : memref<1x1x1x4xf32, #tpu.memory_space<vmem>>, vector<1x1x1x4xf32>
    %c0_7 = arith.constant 0 : index
    %c0_8 = arith.constant 0 : index
    %c0_9 = arith.constant 0 : index
    %c0_10 = arith.constant 0 : index
    %2 = vector.load %arg3[%c0_7, %c0_8, %c0_9, %c0_10] : memref<1x1x1x4xf32, #tpu.memory_space<vmem>>, vector<1x1x1x4xf32>
    %3 = vector.broadcast %1 : vector<1x1x1x4xf32> to vector<1x16x16x4xf32>
    %4 = arith.mulf %0, %3 : vector<1x16x16x4xf32>
    %5 = vector.broadcast %2 : vector<1x1x1x4xf32> to vector<1x16x16x4xf32>
    %6 = arith.addf %4, %5 : vector<1x16x16x4xf32>
    %cst = arith.constant 0.000000e+00 : f32
    %7 = vector.broadcast %cst : f32 to vector<1x16x16x4xf32>
    %8 = arith.maximumf %6, %7 : vector<1x16x16x4xf32>
    %cst_11 = arith.constant 0.000000e+00 : f32
    %9 = vector.broadcast %cst_11 : f32 to vector<18x18x4xf32>
    %c0_12 = arith.constant 0 : index
    %c0_13 = arith.constant 0 : index
    %c0_14 = arith.constant 0 : index
    %10 = vector.load %arg8[%c0_12, %c0_13, %c0_14] : memref<18x18x4xf32, #tpu.memory_space<vmem>>, vector<18x18x4xf32>
    tpu.vector_store %arg8[%c0_12, %c0_13, %c0_14], %9 {strides = array<i32>} : memref<18x18x4xf32, #tpu.memory_space<vmem>>, vector<18x18x4xf32>,
    %11 = vector.shape_cast %8 : vector<1x16x16x4xf32> to vector<16x16x4xf32>
    %c1 = arith.constant 1 : index
    %c1_15 = arith.constant 1 : index
    %c0_16 = arith.constant 0 : index
    %12 = vector.load %arg8[%c1, %c1_15, %c0_16] : memref<18x18x4xf32, #tpu.memory_space<vmem>>, vector<16x16x4xf32>
    tpu.vector_store %arg8[%c1, %c1_15, %c0_16], %11 {strides = array<i32>} : memref<18x18x4xf32, #tpu.memory_space<vmem>>, vector<16x16x4xf32>,
    %cst_17 = arith.constant 0.000000e+00 : f32
    %13 = vector.broadcast %cst_17 : f32 to vector<256x4xf32>
    %c0_18 = arith.constant 0 : index
    %c0_19 = arith.constant 0 : index
    %14 = vector.load %arg9[%c0_18, %c0_19] : memref<256x4xf32, #tpu.memory_space<vmem>>, vector<256x4xf32>
    tpu.vector_store %arg9[%c0_18, %c0_19], %13 {strides = array<i32>} : memref<256x4xf32, #tpu.memory_space<vmem>>, vector<256x4xf32>,
    %c0_20 = arith.constant 0 : index
    %c0_21 = arith.constant 0 : index
    %c0_22 = arith.constant 0 : index
    %15 = vector.load %arg8[%c0_20, %c0_21, %c0_22] : memref<18x18x4xf32, #tpu.memory_space<vmem>>, vector<16x16x4xf32>
    %c0_23 = arith.constant 0 : index
    %c1_24 = arith.constant 1 : index
    %c0_25 = arith.constant 0 : index
    %16 = vector.load %arg8[%c0_23, %c1_24, %c0_25] : memref<18x18x4xf32, #tpu.memory_space<vmem>>, vector<16x16x4xf32>
    %c0_26 = arith.constant 0 : index
    %c2 = arith.constant 2 : index
    %c0_27 = arith.constant 0 : index
    %17 = vector.load %arg8[%c0_26, %c2, %c0_27] : memref<18x18x4xf32, #tpu.memory_space<vmem>>, vector<16x16x4xf32>
    %18 = tpu.concatenate %15, %16, %17 in 2 : vector<16x16x4xf32>, vector<16x16x4xf32>, vector<16x16x4xf32> -> vector<16x16x12xf32>
    %19 = vector.shape_cast %18 : vector<16x16x12xf32> to vector<256x12xf32>
    %c0_28 = arith.constant 0 : index
    %c0_29 = arith.constant 0 : index
    %20 = vector.load %arg9[%c0_28, %c0_29] : memref<256x4xf32, #tpu.memory_space<vmem>>, vector<256x4xf32>
    %21 = arith.truncf %19 : vector<256x12xf32> to vector<256x12xbf16>
    %c0_30 = arith.constant 0 : index
    %c0_31 = arith.constant 0 : index
    %c0_32 = arith.constant 0 : index
    %22 = vector.load %arg4[%c0_30, %c0_31, %c0_32] : memref<3x12x4xbf16, #tpu.memory_space<vmem>>, vector<1x12x4xbf16>
    %23 = vector.shape_cast %22 : vector<1x12x4xbf16> to vector<12x4xbf16>
    %cst_33 = arith.constant dense<0.000000e+00> : vector<256x4xf32>
    %24 = tpu.matmul %21, %23, %cst_33 {dimension_numbers = #tpu.dot_dimension_numbers<[1], [0], [0], [1], [0, 0, 1, 1], [], []>} : vector<256x12xbf16>, vector<12x4xbf16>, vector<256x4xf32> -> vector<256x4xf32>
    %25 = arith.addf %20, %24 : vector<256x4xf32>
    %c0_34 = arith.constant 0 : index
    %c0_35 = arith.constant 0 : index
    %26 = vector.load %arg9[%c0_34, %c0_35] : memref<256x4xf32, #tpu.memory_space<vmem>>, vector<256x4xf32>
    tpu.vector_store %arg9[%c0_34, %c0_35], %25 {strides = array<i32>} : memref<256x4xf32, #tpu.memory_space<vmem>>, vector<256x4xf32>,
    %c1_36 = arith.constant 1 : index
    %c0_37 = arith.constant 0 : index
    %c0_38 = arith.constant 0 : index
    %27 = vector.load %arg8[%c1_36, %c0_37, %c0_38] : memref<18x18x4xf32, #tpu.memory_space<vmem>>, vector<16x16x4xf32>
    %c1_39 = arith.constant 1 : index
    %c1_40 = arith.constant 1 : index
    %c0_41 = arith.constant 0 : index
    %28 = vector.load %arg8[%c1_39, %c1_40, %c0_41] : memref<18x18x4xf32, #tpu.memory_space<vmem>>, vector<16x16x4xf32>
    %c1_42 = arith.constant 1 : index
    %c2_43 = arith.constant 2 : index
    %c0_44 = arith.constant 0 : index
    %29 = vector.load %arg8[%c1_42, %c2_43, %c0_44] : memref<18x18x4xf32, #tpu.memory_space<vmem>>, vector<16x16x4xf32>
    %30 = tpu.concatenate %27, %28, %29 in 2 : vector<16x16x4xf32>, vector<16x16x4xf32>, vector<16x16x4xf32> -> vector<16x16x12xf32>
    %31 = vector.shape_cast %30 : vector<16x16x12xf32> to vector<256x12xf32>
    %c0_45 = arith.constant 0 : index
    %c0_46 = arith.constant 0 : index
    %32 = vector.load %arg9[%c0_45, %c0_46] : memref<256x4xf32, #tpu.memory_space<vmem>>, vector<256x4xf32>
    %33 = arith.truncf %31 : vector<256x12xf32> to vector<256x12xbf16>
    %c1_47 = arith.constant 1 : index
    %c0_48 = arith.constant 0 : index
    %c0_49 = arith.constant 0 : index
    %34 = vector.load %arg4[%c1_47, %c0_48, %c0_49] : memref<3x12x4xbf16, #tpu.memory_space<vmem>>, vector<1x12x4xbf16>
    %35 = vector.shape_cast %34 : vector<1x12x4xbf16> to vector<12x4xbf16>
    %cst_50 = arith.constant dense<0.000000e+00> : vector<256x4xf32>
    %36 = tpu.matmul %33, %35, %cst_50 {dimension_numbers = #tpu.dot_dimension_numbers<[1], [0], [0], [1], [0, 0, 1, 1], [], []>} : vector<256x12xbf16>, vector<12x4xbf16>, vector<256x4xf32> -> vector<256x4xf32>
    %37 = arith.addf %32, %36 : vector<256x4xf32>
    %c0_51 = arith.constant 0 : index
    %c0_52 = arith.constant 0 : index
    %38 = vector.load %arg9[%c0_51, %c0_52] : memref<256x4xf32, #tpu.memory_space<vmem>>, vector<256x4xf32>
    tpu.vector_store %arg9[%c0_51, %c0_52], %37 {strides = array<i32>} : memref<256x4xf32, #tpu.memory_space<vmem>>, vector<256x4xf32>,
    %c2_53 = arith.constant 2 : index
    %c0_54 = arith.constant 0 : index
    %c0_55 = arith.constant 0 : index
    %39 = vector.load %arg8[%c2_53, %c0_54, %c0_55] : memref<18x18x4xf32, #tpu.memory_space<vmem>>, vector<16x16x4xf32>
    %c2_56 = arith.constant 2 : index
    %c1_57 = arith.constant 1 : index
    %c0_58 = arith.constant 0 : index
    %40 = vector.load %arg8[%c2_56, %c1_57, %c0_58] : memref<18x18x4xf32, #tpu.memory_space<vmem>>, vector<16x16x4xf32>
    %c2_59 = arith.constant 2 : index
    %c2_60 = arith.constant 2 : index
    %c0_61 = arith.constant 0 : index
    %41 = vector.load %arg8[%c2_59, %c2_60, %c0_61] : memref<18x18x4xf32, #tpu.memory_space<vmem>>, vector<16x16x4xf32>
    %42 = tpu.concatenate %39, %40, %41 in 2 : vector<16x16x4xf32>, vector<16x16x4xf32>, vector<16x16x4xf32> -> vector<16x16x12xf32>
    %43 = vector.shape_cast %42 : vector<16x16x12xf32> to vector<256x12xf32>
    %c0_62 = arith.constant 0 : index
    %c0_63 = arith.constant 0 : index
    %44 = vector.load %arg9[%c0_62, %c0_63] : memref<256x4xf32, #tpu.memory_space<vmem>>, vector<256x4xf32>
    %45 = arith.truncf %43 : vector<256x12xf32> to vector<256x12xbf16>
    %c2_64 = arith.constant 2 : index
    %c0_65 = arith.constant 0 : index
    %c0_66 = arith.constant 0 : index
    %46 = vector.load %arg4[%c2_64, %c0_65, %c0_66] : memref<3x12x4xbf16, #tpu.memory_space<vmem>>, vector<1x12x4xbf16>
    %47 = vector.shape_cast %46 : vector<1x12x4xbf16> to vector<12x4xbf16>
    %cst_67 = arith.constant dense<0.000000e+00> : vector<256x4xf32>
    %48 = tpu.matmul %45, %47, %cst_67 {dimension_numbers = #tpu.dot_dimension_numbers<[1], [0], [0], [1], [0, 0, 1, 1], [], []>} : vector<256x12xbf16>, vector<12x4xbf16>, vector<256x4xf32> -> vector<256x4xf32>
    %49 = arith.addf %44, %48 : vector<256x4xf32>
    %c0_68 = arith.constant 0 : index
    %c0_69 = arith.constant 0 : index
    %50 = vector.load %arg9[%c0_68, %c0_69] : memref<256x4xf32, #tpu.memory_space<vmem>>, vector<256x4xf32>
    tpu.vector_store %arg9[%c0_68, %c0_69], %49 {strides = array<i32>} : memref<256x4xf32, #tpu.memory_space<vmem>>, vector<256x4xf32>,
    %c0_70 = arith.constant 0 : index
    %c0_71 = arith.constant 0 : index
    %51 = vector.load %arg9[%c0_70, %c0_71] : memref<256x4xf32, #tpu.memory_space<vmem>>, vector<256x4xf32>
    %52 = vector.shape_cast %51 : vector<256x4xf32> to vector<1x16x16x4xf32>
    %c0_72 = arith.constant 0 : index
    %c0_73 = arith.constant 0 : index
    %c0_74 = arith.constant 0 : index
    %c0_75 = arith.constant 0 : index
    %53 = vector.load %arg5[%c0_72, %c0_73, %c0_74, %c0_75] : memref<1x16x16x4xf32, #tpu.memory_space<vmem>>, vector<1x16x16x4xf32>
    tpu.vector_store %arg5[%c0_72, %c0_73, %c0_74, %c0_75], %52 {strides = array<i32>} : memref<1x16x16x4xf32, #tpu.memory_space<vmem>>, vector<1x16x16x4xf32>,
    %cst_76 = arith.constant dense<0.000000e+00> : vector<4xf32>
    %54 = vector.multi_reduction <add>, %51, %cst_76 [0] : vector<256x4xf32> to vector<4xf32>
    %55 = vector.shape_cast %54 : vector<4xf32> to vector<1x4xf32>
    %56 = vector.shape_cast %55 : vector<1x4xf32> to vector<1x1x4xf32>
    %c0_77 = arith.constant 0 : index
    %c0_78 = arith.constant 0 : index
    %c0_79 = arith.constant 0 : index
    %57 = vector.load %arg6[%c0_77, %c0_78, %c0_79] : memref<1x1x4xf32, #tpu.memory_space<vmem>>, vector<1x1x4xf32>
    tpu.vector_store %arg6[%c0_77, %c0_78, %c0_79], %56 {strides = array<i32>} : memref<1x1x4xf32, #tpu.memory_space<vmem>>, vector<1x1x4xf32>,
    %58 = arith.mulf %51, %51 : vector<256x4xf32>
    %cst_80 = arith.constant dense<0.000000e+00> : vector<4xf32>
    %59 = vector.multi_reduction <add>, %58, %cst_80 [0] : vector<256x4xf32> to vector<4xf32>
    %60 = vector.shape_cast %59 : vector<4xf32> to vector<1x4xf32>
    %61 = vector.shape_cast %60 : vector<1x4xf32> to vector<1x1x4xf32>
    %c0_81 = arith.constant 0 : index
    %c0_82 = arith.constant 0 : index
    %c0_83 = arith.constant 0 : index
    %62 = vector.load %arg7[%c0_81, %c0_82, %c0_83] : memref<1x1x4xf32, #tpu.memory_space<vmem>>, vector<1x1x4xf32>
    tpu.vector_store %arg7[%c0_81, %c0_82, %c0_83], %61 {strides = array<i32>} : memref<1x1x4xf32, #tpu.memory_space<vmem>>, vector<1x1x4xf32>,
    return
  }
  func.func @transform_0(%arg0: i32) -> (i32, i32, i32, i32) {
    %c0_i32 = arith.constant 0 : i32
    %c0_i32_0 = arith.constant 0 : i32
    %c0_i32_1 = arith.constant 0 : i32
    %c0_i32_2 = arith.constant 0 : i32
    return %arg0, %c0_i32, %c0_i32_0, %c0_i32_1 : i32, i32, i32, i32
  }
  func.func @transform_1(%arg0: i32) -> (i32, i32, i32, i32) {
    %c0_i32 = arith.constant 0 : i32
    %c0_i32_0 = arith.constant 0 : i32
    %c0_i32_1 = arith.constant 0 : i32
    %c0_i32_2 = arith.constant 0 : i32
    %c0_i32_3 = arith.constant 0 : i32
    return %c0_i32, %c0_i32_0, %c0_i32_1, %c0_i32_2 : i32, i32, i32, i32
  }
  func.func @transform_2(%arg0: i32) -> (i32, i32, i32, i32) {
    %c0_i32 = arith.constant 0 : i32
    %c0_i32_0 = arith.constant 0 : i32
    %c0_i32_1 = arith.constant 0 : i32
    %c0_i32_2 = arith.constant 0 : i32
    %c0_i32_3 = arith.constant 0 : i32
    return %c0_i32, %c0_i32_0, %c0_i32_1, %c0_i32_2 : i32, i32, i32, i32
  }
  func.func @transform_3(%arg0: i32) -> (i32, i32, i32) {
    %c0_i32 = arith.constant 0 : i32
    %c0_i32_0 = arith.constant 0 : i32
    %c0_i32_1 = arith.constant 0 : i32
    %c0_i32_2 = arith.constant 0 : i32
    return %c0_i32, %c0_i32_0, %c0_i32_1 : i32, i32, i32
  }
  func.func @transform_4(%arg0: i32) -> (i32, i32, i32, i32) {
    %c0_i32 = arith.constant 0 : i32
    %c0_i32_0 = arith.constant 0 : i32
    %c0_i32_1 = arith.constant 0 : i32
    %c0_i32_2 = arith.constant 0 : i32
    return %arg0, %c0_i32, %c0_i32_0, %c0_i32_1 : i32, i32, i32, i32
  }
  func.func @transform_5(%arg0: i32) -> (i32, i32, i32) {
    %c0_i32 = arith.constant 0 : i32
    %c0_i32_0 = arith.constant 0 : i32
    %c0_i32_1 = arith.constant 0 : i32
    return %arg0, %c0_i32, %c0_i32_0 : i32, i32, i32
  }
  func.func @transform_6(%arg0: i32) -> (i32, i32, i32) {
    %c0_i32 = arith.constant 0 : i32
    %c0_i32_0 = arith.constant 0 : i32
    %c0_i32_1 = arith.constant 0 : i32
    return %arg0, %c0_i32, %c0_i32_0 : i32, i32, i32
  }
}

module attributes {stable_mosaic.version = 11 : i64} {
  func.func @kernel(%arg0: i32, %arg1: memref<1x16x16x4xf32, #tpu.memory_space<vmem>>, %arg2: memref<1x1x1x4xf32, #tpu.memory_space<vmem>>, %arg3: memref<1x1x1x4xf32, #tpu.memory_space<vmem>>, %arg4: memref<3x12x2xbf16, #tpu.memory_space<vmem>>, %arg5: memref<1x16x16x2xf32, #tpu.memory_space<vmem>>, %arg6: memref<1x1x2xf32, #tpu.memory_space<vmem>>, %arg7: memref<1x1x2xf32, #tpu.memory_space<vmem>>, %arg8: memref<18x18x4xf32, #tpu.memory_space<vmem>>, %arg9: memref<256x2xf32, #tpu.memory_space<vmem>>) attributes {dimension_semantics = [#tpu.dimension_semantics<parallel>], iteration_bounds = array<i64: 2>, scalar_prefetch = 0 : i64, scratch_operands = 2 : i64, tpu.core_type = #tpu.core_type<tc>, window_params = [{transform_indices = @transform_0, window_bounds = array<i64: 1, 16, 16, 4>}, {pipeline_mode = #tpu.pipeline_mode<synchronous>, transform_indices = @transform_1, window_bounds = array<i64: 1, 1, 1, 4>}, {pipeline_mode = #tpu.pipeline_mode<synchronous>, transform_indices = @transform_2, window_bounds = array<i64: 1, 1, 1, 4>}, {pipeline_mode = #tpu.pipeline_mode<synchronous>, transform_indices = @transform_3, window_bounds = array<i64: 3, 12, 2>}, {transform_indices = @transform_4, window_bounds = array<i64: 1, 16, 16, 2>}, {transform_indices = @transform_5, window_bounds = array<i64: 1, 1, 2>}, {transform_indices = @transform_6, window_bounds = array<i64: 1, 1, 2>}]} {
    %c0 = arith.constant 0 : index
    %c0_0 = arith.constant 0 : index
    %c0_1 = arith.constant 0 : index
    %c0_2 = arith.constant 0 : index
    %0 = vector.load %arg1[%c0, %c0_0, %c0_1, %c0_2] : memref<1x16x16x4xf32, #tpu.memory_space<vmem>>, vector<1x16x16x4xf32>
    %c0_3 = arith.constant 0 : index
    %c0_4 = arith.constant 0 : index
    %c0_5 = arith.constant 0 : index
    %c0_6 = arith.constant 0 : index
    %1 = vector.load %arg2[%c0_3, %c0_4, %c0_5, %c0_6] : memref<1x1x1x4xf32, #tpu.memory_space<vmem>>, vector<1x1x1x4xf32>
    %c0_7 = arith.constant 0 : index
    %c0_8 = arith.constant 0 : index
    %c0_9 = arith.constant 0 : index
    %c0_10 = arith.constant 0 : index
    %2 = vector.load %arg3[%c0_7, %c0_8, %c0_9, %c0_10] : memref<1x1x1x4xf32, #tpu.memory_space<vmem>>, vector<1x1x1x4xf32>
    %3 = vector.broadcast %1 : vector<1x1x1x4xf32> to vector<1x16x16x4xf32>
    %4 = arith.mulf %0, %3 : vector<1x16x16x4xf32>
    %5 = vector.broadcast %2 : vector<1x1x1x4xf32> to vector<1x16x16x4xf32>
    %6 = arith.addf %4, %5 : vector<1x16x16x4xf32>
    %cst = arith.constant 0.000000e+00 : f32
    %7 = vector.broadcast %cst : f32 to vector<1x16x16x4xf32>
    %8 = arith.maximumf %6, %7 : vector<1x16x16x4xf32>
    %cst_11 = arith.constant 0.000000e+00 : f32
    %9 = vector.broadcast %cst_11 : f32 to vector<18x18x4xf32>
    %c0_12 = arith.constant 0 : index
    %c0_13 = arith.constant 0 : index
    %c0_14 = arith.constant 0 : index
    %10 = vector.load %arg8[%c0_12, %c0_13, %c0_14] : memref<18x18x4xf32, #tpu.memory_space<vmem>>, vector<18x18x4xf32>
    tpu.vector_store %arg8[%c0_12, %c0_13, %c0_14], %9 {strides = array<i32>} : memref<18x18x4xf32, #tpu.memory_space<vmem>>, vector<18x18x4xf32>,
    %11 = vector.shape_cast %8 : vector<1x16x16x4xf32> to vector<16x16x4xf32>
    %c1 = arith.constant 1 : index
    %c1_15 = arith.constant 1 : index
    %c0_16 = arith.constant 0 : index
    %12 = vector.load %arg8[%c1, %c1_15, %c0_16] : memref<18x18x4xf32, #tpu.memory_space<vmem>>, vector<16x16x4xf32>
    tpu.vector_store %arg8[%c1, %c1_15, %c0_16], %11 {strides = array<i32>} : memref<18x18x4xf32, #tpu.memory_space<vmem>>, vector<16x16x4xf32>,
    %cst_17 = arith.constant 0.000000e+00 : f32
    %13 = vector.broadcast %cst_17 : f32 to vector<256x2xf32>
    %c0_18 = arith.constant 0 : index
    %c0_19 = arith.constant 0 : index
    %14 = vector.load %arg9[%c0_18, %c0_19] : memref<256x2xf32, #tpu.memory_space<vmem>>, vector<256x2xf32>
    tpu.vector_store %arg9[%c0_18, %c0_19], %13 {strides = array<i32>} : memref<256x2xf32, #tpu.memory_space<vmem>>, vector<256x2xf32>,
    %c0_20 = arith.constant 0 : index
    %c0_21 = arith.constant 0 : index
    %c0_22 = arith.constant 0 : index
    %15 = vector.load %arg8[%c0_20, %c0_21, %c0_22] : memref<18x18x4xf32, #tpu.memory_space<vmem>>, vector<16x16x4xf32>
    %c0_23 = arith.constant 0 : index
    %c1_24 = arith.constant 1 : index
    %c0_25 = arith.constant 0 : index
    %16 = vector.load %arg8[%c0_23, %c1_24, %c0_25] : memref<18x18x4xf32, #tpu.memory_space<vmem>>, vector<16x16x4xf32>
    %c0_26 = arith.constant 0 : index
    %c2 = arith.constant 2 : index
    %c0_27 = arith.constant 0 : index
    %17 = vector.load %arg8[%c0_26, %c2, %c0_27] : memref<18x18x4xf32, #tpu.memory_space<vmem>>, vector<16x16x4xf32>
    %18 = tpu.concatenate %15, %16, %17 in 2 : vector<16x16x4xf32>, vector<16x16x4xf32>, vector<16x16x4xf32> -> vector<16x16x12xf32>
    %19 = vector.shape_cast %18 : vector<16x16x12xf32> to vector<256x12xf32>
    %c0_28 = arith.constant 0 : index
    %c0_29 = arith.constant 0 : index
    %20 = vector.load %arg9[%c0_28, %c0_29] : memref<256x2xf32, #tpu.memory_space<vmem>>, vector<256x2xf32>
    %21 = arith.truncf %19 : vector<256x12xf32> to vector<256x12xbf16>
    %c0_30 = arith.constant 0 : index
    %c0_31 = arith.constant 0 : index
    %c0_32 = arith.constant 0 : index
    %22 = vector.load %arg4[%c0_30, %c0_31, %c0_32] : memref<3x12x2xbf16, #tpu.memory_space<vmem>>, vector<1x12x2xbf16>
    %23 = vector.shape_cast %22 : vector<1x12x2xbf16> to vector<12x2xbf16>
    %cst_33 = arith.constant dense<0.000000e+00> : vector<256x2xf32>
    %24 = tpu.matmul %21, %23, %cst_33 {dimension_numbers = #tpu.dot_dimension_numbers<[1], [0], [0], [1], [0, 0, 1, 1], [], []>} : vector<256x12xbf16>, vector<12x2xbf16>, vector<256x2xf32> -> vector<256x2xf32>
    %25 = arith.addf %20, %24 : vector<256x2xf32>
    %c0_34 = arith.constant 0 : index
    %c0_35 = arith.constant 0 : index
    %26 = vector.load %arg9[%c0_34, %c0_35] : memref<256x2xf32, #tpu.memory_space<vmem>>, vector<256x2xf32>
    tpu.vector_store %arg9[%c0_34, %c0_35], %25 {strides = array<i32>} : memref<256x2xf32, #tpu.memory_space<vmem>>, vector<256x2xf32>,
    %c1_36 = arith.constant 1 : index
    %c0_37 = arith.constant 0 : index
    %c0_38 = arith.constant 0 : index
    %27 = vector.load %arg8[%c1_36, %c0_37, %c0_38] : memref<18x18x4xf32, #tpu.memory_space<vmem>>, vector<16x16x4xf32>
    %c1_39 = arith.constant 1 : index
    %c1_40 = arith.constant 1 : index
    %c0_41 = arith.constant 0 : index
    %28 = vector.load %arg8[%c1_39, %c1_40, %c0_41] : memref<18x18x4xf32, #tpu.memory_space<vmem>>, vector<16x16x4xf32>
    %c1_42 = arith.constant 1 : index
    %c2_43 = arith.constant 2 : index
    %c0_44 = arith.constant 0 : index
    %29 = vector.load %arg8[%c1_42, %c2_43, %c0_44] : memref<18x18x4xf32, #tpu.memory_space<vmem>>, vector<16x16x4xf32>
    %30 = tpu.concatenate %27, %28, %29 in 2 : vector<16x16x4xf32>, vector<16x16x4xf32>, vector<16x16x4xf32> -> vector<16x16x12xf32>
    %31 = vector.shape_cast %30 : vector<16x16x12xf32> to vector<256x12xf32>
    %c0_45 = arith.constant 0 : index
    %c0_46 = arith.constant 0 : index
    %32 = vector.load %arg9[%c0_45, %c0_46] : memref<256x2xf32, #tpu.memory_space<vmem>>, vector<256x2xf32>
    %33 = arith.truncf %31 : vector<256x12xf32> to vector<256x12xbf16>
    %c1_47 = arith.constant 1 : index
    %c0_48 = arith.constant 0 : index
    %c0_49 = arith.constant 0 : index
    %34 = vector.load %arg4[%c1_47, %c0_48, %c0_49] : memref<3x12x2xbf16, #tpu.memory_space<vmem>>, vector<1x12x2xbf16>
    %35 = vector.shape_cast %34 : vector<1x12x2xbf16> to vector<12x2xbf16>
    %cst_50 = arith.constant dense<0.000000e+00> : vector<256x2xf32>
    %36 = tpu.matmul %33, %35, %cst_50 {dimension_numbers = #tpu.dot_dimension_numbers<[1], [0], [0], [1], [0, 0, 1, 1], [], []>} : vector<256x12xbf16>, vector<12x2xbf16>, vector<256x2xf32> -> vector<256x2xf32>
    %37 = arith.addf %32, %36 : vector<256x2xf32>
    %c0_51 = arith.constant 0 : index
    %c0_52 = arith.constant 0 : index
    %38 = vector.load %arg9[%c0_51, %c0_52] : memref<256x2xf32, #tpu.memory_space<vmem>>, vector<256x2xf32>
    tpu.vector_store %arg9[%c0_51, %c0_52], %37 {strides = array<i32>} : memref<256x2xf32, #tpu.memory_space<vmem>>, vector<256x2xf32>,
    %c2_53 = arith.constant 2 : index
    %c0_54 = arith.constant 0 : index
    %c0_55 = arith.constant 0 : index
    %39 = vector.load %arg8[%c2_53, %c0_54, %c0_55] : memref<18x18x4xf32, #tpu.memory_space<vmem>>, vector<16x16x4xf32>
    %c2_56 = arith.constant 2 : index
    %c1_57 = arith.constant 1 : index
    %c0_58 = arith.constant 0 : index
    %40 = vector.load %arg8[%c2_56, %c1_57, %c0_58] : memref<18x18x4xf32, #tpu.memory_space<vmem>>, vector<16x16x4xf32>
    %c2_59 = arith.constant 2 : index
    %c2_60 = arith.constant 2 : index
    %c0_61 = arith.constant 0 : index
    %41 = vector.load %arg8[%c2_59, %c2_60, %c0_61] : memref<18x18x4xf32, #tpu.memory_space<vmem>>, vector<16x16x4xf32>
    %42 = tpu.concatenate %39, %40, %41 in 2 : vector<16x16x4xf32>, vector<16x16x4xf32>, vector<16x16x4xf32> -> vector<16x16x12xf32>
    %43 = vector.shape_cast %42 : vector<16x16x12xf32> to vector<256x12xf32>
    %c0_62 = arith.constant 0 : index
    %c0_63 = arith.constant 0 : index
    %44 = vector.load %arg9[%c0_62, %c0_63] : memref<256x2xf32, #tpu.memory_space<vmem>>, vector<256x2xf32>
    %45 = arith.truncf %43 : vector<256x12xf32> to vector<256x12xbf16>
    %c2_64 = arith.constant 2 : index
    %c0_65 = arith.constant 0 : index
    %c0_66 = arith.constant 0 : index
    %46 = vector.load %arg4[%c2_64, %c0_65, %c0_66] : memref<3x12x2xbf16, #tpu.memory_space<vmem>>, vector<1x12x2xbf16>
    %47 = vector.shape_cast %46 : vector<1x12x2xbf16> to vector<12x2xbf16>
    %cst_67 = arith.constant dense<0.000000e+00> : vector<256x2xf32>
    %48 = tpu.matmul %45, %47, %cst_67 {dimension_numbers = #tpu.dot_dimension_numbers<[1], [0], [0], [1], [0, 0, 1, 1], [], []>} : vector<256x12xbf16>, vector<12x2xbf16>, vector<256x2xf32> -> vector<256x2xf32>
    %49 = arith.addf %44, %48 : vector<256x2xf32>
    %c0_68 = arith.constant 0 : index
    %c0_69 = arith.constant 0 : index
    %50 = vector.load %arg9[%c0_68, %c0_69] : memref<256x2xf32, #tpu.memory_space<vmem>>, vector<256x2xf32>
    tpu.vector_store %arg9[%c0_68, %c0_69], %49 {strides = array<i32>} : memref<256x2xf32, #tpu.memory_space<vmem>>, vector<256x2xf32>,
    %c0_70 = arith.constant 0 : index
    %c0_71 = arith.constant 0 : index
    %51 = vector.load %arg9[%c0_70, %c0_71] : memref<256x2xf32, #tpu.memory_space<vmem>>, vector<256x2xf32>
    %52 = vector.shape_cast %51 : vector<256x2xf32> to vector<1x16x16x2xf32>
    %c0_72 = arith.constant 0 : index
    %c0_73 = arith.constant 0 : index
    %c0_74 = arith.constant 0 : index
    %c0_75 = arith.constant 0 : index
    %53 = vector.load %arg5[%c0_72, %c0_73, %c0_74, %c0_75] : memref<1x16x16x2xf32, #tpu.memory_space<vmem>>, vector<1x16x16x2xf32>
    tpu.vector_store %arg5[%c0_72, %c0_73, %c0_74, %c0_75], %52 {strides = array<i32>} : memref<1x16x16x2xf32, #tpu.memory_space<vmem>>, vector<1x16x16x2xf32>,
    %cst_76 = arith.constant dense<0.000000e+00> : vector<2xf32>
    %54 = vector.multi_reduction <add>, %51, %cst_76 [0] : vector<256x2xf32> to vector<2xf32>
    %55 = vector.shape_cast %54 : vector<2xf32> to vector<1x2xf32>
    %56 = vector.shape_cast %55 : vector<1x2xf32> to vector<1x1x2xf32>
    %c0_77 = arith.constant 0 : index
    %c0_78 = arith.constant 0 : index
    %c0_79 = arith.constant 0 : index
    %57 = vector.load %arg6[%c0_77, %c0_78, %c0_79] : memref<1x1x2xf32, #tpu.memory_space<vmem>>, vector<1x1x2xf32>
    tpu.vector_store %arg6[%c0_77, %c0_78, %c0_79], %56 {strides = array<i32>} : memref<1x1x2xf32, #tpu.memory_space<vmem>>, vector<1x1x2xf32>,
    %58 = arith.mulf %51, %51 : vector<256x2xf32>
    %cst_80 = arith.constant dense<0.000000e+00> : vector<2xf32>
    %59 = vector.multi_reduction <add>, %58, %cst_80 [0] : vector<256x2xf32> to vector<2xf32>
    %60 = vector.shape_cast %59 : vector<2xf32> to vector<1x2xf32>
    %61 = vector.shape_cast %60 : vector<1x2xf32> to vector<1x1x2xf32>
    %c0_81 = arith.constant 0 : index
    %c0_82 = arith.constant 0 : index
    %c0_83 = arith.constant 0 : index
    %62 = vector.load %arg7[%c0_81, %c0_82, %c0_83] : memref<1x1x2xf32, #tpu.memory_space<vmem>>, vector<1x1x2xf32>
    tpu.vector_store %arg7[%c0_81, %c0_82, %c0_83], %61 {strides = array<i32>} : memref<1x1x2xf32, #tpu.memory_space<vmem>>, vector<1x1x2xf32>,
    return
  }
  func.func @transform_0(%arg0: i32) -> (i32, i32, i32, i32) {
    %c0_i32 = arith.constant 0 : i32
    %c0_i32_0 = arith.constant 0 : i32
    %c0_i32_1 = arith.constant 0 : i32
    %c0_i32_2 = arith.constant 0 : i32
    return %arg0, %c0_i32, %c0_i32_0, %c0_i32_1 : i32, i32, i32, i32
  }
  func.func @transform_1(%arg0: i32) -> (i32, i32, i32, i32) {
    %c0_i32 = arith.constant 0 : i32
    %c0_i32_0 = arith.constant 0 : i32
    %c0_i32_1 = arith.constant 0 : i32
    %c0_i32_2 = arith.constant 0 : i32
    %c0_i32_3 = arith.constant 0 : i32
    return %c0_i32, %c0_i32_0, %c0_i32_1, %c0_i32_2 : i32, i32, i32, i32
  }
  func.func @transform_2(%arg0: i32) -> (i32, i32, i32, i32) {
    %c0_i32 = arith.constant 0 : i32
    %c0_i32_0 = arith.constant 0 : i32
    %c0_i32_1 = arith.constant 0 : i32
    %c0_i32_2 = arith.constant 0 : i32
    %c0_i32_3 = arith.constant 0 : i32
    return %c0_i32, %c0_i32_0, %c0_i32_1, %c0_i32_2 : i32, i32, i32, i32
  }
  func.func @transform_3(%arg0: i32) -> (i32, i32, i32) {
    %c0_i32 = arith.constant 0 : i32
    %c0_i32_0 = arith.constant 0 : i32
    %c0_i32_1 = arith.constant 0 : i32
    %c0_i32_2 = arith.constant 0 : i32
    return %c0_i32, %c0_i32_0, %c0_i32_1 : i32, i32, i32
  }
  func.func @transform_4(%arg0: i32) -> (i32, i32, i32, i32) {
    %c0_i32 = arith.constant 0 : i32
    %c0_i32_0 = arith.constant 0 : i32
    %c0_i32_1 = arith.constant 0 : i32
    %c0_i32_2 = arith.constant 0 : i32
    return %arg0, %c0_i32, %c0_i32_0, %c0_i32_1 : i32, i32, i32, i32
  }
  func.func @transform_5(%arg0: i32) -> (i32, i32, i32) {
    %c0_i32 = arith.constant 0 : i32
    %c0_i32_0 = arith.constant 0 : i32
    %c0_i32_1 = arith.constant 0 : i32
    return %arg0, %c0_i32, %c0_i32_0 : i32, i32, i32
  }
  func.func @transform_6(%arg0: i32) -> (i32, i32, i32) {
    %c0_i32 = arith.constant 0 : i32
    %c0_i32_0 = arith.constant 0 : i32
    %c0_i32_1 = arith.constant 0 : i32
    return %arg0, %c0_i32, %c0_i32_0 : i32, i32, i32
  }
}

module attributes {stable_mosaic.version = 11 : i64} {
  func.func @kernel(%arg0: i32, %arg1: memref<1x16x16x2xf32, #tpu.memory_space<vmem>>, %arg2: memref<1x1x1x2xf32, #tpu.memory_space<vmem>>, %arg3: memref<1x1x1x2xf32, #tpu.memory_space<vmem>>, %arg4: memref<3x6x2xbf16, #tpu.memory_space<vmem>>, %arg5: memref<1x16x16x4xf32, #tpu.memory_space<vmem>>, %arg6: memref<1x16x16x4xf32, #tpu.memory_space<vmem>>, %arg7: memref<1x1x1x4xf32, #tpu.memory_space<vmem>>, %arg8: memref<1x1x1x4xf32, #tpu.memory_space<vmem>>, %arg9: memref<4x8xbf16, #tpu.memory_space<vmem>>, %arg10: memref<1x16x16x8xf32, #tpu.memory_space<vmem>>, %arg11: memref<18x18x2xf32, #tpu.memory_space<vmem>>, %arg12: memref<256x2xf32, #tpu.memory_space<vmem>>) attributes {dimension_semantics = [#tpu.dimension_semantics<parallel>], iteration_bounds = array<i64: 2>, scalar_prefetch = 0 : i64, scratch_operands = 2 : i64, tpu.core_type = #tpu.core_type<tc>, window_params = [{transform_indices = @transform_0, window_bounds = array<i64: 1, 16, 16, 2>}, {pipeline_mode = #tpu.pipeline_mode<synchronous>, transform_indices = @transform_1, window_bounds = array<i64: 1, 1, 1, 2>}, {pipeline_mode = #tpu.pipeline_mode<synchronous>, transform_indices = @transform_2, window_bounds = array<i64: 1, 1, 1, 2>}, {pipeline_mode = #tpu.pipeline_mode<synchronous>, transform_indices = @transform_3, window_bounds = array<i64: 3, 6, 2>}, {transform_indices = @transform_4, window_bounds = array<i64: 1, 16, 16, 4>}, {transform_indices = @transform_5, window_bounds = array<i64: 1, 16, 16, 4>}, {pipeline_mode = #tpu.pipeline_mode<synchronous>, transform_indices = @transform_6, window_bounds = array<i64: 1, 1, 1, 4>}, {pipeline_mode = #tpu.pipeline_mode<synchronous>, transform_indices = @transform_7, window_bounds = array<i64: 1, 1, 1, 4>}, {pipeline_mode = #tpu.pipeline_mode<synchronous>, transform_indices = @transform_8, window_bounds = array<i64: 4, 8>}, {transform_indices = @transform_9, window_bounds = array<i64: 1, 16, 16, 8>}]} {
    %c0 = arith.constant 0 : index
    %c0_0 = arith.constant 0 : index
    %c0_1 = arith.constant 0 : index
    %c0_2 = arith.constant 0 : index
    %0 = vector.load %arg1[%c0, %c0_0, %c0_1, %c0_2] : memref<1x16x16x2xf32, #tpu.memory_space<vmem>>, vector<1x16x16x2xf32>
    %c0_3 = arith.constant 0 : index
    %c0_4 = arith.constant 0 : index
    %c0_5 = arith.constant 0 : index
    %c0_6 = arith.constant 0 : index
    %1 = vector.load %arg6[%c0_3, %c0_4, %c0_5, %c0_6] : memref<1x16x16x4xf32, #tpu.memory_space<vmem>>, vector<1x16x16x4xf32>
    %c0_7 = arith.constant 0 : index
    %c0_8 = arith.constant 0 : index
    %c0_9 = arith.constant 0 : index
    %c0_10 = arith.constant 0 : index
    %2 = vector.load %arg2[%c0_7, %c0_8, %c0_9, %c0_10] : memref<1x1x1x2xf32, #tpu.memory_space<vmem>>, vector<1x1x1x2xf32>
    %c0_11 = arith.constant 0 : index
    %c0_12 = arith.constant 0 : index
    %c0_13 = arith.constant 0 : index
    %c0_14 = arith.constant 0 : index
    %3 = vector.load %arg3[%c0_11, %c0_12, %c0_13, %c0_14] : memref<1x1x1x2xf32, #tpu.memory_space<vmem>>, vector<1x1x1x2xf32>
    %4 = vector.broadcast %2 : vector<1x1x1x2xf32> to vector<1x16x16x2xf32>
    %5 = arith.mulf %0, %4 : vector<1x16x16x2xf32>
    %6 = vector.broadcast %3 : vector<1x1x1x2xf32> to vector<1x16x16x2xf32>
    %7 = arith.addf %5, %6 : vector<1x16x16x2xf32>
    %cst = arith.constant 0.000000e+00 : f32
    %8 = vector.broadcast %cst : f32 to vector<1x16x16x2xf32>
    %9 = arith.maximumf %7, %8 : vector<1x16x16x2xf32>
    %cst_15 = arith.constant 0.000000e+00 : f32
    %10 = vector.broadcast %cst_15 : f32 to vector<18x18x2xf32>
    %c0_16 = arith.constant 0 : index
    %c0_17 = arith.constant 0 : index
    %c0_18 = arith.constant 0 : index
    %11 = vector.load %arg11[%c0_16, %c0_17, %c0_18] : memref<18x18x2xf32, #tpu.memory_space<vmem>>, vector<18x18x2xf32>
    tpu.vector_store %arg11[%c0_16, %c0_17, %c0_18], %10 {strides = array<i32>} : memref<18x18x2xf32, #tpu.memory_space<vmem>>, vector<18x18x2xf32>,
    %12 = vector.shape_cast %9 : vector<1x16x16x2xf32> to vector<16x16x2xf32>
    %c1 = arith.constant 1 : index
    %c1_19 = arith.constant 1 : index
    %c0_20 = arith.constant 0 : index
    %13 = vector.load %arg11[%c1, %c1_19, %c0_20] : memref<18x18x2xf32, #tpu.memory_space<vmem>>, vector<16x16x2xf32>
    tpu.vector_store %arg11[%c1, %c1_19, %c0_20], %12 {strides = array<i32>} : memref<18x18x2xf32, #tpu.memory_space<vmem>>, vector<16x16x2xf32>,
    %cst_21 = arith.constant 0.000000e+00 : f32
    %14 = vector.broadcast %cst_21 : f32 to vector<256x2xf32>
    %c0_22 = arith.constant 0 : index
    %c0_23 = arith.constant 0 : index
    %15 = vector.load %arg12[%c0_22, %c0_23] : memref<256x2xf32, #tpu.memory_space<vmem>>, vector<256x2xf32>
    tpu.vector_store %arg12[%c0_22, %c0_23], %14 {strides = array<i32>} : memref<256x2xf32, #tpu.memory_space<vmem>>, vector<256x2xf32>,
    %c0_24 = arith.constant 0 : index
    %c0_25 = arith.constant 0 : index
    %c0_26 = arith.constant 0 : index
    %16 = vector.load %arg11[%c0_24, %c0_25, %c0_26] : memref<18x18x2xf32, #tpu.memory_space<vmem>>, vector<16x16x2xf32>
    %c0_27 = arith.constant 0 : index
    %c1_28 = arith.constant 1 : index
    %c0_29 = arith.constant 0 : index
    %17 = vector.load %arg11[%c0_27, %c1_28, %c0_29] : memref<18x18x2xf32, #tpu.memory_space<vmem>>, vector<16x16x2xf32>
    %c0_30 = arith.constant 0 : index
    %c2 = arith.constant 2 : index
    %c0_31 = arith.constant 0 : index
    %18 = vector.load %arg11[%c0_30, %c2, %c0_31] : memref<18x18x2xf32, #tpu.memory_space<vmem>>, vector<16x16x2xf32>
    %19 = tpu.concatenate %16, %17, %18 in 2 : vector<16x16x2xf32>, vector<16x16x2xf32>, vector<16x16x2xf32> -> vector<16x16x6xf32>
    %20 = vector.shape_cast %19 : vector<16x16x6xf32> to vector<256x6xf32>
    %c0_32 = arith.constant 0 : index
    %c0_33 = arith.constant 0 : index
    %21 = vector.load %arg12[%c0_32, %c0_33] : memref<256x2xf32, #tpu.memory_space<vmem>>, vector<256x2xf32>
    %22 = arith.truncf %20 : vector<256x6xf32> to vector<256x6xbf16>
    %c0_34 = arith.constant 0 : index
    %c0_35 = arith.constant 0 : index
    %c0_36 = arith.constant 0 : index
    %23 = vector.load %arg4[%c0_34, %c0_35, %c0_36] : memref<3x6x2xbf16, #tpu.memory_space<vmem>>, vector<1x6x2xbf16>
    %24 = vector.shape_cast %23 : vector<1x6x2xbf16> to vector<6x2xbf16>
    %cst_37 = arith.constant dense<0.000000e+00> : vector<256x2xf32>
    %25 = tpu.matmul %22, %24, %cst_37 {dimension_numbers = #tpu.dot_dimension_numbers<[1], [0], [0], [1], [0, 0, 1, 1], [], []>} : vector<256x6xbf16>, vector<6x2xbf16>, vector<256x2xf32> -> vector<256x2xf32>
    %26 = arith.addf %21, %25 : vector<256x2xf32>
    %c0_38 = arith.constant 0 : index
    %c0_39 = arith.constant 0 : index
    %27 = vector.load %arg12[%c0_38, %c0_39] : memref<256x2xf32, #tpu.memory_space<vmem>>, vector<256x2xf32>
    tpu.vector_store %arg12[%c0_38, %c0_39], %26 {strides = array<i32>} : memref<256x2xf32, #tpu.memory_space<vmem>>, vector<256x2xf32>,
    %c1_40 = arith.constant 1 : index
    %c0_41 = arith.constant 0 : index
    %c0_42 = arith.constant 0 : index
    %28 = vector.load %arg11[%c1_40, %c0_41, %c0_42] : memref<18x18x2xf32, #tpu.memory_space<vmem>>, vector<16x16x2xf32>
    %c1_43 = arith.constant 1 : index
    %c1_44 = arith.constant 1 : index
    %c0_45 = arith.constant 0 : index
    %29 = vector.load %arg11[%c1_43, %c1_44, %c0_45] : memref<18x18x2xf32, #tpu.memory_space<vmem>>, vector<16x16x2xf32>
    %c1_46 = arith.constant 1 : index
    %c2_47 = arith.constant 2 : index
    %c0_48 = arith.constant 0 : index
    %30 = vector.load %arg11[%c1_46, %c2_47, %c0_48] : memref<18x18x2xf32, #tpu.memory_space<vmem>>, vector<16x16x2xf32>
    %31 = tpu.concatenate %28, %29, %30 in 2 : vector<16x16x2xf32>, vector<16x16x2xf32>, vector<16x16x2xf32> -> vector<16x16x6xf32>
    %32 = vector.shape_cast %31 : vector<16x16x6xf32> to vector<256x6xf32>
    %c0_49 = arith.constant 0 : index
    %c0_50 = arith.constant 0 : index
    %33 = vector.load %arg12[%c0_49, %c0_50] : memref<256x2xf32, #tpu.memory_space<vmem>>, vector<256x2xf32>
    %34 = arith.truncf %32 : vector<256x6xf32> to vector<256x6xbf16>
    %c1_51 = arith.constant 1 : index
    %c0_52 = arith.constant 0 : index
    %c0_53 = arith.constant 0 : index
    %35 = vector.load %arg4[%c1_51, %c0_52, %c0_53] : memref<3x6x2xbf16, #tpu.memory_space<vmem>>, vector<1x6x2xbf16>
    %36 = vector.shape_cast %35 : vector<1x6x2xbf16> to vector<6x2xbf16>
    %cst_54 = arith.constant dense<0.000000e+00> : vector<256x2xf32>
    %37 = tpu.matmul %34, %36, %cst_54 {dimension_numbers = #tpu.dot_dimension_numbers<[1], [0], [0], [1], [0, 0, 1, 1], [], []>} : vector<256x6xbf16>, vector<6x2xbf16>, vector<256x2xf32> -> vector<256x2xf32>
    %38 = arith.addf %33, %37 : vector<256x2xf32>
    %c0_55 = arith.constant 0 : index
    %c0_56 = arith.constant 0 : index
    %39 = vector.load %arg12[%c0_55, %c0_56] : memref<256x2xf32, #tpu.memory_space<vmem>>, vector<256x2xf32>
    tpu.vector_store %arg12[%c0_55, %c0_56], %38 {strides = array<i32>} : memref<256x2xf32, #tpu.memory_space<vmem>>, vector<256x2xf32>,
    %c2_57 = arith.constant 2 : index
    %c0_58 = arith.constant 0 : index
    %c0_59 = arith.constant 0 : index
    %40 = vector.load %arg11[%c2_57, %c0_58, %c0_59] : memref<18x18x2xf32, #tpu.memory_space<vmem>>, vector<16x16x2xf32>
    %c2_60 = arith.constant 2 : index
    %c1_61 = arith.constant 1 : index
    %c0_62 = arith.constant 0 : index
    %41 = vector.load %arg11[%c2_60, %c1_61, %c0_62] : memref<18x18x2xf32, #tpu.memory_space<vmem>>, vector<16x16x2xf32>
    %c2_63 = arith.constant 2 : index
    %c2_64 = arith.constant 2 : index
    %c0_65 = arith.constant 0 : index
    %42 = vector.load %arg11[%c2_63, %c2_64, %c0_65] : memref<18x18x2xf32, #tpu.memory_space<vmem>>, vector<16x16x2xf32>
    %43 = tpu.concatenate %40, %41, %42 in 2 : vector<16x16x2xf32>, vector<16x16x2xf32>, vector<16x16x2xf32> -> vector<16x16x6xf32>
    %44 = vector.shape_cast %43 : vector<16x16x6xf32> to vector<256x6xf32>
    %c0_66 = arith.constant 0 : index
    %c0_67 = arith.constant 0 : index
    %45 = vector.load %arg12[%c0_66, %c0_67] : memref<256x2xf32, #tpu.memory_space<vmem>>, vector<256x2xf32>
    %46 = arith.truncf %44 : vector<256x6xf32> to vector<256x6xbf16>
    %c2_68 = arith.constant 2 : index
    %c0_69 = arith.constant 0 : index
    %c0_70 = arith.constant 0 : index
    %47 = vector.load %arg4[%c2_68, %c0_69, %c0_70] : memref<3x6x2xbf16, #tpu.memory_space<vmem>>, vector<1x6x2xbf16>
    %48 = vector.shape_cast %47 : vector<1x6x2xbf16> to vector<6x2xbf16>
    %cst_71 = arith.constant dense<0.000000e+00> : vector<256x2xf32>
    %49 = tpu.matmul %46, %48, %cst_71 {dimension_numbers = #tpu.dot_dimension_numbers<[1], [0], [0], [1], [0, 0, 1, 1], [], []>} : vector<256x6xbf16>, vector<6x2xbf16>, vector<256x2xf32> -> vector<256x2xf32>
    %50 = arith.addf %45, %49 : vector<256x2xf32>
    %c0_72 = arith.constant 0 : index
    %c0_73 = arith.constant 0 : index
    %51 = vector.load %arg12[%c0_72, %c0_73] : memref<256x2xf32, #tpu.memory_space<vmem>>, vector<256x2xf32>
    tpu.vector_store %arg12[%c0_72, %c0_73], %50 {strides = array<i32>} : memref<256x2xf32, #tpu.memory_space<vmem>>, vector<256x2xf32>,
    %c0_74 = arith.constant 0 : index
    %c0_75 = arith.constant 0 : index
    %52 = vector.load %arg12[%c0_74, %c0_75] : memref<256x2xf32, #tpu.memory_space<vmem>>, vector<256x2xf32>
    %c0_76 = arith.constant 0 : index
    %c0_77 = arith.constant 0 : index
    %c0_78 = arith.constant 0 : index
    %c0_79 = arith.constant 0 : index
    %53 = vector.load %arg5[%c0_76, %c0_77, %c0_78, %c0_79] : memref<1x16x16x4xf32, #tpu.memory_space<vmem>>, vector<1x16x16x4xf32>
    %54 = vector.shape_cast %53 : vector<1x16x16x4xf32> to vector<256x4xf32>
    %55 = vector.shape_cast %0 : vector<1x16x16x2xf32> to vector<256x2xf32>
    %56 = tpu.concatenate %54, %55, %52 in 1 : vector<256x4xf32>, vector<256x2xf32>, vector<256x2xf32> -> vector<256x8xf32>
    %c0_80 = arith.constant 0 : index
    %c0_81 = arith.constant 0 : index
    %c0_82 = arith.constant 0 : index
    %c0_83 = arith.constant 0 : index
    %57 = vector.load %arg7[%c0_80, %c0_81, %c0_82, %c0_83] : memref<1x1x1x4xf32, #tpu.memory_space<vmem>>, vector<1x1x1x4xf32>
    %58 = vector.broadcast %57 : vector<1x1x1x4xf32> to vector<1x16x16x4xf32>
    %59 = arith.mulf %1, %58 : vector<1x16x16x4xf32>
    %c0_84 = arith.constant 0 : index
    %c0_85 = arith.constant 0 : index
    %c0_86 = arith.constant 0 : index
    %c0_87 = arith.constant 0 : index
    %60 = vector.load %arg8[%c0_84, %c0_85, %c0_86, %c0_87] : memref<1x1x1x4xf32, #tpu.memory_space<vmem>>, vector<1x1x1x4xf32>
    %61 = vector.broadcast %60 : vector<1x1x1x4xf32> to vector<1x16x16x4xf32>
    %62 = arith.addf %59, %61 : vector<1x16x16x4xf32>
    %cst_88 = arith.constant 0.000000e+00 : f32
    %63 = vector.broadcast %cst_88 : f32 to vector<1x16x16x4xf32>
    %64 = arith.maximumf %62, %63 : vector<1x16x16x4xf32>
    %65 = vector.shape_cast %64 : vector<1x16x16x4xf32> to vector<256x4xf32>
    %66 = arith.truncf %65 : vector<256x4xf32> to vector<256x4xbf16>
    %c0_89 = arith.constant 0 : index
    %c0_90 = arith.constant 0 : index
    %67 = vector.load %arg9[%c0_89, %c0_90] : memref<4x8xbf16, #tpu.memory_space<vmem>>, vector<4x8xbf16>
    %cst_91 = arith.constant dense<0.000000e+00> : vector<256x8xf32>
    %68 = tpu.matmul %66, %67, %cst_91 {dimension_numbers = #tpu.dot_dimension_numbers<[1], [0], [0], [1], [0, 0, 1, 1], [], []>} : vector<256x4xbf16>, vector<4x8xbf16>, vector<256x8xf32> -> vector<256x8xf32>
    %69 = arith.addf %56, %68 : vector<256x8xf32>
    %70 = vector.shape_cast %69 : vector<256x8xf32> to vector<1x16x16x8xf32>
    %c0_92 = arith.constant 0 : index
    %c0_93 = arith.constant 0 : index
    %c0_94 = arith.constant 0 : index
    %c0_95 = arith.constant 0 : index
    %71 = vector.load %arg10[%c0_92, %c0_93, %c0_94, %c0_95] : memref<1x16x16x8xf32, #tpu.memory_space<vmem>>, vector<1x16x16x8xf32>
    tpu.vector_store %arg10[%c0_92, %c0_93, %c0_94, %c0_95], %70 {strides = array<i32>} : memref<1x16x16x8xf32, #tpu.memory_space<vmem>>, vector<1x16x16x8xf32>,
    return
  }
  func.func @transform_0(%arg0: i32) -> (i32, i32, i32, i32) {
    %c0_i32 = arith.constant 0 : i32
    %c0_i32_0 = arith.constant 0 : i32
    %c0_i32_1 = arith.constant 0 : i32
    %c0_i32_2 = arith.constant 0 : i32
    return %arg0, %c0_i32, %c0_i32_0, %c0_i32_1 : i32, i32, i32, i32
  }
  func.func @transform_1(%arg0: i32) -> (i32, i32, i32, i32) {
    %c0_i32 = arith.constant 0 : i32
    %c0_i32_0 = arith.constant 0 : i32
    %c0_i32_1 = arith.constant 0 : i32
    %c0_i32_2 = arith.constant 0 : i32
    %c0_i32_3 = arith.constant 0 : i32
    return %c0_i32, %c0_i32_0, %c0_i32_1, %c0_i32_2 : i32, i32, i32, i32
  }
  func.func @transform_2(%arg0: i32) -> (i32, i32, i32, i32) {
    %c0_i32 = arith.constant 0 : i32
    %c0_i32_0 = arith.constant 0 : i32
    %c0_i32_1 = arith.constant 0 : i32
    %c0_i32_2 = arith.constant 0 : i32
    %c0_i32_3 = arith.constant 0 : i32
    return %c0_i32, %c0_i32_0, %c0_i32_1, %c0_i32_2 : i32, i32, i32, i32
  }
  func.func @transform_3(%arg0: i32) -> (i32, i32, i32) {
    %c0_i32 = arith.constant 0 : i32
    %c0_i32_0 = arith.constant 0 : i32
    %c0_i32_1 = arith.constant 0 : i32
    %c0_i32_2 = arith.constant 0 : i32
    return %c0_i32, %c0_i32_0, %c0_i32_1 : i32, i32, i32
  }
  func.func @transform_4(%arg0: i32) -> (i32, i32, i32, i32) {
    %c0_i32 = arith.constant 0 : i32
    %c0_i32_0 = arith.constant 0 : i32
    %c0_i32_1 = arith.constant 0 : i32
    %c0_i32_2 = arith.constant 0 : i32
    return %arg0, %c0_i32, %c0_i32_0, %c0_i32_1 : i32, i32, i32, i32
  }
  func.func @transform_5(%arg0: i32) -> (i32, i32, i32, i32) {
    %c0_i32 = arith.constant 0 : i32
    %c0_i32_0 = arith.constant 0 : i32
    %c0_i32_1 = arith.constant 0 : i32
    %c0_i32_2 = arith.constant 0 : i32
    return %arg0, %c0_i32, %c0_i32_0, %c0_i32_1 : i32, i32, i32, i32
  }
  func.func @transform_6(%arg0: i32) -> (i32, i32, i32, i32) {
    %c0_i32 = arith.constant 0 : i32
    %c0_i32_0 = arith.constant 0 : i32
    %c0_i32_1 = arith.constant 0 : i32
    %c0_i32_2 = arith.constant 0 : i32
    %c0_i32_3 = arith.constant 0 : i32
    return %c0_i32, %c0_i32_0, %c0_i32_1, %c0_i32_2 : i32, i32, i32, i32
  }
  func.func @transform_7(%arg0: i32) -> (i32, i32, i32, i32) {
    %c0_i32 = arith.constant 0 : i32
    %c0_i32_0 = arith.constant 0 : i32
    %c0_i32_1 = arith.constant 0 : i32
    %c0_i32_2 = arith.constant 0 : i32
    %c0_i32_3 = arith.constant 0 : i32
    return %c0_i32, %c0_i32_0, %c0_i32_1, %c0_i32_2 : i32, i32, i32, i32
  }
  func.func @transform_8(%arg0: i32) -> (i32, i32) {
    %c0_i32 = arith.constant 0 : i32
    %c0_i32_0 = arith.constant 0 : i32
    %c0_i32_1 = arith.constant 0 : i32
    return %c0_i32, %c0_i32_0 : i32, i32
  }
  func.func @transform_9(%arg0: i32) -> (i32, i32, i32, i32) {
    %c0_i32 = arith.constant 0 : i32
    %c0_i32_0 = arith.constant 0 : i32
    %c0_i32_1 = arith.constant 0 : i32
    %c0_i32_2 = arith.constant 0 : i32
    return %arg0, %c0_i32, %c0_i32_0, %c0_i32_1 : i32, i32, i32, i32
  }
}

</mosaic_0001>

<llo_original>
// kernel: conv_block_forward.3
$region0: #{conv_block_forward.3}
  #allocation0 [shape = 'u32[]', space=smem, size = 0x4, offset = 0x4, fixed_abs, tag = 'smem constant byte address 0x4 - core index']
  #allocation1 [shape = 'u32[144,128]{1,0:T(1,128)}', space=vmem, size = 0x12000, scoped, tag = 'internal scratch']
  #allocation2 [shape = 'f32[18,18,4]{2,1,0:T(8,128)}', space=vmem, size = 0x36000, scoped, tag = 'scratch operand']
  #allocation3 [shape = 'f32[256,4]{1,0:T(8,128)}', space=vmem, size = 0x20000, scoped, tag = 'scratch operand']
  %s0 = inlined_call_operand.hbm [shape: f32[2,16,16,4], index: 0, kind: input, shape index: {}]
  %s1 = inlined_call_operand.hbm [shape: f32[1,1,1,4], index: 1, kind: input, shape index: {}]
  %s2 = inlined_call_operand.hbm [shape: f32[1,1,1,4], index: 2, kind: input, shape index: {}]
  %s3 = inlined_call_operand.hbm [shape: bf16[3,12,4], index: 3, kind: input, shape index: {}]
  %s4 = inlined_call_operand.hbm [shape: f32[2,16,16,4], index: 4, kind: output, shape index: {0}]
  %s5 = inlined_call_operand.hbm [shape: f32[2,1,4], index: 5, kind: output, shape index: {1}]
  %s6 = inlined_call_operand.hbm [shape: f32[2,1,4], index: 6, kind: output, shape index: {2}]
  %7 = xla_tuple %s4, %s5, %s6
  %s8 = sld [smem:[#allocation0]]
  $region81: #{conv_block_forward.3} parent=0
    _
  %s10 = ssub.s32 1, %s8
  %s11 = scalar_select 0, %s10, %s8
  $region1: #{conv_block_forward.3} parent=0
    #allocation4 [shape = 'u8[262144]{0}', space=vmem, size = 0x40000, scoped, tag = 'input window, operand 0']
    #allocation5 [shape = 's32[2]{0}', space=sflag, size = 0x8, scoped, tag = 'scoped memory for conv_block_forward.3']
    #allocation6 [shape = 's32[2]{0}', space=sflag, size = 0x8, scoped, tag = 'scoped memory for conv_block_forward.3']
    #allocation7 [shape = 'u8[512]{0}', space=vmem, size = 0x400, scoped, tag = 'input window, operand 1, single buffered']
    #allocation8 [shape = 's32[1]{0}', space=sflag, size = 0x4, scoped, tag = 'scoped memory for conv_block_forward.3']
    #allocation9 [shape = 'u8[512]{0}', space=vmem, size = 0x400, scoped, tag = 'input window, operand 2, single buffered']
    #allocation10 [shape = 'u8[12288]{0}', space=vmem, size = 0x3000, scoped, tag = 'input window, operand 3, single buffered']
    #allocation11 [shape = 's32[1]{0}', space=sflag, size = 0x4, scoped, tag = 'scoped memory for conv_block_forward.3']
    #allocation12 [shape = 'u8[262144]{0}', space=vmem, size = 0x40000, scoped, tag = 'output window, operand 0']
    #allocation13 [shape = 'u8[1024]{0}', space=vmem, size = 0x400, scoped, tag = 'output window, operand 1']
    #allocation14 [shape = 's32[2]{0}', space=sflag, size = 0x8, scoped, tag = 'scoped memory for conv_block_forward.3']
    #allocation15 [shape = 'u8[1024]{0}', space=vmem, size = 0x400, scoped, tag = 'output window, operand 2']
    %12 = vsyncpa [#allocation5], 0
    %s13 = scalar_lea.sflag [#allocation5], 1
    %14 = vsyncpa %s13, 0
    %15 = vsyncpa [#allocation8], 0
    %16 = vsyncpa [#allocation11], 0
    %17 = vsyncpa [#allocation6], 0
    %s18 = scalar_lea.sflag [#allocation6], 1
    %19 = vsyncpa %s18, 0
    %20 = vsyncpa [#allocation14], 0
    %s21 = scalar_lea.sflag [#allocation14], 1
    %22 = vsyncpa %s21, 0
    loop: start=0, step=1, limit=4
    $region2: #{conv_block_forward.3} parent=1 // loop_pre_header
      _
    $region3: #{conv_block_forward.3} parent=1 // loop_header
      %s24 = sphi 0, %s28
      %p25 = scmp.ge.s32.totalorder %s24, 4
      %s34 = sphi 0, %s36
      %s37 = sphi 0, %s34
      %s38 = sphi 0, %s37
      %s54 = sphi 0, %s38
      %s58 = sphi 0, %s58
      %s60 = sphi 0, %s58
      %s61 = sphi 0, %s60
      %s75 = sphi 0, %s61
      %s79 = sphi 0, %s79
      %s81 = sphi 0, %s79
      %s82 = sphi 0, %s81
      %s96 = sphi 0, %s82
      %s100 = sphi 0, %s100
      %s102 = sphi 0, %s100
      %s103 = sphi 0, %s102
      %s117 = sphi 0, %s103
      %s123 = sphi 0, %s125
      %s126 = sphi 0, %s123
      %s127 = sphi 0, %s126
      %s143 = sphi 0, %s127
      %s149 = sphi 0, %s151
      %s152 = sphi 0, %s149
      %s153 = sphi 0, %s152
      %s169 = sphi 0, %s153
      %s175 = sphi 0, %s177
      %s178 = sphi 0, %s175
      %s179 = sphi 0, %s178
      %s195 = sphi 0, %s179
    $region4: #{conv_block_forward.3} parent=1 // loop_header_branch
      %27 = sbr.rel (%p25) target = $region8
    $region5: #{conv_block_forward.3} parent=1 // loop_body
      %s29 = ssub.s32 %s24, 1
      %s30 = ssub.s32 %s24, 2
      %s31 = sadd.s32 %s24, 1
      %s32 = ssub.s32 %s24, %s31
      %p33 = scmp.eq.s32.totalorder %s32, 0
      %s35 = sadd.s32 %s34, 1
      %s36 = scalar_select %p33, %s34, %s35
      %p39 = pneg %p33
      %p40 = scmp.eq.s32.totalorder %s24, 1
      %p41 = por %p39, %p40
      %p42 = scmp.ne.s32.totalorder %s34, %s37
      %p43 = scmp.eq.s32.totalorder %s24, 0
      %p44 = por %p42, %p43
      %p45 = scmp.ne.s32.totalorder %s34, %s37
      %p46 = scmp.eq.s32.totalorder %s29, 1
      %p47 = por %p45, %p46
      %p48 = scmp.ne.s32.totalorder %s37, %s38
      %p49 = scmp.eq.s32.totalorder %s29, 0
      %p50 = por %p48, %p49
      %p51 = scmp.ne.s32.totalorder %s37, %s38
      %p52 = scmp.eq.s32.totalorder %s30, 1
      %p53 = por %p51, %p52
      %p55 = scmp.ne.s32.totalorder %s38, %s54
      %p56 = scmp.eq.s32.totalorder %s30, 0
      %p57 = por %p55, %p56
      %s59 = sadd.s32 %s58, 1
      %p62 = scmp.eq.s32.totalorder %s24, 1
      %p63 = scmp.ne.s32.totalorder %s58, %s60
      %p64 = scmp.eq.s32.totalorder %s24, 0
      %p65 = por %p63, %p64
      %p66 = scmp.ne.s32.totalorder %s58, %s60
      %p67 = scmp.eq.s32.totalorder %s29, 1
      %p68 = por %p66, %p67
      %p69 = scmp.ne.s32.totalorder %s60, %s61
      %p70 = scmp.eq.s32.totalorder %s29, 0
      %p71 = por %p69, %p70
      %p72 = scmp.ne.s32.totalorder %s60, %s61
      %p73 = scmp.eq.s32.totalorder %s30, 1
      %p74 = por %p72, %p73
      %p76 = scmp.ne.s32.totalorder %s61, %s75
      %p77 = scmp.eq.s32.totalorder %s30, 0
      %p78 = por %p76, %p77
      %s80 = sadd.s32 %s79, 1
      %p83 = scmp.eq.s32.totalorder %s24, 1
      %p84 = scmp.ne.s32.totalorder %s79, %s81
      %p85 = scmp.eq.s32.totalorder %s24, 0
      %p86 = por %p84, %p85
      %p87 = scmp.ne.s32.totalorder %s79, %s81
      %p88 = scmp.eq.s32.totalorder %s29, 1
      %p89 = por %p87, %p88
      %p90 = scmp.ne.s32.totalorder %s81, %s82
      %p91 = scmp.eq.s32.totalorder %s29, 0
      %p92 = por %p90, %p91
      %p93 = scmp.ne.s32.totalorder %s81, %s82
      %p94 = scmp.eq.s32.totalorder %s30, 1
      %p95 = por %p93, %p94
      %p97 = scmp.ne.s32.totalorder %s82, %s96
      %p98 = scmp.eq.s32.totalorder %s30, 0
      %p99 = por %p97, %p98
      %s101 = sadd.s32 %s100, 1
      %p104 = scmp.eq.s32.totalorder %s24, 1
      %p105 = scmp.ne.s32.totalorder %s100, %s102
      %p106 = scmp.eq.s32.totalorder %s24, 0
      %p107 = por %p105, %p106
      %p108 = scmp.ne.s32.totalorder %s100, %s102
      %p109 = scmp.eq.s32.totalorder %s29, 1
      %p110 = por %p108, %p109
      %p111 = scmp.ne.s32.totalorder %s102, %s103
      %p112 = scmp.eq.s32.totalorder %s29, 0
      %p113 = por %p111, %p112
      %p114 = scmp.ne.s32.totalorder %s102, %s103
      %p115 = scmp.eq.s32.totalorder %s30, 1
      %p116 = por %p114, %p115
      %p118 = scmp.ne.s32.totalorder %s103, %s117
      %p119 = scmp.eq.s32.totalorder %s30, 0
      %p120 = por %p118, %p119
      %s121 = ssub.s32 %s24, %s31
      %p122 = scmp.eq.s32.totalorder %s121, 0
      %s124 = sadd.s32 %s123, 1
      %s125 = scalar_select %p122, %s123, %s124
      %p128 = pneg %p122
      %p129 = scmp.eq.s32.totalorder %s24, 1
      %p130 = por %p128, %p129
      %p131 = scmp.ne.s32.totalorder %s123, %s126
      %p132 = scmp.eq.s32.totalorder %s24, 0
      %p133 = por %p131, %p132
      %p134 = scmp.ne.s32.totalorder %s123, %s126
      %p135 = scmp.eq.s32.totalorder %s29, 1
      %p136 = por %p134, %p135
      %p137 = scmp.ne.s32.totalorder %s126, %s127
      %p138 = scmp.eq.s32.totalorder %s29, 0
      %p139 = por %p137, %p138
      %p140 = scmp.ne.s32.totalorder %s126, %s127
      %p141 = scmp.eq.s32.totalorder %s30, 1
      %p142 = por %p140, %p141
      %p144 = scmp.ne.s32.totalorder %s127, %s143
      %p145 = scmp.eq.s32.totalorder %s30, 0
      %p146 = por %p144, %p145
      %s147 = ssub.s32 %s24, %s31
      %p148 = scmp.eq.s32.totalorder %s147, 0
      %s150 = sadd.s32 %s149, 1
      %s151 = scalar_select %p148, %s149, %s150
      %p154 = pneg %p148
      %p155 = scmp.eq.s32.totalorder %s24, 1
      %p156 = por %p154, %p155
      %p157 = scmp.ne.s32.totalorder %s149, %s152
      %p158 = scmp.eq.s32.totalorder %s24, 0
      %p159 = por %p157, %p158
      %p160 = scmp.ne.s32.totalorder %s149, %s152
      %p161 = scmp.eq.s32.totalorder %s29, 1
      %p162 = por %p160, %p161
      %p163 = scmp.ne.s32.totalorder %s152, %s153
      %p164 = scmp.eq.s32.totalorder %s29, 0
      %p165 = por %p163, %p164
      %p166 = scmp.ne.s32.totalorder %s152, %s153
      %p167 = scmp.eq.s32.totalorder %s30, 1
      %p168 = por %p166, %p167
      %p170 = scmp.ne.s32.totalorder %s153, %s169
      %p171 = scmp.eq.s32.totalorder %s30, 0
      %p172 = por %p170, %p171
      %s173 = ssub.s32 %s24, %s31
      %p174 = scmp.eq.s32.totalorder %s173, 0
      %s176 = sadd.s32 %s175, 1
      %s177 = scalar_select %p174, %s175, %s176
      %p180 = pneg %p174
      %p181 = scmp.eq.s32.totalorder %s24, 1
      %p182 = por %p180, %p181
      %p183 = scmp.ne.s32.totalorder %s175, %s178
      %p184 = scmp.eq.s32.totalorder %s24, 0
      %p185 = por %p183, %p184
      %p186 = scmp.ne.s32.totalorder %s175, %s178
      %p187 = scmp.eq.s32.totalorder %s29, 1
      %p188 = por %p186, %p187
      %p189 = scmp.ne.s32.totalorder %s178, %s179
      %p190 = scmp.eq.s32.totalorder %s29, 0
      %p191 = por %p189, %p190
      %p192 = scmp.ne.s32.totalorder %s178, %s179
      %p193 = scmp.eq.s32.totalorder %s30, 1
      %p194 = por %p192, %p193
      %p196 = scmp.ne.s32.totalorder %s179, %s195
      %p197 = scmp.eq.s32.totalorder %s30, 0
      %p198 = por %p196, %p197
      %p199 = scmp.le.s32.totalorder 1, %s24
      %p200 = scmp.lt.s32.totalorder %s24, 3
      %p201 = pnand %p199, %p200
      %p202 = pneg %p201
      // Predicated region
      $region9: #{conv_block_forward.3} parent=5 // pred_check
        _
      $region10: #{conv_block_forward.3} parent=5 // pred_check_branch
        %204 = sbr.rel (%p201) target = $region12
      $region11: #{conv_block_forward.3} parent=5 // pred_region
        %s205 = ssub.s32 %s24, 1
        // Predicated region
        $region13: #{conv_block_forward.3} parent=11 // pred_check
          %p206 = pneg %p71
        $region14: #{conv_block_forward.3} parent=11 // pred_check_branch
          %208 = sbr.rel (%p206) target = $region16
        $region15: #{conv_block_forward.3} parent=11 // pred_region
          %s210 = ssub.s32 16, 16
          %211 = vsyncadd [#allocation8], %s210
          %s213 = sshll.u32 [#allocation7], 4
          %s214 = int_to_ptr.vmem [resolvable:$true] %s213
          %216 = dma.hbm_to_vmem [thread:$0]  %s1, 16, %s214, [#allocation8]
        $region16: #{conv_block_forward.3} parent=11 // pred_fallthru
          _
        // Predicated region
        $region17: #{conv_block_forward.3} parent=11 // pred_check
          %p217 = pneg %p92
        $region18: #{conv_block_forward.3} parent=11 // pred_check_branch
          %219 = sbr.rel (%p217) target = $region20
        $region19: #{conv_block_forward.3} parent=11 // pred_region
          %s221 = ssub.s32 16, 16
          %222 = vsyncadd [#allocation8], %s221
          %s224 = sshll.u32 [#allocation9], 4
          %s225 = int_to_ptr.vmem [resolvable:$true] %s224
          %227 = dma.hbm_to_vmem [thread:$0]  %s2, 16, %s225, [#allocation8]
        $region20: #{conv_block_forward.3} parent=11 // pred_fallthru
          _
        // Predicated region
        $region21: #{conv_block_forward.3} parent=11 // pred_check
          %p228 = pneg %p113
        $region22: #{conv_block_forward.3} parent=11 // pred_check_branch
          %230 = sbr.rel (%p228) target = $region24
        $region23: #{conv_block_forward.3} parent=11 // pred_region
          %s232 = ssub.s32 384, 384
          %233 = vsyncadd [#allocation11], %s232
          %s234 = sshll.u32 [#allocation10], 4
          %s235 = int_to_ptr.vmem [resolvable:$true] %s234
          %240 = dma.hbm_to_vmem [thread:$0]  %s3, 384, %s235, [#allocation11], 64, 64, 4
        $region24: #{conv_block_forward.3} parent=11 // pred_fallthru
          _
      $region12: #{conv_block_forward.3} parent=5 // pred_fallthru
        _
      %p241 = scmp.lt.s32.totalorder %s24, 2
      // Predicated region
      $region25: #{conv_block_forward.3} parent=5 // pred_check
        %p242 = pneg %p241
      $region26: #{conv_block_forward.3} parent=5 // pred_check_branch
        %244 = sbr.rel (%p242) target = $region28
      $region27: #{conv_block_forward.3} parent=5 // pred_region
        // Predicated region
        $region29: #{conv_block_forward.3} parent=27 // pred_check
          %p245 = pneg %p44
        $region30: #{conv_block_forward.3} parent=27 // pred_check_branch
          %247 = sbr.rel (%p245) target = $region32
        $region31: #{conv_block_forward.3} parent=27 // pred_region
          %s248 = sand.u32 %s34, 1
          %s249 = scalar_lea.sflag [#allocation5], %s248
          %s250 = sand.u32 %s34, 1
          %s251 = smul.addr %s250, 256
          %s252 = scalar_lea.vmem [#allocation4], %s251
          %s254 = ssub.s32 4096, 4096
          %255 = vsyncadd %s249, %s254
          %s256 = smul.addr %s24, 32
          %s257 = smul.addr %s256, 128
          %s258 = scalar_lea.hbm %s0, %s257
          %s259 = sshll.u32 %s252, 4
          %s260 = int_to_ptr.vmem [resolvable:$true] %s259
          %265 = dma.hbm_to_vmem [thread:$0]  %s258, 4096, %s260, %s249, 128, 128, 8
        $region32: #{conv_block_forward.3} parent=27 // pred_fallthru
          _
      $region28: #{conv_block_forward.3} parent=5 // pred_fallthru
        _
      %p266 = scmp.le.s32.totalorder 1, %s24
      %p267 = scmp.lt.s32.totalorder %s24, 3
      %p268 = pnand %p266, %p267
      %p269 = pneg %p268
      // Predicated region
      $region33: #{conv_block_forward.3} parent=5 // pred_check
        _
      $region34: #{conv_block_forward.3} parent=5 // pred_check_branch
        %271 = sbr.rel (%p268) target = $region36
      $region35: #{conv_block_forward.3} parent=5 // pred_region
        %s272 = ssub.s32 %s24, 1
        %s273 = sand.u32 %s37, 1
        %s274 = scalar_lea.sflag [#allocation5], %s273
        %s275 = sand.u32 %s37, 1
        %s276 = smul.addr %s275, 256
        %s277 = scalar_lea.vmem [#allocation4], %s276
        // Predicated region
        $region37: #{conv_block_forward.3} parent=35 // pred_check
          %p278 = pneg %p50
        $region38: #{conv_block_forward.3} parent=35 // pred_check_branch
          %280 = sbr.rel (%p278) target = $region40
        $region39: #{conv_block_forward.3} parent=35 // pred_region
          %281 = dma.done %s274, 4096
        $region40: #{conv_block_forward.3} parent=35 // pred_fallthru
          _
        // Predicated region
        $region41: #{conv_block_forward.3} parent=35 // pred_check
          %p282 = pneg %p71
        $region42: #{conv_block_forward.3} parent=35 // pred_check_branch
          %284 = sbr.rel (%p282) target = $region44
        $region43: #{conv_block_forward.3} parent=35 // pred_region
          %285 = dma.done [#allocation8], 16
        $region44: #{conv_block_forward.3} parent=35 // pred_fallthru
          _
        // Predicated region
        $region45: #{conv_block_forward.3} parent=35 // pred_check
          %p286 = pneg %p92
        $region46: #{conv_block_forward.3} parent=35 // pred_check_branch
          %288 = sbr.rel (%p286) target = $region48
        $region47: #{conv_block_forward.3} parent=35 // pred_region
          %289 = dma.done [#allocation8], 16
        $region48: #{conv_block_forward.3} parent=35 // pred_fallthru
          _
        // Predicated region
        $region49: #{conv_block_forward.3} parent=35 // pred_check
          %p290 = pneg %p113
        $region50: #{conv_block_forward.3} parent=35 // pred_check_branch
          %292 = sbr.rel (%p290) target = $region52
        $region51: #{conv_block_forward.3} parent=35 // pred_region
          %293 = dma.done [#allocation11], 384
        $region52: #{conv_block_forward.3} parent=35 // pred_fallthru
          _
        %s294 = sand.u32 %s37, 1
        %s295 = scalar_lea.sflag [#allocation5], %s294
        %s296 = sand.u32 %s37, 1
        %s297 = smul.addr %s296, 256
        %s298 = scalar_lea.vmem [#allocation4], %s297
        %p299 = pneg %p50
        %p300 = pneg %p47
        %p301 = pneg %p71
        %p302 = pneg %p68
        %p303 = pneg %p92
        %p304 = pneg %p89
        %p305 = pneg %p113
        %p306 = pneg %p110
        %p307 = pneg %p139
        %p308 = pneg %p136
        %s309 = sand.u32 %s126, 1
        %s310 = scalar_lea.sflag [#allocation6], %s309
        %s311 = sand.u32 %s126, 1
        %s312 = smul.addr %s311, 256
        %s313 = scalar_lea.vmem [#allocation12], %s312
        %p314 = pneg %p165
        %p315 = pneg %p162
        %s316 = sand.u32 %s29, 1
        %s317 = scalar_lea.sflag [#allocation14], %s316
        %s318 = sand.u32 %s152, 1
        %s319 = scalar_lea.vmem [#allocation13], %s318
        %p320 = pneg %p191
        %p321 = pneg %p188
        %s322 = sand.u32 %s29, 1
        %s323 = scalar_lea.sflag [#allocation14], %s322
        %s324 = sand.u32 %s178, 1
        %s325 = scalar_lea.vmem [#allocation15], %s324
        %v327 = vld [vmem:[%s277] sm:$0xff]
        %v328 = vld [vmem:[%s277 + $0x8] sm:$0xff]
        %v329 = vld [vmem:[%s277 + $0x10] sm:$0xff]
        %v330 = vld [vmem:[%s277 + $0x18] sm:$0xff]
        %v331 = vld [vmem:[%s277 + $0x20] sm:$0xff]
        %v332 = vld [vmem:[%s277 + $0x28] sm:$0xff]
        %v333 = vld [vmem:[%s277 + $0x30] sm:$0xff]
        %v334 = vld [vmem:[%s277 + $0x38] sm:$0xff]
        %v335 = vld [vmem:[%s277 + $0x40] sm:$0xff]
        %v336 = vld [vmem:[%s277 + $0x48] sm:$0xff]
        %v337 = vld [vmem:[%s277 + $0x50] sm:$0xff]
        %v338 = vld [vmem:[%s277 + $0x58] sm:$0xff]
        %v339 = vld [vmem:[%s277 + $0x60] sm:$0xff]
        %v340 = vld [vmem:[%s277 + $0x68] sm:$0xff]
        %v341 = vld [vmem:[%s277 + $0x70] sm:$0xff]
        %v342 = vld [vmem:[%s277 + $0x78] sm:$0xff]
        %v343 = vld [vmem:[%s277 + $0x80] sm:$0xff]
        %v344 = vld [vmem:[%s277 + $0x88] sm:$0xff]
        %v345 = vld [vmem:[%s277 + $0x90] sm:$0xff]
        %v346 = vld [vmem:[%s277 + $0x98] sm:$0xff]
        %v347 = vld [vmem:[%s277 + $0xa0] sm:$0xff]
        %v348 = vld [vmem:[%s277 + $0xa8] sm:$0xff]
        %v349 = vld [vmem:[%s277 + $0xb0] sm:$0xff]
        %v350 = vld [vmem:[%s277 + $0xb8] sm:$0xff]
        %v351 = vld [vmem:[%s277 + $0xc0] sm:$0xff]
        %v352 = vld [vmem:[%s277 + $0xc8] sm:$0xff]
        %v353 = vld [vmem:[%s277 + $0xd0] sm:$0xff]
        %v354 = vld [vmem:[%s277 + $0xd8] sm:$0xff]
        %v355 = vld [vmem:[%s277 + $0xe0] sm:$0xff]
        %v356 = vld [vmem:[%s277 + $0xe8] sm:$0xff]
        %v357 = vld [vmem:[%s277 + $0xf0] sm:$0xff]
        %v358 = vld [vmem:[%s277 + $0xf8] sm:$0xff]
        %v359 = vld [vmem:[#allocation7] sm:$0x1]
        %v360 = vld [vmem:[#allocation9] sm:$0x1]
        %v362 = vlaneseq
        %v363 = vshrl.u32 %v362, 7
        %v364 = vsub.s32 0, %v363
        %v365 = vrot.slane %v359, %v364
        %v367 = vmul.f32 %v327, %v365
        %v368 = vmul.f32 %v328, %v365
        %v369 = vmul.f32 %v329, %v365
        %v370 = vmul.f32 %v330, %v365
        %v371 = vmul.f32 %v331, %v365
        %v372 = vmul.f32 %v332, %v365
        %v373 = vmul.f32 %v333, %v365
        %v374 = vmul.f32 %v334, %v365
        %v375 = vmul.f32 %v335, %v365
        %v376 = vmul.f32 %v336, %v365
        %v377 = vmul.f32 %v337, %v365
        %v378 = vmul.f32 %v338, %v365
        %v379 = vmul.f32 %v339, %v365
        %v380 = vmul.f32 %v340, %v365
        %v381 = vmul.f32 %v341, %v365
        %v382 = vmul.f32 %v342, %v365
        %v383 = vmul.f32 %v343, %v365
        %v384 = vmul.f32 %v344, %v365
        %v385 = vmul.f32 %v345, %v365
        %v386 = vmul.f32 %v346, %v365
        %v387 = vmul.f32 %v347, %v365
        %v388 = vmul.f32 %v348, %v365
        %v389 = vmul.f32 %v349, %v365
        %v390 = vmul.f32 %v350, %v365
        %v391 = vmul.f32 %v351, %v365
        %v392 = vmul.f32 %v352, %v365
        %v393 = vmul.f32 %v353, %v365
        %v394 = vmul.f32 %v354, %v365
        %v395 = vmul.f32 %v355, %v365
        %v396 = vmul.f32 %v356, %v365
        %v397 = vmul.f32 %v357, %v365
        %v398 = vmul.f32 %v358, %v365
        %v400 = vlaneseq
        %v401 = vshrl.u32 %v400, 7
        %v402 = vsub.s32 0, %v401
        %v403 = vrot.slane %v360, %v402
        %v405 = vadd.f32 %v367, %v403
        %v406 = vadd.f32 %v368, %v403
        %v407 = vadd.f32 %v369, %v403
        %v408 = vadd.f32 %v370, %v403
        %v409 = vadd.f32 %v371, %v403
        %v410 = vadd.f32 %v372, %v403
        %v411 = vadd.f32 %v373, %v403
        %v412 = vadd.f32 %v374, %v403
        %v413 = vadd.f32 %v375, %v403
        %v414 = vadd.f32 %v376, %v403
        %v415 = vadd.f32 %v377, %v403
        %v416 = vadd.f32 %v378, %v403
        %v417 = vadd.f32 %v379, %v403
        %v418 = vadd.f32 %v380, %v403
        %v419 = vadd.f32 %v381, %v403
        %v420 = vadd.f32 %v382, %v403
        %v421 = vadd.f32 %v383, %v403
        %v422 = vadd.f32 %v384, %v403
        %v423 = vadd.f32 %v385, %v403
        %v424 = vadd.f32 %v386, %v403
        %v425 = vadd.f32 %v387, %v403
        %v426 = vadd.f32 %v388, %v403
        %v427 = vadd.f32 %v389, %v403
        %v428 = vadd.f32 %v390, %v403
        %v429 = vadd.f32 %v391, %v403
        %v430 = vadd.f32 %v392, %v403
        %v431 = vadd.f32 %v393, %v403
        %v432 = vadd.f32 %v394, %v403
        %v433 = vadd.f32 %v395, %v403
        %v434 = vadd.f32 %v396, %v403
        %v435 = vadd.f32 %v397, %v403
        %v436 = vadd.f32 %v398, %v403
        %v437 = vmax.f32 %v405, 0.0
        %v438 = vmax.f32 %v406, 0.0
        %v439 = vmax.f32 %v407, 0.0
        %v440 = vmax.f32 %v408, 0.0
        %v441 = vmax.f32 %v409, 0.0
        %v442 = vmax.f32 %v410, 0.0
        %v443 = vmax.f32 %v411, 0.0
        %v444 = vmax.f32 %v412, 0.0
        %v445 = vmax.f32 %v413, 0.0
        %v446 = vmax.f32 %v414, 0.0
        %v447 = vmax.f32 %v415, 0.0
        %v448 = vmax.f32 %v416, 0.0
        %v449 = vmax.f32 %v417, 0.0
        %v450 = vmax.f32 %v418, 0.0
        %v451 = vmax.f32 %v419, 0.0
        %v452 = vmax.f32 %v420, 0.0
        %v453 = vmax.f32 %v421, 0.0
        %v454 = vmax.f32 %v422, 0.0
        %v455 = vmax.f32 %v423, 0.0
        %v456 = vmax.f32 %v424, 0.0
        %v457 = vmax.f32 %v425, 0.0
        %v458 = vmax.f32 %v426, 0.0
        %v459 = vmax.f32 %v427, 0.0
        %v460 = vmax.f32 %v428, 0.0
        %v461 = vmax.f32 %v429, 0.0
        %v462 = vmax.f32 %v430, 0.0
        %v463 = vmax.f32 %v431, 0.0
        %v464 = vmax.f32 %v432, 0.0
        %v465 = vmax.f32 %v433, 0.0
        %v466 = vmax.f32 %v434, 0.0
        %v467 = vmax.f32 %v435, 0.0
        %v468 = vmax.f32 %v436, 0.0
        %vm469 = vcmask 31744
        %470 = vst.msk [vmem:[#allocation2] sm:$0xff] %vm469, 0.0
        %471 = vst.msk [vmem:[#allocation2 + $0x8] sm:$0xff] %vm469, 0.0
        %vm472 = vcmask 25600
        %473 = vst.msk [vmem:[#allocation2 + $0x10] sm:$0x3] %vm472, 0.0
        %474 = vst.msk [vmem:[#allocation2 + $0x18] sm:$0xff] %vm469, 0.0
        %475 = vst.msk [vmem:[#allocation2 + $0x20] sm:$0xff] %vm469, 0.0
        %476 = vst.msk [vmem:[#allocation2 + $0x28] sm:$0x3] %vm472, 0.0
        %477 = vst.msk [vmem:[#allocation2 + $0x30] sm:$0xff] %vm469, 0.0
        %478 = vst.msk [vmem:[#allocation2 + $0x38] sm:$0xff] %vm469, 0.0
        %479 = vst.msk [vmem:[#allocation2 + $0x40] sm:$0x3] %vm472, 0.0
        %480 = vst.msk [vmem:[#allocation2 + $0x48] sm:$0xff] %vm469, 0.0
        %481 = vst.msk [vmem:[#allocation2 + $0x50] sm:$0xff] %vm469, 0.0
        %482 = vst.msk [vmem:[#allocation2 + $0x58] sm:$0x3] %vm472, 0.0
        %483 = vst.msk [vmem:[#allocation2 + $0x60] sm:$0xff] %vm469, 0.0
        %484 = vst.msk [vmem:[#allocation2 + $0x68] sm:$0xff] %vm469, 0.0
        %485 = vst.msk [vmem:[#allocation2 + $0x70] sm:$0x3] %vm472, 0.0
        %486 = vst.msk [vmem:[#allocation2 + $0x78] sm:$0xff] %vm469, 0.0
        %487 = vst.msk [vmem:[#allocation2 + $0x80] sm:$0xff] %vm469, 0.0
        %488 = vst.msk [vmem:[#allocation2 + $0x88] sm:$0x3] %vm472, 0.0
        %489 = vst.msk [vmem:[#allocation2 + $0x90] sm:$0xff] %vm469, 0.0
        %490 = vst.msk [vmem:[#allocation2 + $0x98] sm:$0xff] %vm469, 0.0
        %491 = vst.msk [vmem:[#allocation2 + $0xa0] sm:$0x3] %vm472, 0.0
        %492 = vst.msk [vmem:[#allocation2 + $0xa8] sm:$0xff] %vm469, 0.0
        %493 = vst.msk [vmem:[#allocation2 + $0xb0] sm:$0xff] %vm469, 0.0
        %494 = vst.msk [vmem:[#allocation2 + $0xb8] sm:$0x3] %vm472, 0.0
        %495 = vst.msk [vmem:[#allocation2 + $0xc0] sm:$0xff] %vm469, 0.0
        %496 = vst.msk [vmem:[#allocation2 + $0xc8] sm:$0xff] %vm469, 0.0
        %497 = vst.msk [vmem:[#allocation2 + $0xd0] sm:$0x3] %vm472, 0.0
        %498 = vst.msk [vmem:[#allocation2 + $0xd8] sm:$0xff] %vm469, 0.0
        %499 = vst.msk [vmem:[#allocation2 + $0xe0] sm:$0xff] %vm469, 0.0
        %500 = vst.msk [vmem:[#allocation2 + $0xe8] sm:$0x3] %vm472, 0.0
        %501 = vst.msk [vmem:[#allocation2 + $0xf0] sm:$0xff] %vm469, 0.0
        %502 = vst.msk [vmem:[#allocation2 + $0xf8] sm:$0xff] %vm469, 0.0
        %503 = vst.msk [vmem:[#allocation2 + $0x100] sm:$0x3] %vm472, 0.0
        %504 = vst.msk [vmem:[#allocation2 + $0x108] sm:$0xff] %vm469, 0.0
        %505 = vst.msk [vmem:[#allocation2 + $0x110] sm:$0xff] %vm469, 0.0
        %506 = vst.msk [vmem:[#allocation2 + $0x118] sm:$0x3] %vm472, 0.0
        %507 = vst.msk [vmem:[#allocation2 + $0x120] sm:$0xff] %vm469, 0.0
        %508 = vst.msk [vmem:[#allocation2 + $0x128] sm:$0xff] %vm469, 0.0
        %509 = vst.msk [vmem:[#allocation2 + $0x130] sm:$0x3] %vm472, 0.0
        %510 = vst.msk [vmem:[#allocation2 + $0x138] sm:$0xff] %vm469, 0.0
        %511 = vst.msk [vmem:[#allocation2 + $0x140] sm:$0xff] %vm469, 0.0
        %512 = vst.msk [vmem:[#allocation2 + $0x148] sm:$0x3] %vm472, 0.0
        %513 = vst.msk [vmem:[#allocation2 + $0x150] sm:$0xff] %vm469, 0.0
        %514 = vst.msk [vmem:[#allocation2 + $0x158] sm:$0xff] %vm469, 0.0
        %515 = vst.msk [vmem:[#allocation2 + $0x160] sm:$0x3] %vm472, 0.0
        %516 = vst.msk [vmem:[#allocation2 + $0x168] sm:$0xff] %vm469, 0.0
        %517 = vst.msk [vmem:[#allocation2 + $0x170] sm:$0xff] %vm469, 0.0
        %518 = vst.msk [vmem:[#allocation2 + $0x178] sm:$0x3] %vm472, 0.0
        %519 = vst.msk [vmem:[#allocation2 + $0x180] sm:$0xff] %vm469, 0.0
        %520 = vst.msk [vmem:[#allocation2 + $0x188] sm:$0xff] %vm469, 0.0
        %521 = vst.msk [vmem:[#allocation2 + $0x190] sm:$0x3] %vm472, 0.0
        %522 = vst.msk [vmem:[#allocation2 + $0x198] sm:$0xff] %vm469, 0.0
        %523 = vst.msk [vmem:[#allocation2 + $0x1a0] sm:$0xff] %vm469, 0.0
        %524 = vst.msk [vmem:[#allocation2 + $0x1a8] sm:$0x3] %vm472, 0.0
        %s525 = scalar_lea.vmem [#allocation2], 24
        %526 = vst.msk [vmem:[%s525 + $0x1] sm:$0xff] %vm469, %v437
        %527 = vst.msk [vmem:[%s525 + $0x9] sm:$0xff] %vm469, %v438
        %528 = vst.msk [vmem:[%s525 + $0x19] sm:$0xff] %vm469, %v439
        %529 = vst.msk [vmem:[%s525 + $0x21] sm:$0xff] %vm469, %v440
        %530 = vst.msk [vmem:[%s525 + $0x31] sm:$0xff] %vm469, %v441
        %531 = vst.msk [vmem:[%s525 + $0x39] sm:$0xff] %vm469, %v442
        %532 = vst.msk [vmem:[%s525 + $0x49] sm:$0xff] %vm469, %v443
        %533 = vst.msk [vmem:[%s525 + $0x51] sm:$0xff] %vm469, %v444
        %534 = vst.msk [vmem:[%s525 + $0x61] sm:$0xff] %vm469, %v445
        %535 = vst.msk [vmem:[%s525 + $0x69] sm:$0xff] %vm469, %v446
        %536 = vst.msk [vmem:[%s525 + $0x79] sm:$0xff] %vm469, %v447
        %537 = vst.msk [vmem:[%s525 + $0x81] sm:$0xff] %vm469, %v448
        %538 = vst.msk [vmem:[%s525 + $0x91] sm:$0xff] %vm469, %v449
        %539 = vst.msk [vmem:[%s525 + $0x99] sm:$0xff] %vm469, %v450
        %540 = vst.msk [vmem:[%s525 + $0xa9] sm:$0xff] %vm469, %v451
        %541 = vst.msk [vmem:[%s525 + $0xb1] sm:$0xff] %vm469, %v452
        %542 = vst.msk [vmem:[%s525 + $0xc1] sm:$0xff] %vm469, %v453
        %543 = vst.msk [vmem:[%s525 + $0xc9] sm:$0xff] %vm469, %v454
        %544 = vst.msk [vmem:[%s525 + $0xd9] sm:$0xff] %vm469, %v455
        %545 = vst.msk [vmem:[%s525 + $0xe1] sm:$0xff] %vm469, %v456
        %546 = vst.msk [vmem:[%s525 + $0xf1] sm:$0xff] %vm469, %v457
        %547 = vst.msk [vmem:[%s525 + $0xf9] sm:$0xff] %vm469, %v458
        %548 = vst.msk [vmem:[%s525 + $0x109] sm:$0xff] %vm469, %v459
        %549 = vst.msk [vmem:[%s525 + $0x111] sm:$0xff] %vm469, %v460
        %550 = vst.msk [vmem:[%s525 + $0x121] sm:$0xff] %vm469, %v461
        %551 = vst.msk [vmem:[%s525 + $0x129] sm:$0xff] %vm469, %v462
        %552 = vst.msk [vmem:[%s525 + $0x139] sm:$0xff] %vm469, %v463
        %553 = vst.msk [vmem:[%s525 + $0x141] sm:$0xff] %vm469, %v464
        %554 = vst.msk [vmem:[%s525 + $0x151] sm:$0xff] %vm469, %v465
        %555 = vst.msk [vmem:[%s525 + $0x159] sm:$0xff] %vm469, %v466
        %556 = vst.msk [vmem:[%s525 + $0x169] sm:$0xff] %vm469, %v467
        %557 = vst.msk [vmem:[%s525 + $0x171] sm:$0xff] %vm469, %v468
        %558 = vst.msk [vmem:[#allocation3] sm:$0xff] %vm469, 0.0
        %559 = vst.msk [vmem:[#allocation3 + $0x8] sm:$0xff] %vm469, 0.0
        %560 = vst.msk [vmem:[#allocation3 + $0x10] sm:$0xff] %vm469, 0.0
        %561 = vst.msk [vmem:[#allocation3 + $0x18] sm:$0xff] %vm469, 0.0
        %562 = vst.msk [vmem:[#allocation3 + $0x20] sm:$0xff] %vm469, 0.0
        %563 = vst.msk [vmem:[#allocation3 + $0x28] sm:$0xff] %vm469, 0.0
        %564 = vst.msk [vmem:[#allocation3 + $0x30] sm:$0xff] %vm469, 0.0
        %565 = vst.msk [vmem:[#allocation3 + $0x38] sm:$0xff] %vm469, 0.0
        %566 = vst.msk [vmem:[#allocation3 + $0x40] sm:$0xff] %vm469, 0.0
        %567 = vst.msk [vmem:[#allocation3 + $0x48] sm:$0xff] %vm469, 0.0
        %568 = vst.msk [vmem:[#allocation3 + $0x50] sm:$0xff] %vm469, 0.0
        %569 = vst.msk [vmem:[#allocation3 + $0x58] sm:$0xff] %vm469, 0.0
        %570 = vst.msk [vmem:[#allocation3 + $0x60] sm:$0xff] %vm469, 0.0
        %571 = vst.msk [vmem:[#allocation3 + $0x68] sm:$0xff] %vm469, 0.0
        %572 = vst.msk [vmem:[#allocation3 + $0x70] sm:$0xff] %vm469, 0.0
        %573 = vst.msk [vmem:[#allocation3 + $0x78] sm:$0xff] %vm469, 0.0
        %574 = vst.msk [vmem:[#allocation3 + $0x80] sm:$0xff] %vm469, 0.0
        %575 = vst.msk [vmem:[#allocation3 + $0x88] sm:$0xff] %vm469, 0.0
        %576 = vst.msk [vmem:[#allocation3 + $0x90] sm:$0xff] %vm469, 0.0
        %577 = vst.msk [vmem:[#allocation3 + $0x98] sm:$0xff] %vm469, 0.0
        %578 = vst.msk [vmem:[#allocation3 + $0xa0] sm:$0xff] %vm469, 0.0
        %579 = vst.msk [vmem:[#allocation3 + $0xa8] sm:$0xff] %vm469, 0.0
        %580 = vst.msk [vmem:[#allocation3 + $0xb0] sm:$0xff] %vm469, 0.0
        %581 = vst.msk [vmem:[#allocation3 + $0xb8] sm:$0xff] %vm469, 0.0
        %582 = vst.msk [vmem:[#allocation3 + $0xc0] sm:$0xff] %vm469, 0.0
        %583 = vst.msk [vmem:[#allocation3 + $0xc8] sm:$0xff] %vm469, 0.0
        %584 = vst.msk [vmem:[#allocation3 + $0xd0] sm:$0xff] %vm469, 0.0
        %585 = vst.msk [vmem:[#allocation3 + $0xd8] sm:$0xff] %vm469, 0.0
        %586 = vst.msk [vmem:[#allocation3 + $0xe0] sm:$0xff] %vm469, 0.0
        %587 = vst.msk [vmem:[#allocation3 + $0xe8] sm:$0xff] %vm469, 0.0
        %588 = vst.msk [vmem:[#allocation3 + $0xf0] sm:$0xff] %vm469, 0.0
        %589 = vst.msk [vmem:[#allocation3 + $0xf8] sm:$0xff] %vm469, 0.0
        %v590 = vld [vmem:[#allocation2] sm:$0xff]
        %v591 = vld [vmem:[#allocation2 + $0x8] sm:$0xff]
        %v592 = vld [vmem:[#allocation2 + $0x18] sm:$0xff]
        %v593 = vld [vmem:[#allocation2 + $0x20] sm:$0xff]
        %v594 = vld [vmem:[#allocation2 + $0x30] sm:$0xff]
        %v595 = vld [vmem:[#allocation2 + $0x38] sm:$0xff]
        %v596 = vld [vmem:[#allocation2 + $0x48] sm:$0xff]
        %v597 = vld [vmem:[#allocation2 + $0x50] sm:$0xff]
        %v598 = vld [vmem:[#allocation2 + $0x60] sm:$0xff]
        %v599 = vld [vmem:[#allocation2 + $0x68] sm:$0xff]
        %v600 = vld [vmem:[#allocation2 + $0x78] sm:$0xff]
        %v601 = vld [vmem:[#allocation2 + $0x80] sm:$0xff]
        %v602 = vld [vmem:[#allocation2 + $0x90] sm:$0xff]
        %v603 = vld [vmem:[#allocation2 + $0x98] sm:$0xff]
        %v604 = vld [vmem:[#allocation2 + $0xa8] sm:$0xff]
        %v605 = vld [vmem:[#allocation2 + $0xb0] sm:$0xff]
        %v606 = vld [vmem:[#allocation2 + $0xc0] sm:$0xff]
        %v607 = vld [vmem:[#allocation2 + $0xc8] sm:$0xff]
        %v608 = vld [vmem:[#allocation2 + $0xd8] sm:$0xff]
        %v609 = vld [vmem:[#allocation2 + $0xe0] sm:$0xff]
        %v610 = vld [vmem:[#allocation2 + $0xf0] sm:$0xff]
        %v611 = vld [vmem:[#allocation2 + $0xf8] sm:$0xff]
        %v612 = vld [vmem:[#allocation2 + $0x108] sm:$0xff]
        %v613 = vld [vmem:[#allocation2 + $0x110] sm:$0xff]
        %v614 = vld [vmem:[#allocation2 + $0x120] sm:$0xff]
        %v615 = vld [vmem:[#allocation2 + $0x128] sm:$0xff]
        %v616 = vld [vmem:[#allocation2 + $0x138] sm:$0xff]
        %v617 = vld [vmem:[#allocation2 + $0x140] sm:$0xff]
        %v618 = vld [vmem:[#allocation2 + $0x150] sm:$0xff]
        %v619 = vld [vmem:[#allocation2 + $0x158] sm:$0xff]
        %v620 = vld [vmem:[#allocation2 + $0x168] sm:$0xff]
        %v621 = vld [vmem:[#allocation2 + $0x170] sm:$0xff]
        %v622 = vld [vmem:[#allocation2 + $0x1] sm:$0xff]
        %v623 = vld [vmem:[#allocation2 + $0x9] sm:$0xff]
        %v624 = vld [vmem:[#allocation2 + $0x19] sm:$0xff]
        %v625 = vld [vmem:[#allocation2 + $0x21] sm:$0xff]
        %v626 = vld [vmem:[#allocation2 + $0x31] sm:$0xff]
        %v627 = vld [vmem:[#allocation2 + $0x39] sm:$0xff]
        %v628 = vld [vmem:[#allocation2 + $0x49] sm:$0xff]
        %v629 = vld [vmem:[#allocation2 + $0x51] sm:$0xff]
        %v630 = vld [vmem:[#allocation2 + $0x61] sm:$0xff]
        %v631 = vld [vmem:[#allocation2 + $0x69] sm:$0xff]
        %v632 = vld [vmem:[#allocation2 + $0x79] sm:$0xff]
        %v633 = vld [vmem:[#allocation2 + $0x81] sm:$0xff]
        %v634 = vld [vmem:[#allocation2 + $0x91] sm:$0xff]
        %v635 = vld [vmem:[#allocation2 + $0x99] sm:$0xff]
        %v636 = vld [vmem:[#allocation2 + $0xa9] sm:$0xff]
        %v637 = vld [vmem:[#allocation2 + $0xb1] sm:$0xff]
        %v638 = vld [vmem:[#allocation2 + $0xc1] sm:$0xff]
        %v639 = vld [vmem:[#allocation2 + $0xc9] sm:$0xff]
        %v640 = vld [vmem:[#allocation2 + $0xd9] sm:$0xff]
        %v641 = vld [vmem:[#allocation2 + $0xe1] sm:$0xff]
        %v642 = vld [vmem:[#allocation2 + $0xf1] sm:$0xff]
        %v643 = vld [vmem:[#allocation2 + $0xf9] sm:$0xff]
        %v644 = vld [vmem:[#allocation2 + $0x109] sm:$0xff]
        %v645 = vld [vmem:[#allocation2 + $0x111] sm:$0xff]
        %v646 = vld [vmem:[#allocation2 + $0x121] sm:$0xff]
        %v647 = vld [vmem:[#allocation2 + $0x129] sm:$0xff]
        %v648 = vld [vmem:[#allocation2 + $0x139] sm:$0xff]
        %v649 = vld [vmem:[#allocation2 + $0x141] sm:$0xff]
        %v650 = vld [vmem:[#allocation2 + $0x151] sm:$0xff]
        %v651 = vld [vmem:[#allocation2 + $0x159] sm:$0xff]
        %v652 = vld [vmem:[#allocation2 + $0x169] sm:$0xff]
        %v653 = vld [vmem:[#allocation2 + $0x171] sm:$0xff]
        %v654 = vld [vmem:[#allocation2 + $0x2] sm:$0xff]
        %v655 = vld [vmem:[#allocation2 + $0xa] sm:$0xff]
        %v656 = vld [vmem:[#allocation2 + $0x1a] sm:$0xff]
        %v657 = vld [vmem:[#allocation2 + $0x22] sm:$0xff]
        %v658 = vld [vmem:[#allocation2 + $0x32] sm:$0xff]
        %v659 = vld [vmem:[#allocation2 + $0x3a] sm:$0xff]
        %v660 = vld [vmem:[#allocation2 + $0x4a] sm:$0xff]
        %v661 = vld [vmem:[#allocation2 + $0x52] sm:$0xff]
        %v662 = vld [vmem:[#allocation2 + $0x62] sm:$0xff]
        %v663 = vld [vmem:[#allocation2 + $0x6a] sm:$0xff]
        %v664 = vld [vmem:[#allocation2 + $0x7a] sm:$0xff]
        %v665 = vld [vmem:[#allocation2 + $0x82] sm:$0xff]
        %v666 = vld [vmem:[#allocation2 + $0x92] sm:$0xff]
        %v667 = vld [vmem:[#allocation2 + $0x9a] sm:$0xff]
        %v668 = vld [vmem:[#allocation2 + $0xaa] sm:$0xff]
        %v669 = vld [vmem:[#allocation2 + $0xb2] sm:$0xff]
        %v670 = vld [vmem:[#allocation2 + $0xc2] sm:$0xff]
        %v671 = vld [vmem:[#allocation2 + $0xca] sm:$0xff]
        %v672 = vld [vmem:[#allocation2 + $0xda] sm:$0xff]
        %v673 = vld [vmem:[#allocation2 + $0xe2] sm:$0xff]
        %v674 = vld [vmem:[#allocation2 + $0xf2] sm:$0xff]
        %v675 = vld [vmem:[#allocation2 + $0xfa] sm:$0xff]
        %v676 = vld [vmem:[#allocation2 + $0x10a] sm:$0xff]
        %v677 = vld [vmem:[#allocation2 + $0x112] sm:$0xff]
        %v678 = vld [vmem:[#allocation2 + $0x122] sm:$0xff]
        %v679 = vld [vmem:[#allocation2 + $0x12a] sm:$0xff]
        %v680 = vld [vmem:[#allocation2 + $0x13a] sm:$0xff]
        %v681 = vld [vmem:[#allocation2 + $0x142] sm:$0xff]
        %v682 = vld [vmem:[#allocation2 + $0x152] sm:$0xff]
        %v683 = vld [vmem:[#allocation2 + $0x15a] sm:$0xff]
        %v684 = vld [vmem:[#allocation2 + $0x16a] sm:$0xff]
        %v685 = vld [vmem:[#allocation2 + $0x172] sm:$0xff]
        %718 = vrot.lane.b32.xlu0 %v622, 4
        %v719 = vpop.permute.xlu0 %718
        %720 = vrot.lane.b32.xlu0 %v623, 4
        %v721 = vpop.permute.xlu0 %720
        %722 = vrot.lane.b32.xlu0 %v624, 4
        %v723 = vpop.permute.xlu0 %722
        %724 = vrot.lane.b32.xlu0 %v625, 4
        %v725 = vpop.permute.xlu0 %724
        %726 = vrot.lane.b32.xlu0 %v626, 4
        %v727 = vpop.permute.xlu0 %726
        %728 = vrot.lane.b32.xlu0 %v627, 4
        %v729 = vpop.permute.xlu0 %728
        %730 = vrot.lane.b32.xlu0 %v628, 4
        %v731 = vpop.permute.xlu0 %730
        %732 = vrot.lane.b32.xlu0 %v629, 4
        %v733 = vpop.permute.xlu0 %732
        %734 = vrot.lane.b32.xlu0 %v630, 4
        %v735 = vpop.permute.xlu0 %734
        %736 = vrot.lane.b32.xlu0 %v631, 4
        %v737 = vpop.permute.xlu0 %736
        %738 = vrot.lane.b32.xlu0 %v632, 4
        %v739 = vpop.permute.xlu0 %738
        %740 = vrot.lane.b32.xlu0 %v633, 4
        %v741 = vpop.permute.xlu0 %740
        %742 = vrot.lane.b32.xlu0 %v634, 4
        %v743 = vpop.permute.xlu0 %742
        %744 = vrot.lane.b32.xlu0 %v635, 4
        %v745 = vpop.permute.xlu0 %744
        %746 = vrot.lane.b32.xlu0 %v636, 4
        %v747 = vpop.permute.xlu0 %746
        %748 = vrot.lane.b32.xlu0 %v637, 4
        %v749 = vpop.permute.xlu0 %748
        %750 = vrot.lane.b32.xlu0 %v638, 4
        %v751 = vpop.permute.xlu0 %750
        %752 = vrot.lane.b32.xlu0 %v639, 4
        %v753 = vpop.permute.xlu0 %752
        %754 = vrot.lane.b32.xlu0 %v640, 4
        %v755 = vpop.permute.xlu0 %754
        %756 = vrot.lane.b32.xlu0 %v641, 4
        %v757 = vpop.permute.xlu0 %756
        %758 = vrot.lane.b32.xlu0 %v642, 4
        %v759 = vpop.permute.xlu0 %758
        %760 = vrot.lane.b32.xlu0 %v643, 4
        %v761 = vpop.permute.xlu0 %760
        %762 = vrot.lane.b32.xlu0 %v644, 4
        %v763 = vpop.permute.xlu0 %762
        %764 = vrot.lane.b32.xlu0 %v645, 4
        %v765 = vpop.permute.xlu0 %764
        %766 = vrot.lane.b32.xlu0 %v646, 4
        %v767 = vpop.permute.xlu0 %766
        %768 = vrot.lane.b32.xlu0 %v647, 4
        %v769 = vpop.permute.xlu0 %768
        %770 = vrot.lane.b32.xlu0 %v648, 4
        %v771 = vpop.permute.xlu0 %770
        %772 = vrot.lane.b32.xlu0 %v649, 4
        %v773 = vpop.permute.xlu0 %772
        %774 = vrot.lane.b32.xlu0 %v650, 4
        %v775 = vpop.permute.xlu0 %774
        %776 = vrot.lane.b32.xlu0 %v651, 4
        %v777 = vpop.permute.xlu0 %776
        %778 = vrot.lane.b32.xlu0 %v652, 4
        %v779 = vpop.permute.xlu0 %778
        %780 = vrot.lane.b32.xlu0 %v653, 4
        %v781 = vpop.permute.xlu0 %780
        %846 = vrot.lane.b32.xlu0 %v654, 8
        %v847 = vpop.permute.xlu0 %846
        %848 = vrot.lane.b32.xlu0 %v655, 8
        %v849 = vpop.permute.xlu0 %848
        %850 = vrot.lane.b32.xlu0 %v656, 8
        %v851 = vpop.permute.xlu0 %850
        %852 = vrot.lane.b32.xlu0 %v657, 8
        %v853 = vpop.permute.xlu0 %852
        %854 = vrot.lane.b32.xlu0 %v658, 8
        %v855 = vpop.permute.xlu0 %854
        %856 = vrot.lane.b32.xlu0 %v659, 8
        %v857 = vpop.permute.xlu0 %856
        %858 = vrot.lane.b32.xlu0 %v660, 8
        %v859 = vpop.permute.xlu0 %858
        %860 = vrot.lane.b32.xlu0 %v661, 8
        %v861 = vpop.permute.xlu0 %860
        %862 = vrot.lane.b32.xlu0 %v662, 8
        %v863 = vpop.permute.xlu0 %862
        %864 = vrot.lane.b32.xlu0 %v663, 8
        %v865 = vpop.permute.xlu0 %864
        %866 = vrot.lane.b32.xlu0 %v664, 8
        %v867 = vpop.permute.xlu0 %866
        %868 = vrot.lane.b32.xlu0 %v665, 8
        %v869 = vpop.permute.xlu0 %868
        %870 = vrot.lane.b32.xlu0 %v666, 8
        %v871 = vpop.permute.xlu0 %870
        %872 = vrot.lane.b32.xlu0 %v667, 8
        %v873 = vpop.permute.xlu0 %872
        %874 = vrot.lane.b32.xlu0 %v668, 8
        %v875 = vpop.permute.xlu0 %874
        %876 = vrot.lane.b32.xlu0 %v669, 8
        %v877 = vpop.permute.xlu0 %876
        %878 = vrot.lane.b32.xlu0 %v670, 8
        %v879 = vpop.permute.xlu0 %878
        %880 = vrot.lane.b32.xlu0 %v671, 8
        %v881 = vpop.permute.xlu0 %880
        %882 = vrot.lane.b32.xlu0 %v672, 8
        %v883 = vpop.permute.xlu0 %882
        %884 = vrot.lane.b32.xlu0 %v673, 8
        %v885 = vpop.permute.xlu0 %884
        %886 = vrot.lane.b32.xlu0 %v674, 8
        %v887 = vpop.permute.xlu0 %886
        %888 = vrot.lane.b32.xlu0 %v675, 8
        %v889 = vpop.permute.xlu0 %888
        %890 = vrot.lane.b32.xlu0 %v676, 8
        %v891 = vpop.permute.xlu0 %890
        %892 = vrot.lane.b32.xlu0 %v677, 8
        %v893 = vpop.permute.xlu0 %892
        %894 = vrot.lane.b32.xlu0 %v678, 8
        %v895 = vpop.permute.xlu0 %894
        %896 = vrot.lane.b32.xlu0 %v679, 8
        %v897 = vpop.permute.xlu0 %896
        %898 = vrot.lane.b32.xlu0 %v680, 8
        %v899 = vpop.permute.xlu0 %898
        %900 = vrot.lane.b32.xlu0 %v681, 8
        %v901 = vpop.permute.xlu0 %900
        %902 = vrot.lane.b32.xlu0 %v682, 8
        %v903 = vpop.permute.xlu0 %902
        %904 = vrot.lane.b32.xlu0 %v683, 8
        %v905 = vpop.permute.xlu0 %904
        %906 = vrot.lane.b32.xlu0 %v684, 8
        %v907 = vpop.permute.xlu0 %906
        %908 = vrot.lane.b32.xlu0 %v685, 8
        %v909 = vpop.permute.xlu0 %908
        %v942 = vsel %vm469, %v590, %v719
        %v943 = vsel %vm469, %v591, %v721
        %v944 = vsel %vm469, %v592, %v723
        %v945 = vsel %vm469, %v593, %v725
        %v946 = vsel %vm469, %v594, %v727
        %v947 = vsel %vm469, %v595, %v729
        %v948 = vsel %vm469, %v596, %v731
        %v949 = vsel %vm469, %v597, %v733
        %v950 = vsel %vm469, %v598, %v735
        %v951 = vsel %vm469, %v599, %v737
        %v952 = vsel %vm469, %v600, %v739
        %v953 = vsel %vm469, %v601, %v741
        %v954 = vsel %vm469, %v602, %v743
        %v955 = vsel %vm469, %v603, %v745
        %v956 = vsel %vm469, %v604, %v747
        %v957 = vsel %vm469, %v605, %v749
        %v958 = vsel %vm469, %v606, %v751
        %v959 = vsel %vm469, %v607, %v753
        %v960 = vsel %vm469, %v608, %v755
        %v961 = vsel %vm469, %v609, %v757
        %v962 = vsel %vm469, %v610, %v759
        %v963 = vsel %vm469, %v611, %v761
        %v964 = vsel %vm469, %v612, %v763
        %v965 = vsel %vm469, %v613, %v765
        %v966 = vsel %vm469, %v614, %v767
        %v967 = vsel %vm469, %v615, %v769
        %v968 = vsel %vm469, %v616, %v771
        %v969 = vsel %vm469, %v617, %v773
        %v970 = vsel %vm469, %v618, %v775
        %v971 = vsel %vm469, %v619, %v777
        %v972 = vsel %vm469, %v620, %v779
        %v973 = vsel %vm469, %v621, %v781
        %vm974 = vcmask 64512
        %v975 = vsel %vm974, %v942, %v847
        %v976 = vsel %vm974, %v943, %v849
        %v977 = vsel %vm974, %v944, %v851
        %v978 = vsel %vm974, %v945, %v853
        %v979 = vsel %vm974, %v946, %v855
        %v980 = vsel %vm974, %v947, %v857
        %v981 = vsel %vm974, %v948, %v859
        %v982 = vsel %vm974, %v949, %v861
        %v983 = vsel %vm974, %v950, %v863
        %v984 = vsel %vm974, %v951, %v865
        %v985 = vsel %vm974, %v952, %v867
        %v986 = vsel %vm974, %v953, %v869
        %v987 = vsel %vm974, %v954, %v871
        %v988 = vsel %vm974, %v955, %v873
        %v989 = vsel %vm974, %v956, %v875
        %v990 = vsel %vm974, %v957, %v877
        %v991 = vsel %vm974, %v958, %v879
        %v992 = vsel %vm974, %v959, %v881
        %v993 = vsel %vm974, %v960, %v883
        %v994 = vsel %vm974, %v961, %v885
        %v995 = vsel %vm974, %v962, %v887
        %v996 = vsel %vm974, %v963, %v889
        %v997 = vsel %vm974, %v964, %v891
        %v998 = vsel %vm974, %v965, %v893
        %v999 = vsel %vm974, %v966, %v895
        %v1000 = vsel %vm974, %v967, %v897
        %v1001 = vsel %vm974, %v968, %v899
        %v1002 = vsel %vm974, %v969, %v901
        %v1003 = vsel %vm974, %v970, %v903
        %v1004 = vsel %vm974, %v971, %v905
        %v1005 = vsel %vm974, %v972, %v907
        %v1006 = vsel %vm974, %v973, %v909
        %v1007 = vld [vmem:[#allocation3] sm:$0xff]
        %v1008 = vld [vmem:[#allocation3 + $0x8] sm:$0xff]
        %v1009 = vld [vmem:[#allocation3 + $0x10] sm:$0xff]
        %v1010 = vld [vmem:[#allocation3 + $0x18] sm:$0xff]
        %v1011 = vld [vmem:[#allocation3 + $0x20] sm:$0xff]
        %v1012 = vld [vmem:[#allocation3 + $0x28] sm:$0xff]
        %v1013 = vld [vmem:[#allocation3 + $0x30] sm:$0xff]
        %v1014 = vld [vmem:[#allocation3 + $0x38] sm:$0xff]
        %v1015 = vld [vmem:[#allocation3 + $0x40] sm:$0xff]
        %v1016 = vld [vmem:[#allocation3 + $0x48] sm:$0xff]
        %v1017 = vld [vmem:[#allocation3 + $0x50] sm:$0xff]
        %v1018 = vld [vmem:[#allocation3 + $0x58] sm:$0xff]
        %v1019 = vld [vmem:[#allocation3 + $0x60] sm:$0xff]
        %v1020 = vld [vmem:[#allocation3 + $0x68] sm:$0xff]
        %v1021 = vld [vmem:[#allocation3 + $0x70] sm:$0xff]
        %v1022 = vld [vmem:[#allocation3 + $0x78] sm:$0xff]
        %v1023 = vld [vmem:[#allocation3 + $0x80] sm:$0xff]
        %v1024 = vld [vmem:[#allocation3 + $0x88] sm:$0xff]
        %v1025 = vld [vmem:[#allocation3 + $0x90] sm:$0xff]
        %v1026 = vld [vmem:[#allocation3 + $0x98] sm:$0xff]
        %v1027 = vld [vmem:[#allocation3 + $0xa0] sm:$0xff]
        %v1028 = vld [vmem:[#allocation3 + $0xa8] sm:$0xff]
        %v1029 = vld [vmem:[#allocation3 + $0xb0] sm:$0xff]
        %v1030 = vld [vmem:[#allocation3 + $0xb8] sm:$0xff]
        %v1031 = vld [vmem:[#allocation3 + $0xc0] sm:$0xff]
        %v1032 = vld [vmem:[#allocation3 + $0xc8] sm:$0xff]
        %v1033 = vld [vmem:[#allocation3 + $0xd0] sm:$0xff]
        %v1034 = vld [vmem:[#allocation3 + $0xd8] sm:$0xff]
        %v1035 = vld [vmem:[#allocation3 + $0xe0] sm:$0xff]
        %v1036 = vld [vmem:[#allocation3 + $0xe8] sm:$0xff]
        %v1037 = vld [vmem:[#allocation3 + $0xf0] sm:$0xff]
        %v1038 = vld [vmem:[#allocation3 + $0xf8] sm:$0xff]
        %v1039 = vpack.c.bf16 %v976, %v975
        %v1040 = vpack.c.bf16 %v978, %v977
        %v1041 = vpack.c.bf16 %v980, %v979
        %v1042 = vpack.c.bf16 %v982, %v981
        %v1043 = vpack.c.bf16 %v984, %v983
        %v1044 = vpack.c.bf16 %v986, %v985
        %v1045 = vpack.c.bf16 %v988, %v987
        %v1046 = vpack.c.bf16 %v990, %v989
        %v1047 = vpack.c.bf16 %v992, %v991
        %v1048 = vpack.c.bf16 %v994, %v993
        %v1049 = vpack.c.bf16 %v996, %v995
        %v1050 = vpack.c.bf16 %v998, %v997
        %v1051 = vpack.c.bf16 %v1000, %v999
        %v1052 = vpack.c.bf16 %v1002, %v1001
        %v1053 = vpack.c.bf16 %v1004, %v1003
        %v1054 = vpack.c.bf16 %v1006, %v1005
        %v1055 = vld [vmem:[#allocation10] sm:$0xf]
        %v1056 = vld [vmem:[#allocation10 + $0x4] sm:$0x3]
        %v1059 = vunpack.c.l.b16 %v1055
        %v1060 = vunpack.c.l.b16 %v1056
        %v1061 = vpack.c.b16 %v1060, %v1059
        %vm1062 = vcmask 97280
        %v1064 = vsel %vm1062, %v1039, 0
        %v1067 = vsel %vm1062, %v1040, 0
        %v1070 = vsel %vm1062, %v1041, 0
        %v1073 = vsel %vm1062, %v1042, 0
        %v1076 = vsel %vm1062, %v1043, 0
        %v1079 = vsel %vm1062, %v1044, 0
        %v1082 = vsel %vm1062, %v1045, 0
        %v1085 = vsel %vm1062, %v1046, 0
        %v1088 = vsel %vm1062, %v1047, 0
        %v1091 = vsel %vm1062, %v1048, 0
        %v1094 = vsel %vm1062, %v1049, 0
        %v1097 = vsel %vm1062, %v1050, 0
        %v1100 = vsel %vm1062, %v1051, 0
        %v1103 = vsel %vm1062, %v1052, 0
        %v1106 = vsel %vm1062, %v1053, 0
        %v1109 = vsel %vm1062, %v1054, 0
        %vm1111 = vcmask 1045504
        %v1113 = vsel %vm1111, %v1061, 0
        %1115 = vmatprep.subr.bf16.mxu0 0
        %1116 = vmatpush1.bf16.msra.mxu0 %v1113
        %1117 = vmatprep.subr.bf16.mxu0 0
        %1118 = vmatpush1.bf16.msra.mxu0 0
        %1119 = vmatprep.subr.bf16.mxu0 0
        %1120 = vmatpush1.bf16.msra.mxu0 0
        %1121 = vmatprep.subr.bf16.mxu0 0
        %1122 = vmatpush1.bf16.msra.mxu0 0
        %1123 = vmatprep.subr.bf16.mxu0 0
        %1124 = vmatpush1.bf16.msra.mxu0 0
        %1125 = vmatprep.subr.bf16.mxu0 0
        %1126 = vmatpush1.bf16.msra.mxu0 0
        %1127 = vmatprep.subr.bf16.mxu0 0
        %1128 = vmatpush1.bf16.msra.mxu0 0
        %1129 = vmatprep.subr.bf16.mxu0 0
        %1130 = vmatpush1.bf16.msra.mxu0 0
        %1131 = vmatprep.subr.bf16.mxu0 0
        %1132 = vmatpush1.bf16.msra.mxu0 0
        %1133 = vmatprep.subr.bf16.mxu0 0
        %1134 = vmatpush1.bf16.msra.mxu0 0
        %1135 = vmatprep.subr.bf16.mxu0 0
        %1136 = vmatpush1.bf16.msra.mxu0 0
        %1137 = vmatprep.subr.bf16.mxu0 0
        %1138 = vmatpush1.bf16.msra.mxu0 0
        %1139 = vmatprep.subr.bf16.mxu0 0
        %1140 = vmatpush1.bf16.msra.mxu0 0
        %1141 = vmatprep.subr.bf16.mxu0 0
        %1142 = vmatpush1.bf16.msra.mxu0 0
        %1143 = vmatprep.subr.bf16.mxu0 0
        %1144 = vmatpush1.bf16.msra.mxu0 0
        %1145 = vmatprep.subr.bf16.mxu0 0
        %1146 = vmatpush1.bf16.msra.mxu0 0
        %1147 = vmatprep.mubr.bf16.mxu0 0
        %1148 = vmatmul.mubr.bf16.gmra.mrb[0].mxu0 %v1064
        %v1149 = vpop.f32.mrb[0].mxu0
        %v1150 = vadd.f32 0.0, %v1149
        %v1151 = vpop.f32.mrb[0].mxu0
        %v1152 = vpop.f32.mrb[0].mxu0
        %v1153 = vadd.f32 0.0, %v1152
        %v1154 = vpop.f32.mrb[0].mxu0
        %1155 = vmatprep.mubr.bf16.mxu0 0
        %1156 = vmatmul.mubr.bf16.gmra.mrb[0].mxu0 %v1067
        %v1157 = vpop.f32.mrb[0].mxu0
        %v1158 = vadd.f32 0.0, %v1157
        %v1159 = vpop.f32.mrb[0].mxu0
        %v1160 = vpop.f32.mrb[0].mxu0
        %v1161 = vadd.f32 0.0, %v1160
        %v1162 = vpop.f32.mrb[0].mxu0
        %1163 = vmatprep.mubr.bf16.mxu0 0
        %1164 = vmatmul.mubr.bf16.gmra.mrb[0].mxu0 %v1070
        %v1165 = vpop.f32.mrb[0].mxu0
        %v1166 = vadd.f32 0.0, %v1165
        %v1167 = vpop.f32.mrb[0].mxu0
        %v1168 = vpop.f32.mrb[0].mxu0
        %v1169 = vadd.f32 0.0, %v1168
        %v1170 = vpop.f32.mrb[0].mxu0
        %1171 = vmatprep.mubr.bf16.mxu0 0
        %1172 = vmatmul.mubr.bf16.gmra.mrb[0].mxu0 %v1073
        %v1173 = vpop.f32.mrb[0].mxu0
        %v1174 = vadd.f32 0.0, %v1173
        %v1175 = vpop.f32.mrb[0].mxu0
        %v1176 = vpop.f32.mrb[0].mxu0
        %v1177 = vadd.f32 0.0, %v1176
        %v1178 = vpop.f32.mrb[0].mxu0
        %1179 = vmatprep.mubr.bf16.mxu0 0
        %1180 = vmatmul.mubr.bf16.gmra.mrb[0].mxu0 %v1076
        %v1181 = vpop.f32.mrb[0].mxu0
        %v1182 = vadd.f32 0.0, %v1181
        %v1183 = vpop.f32.mrb[0].mxu0
        %v1184 = vpop.f32.mrb[0].mxu0
        %v1185 = vadd.f32 0.0, %v1184
        %v1186 = vpop.f32.mrb[0].mxu0
        %1187 = vmatprep.mubr.bf16.mxu0 0
        %1188 = vmatmul.mubr.bf16.gmra.mrb[0].mxu0 %v1079
        %v1189 = vpop.f32.mrb[0].mxu0
        %v1190 = vadd.f32 0.0, %v1189
        %v1191 = vpop.f32.mrb[0].mxu0
        %v1192 = vpop.f32.mrb[0].mxu0
        %v1193 = vadd.f32 0.0, %v1192
        %v1194 = vpop.f32.mrb[0].mxu0
        %1195 = vmatprep.mubr.bf16.mxu0 0
        %1196 = vmatmul.mubr.bf16.gmra.mrb[0].mxu0 %v1082
        %v1197 = vpop.f32.mrb[0].mxu0
        %v1198 = vadd.f32 0.0, %v1197
        %v1199 = vpop.f32.mrb[0].mxu0
        %v1200 = vpop.f32.mrb[0].mxu0
        %v1201 = vadd.f32 0.0, %v1200
        %v1202 = vpop.f32.mrb[0].mxu0
        %1203 = vmatprep.mubr.bf16.mxu0 0
        %1204 = vmatmul.mubr.bf16.gmra.mrb[0].mxu0 %v1085
        %v1205 = vpop.f32.mrb[0].mxu0
        %v1206 = vadd.f32 0.0, %v1205
        %v1207 = vpop.f32.mrb[0].mxu0
        %v1208 = vpop.f32.mrb[0].mxu0
        %v1209 = vadd.f32 0.0, %v1208
        %v1210 = vpop.f32.mrb[0].mxu0
        %1211 = vmatprep.mubr.bf16.mxu0 0
        %1212 = vmatmul.mubr.bf16.gmra.mrb[0].mxu0 %v1088
        %v1213 = vpop.f32.mrb[0].mxu0
        %v1214 = vadd.f32 0.0, %v1213
        %v1215 = vpop.f32.mrb[0].mxu0
        %v1216 = vpop.f32.mrb[0].mxu0
        %v1217 = vadd.f32 0.0, %v1216
        %v1218 = vpop.f32.mrb[0].mxu0
        %1219 = vmatprep.mubr.bf16.mxu0 0
        %1220 = vmatmul.mubr.bf16.gmra.mrb[0].mxu0 %v1091
        %v1221 = vpop.f32.mrb[0].mxu0
        %v1222 = vadd.f32 0.0, %v1221
        %v1223 = vpop.f32.mrb[0].mxu0
        %v1224 = vpop.f32.mrb[0].mxu0
        %v1225 = vadd.f32 0.0, %v1224
        %v1226 = vpop.f32.mrb[0].mxu0
        %1227 = vmatprep.mubr.bf16.mxu0 0
        %1228 = vmatmul.mubr.bf16.gmra.mrb[0].mxu0 %v1094
        %v1229 = vpop.f32.mrb[0].mxu0
        %v1230 = vadd.f32 0.0, %v1229
        %v1231 = vpop.f32.mrb[0].mxu0
        %v1232 = vpop.f32.mrb[0].mxu0
        %v1233 = vadd.f32 0.0, %v1232
        %v1234 = vpop.f32.mrb[0].mxu0
        %1235 = vmatprep.mubr.bf16.mxu0 0
        %1236 = vmatmul.mubr.bf16.gmra.mrb[0].mxu0 %v1097
        %v1237 = vpop.f32.mrb[0].mxu0
        %v1238 = vadd.f32 0.0, %v1237
        %v1239 = vpop.f32.mrb[0].mxu0
        %v1240 = vpop.f32.mrb[0].mxu0
        %v1241 = vadd.f32 0.0, %v1240
        %v1242 = vpop.f32.mrb[0].mxu0
        %1243 = vmatprep.mubr.bf16.mxu0 0
        %1244 = vmatmul.mubr.bf16.gmra.mrb[0].mxu0 %v1100
        %v1245 = vpop.f32.mrb[0].mxu0
        %v1246 = vadd.f32 0.0, %v1245
        %v1247 = vpop.f32.mrb[0].mxu0
        %v1248 = vpop.f32.mrb[0].mxu0
        %v1249 = vadd.f32 0.0, %v1248
        %v1250 = vpop.f32.mrb[0].mxu0
        %1251 = vmatprep.mubr.bf16.mxu0 0
        %1252 = vmatmul.mubr.bf16.gmra.mrb[0].mxu0 %v1103
        %v1253 = vpop.f32.mrb[0].mxu0
        %v1254 = vadd.f32 0.0, %v1253
        %v1255 = vpop.f32.mrb[0].mxu0
        %v1256 = vpop.f32.mrb[0].mxu0
        %v1257 = vadd.f32 0.0, %v1256
        %v1258 = vpop.f32.mrb[0].mxu0
        %1259 = vmatprep.mubr.bf16.mxu0 0
        %1260 = vmatmul.mubr.bf16.gmra.mrb[0].mxu0 %v1106
        %v1261 = vpop.f32.mrb[0].mxu0
        %v1262 = vadd.f32 0.0, %v1261
        %v1263 = vpop.f32.mrb[0].mxu0
        %v1264 = vpop.f32.mrb[0].mxu0
        %v1265 = vadd.f32 0.0, %v1264
        %v1266 = vpop.f32.mrb[0].mxu0
        %1267 = vmatprep.mubr.bf16.mxu0 0
        %1268 = vmatmul.mubr.bf16.gmra.mrb[0].mxu0 %v1109
        %v1269 = vpop.f32.mrb[0].mxu0
        %v1270 = vadd.f32 0.0, %v1269
        %v1271 = vpop.f32.mrb[0].mxu0
        %v1272 = vpop.f32.mrb[0].mxu0
        %v1273 = vadd.f32 0.0, %v1272
        %v1274 = vpop.f32.mrb[0].mxu0
        %1275 = vdwg.mxu0
        %v1276 = vadd.f32 %v1007, %v1150
        %v1277 = vadd.f32 %v1008, %v1153
        %v1278 = vadd.f32 %v1009, %v1158
        %v1279 = vadd.f32 %v1010, %v1161
        %v1280 = vadd.f32 %v1011, %v1166
        %v1281 = vadd.f32 %v1012, %v1169
        %v1282 = vadd.f32 %v1013, %v1174
        %v1283 = vadd.f32 %v1014, %v1177
        %v1284 = vadd.f32 %v1015, %v1182
        %v1285 = vadd.f32 %v1016, %v1185
        %v1286 = vadd.f32 %v1017, %v1190
        %v1287 = vadd.f32 %v1018, %v1193
        %v1288 = vadd.f32 %v1019, %v1198
        %v1289 = vadd.f32 %v1020, %v1201
        %v1290 = vadd.f32 %v1021, %v1206
        %v1291 = vadd.f32 %v1022, %v1209
        %v1292 = vadd.f32 %v1023, %v1214
        %v1293 = vadd.f32 %v1024, %v1217
        %v1294 = vadd.f32 %v1025, %v1222
        %v1295 = vadd.f32 %v1026, %v1225
        %v1296 = vadd.f32 %v1027, %v1230
        %v1297 = vadd.f32 %v1028, %v1233
        %v1298 = vadd.f32 %v1029, %v1238
        %v1299 = vadd.f32 %v1030, %v1241
        %v1300 = vadd.f32 %v1031, %v1246
        %v1301 = vadd.f32 %v1032, %v1249
        %v1302 = vadd.f32 %v1033, %v1254
        %v1303 = vadd.f32 %v1034, %v1257
        %v1304 = vadd.f32 %v1035, %v1262
        %v1305 = vadd.f32 %v1036, %v1265
        %v1306 = vadd.f32 %v1037, %v1270
        %v1307 = vadd.f32 %v1038, %v1273
        %1308 = vst.msk [vmem:[#allocation3] sm:$0xff] %vm469, %v1276
        %1309 = vst.msk [vmem:[#allocation3 + $0x8] sm:$0xff] %vm469, %v1277
        %1310 = vst.msk [vmem:[#allocation3 + $0x10] sm:$0xff] %vm469, %v1278
        %1311 = vst.msk [vmem:[#allocation3 + $0x18] sm:$0xff] %vm469, %v1279
        %1312 = vst.msk [vmem:[#allocation3 + $0x20] sm:$0xff] %vm469, %v1280
        %1313 = vst.msk [vmem:[#allocation3 + $0x28] sm:$0xff] %vm469, %v1281
        %1314 = vst.msk [vmem:[#allocation3 + $0x30] sm:$0xff] %vm469, %v1282
        %1315 = vst.msk [vmem:[#allocation3 + $0x38] sm:$0xff] %vm469, %v1283
        %1316 = vst.msk [vmem:[#allocation3 + $0x40] sm:$0xff] %vm469, %v1284
        %1317 = vst.msk [vmem:[#allocation3 + $0x48] sm:$0xff] %vm469, %v1285
        %1318 = vst.msk [vmem:[#allocation3 + $0x50] sm:$0xff] %vm469, %v1286
        %1319 = vst.msk [vmem:[#allocation3 + $0x58] sm:$0xff] %vm469, %v1287
        %1320 = vst.msk [vmem:[#allocation3 + $0x60] sm:$0xff] %vm469, %v1288
        %1321 = vst.msk [vmem:[#allocation3 + $0x68] sm:$0xff] %vm469, %v1289
        %1322 = vst.msk [vmem:[#allocation3 + $0x70] sm:$0xff] %vm469, %v1290
        %1323 = vst.msk [vmem:[#allocation3 + $0x78] sm:$0xff] %vm469, %v1291
        %1324 = vst.msk [vmem:[#allocation3 + $0x80] sm:$0xff] %vm469, %v1292
        %1325 = vst.msk [vmem:[#allocation3 + $0x88] sm:$0xff] %vm469, %v1293
        %1326 = vst.msk [vmem:[#allocation3 + $0x90] sm:$0xff] %vm469, %v1294
        %1327 = vst.msk [vmem:[#allocation3 + $0x98] sm:$0xff] %vm469, %v1295
        %1328 = vst.msk [vmem:[#allocation3 + $0xa0] sm:$0xff] %vm469, %v1296
        %1329 = vst.msk [vmem:[#allocation3 + $0xa8] sm:$0xff] %vm469, %v1297
        %1330 = vst.msk [vmem:[#allocation3 + $0xb0] sm:$0xff] %vm469, %v1298
        %1331 = vst.msk [vmem:[#allocation3 + $0xb8] sm:$0xff] %vm469, %v1299
        %1332 = vst.msk [vmem:[#allocation3 + $0xc0] sm:$0xff] %vm469, %v1300
        %1333 = vst.msk [vmem:[#allocation3 + $0xc8] sm:$0xff] %vm469, %v1301
        %1334 = vst.msk [vmem:[#allocation3 + $0xd0] sm:$0xff] %vm469, %v1302
        %1335 = vst.msk [vmem:[#allocation3 + $0xd8] sm:$0xff] %vm469, %v1303
        %1336 = vst.msk [vmem:[#allocation3 + $0xe0] sm:$0xff] %vm469, %v1304
        %1337 = vst.msk [vmem:[#allocation3 + $0xe8] sm:$0xff] %vm469, %v1305
        %1338 = vst.msk [vmem:[#allocation3 + $0xf0] sm:$0xff] %vm469, %v1306
        %1339 = vst.msk [vmem:[#allocation3 + $0xf8] sm:$0xff] %vm469, %v1307
        %v1340 = vld [vmem:[%s525] sm:$0xff]
        %v1341 = vld [vmem:[%s525 + $0x8] sm:$0xff]
        %v1342 = vld [vmem:[%s525 + $0x18] sm:$0xff]
        %v1343 = vld [vmem:[%s525 + $0x20] sm:$0xff]
        %v1344 = vld [vmem:[%s525 + $0x30] sm:$0xff]
        %v1345 = vld [vmem:[%s525 + $0x38] sm:$0xff]
        %v1346 = vld [vmem:[%s525 + $0x48] sm:$0xff]
        %v1347 = vld [vmem:[%s525 + $0x50] sm:$0xff]
        %v1348 = vld [vmem:[%s525 + $0x60] sm:$0xff]
        %v1349 = vld [vmem:[%s525 + $0x68] sm:$0xff]
        %v1350 = vld [vmem:[%s525 + $0x78] sm:$0xff]
        %v1351 = vld [vmem:[%s525 + $0x80] sm:$0xff]
        %v1352 = vld [vmem:[%s525 + $0x90] sm:$0xff]
        %v1353 = vld [vmem:[%s525 + $0x98] sm:$0xff]
        %v1354 = vld [vmem:[%s525 + $0xa8] sm:$0xff]
        %v1355 = vld [vmem:[%s525 + $0xb0] sm:$0xff]
        %v1356 = vld [vmem:[%s525 + $0xc0] sm:$0xff]
        %v1357 = vld [vmem:[%s525 + $0xc8] sm:$0xff]
        %v1358 = vld [vmem:[%s525 + $0xd8] sm:$0xff]
        %v1359 = vld [vmem:[%s525 + $0xe0] sm:$0xff]
        %v1360 = vld [vmem:[%s525 + $0xf0] sm:$0xff]
        %v1361 = vld [vmem:[%s525 + $0xf8] sm:$0xff]
        %v1362 = vld [vmem:[%s525 + $0x108] sm:$0xff]
        %v1363 = vld [vmem:[%s525 + $0x110] sm:$0xff]
        %v1364 = vld [vmem:[%s525 + $0x120] sm:$0xff]
        %v1365 = vld [vmem:[%s525 + $0x128] sm:$0xff]
        %v1366 = vld [vmem:[%s525 + $0x138] sm:$0xff]
        %v1367 = vld [vmem:[%s525 + $0x140] sm:$0xff]
        %v1368 = vld [vmem:[%s525 + $0x150] sm:$0xff]
        %v1369 = vld [vmem:[%s525 + $0x158] sm:$0xff]
        %v1370 = vld [vmem:[%s525 + $0x168] sm:$0xff]
        %v1371 = vld [vmem:[%s525 + $0x170] sm:$0xff]
        %v1372 = vld [vmem:[%s525 + $0x1] sm:$0xff]
        %v1373 = vld [vmem:[%s525 + $0x9] sm:$0xff]
        %v1374 = vld [vmem:[%s525 + $0x19] sm:$0xff]
        %v1375 = vld [vmem:[%s525 + $0x21] sm:$0xff]
        %v1376 = vld [vmem:[%s525 + $0x31] sm:$0xff]
        %v1377 = vld [vmem:[%s525 + $0x39] sm:$0xff]
        %v1378 = vld [vmem:[%s525 + $0x49] sm:$0xff]
        %v1379 = vld [vmem:[%s525 + $0x51] sm:$0xff]
        %v1380 = vld [vmem:[%s525 + $0x61] sm:$0xff]
        %v1381 = vld [vmem:[%s525 + $0x69] sm:$0xff]
        %v1382 = vld [vmem:[%s525 + $0x79] sm:$0xff]
        %v1383 = vld [vmem:[%s525 + $0x81] sm:$0xff]
        %v1384 = vld [vmem:[%s525 + $0x91] sm:$0xff]
        %v1385 = vld [vmem:[%s525 + $0x99] sm:$0xff]
        %v1386 = vld [vmem:[%s525 + $0xa9] sm:$0xff]
        %v1387 = vld [vmem:[%s525 + $0xb1] sm:$0xff]
        %v1388 = vld [vmem:[%s525 + $0xc1] sm:$0xff]
        %v1389 = vld [vmem:[%s525 + $0xc9] sm:$0xff]
        %v1390 = vld [vmem:[%s525 + $0xd9] sm:$0xff]
        %v1391 = vld [vmem:[%s525 + $0xe1] sm:$0xff]
        %v1392 = vld [vmem:[%s525 + $0xf1] sm:$0xff]
        %v1393 = vld [vmem:[%s525 + $0xf9] sm:$0xff]
        %v1394 = vld [vmem:[%s525 + $0x109] sm:$0xff]
        %v1395 = vld [vmem:[%s525 + $0x111] sm:$0xff]
        %v1396 = vld [vmem:[%s525 + $0x121] sm:$0xff]
        %v1397 = vld [vmem:[%s525 + $0x129] sm:$0xff]
        %v1398 = vld [vmem:[%s525 + $0x139] sm:$0xff]
        %v1399 = vld [vmem:[%s525 + $0x141] sm:$0xff]
        %v1400 = vld [vmem:[%s525 + $0x151] sm:$0xff]
        %v1401 = vld [vmem:[%s525 + $0x159] sm:$0xff]
        %v1402 = vld [vmem:[%s525 + $0x169] sm:$0xff]
        %v1403 = vld [vmem:[%s525 + $0x171] sm:$0xff]
        %v1404 = vld [vmem:[%s525 + $0x2] sm:$0xff]
        %v1405 = vld [vmem:[%s525 + $0xa] sm:$0xff]
        %v1406 = vld [vmem:[%s525 + $0x1a] sm:$0xff]
        %v1407 = vld [vmem:[%s525 + $0x22] sm:$0xff]
        %v1408 = vld [vmem:[%s525 + $0x32] sm:$0xff]
        %v1409 = vld [vmem:[%s525 + $0x3a] sm:$0xff]
        %v1410 = vld [vmem:[%s525 + $0x4a] sm:$0xff]
        %v1411 = vld [vmem:[%s525 + $0x52] sm:$0xff]
        %v1412 = vld [vmem:[%s525 + $0x62] sm:$0xff]
        %v1413 = vld [vmem:[%s525 + $0x6a] sm:$0xff]
        %v1414 = vld [vmem:[%s525 + $0x7a] sm:$0xff]
        %v1415 = vld [vmem:[%s525 + $0x82] sm:$0xff]
        %v1416 = vld [vmem:[%s525 + $0x92] sm:$0xff]
        %v1417 = vld [vmem:[%s525 + $0x9a] sm:$0xff]
        %v1418 = vld [vmem:[%s525 + $0xaa] sm:$0xff]
        %v1419 = vld [vmem:[%s525 + $0xb2] sm:$0xff]
        %v1420 = vld [vmem:[%s525 + $0xc2] sm:$0xff]
        %v1421 = vld [vmem:[%s525 + $0xca] sm:$0xff]
        %v1422 = vld [vmem:[%s525 + $0xda] sm:$0xff]
        %v1423 = vld [vmem:[%s525 + $0xe2] sm:$0xff]
        %v1424 = vld [vmem:[%s525 + $0xf2] sm:$0xff]
        %v1425 = vld [vmem:[%s525 + $0xfa] sm:$0xff]
        %v1426 = vld [vmem:[%s525 + $0x10a] sm:$0xff]
        %v1427 = vld [vmem:[%s525 + $0x112] sm:$0xff]
        %v1428 = vld [vmem:[%s525 + $0x122] sm:$0xff]
        %v1429 = vld [vmem:[%s525 + $0x12a] sm:$0xff]
        %v1430 = vld [vmem:[%s525 + $0x13a] sm:$0xff]
        %v1431 = vld [vmem:[%s525 + $0x142] sm:$0xff]
        %v1432 = vld [vmem:[%s525 + $0x152] sm:$0xff]
        %v1433 = vld [vmem:[%s525 + $0x15a] sm:$0xff]
        %v1434 = vld [vmem:[%s525 + $0x16a] sm:$0xff]
        %v1435 = vld [vmem:[%s525 + $0x172] sm:$0xff]
        %1468 = vrot.lane.b32.xlu0 %v1372, 4
        %v1469 = vpop.permute.xlu0 %1468
        %1470 = vrot.lane.b32.xlu0 %v1373, 4
        %v1471 = vpop.permute.xlu0 %1470
        %1472 = vrot.lane.b32.xlu0 %v1374, 4
        %v1473 = vpop.permute.xlu0 %1472
        %1474 = vrot.lane.b32.xlu0 %v1375, 4
        %v1475 = vpop.permute.xlu0 %1474
        %1476 = vrot.lane.b32.xlu0 %v1376, 4
        %v1477 = vpop.permute.xlu0 %1476
        %1478 = vrot.lane.b32.xlu0 %v1377, 4
        %v1479 = vpop.permute.xlu0 %1478
        %1480 = vrot.lane.b32.xlu0 %v1378, 4
        %v1481 = vpop.permute.xlu0 %1480
        %1482 = vrot.lane.b32.xlu0 %v1379, 4
        %v1483 = vpop.permute.xlu0 %1482
        %1484 = vrot.lane.b32.xlu0 %v1380, 4
        %v1485 = vpop.permute.xlu0 %1484
        %1486 = vrot.lane.b32.xlu0 %v1381, 4
        %v1487 = vpop.permute.xlu0 %1486
        %1488 = vrot.lane.b32.xlu0 %v1382, 4
        %v1489 = vpop.permute.xlu0 %1488
        %1490 = vrot.lane.b32.xlu0 %v1383, 4
        %v1491 = vpop.permute.xlu0 %1490
        %1492 = vrot.lane.b32.xlu0 %v1384, 4
        %v1493 = vpop.permute.xlu0 %1492
        %1494 = vrot.lane.b32.xlu0 %v1385, 4
        %v1495 = vpop.permute.xlu0 %1494
        %1496 = vrot.lane.b32.xlu0 %v1386, 4
        %v1497 = vpop.permute.xlu0 %1496
        %1498 = vrot.lane.b32.xlu0 %v1387, 4
        %v1499 = vpop.permute.xlu0 %1498
        %1500 = vrot.lane.b32.xlu0 %v1388, 4
        %v1501 = vpop.permute.xlu0 %1500
        %1502 = vrot.lane.b32.xlu0 %v1389, 4
        %v1503 = vpop.permute.xlu0 %1502
        %1504 = vrot.lane.b32.xlu0 %v1390, 4
        %v1505 = vpop.permute.xlu0 %1504
        %1506 = vrot.lane.b32.xlu0 %v1391, 4
        %v1507 = vpop.permute.xlu0 %1506
        %1508 = vrot.lane.b32.xlu0 %v1392, 4
        %v1509 = vpop.permute.xlu0 %1508
        %1510 = vrot.lane.b32.xlu0 %v1393, 4
        %v1511 = vpop.permute.xlu0 %1510
        %1512 = vrot.lane.b32.xlu0 %v1394, 4
        %v1513 = vpop.permute.xlu0 %1512
        %1514 = vrot.lane.b32.xlu0 %v1395, 4
        %v1515 = vpop.permute.xlu0 %1514
        %1516 = vrot.lane.b32.xlu0 %v1396, 4
        %v1517 = vpop.permute.xlu0 %1516
        %1518 = vrot.lane.b32.xlu0 %v1397, 4
        %v1519 = vpop.permute.xlu0 %1518
        %1520 = vrot.lane.b32.xlu0 %v1398, 4
        %v1521 = vpop.permute.xlu0 %1520
        %1522 = vrot.lane.b32.xlu0 %v1399, 4
        %v1523 = vpop.permute.xlu0 %1522
        %1524 = vrot.lane.b32.xlu0 %v1400, 4
        %v1525 = vpop.permute.xlu0 %1524
        %1526 = vrot.lane.b32.xlu0 %v1401, 4
        %v1527 = vpop.permute.xlu0 %1526
        %1528 = vrot.lane.b32.xlu0 %v1402, 4
        %v1529 = vpop.permute.xlu0 %1528
        %1530 = vrot.lane.b32.xlu0 %v1403, 4
        %v1531 = vpop.permute.xlu0 %1530
        %1596 = vrot.lane.b32.xlu0 %v1404, 8
        %v1597 = vpop.permute.xlu0 %1596
        %1598 = vrot.lane.b32.xlu0 %v1405, 8
        %v1599 = vpop.permute.xlu0 %1598
        %1600 = vrot.lane.b32.xlu0 %v1406, 8
        %v1601 = vpop.permute.xlu0 %1600
        %1602 = vrot.lane.b32.xlu0 %v1407, 8
        %v1603 = vpop.permute.xlu0 %1602
        %1604 = vrot.lane.b32.xlu0 %v1408, 8
        %v1605 = vpop.permute.xlu0 %1604
        %1606 = vrot.lane.b32.xlu0 %v1409, 8
        %v1607 = vpop.permute.xlu0 %1606
        %1608 = vrot.lane.b32.xlu0 %v1410, 8
        %v1609 = vpop.permute.xlu0 %1608
        %1610 = vrot.lane.b32.xlu0 %v1411, 8
        %v1611 = vpop.permute.xlu0 %1610
        %1612 = vrot.lane.b32.xlu0 %v1412, 8
        %v1613 = vpop.permute.xlu0 %1612
        %1614 = vrot.lane.b32.xlu0 %v1413, 8
        %v1615 = vpop.permute.xlu0 %1614
        %1616 = vrot.lane.b32.xlu0 %v1414, 8
        %v1617 = vpop.permute.xlu0 %1616
        %1618 = vrot.lane.b32.xlu0 %v1415, 8
        %v1619 = vpop.permute.xlu0 %1618
        %1620 = vrot.lane.b32.xlu0 %v1416, 8
        %v1621 = vpop.permute.xlu0 %1620
        %1622 = vrot.lane.b32.xlu0 %v1417, 8
        %v1623 = vpop.permute.xlu0 %1622
        %1624 = vrot.lane.b32.xlu0 %v1418, 8
        %v1625 = vpop.permute.xlu0 %1624
        %1626 = vrot.lane.b32.xlu0 %v1419, 8
        %v1627 = vpop.permute.xlu0 %1626
        %1628 = vrot.lane.b32.xlu0 %v1420, 8
        %v1629 = vpop.permute.xlu0 %1628
        %1630 = vrot.lane.b32.xlu0 %v1421, 8
        %v1631 = vpop.permute.xlu0 %1630
        %1632 = vrot.lane.b32.xlu0 %v1422, 8
        %v1633 = vpop.permute.xlu0 %1632
        %1634 = vrot.lane.b32.xlu0 %v1423, 8
        %v1635 = vpop.permute.xlu0 %1634
        %1636 = vrot.lane.b32.xlu0 %v1424, 8
        %v1637 = vpop.permute.xlu0 %1636
        %1638 = vrot.lane.b32.xlu0 %v1425, 8
        %v1639 = vpop.permute.xlu0 %1638
        %1640 = vrot.lane.b32.xlu0 %v1426, 8
        %v1641 = vpop.permute.xlu0 %1640
        %1642 = vrot.lane.b32.xlu0 %v1427, 8
        %v1643 = vpop.permute.xlu0 %1642
        %1644 = vrot.lane.b32.xlu0 %v1428, 8
        %v1645 = vpop.permute.xlu0 %1644
        %1646 = vrot.lane.b32.xlu0 %v1429, 8
        %v1647 = vpop.permute.xlu0 %1646
        %1648 = vrot.lane.b32.xlu0 %v1430, 8
        %v1649 = vpop.permute.xlu0 %1648
        %1650 = vrot.lane.b32.xlu0 %v1431, 8
        %v1651 = vpop.permute.xlu0 %1650
        %1652 = vrot.lane.b32.xlu0 %v1432, 8
        %v1653 = vpop.permute.xlu0 %1652
        %1654 = vrot.lane.b32.xlu0 %v1433, 8
        %v1655 = vpop.permute.xlu0 %1654
        %1656 = vrot.lane.b32.xlu0 %v1434, 8
        %v1657 = vpop.permute.xlu0 %1656
        %1658 = vrot.lane.b32.xlu0 %v1435, 8
        %v1659 = vpop.permute.xlu0 %1658
        %v1692 = vsel %vm469, %v1340, %v1469
        %v1693 = vsel %vm469, %v1341, %v1471
        %v1694 = vsel %vm469, %v1342, %v1473
        %v1695 = vsel %vm469, %v1343, %v1475
        %v1696 = vsel %vm469, %v1344, %v1477
        %v1697 = vsel %vm469, %v1345, %v1479
        %v1698 = vsel %vm469, %v1346, %v1481
        %v1699 = vsel %vm469, %v1347, %v1483
        %v1700 = vsel %vm469, %v1348, %v1485
        %v1701 = vsel %vm469, %v1349, %v1487
        %v1702 = vsel %vm469, %v1350, %v1489
        %v1703 = vsel %vm469, %v1351, %v1491
        %v1704 = vsel %vm469, %v1352, %v1493
        %v1705 = vsel %vm469, %v1353, %v1495
        %v1706 = vsel %vm469, %v1354, %v1497
        %v1707 = vsel %vm469, %v1355, %v1499
        %v1708 = vsel %vm469, %v1356, %v1501
        %v1709 = vsel %vm469, %v1357, %v1503
        %v1710 = vsel %vm469, %v1358, %v1505
        %v1711 = vsel %vm469, %v1359, %v1507
        %v1712 = vsel %vm469, %v1360, %v1509
        %v1713 = vsel %vm469, %v1361, %v1511
        %v1714 = vsel %vm469, %v1362, %v1513
        %v1715 = vsel %vm469, %v1363, %v1515
        %v1716 = vsel %vm469, %v1364, %v1517
        %v1717 = vsel %vm469, %v1365, %v1519
        %v1718 = vsel %vm469, %v1366, %v1521
        %v1719 = vsel %vm469, %v1367, %v1523
        %v1720 = vsel %vm469, %v1368, %v1525
        %v1721 = vsel %vm469, %v1369, %v1527
        %v1722 = vsel %vm469, %v1370, %v1529
        %v1723 = vsel %vm469, %v1371, %v1531
        %v1724 = vsel %vm974, %v1692, %v1597
        %v1725 = vsel %vm974, %v1693, %v1599
        %v1726 = vsel %vm974, %v1694, %v1601
        %v1727 = vsel %vm974, %v1695, %v1603
        %v1728 = vsel %vm974, %v1696, %v1605
        %v1729 = vsel %vm974, %v1697, %v1607
        %v1730 = vsel %vm974, %v1698, %v1609
        %v1731 = vsel %vm974, %v1699, %v1611
        %v1732 = vsel %vm974, %v1700, %v1613
        %v1733 = vsel %vm974, %v1701, %v1615
        %v1734 = vsel %vm974, %v1702, %v1617
        %v1735 = vsel %vm974, %v1703, %v1619
        %v1736 = vsel %vm974, %v1704, %v1621
        %v1737 = vsel %vm974, %v1705, %v1623
        %v1738 = vsel %vm974, %v1706, %v1625
        %v1739 = vsel %vm974, %v1707, %v1627
        %v1740 = vsel %vm974, %v1708, %v1629
        %v1741 = vsel %vm974, %v1709, %v1631
        %v1742 = vsel %vm974, %v1710, %v1633
        %v1743 = vsel %vm974, %v1711, %v1635
        %v1744 = vsel %vm974, %v1712, %v1637
        %v1745 = vsel %vm974, %v1713, %v1639
        %v1746 = vsel %vm974, %v1714, %v1641
        %v1747 = vsel %vm974, %v1715, %v1643
        %v1748 = vsel %vm974, %v1716, %v1645
        %v1749 = vsel %vm974, %v1717, %v1647
        %v1750 = vsel %vm974, %v1718, %v1649
        %v1751 = vsel %vm974, %v1719, %v1651
        %v1752 = vsel %vm974, %v1720, %v1653
        %v1753 = vsel %vm974, %v1721, %v1655
        %v1754 = vsel %vm974, %v1722, %v1657
        %v1755 = vsel %vm974, %v1723, %v1659
        %v1756 = vld [vmem:[#allocation3] sm:$0xff]
        %v1757 = vld [vmem:[#allocation3 + $0x8] sm:$0xff]
        %v1758 = vld [vmem:[#allocation3 + $0x10] sm:$0xff]
        %v1759 = vld [vmem:[#allocation3 + $0x18] sm:$0xff]
        %v1760 = vld [vmem:[#allocation3 + $0x20] sm:$0xff]
        %v1761 = vld [vmem:[#allocation3 + $0x28] sm:$0xff]
        %v1762 = vld [vmem:[#allocation3 + $0x30] sm:$0xff]
        %v1763 = vld [vmem:[#allocation3 + $0x38] sm:$0xff]
        %v1764 = vld [vmem:[#allocation3 + $0x40] sm:$0xff]
        %v1765 = vld [vmem:[#allocation3 + $0x48] sm:$0xff]
        %v1766 = vld [vmem:[#allocation3 + $0x50] sm:$0xff]
        %v1767 = vld [vmem:[#allocation3 + $0x58] sm:$0xff]
        %v1768 = vld [vmem:[#allocation3 + $0x60] sm:$0xff]
        %v1769 = vld [vmem:[#allocation3 + $0x68] sm:$0xff]
        %v1770 = vld [vmem:[#allocation3 + $0x70] sm:$0xff]
        %v1771 = vld [vmem:[#allocation3 + $0x78] sm:$0xff]
        %v1772 = vld [vmem:[#allocation3 + $0x80] sm:$0xff]
        %v1773 = vld [vmem:[#allocation3 + $0x88] sm:$0xff]
        %v1774 = vld [vmem:[#allocation3 + $0x90] sm:$0xff]
        %v1775 = vld [vmem:[#allocation3 + $0x98] sm:$0xff]
        %v1776 = vld [vmem:[#allocation3 + $0xa0] sm:$0xff]
        %v1777 = vld [vmem:[#allocation3 + $0xa8] sm:$0xff]
        %v1778 = vld [vmem:[#allocation3 + $0xb0] sm:$0xff]
        %v1779 = vld [vmem:[#allocation3 + $0xb8] sm:$0xff]
        %v1780 = vld [vmem:[#allocation3 + $0xc0] sm:$0xff]
        %v1781 = vld [vmem:[#allocation3 + $0xc8] sm:$0xff]
        %v1782 = vld [vmem:[#allocation3 + $0xd0] sm:$0xff]
        %v1783 = vld [vmem:[#allocation3 + $0xd8] sm:$0xff]
        %v1784 = vld [vmem:[#allocation3 + $0xe0] sm:$0xff]
        %v1785 = vld [vmem:[#allocation3 + $0xe8] sm:$0xff]
        %v1786 = vld [vmem:[#allocation3 + $0xf0] sm:$0xff]
        %v1787 = vld [vmem:[#allocation3 + $0xf8] sm:$0xff]
        %v1788 = vpack.c.bf16 %v1725, %v1724
        %v1789 = vpack.c.bf16 %v1727, %v1726
        %v1790 = vpack.c.bf16 %v1729, %v1728
        %v1791 = vpack.c.bf16 %v1731, %v1730
        %v1792 = vpack.c.bf16 %v1733, %v1732
        %v1793 = vpack.c.bf16 %v1735, %v1734
        %v1794 = vpack.c.bf16 %v1737, %v1736
        %v1795 = vpack.c.bf16 %v1739, %v1738
        %v1796 = vpack.c.bf16 %v1741, %v1740
        %v1797 = vpack.c.bf16 %v1743, %v1742
        %v1798 = vpack.c.bf16 %v1745, %v1744
        %v1799 = vpack.c.bf16 %v1747, %v1746
        %v1800 = vpack.c.bf16 %v1749, %v1748
        %v1801 = vpack.c.bf16 %v1751, %v1750
        %v1802 = vpack.c.bf16 %v1753, %v1752
        %v1803 = vpack.c.bf16 %v1755, %v1754
        %s1804 = scalar_lea.vmem [#allocation10], 8
        %v1805 = vld [vmem:[%s1804] sm:$0xf]
        %v1806 = vld [vmem:[%s1804 + $0x4] sm:$0x3]
        %v1809 = vunpack.c.l.b16 %v1805
        %v1810 = vunpack.c.l.b16 %v1806
        %v1811 = vpack.c.b16 %v1810, %v1809
        %v1813 = vsel %vm1062, %v1788, 0
        %v1816 = vsel %vm1062, %v1789, 0
        %v1819 = vsel %vm1062, %v1790, 0
        %v1822 = vsel %vm1062, %v1791, 0
        %v1825 = vsel %vm1062, %v1792, 0
        %v1828 = vsel %vm1062, %v1793, 0
        %v1831 = vsel %vm1062, %v1794, 0
        %v1834 = vsel %vm1062, %v1795, 0
        %v1837 = vsel %vm1062, %v1796, 0
        %v1840 = vsel %vm1062, %v1797, 0
        %v1843 = vsel %vm1062, %v1798, 0
        %v1846 = vsel %vm1062, %v1799, 0
        %v1849 = vsel %vm1062, %v1800, 0
        %v1852 = vsel %vm1062, %v1801, 0
        %v1855 = vsel %vm1062, %v1802, 0
        %v1858 = vsel %vm1062, %v1803, 0
        %v1861 = vsel %vm1111, %v1811, 0
        %1863 = vmatprep.subr.bf16.mxu0 0
        %1864 = vmatpush1.bf16.msra.mxu0 %v1861
        %1865 = vmatprep.subr.bf16.mxu0 0
        %1866 = vmatpush1.bf16.msra.mxu0 0
        %1867 = vmatprep.subr.bf16.mxu0 0
        %1868 = vmatpush1.bf16.msra.mxu0 0
        %1869 = vmatprep.subr.bf16.mxu0 0
        %1870 = vmatpush1.bf16.msra.mxu0 0
        %1871 = vmatprep.subr.bf16.mxu0 0
        %1872 = vmatpush1.bf16.msra.mxu0 0
        %1873 = vmatprep.subr.bf16.mxu0 0
        %1874 = vmatpush1.bf16.msra.mxu0 0
        %1875 = vmatprep.subr.bf16.mxu0 0
        %1876 = vmatpush1.bf16.msra.mxu0 0
        %1877 = vmatprep.subr.bf16.mxu0 0
        %1878 = vmatpush1.bf16.msra.mxu0 0
        %1879 = vmatprep.subr.bf16.mxu0 0
        %1880 = vmatpush1.bf16.msra.mxu0 0
        %1881 = vmatprep.subr.bf16.mxu0 0
        %1882 = vmatpush1.bf16.msra.mxu0 0
        %1883 = vmatprep.subr.bf16.mxu0 0
        %1884 = vmatpush1.bf16.msra.mxu0 0
        %1885 = vmatprep.subr.bf16.mxu0 0
        %1886 = vmatpush1.bf16.msra.mxu0 0
        %1887 = vmatprep.subr.bf16.mxu0 0
        %1888 = vmatpush1.bf16.msra.mxu0 0
        %1889 = vmatprep.subr.bf16.mxu0 0
        %1890 = vmatpush1.bf16.msra.mxu0 0
        %1891 = vmatprep.subr.bf16.mxu0 0
        %1892 = vmatpush1.bf16.msra.mxu0 0
        %1893 = vmatprep.subr.bf16.mxu0 0
        %1894 = vmatpush1.bf16.msra.mxu0 0
        %1895 = vmatprep.mubr.bf16.mxu0 0
        %1896 = vmatmul.mubr.bf16.gmra.mrb[0].mxu0 %v1813
        %v1897 = vpop.f32.mrb[0].mxu0
        %v1898 = vadd.f32 0.0, %v1897
        %v1899 = vpop.f32.mrb[0].mxu0
        %v1900 = vpop.f32.mrb[0].mxu0
        %v1901 = vadd.f32 0.0, %v1900
        %v1902 = vpop.f32.mrb[0].mxu0
        %1903 = vmatprep.mubr.bf16.mxu0 0
        %1904 = vmatmul.mubr.bf16.gmra.mrb[0].mxu0 %v1816
        %v1905 = vpop.f32.mrb[0].mxu0
        %v1906 = vadd.f32 0.0, %v1905
        %v1907 = vpop.f32.mrb[0].mxu0
        %v1908 = vpop.f32.mrb[0].mxu0
        %v1909 = vadd.f32 0.0, %v1908
        %v1910 = vpop.f32.mrb[0].mxu0
        %1911 = vmatprep.mubr.bf16.mxu0 0
        %1912 = vmatmul.mubr.bf16.gmra.mrb[0].mxu0 %v1819
        %v1913 = vpop.f32.mrb[0].mxu0
        %v1914 = vadd.f32 0.0, %v1913
        %v1915 = vpop.f32.mrb[0].mxu0
        %v1916 = vpop.f32.mrb[0].mxu0
        %v1917 = vadd.f32 0.0, %v1916
        %v1918 = vpop.f32.mrb[0].mxu0
        %1919 = vmatprep.mubr.bf16.mxu0 0
        %1920 = vmatmul.mubr.bf16.gmra.mrb[0].mxu0 %v1822
        %v1921 = vpop.f32.mrb[0].mxu0
        %v1922 = vadd.f32 0.0, %v1921
        %v1923 = vpop.f32.mrb[0].mxu0
        %v1924 = vpop.f32.mrb[0].mxu0
        %v1925 = vadd.f32 0.0, %v1924
        %v1926 = vpop.f32.mrb[0].mxu0
        %1927 = vmatprep.mubr.bf16.mxu0 0
        %1928 = vmatmul.mubr.bf16.gmra.mrb[0].mxu0 %v1825
        %v1929 = vpop.f32.mrb[0].mxu0
        %v1930 = vadd.f32 0.0, %v1929
        %v1931 = vpop.f32.mrb[0].mxu0
        %v1932 = vpop.f32.mrb[0].mxu0
        %v1933 = vadd.f32 0.0, %v1932
        %v1934 = vpop.f32.mrb[0].mxu0
        %1935 = vmatprep.mubr.bf16.mxu0 0
        %1936 = vmatmul.mubr.bf16.gmra.mrb[0].mxu0 %v1828
        %v1937 = vpop.f32.mrb[0].mxu0
        %v1938 = vadd.f32 0.0, %v1937
        %v1939 = vpop.f32.mrb[0].mxu0
        %v1940 = vpop.f32.mrb[0].mxu0
        %v1941 = vadd.f32 0.0, %v1940
        %v1942 = vpop.f32.mrb[0].mxu0
        %1943 = vmatprep.mubr.bf16.mxu0 0
        %1944 = vmatmul.mubr.bf16.gmra.mrb[0].mxu0 %v1831
        %v1945 = vpop.f32.mrb[0].mxu0
        %v1946 = vadd.f32 0.0, %v1945
        %v1947 = vpop.f32.mrb[0].mxu0
        %v1948 = vpop.f32.mrb[0].mxu0
        %v1949 = vadd.f32 0.0, %v1948
        %v1950 = vpop.f32.mrb[0].mxu0
        %1951 = vmatprep.mubr.bf16.mxu0 0
        %1952 = vmatmul.mubr.bf16.gmra.mrb[0].mxu0 %v1834
        %v1953 = vpop.f32.mrb[0].mxu0
        %v1954 = vadd.f32 0.0, %v1953
        %v1955 = vpop.f32.mrb[0].mxu0
        %v1956 = vpop.f32.mrb[0].mxu0
        %v1957 = vadd.f32 0.0, %v1956
        %v1958 = vpop.f32.mrb[0].mxu0
        %1959 = vmatprep.mubr.bf16.mxu0 0
        %1960 = vmatmul.mubr.bf16.gmra.mrb[0].mxu0 %v1837
        %v1961 = vpop.f32.mrb[0].mxu0
        %v1962 = vadd.f32 0.0, %v1961
        %v1963 = vpop.f32.mrb[0].mxu0
        %v1964 = vpop.f32.mrb[0].mxu0
        %v1965 = vadd.f32 0.0, %v1964
        %v1966 = vpop.f32.mrb[0].mxu0
        %1967 = vmatprep.mubr.bf16.mxu0 0
        %1968 = vmatmul.mubr.bf16.gmra.mrb[0].mxu0 %v1840
        %v1969 = vpop.f32.mrb[0].mxu0
        %v1970 = vadd.f32 0.0, %v1969
        %v1971 = vpop.f32.mrb[0].mxu0
        %v1972 = vpop.f32.mrb[0].mxu0
        %v1973 = vadd.f32 0.0, %v1972
        %v1974 = vpop.f32.mrb[0].mxu0
        %1975 = vmatprep.mubr.bf16.mxu0 0
        %1976 = vmatmul.mubr.bf16.gmra.mrb[0].mxu0 %v1843
        %v1977 = vpop.f32.mrb[0].mxu0
        %v1978 = vadd.f32 0.0, %v1977
        %v1979 = vpop.f32.mrb[0].mxu0
        %v1980 = vpop.f32.mrb[0].mxu0
        %v1981 = vadd.f32 0.0, %v1980
        %v1982 = vpop.f32.mrb[0].mxu0
        %1983 = vmatprep.mubr.bf16.mxu0 0
        %1984 = vmatmul.mubr.bf16.gmra.mrb[0].mxu0 %v1846
        %v1985 = vpop.f32.mrb[0].mxu0
        %v1986 = vadd.f32 0.0, %v1985
        %v1987 = vpop.f32.mrb[0].mxu0
        %v1988 = vpop.f32.mrb[0].mxu0
        %v1989 = vadd.f32 0.0, %v1988
        %v1990 = vpop.f32.mrb[0].mxu0
        %1991 = vmatprep.mubr.bf16.mxu0 0
        %1992 = vmatmul.mubr.bf16.gmra.mrb[0].mxu0 %v1849
        %v1993 = vpop.f32.mrb[0].mxu0
        %v1994 = vadd.f32 0.0, %v1993
        %v1995 = vpop.f32.mrb[0].mxu0
        %v1996 = vpop.f32.mrb[0].mxu0
        %v1997 = vadd.f32 0.0, %v1996
        %v1998 = vpop.f32.mrb[0].mxu0
        %1999 = vmatprep.mubr.bf16.mxu0 0
        %2000 = vmatmul.mubr.bf16.gmra.mrb[0].mxu0 %v1852
        %v2001 = vpop.f32.mrb[0].mxu0
        %v2002 = vadd.f32 0.0, %v2001
        %v2003 = vpop.f32.mrb[0].mxu0
        %v2004 = vpop.f32.mrb[0].mxu0
        %v2005 = vadd.f32 0.0, %v2004
        %v2006 = vpop.f32.mrb[0].mxu0
        %2007 = vmatprep.mubr.bf16.mxu0 0
        %2008 = vmatmul.mubr.bf16.gmra.mrb[0].mxu0 %v1855
        %v2009 = vpop.f32.mrb[0].mxu0
        %v2010 = vadd.f32 0.0, %v2009
        %v2011 = vpop.f32.mrb[0].mxu0
        %v2012 = vpop.f32.mrb[0].mxu0
        %v2013 = vadd.f32 0.0, %v2012
        %v2014 = vpop.f32.mrb[0].mxu0
        %2015 = vmatprep.mubr.bf16.mxu0 0
        %2016 = vmatmul.mubr.bf16.gmra.mrb[0].mxu0 %v1858
        %v2017 = vpop.f32.mrb[0].mxu0
        %v2018 = vadd.f32 0.0, %v2017
        %v2019 = vpop.f32.mrb[0].mxu0
        %v2020 = vpop.f32.mrb[0].mxu0
        %v2021 = vadd.f32 0.0, %v2020
        %v2022 = vpop.f32.mrb[0].mxu0
        %2023 = vdwg.mxu0
        %v2024 = vadd.f32 %v1756, %v1898
        %v2025 = vadd.f32 %v1757, %v1901
        %v2026 = vadd.f32 %v1758, %v1906
        %v2027 = vadd.f32 %v1759, %v1909
        %v2028 = vadd.f32 %v1760, %v1914
        %v2029 = vadd.f32 %v1761, %v1917
        %v2030 = vadd.f32 %v1762, %v1922
        %v2031 = vadd.f32 %v1763, %v1925
        %v2032 = vadd.f32 %v1764, %v1930
        %v2033 = vadd.f32 %v1765, %v1933
        %v2034 = vadd.f32 %v1766, %v1938
        %v2035 = vadd.f32 %v1767, %v1941
        %v2036 = vadd.f32 %v1768, %v1946
        %v2037 = vadd.f32 %v1769, %v1949
        %v2038 = vadd.f32 %v1770, %v1954
        %v2039 = vadd.f32 %v1771, %v1957
        %v2040 = vadd.f32 %v1772, %v1962
        %v2041 = vadd.f32 %v1773, %v1965
        %v2042 = vadd.f32 %v1774, %v1970
        %v2043 = vadd.f32 %v1775, %v1973
        %v2044 = vadd.f32 %v1776, %v1978
        %v2045 = vadd.f32 %v1777, %v1981
        %v2046 = vadd.f32 %v1778, %v1986
        %v2047 = vadd.f32 %v1779, %v1989
        %v2048 = vadd.f32 %v1780, %v1994
        %v2049 = vadd.f32 %v1781, %v1997
        %v2050 = vadd.f32 %v1782, %v2002
        %v2051 = vadd.f32 %v1783, %v2005
        %v2052 = vadd.f32 %v1784, %v2010
        %v2053 = vadd.f32 %v1785, %v2013
        %v2054 = vadd.f32 %v1786, %v2018
        %v2055 = vadd.f32 %v1787, %v2021
        %2056 = vst.msk [vmem:[#allocation3] sm:$0xff] %vm469, %v2024
        %2057 = vst.msk [vmem:[#allocation3 + $0x8] sm:$0xff] %vm469, %v2025
        %2058 = vst.msk [vmem:[#allocation3 + $0x10] sm:$0xff] %vm469, %v2026
        %2059 = vst.msk [vmem:[#allocation3 + $0x18] sm:$0xff] %vm469, %v2027
        %2060 = vst.msk [vmem:[#allocation3 + $0x20] sm:$0xff] %vm469, %v2028
        %2061 = vst.msk [vmem:[#allocation3 + $0x28] sm:$0xff] %vm469, %v2029
        %2062 = vst.msk [vmem:[#allocation3 + $0x30] sm:$0xff] %vm469, %v2030
        %2063 = vst.msk [vmem:[#allocation3 + $0x38] sm:$0xff] %vm469, %v2031
        %2064 = vst.msk [vmem:[#allocation3 + $0x40] sm:$0xff] %vm469, %v2032
        %2065 = vst.msk [vmem:[#allocation3 + $0x48] sm:$0xff] %vm469, %v2033
        %2066 = vst.msk [vmem:[#allocation3 + $0x50] sm:$0xff] %vm469, %v2034
        %2067 = vst.msk [vmem:[#allocation3 + $0x58] sm:$0xff] %vm469, %v2035
        %2068 = vst.msk [vmem:[#allocation3 + $0x60] sm:$0xff] %vm469, %v2036
        %2069 = vst.msk [vmem:[#allocation3 + $0x68] sm:$0xff] %vm469, %v2037
        %2070 = vst.msk [vmem:[#allocation3 + $0x70] sm:$0xff] %vm469, %v2038
        %2071 = vst.msk [vmem:[#allocation3 + $0x78] sm:$0xff] %vm469, %v2039
        %2072 = vst.msk [vmem:[#allocation3 + $0x80] sm:$0xff] %vm469, %v2040
        %2073 = vst.msk [vmem:[#allocation3 + $0x88] sm:$0xff] %vm469, %v2041
        %2074 = vst.msk [vmem:[#allocation3 + $0x90] sm:$0xff] %vm469, %v2042
        %2075 = vst.msk [vmem:[#allocation3 + $0x98] sm:$0xff] %vm469, %v2043
        %2076 = vst.msk [vmem:[#allocation3 + $0xa0] sm:$0xff] %vm469, %v2044
        %2077 = vst.msk [vmem:[#allocation3 + $0xa8] sm:$0xff] %vm469, %v2045
        %2078 = vst.msk [vmem:[#allocation3 + $0xb0] sm:$0xff] %vm469, %v2046
        %2079 = vst.msk [vmem:[#allocation3 + $0xb8] sm:$0xff] %vm469, %v2047
        %2080 = vst.msk [vmem:[#allocation3 + $0xc0] sm:$0xff] %vm469, %v2048
        %2081 = vst.msk [vmem:[#allocation3 + $0xc8] sm:$0xff] %vm469, %v2049
        %2082 = vst.msk [vmem:[#allocation3 + $0xd0] sm:$0xff] %vm469, %v2050
        %2083 = vst.msk [vmem:[#allocation3 + $0xd8] sm:$0xff] %vm469, %v2051
        %2084 = vst.msk [vmem:[#allocation3 + $0xe0] sm:$0xff] %vm469, %v2052
        %2085 = vst.msk [vmem:[#allocation3 + $0xe8] sm:$0xff] %vm469, %v2053
        %2086 = vst.msk [vmem:[#allocation3 + $0xf0] sm:$0xff] %vm469, %v2054
        %2087 = vst.msk [vmem:[#allocation3 + $0xf8] sm:$0xff] %vm469, %v2055
        %s2088 = scalar_lea.vmem [#allocation2], 48
        %v2089 = vld [vmem:[%s2088] sm:$0xff]
        %v2090 = vld [vmem:[%s2088 + $0x8] sm:$0xff]
        %v2091 = vld [vmem:[%s2088 + $0x18] sm:$0xff]
        %v2092 = vld [vmem:[%s2088 + $0x20] sm:$0xff]
        %v2093 = vld [vmem:[%s2088 + $0x30] sm:$0xff]
        %v2094 = vld [vmem:[%s2088 + $0x38] sm:$0xff]
        %v2095 = vld [vmem:[%s2088 + $0x48] sm:$0xff]
        %v2096 = vld [vmem:[%s2088 + $0x50] sm:$0xff]
        %v2097 = vld [vmem:[%s2088 + $0x60] sm:$0xff]
        %v2098 = vld [vmem:[%s2088 + $0x68] sm:$0xff]
        %v2099 = vld [vmem:[%s2088 + $0x78] sm:$0xff]
        %v2100 = vld [vmem:[%s2088 + $0x80] sm:$0xff]
        %v2101 = vld [vmem:[%s2088 + $0x90] sm:$0xff]
        %v2102 = vld [vmem:[%s2088 + $0x98] sm:$0xff]
        %v2103 = vld [vmem:[%s2088 + $0xa8] sm:$0xff]
        %v2104 = vld [vmem:[%s2088 + $0xb0] sm:$0xff]
        %v2105 = vld [vmem:[%s2088 + $0xc0] sm:$0xff]
        %v2106 = vld [vmem:[%s2088 + $0xc8] sm:$0xff]
        %v2107 = vld [vmem:[%s2088 + $0xd8] sm:$0xff]
        %v2108 = vld [vmem:[%s2088 + $0xe0] sm:$0xff]
        %v2109 = vld [vmem:[%s2088 + $0xf0] sm:$0xff]
        %v2110 = vld [vmem:[%s2088 + $0xf8] sm:$0xff]
        %v2111 = vld [vmem:[%s2088 + $0x108] sm:$0xff]
        %v2112 = vld [vmem:[%s2088 + $0x110] sm:$0xff]
        %v2113 = vld [vmem:[%s2088 + $0x120] sm:$0xff]
        %v2114 = vld [vmem:[%s2088 + $0x128] sm:$0xff]
        %v2115 = vld [vmem:[%s2088 + $0x138] sm:$0xff]
        %v2116 = vld [vmem:[%s2088 + $0x140] sm:$0xff]
        %v2117 = vld [vmem:[%s2088 + $0x150] sm:$0xff]
        %v2118 = vld [vmem:[%s2088 + $0x158] sm:$0xff]
        %v2119 = vld [vmem:[%s2088 + $0x168] sm:$0xff]
        %v2120 = vld [vmem:[%s2088 + $0x170] sm:$0xff]
        %v2121 = vld [vmem:[%s2088 + $0x1] sm:$0xff]
        %v2122 = vld [vmem:[%s2088 + $0x9] sm:$0xff]
        %v2123 = vld [vmem:[%s2088 + $0x19] sm:$0xff]
        %v2124 = vld [vmem:[%s2088 + $0x21] sm:$0xff]
        %v2125 = vld [vmem:[%s2088 + $0x31] sm:$0xff]
        %v2126 = vld [vmem:[%s2088 + $0x39] sm:$0xff]
        %v2127 = vld [vmem:[%s2088 + $0x49] sm:$0xff]
        %v2128 = vld [vmem:[%s2088 + $0x51] sm:$0xff]
        %v2129 = vld [vmem:[%s2088 + $0x61] sm:$0xff]
        %v2130 = vld [vmem:[%s2088 + $0x69] sm:$0xff]
        %v2131 = vld [vmem:[%s2088 + $0x79] sm:$0xff]
        %v2132 = vld [vmem:[%s2088 + $0x81] sm:$0xff]
        %v2133 = vld [vmem:[%s2088 + $0x91] sm:$0xff]
        %v2134 = vld [vmem:[%s2088 + $0x99] sm:$0xff]
        %v2135 = vld [vmem:[%s2088 + $0xa9] sm:$0xff]
        %v2136 = vld [vmem:[%s2088 + $0xb1] sm:$0xff]
        %v2137 = vld [vmem:[%s2088 + $0xc1] sm:$0xff]
        %v2138 = vld [vmem:[%s2088 + $0xc9] sm:$0xff]
        %v2139 = vld [vmem:[%s2088 + $0xd9] sm:$0xff]
        %v2140 = vld [vmem:[%s2088 + $0xe1] sm:$0xff]
        %v2141 = vld [vmem:[%s2088 + $0xf1] sm:$0xff]
        %v2142 = vld [vmem:[%s2088 + $0xf9] sm:$0xff]
        %v2143 = vld [vmem:[%s2088 + $0x109] sm:$0xff]
        %v2144 = vld [vmem:[%s2088 + $0x111] sm:$0xff]
        %v2145 = vld [vmem:[%s2088 + $0x121] sm:$0xff]
        %v2146 = vld [vmem:[%s2088 + $0x129] sm:$0xff]
        %v2147 = vld [vmem:[%s2088 + $0x139] sm:$0xff]
        %v2148 = vld [vmem:[%s2088 + $0x141] sm:$0xff]
        %v2149 = vld [vmem:[%s2088 + $0x151] sm:$0xff]
        %v2150 = vld [vmem:[%s2088 + $0x159] sm:$0xff]
        %v2151 = vld [vmem:[%s2088 + $0x169] sm:$0xff]
        %v2152 = vld [vmem:[%s2088 + $0x171] sm:$0xff]
        %v2153 = vld [vmem:[%s2088 + $0x2] sm:$0xff]
        %v2154 = vld [vmem:[%s2088 + $0xa] sm:$0xff]
        %v2155 = vld [vmem:[%s2088 + $0x1a] sm:$0xff]
        %v2156 = vld [vmem:[%s2088 + $0x22] sm:$0xff]
        %v2157 = vld [vmem:[%s2088 + $0x32] sm:$0xff]
        %v2158 = vld [vmem:[%s2088 + $0x3a] sm:$0xff]
        %v2159 = vld [vmem:[%s2088 + $0x4a] sm:$0xff]
        %v2160 = vld [vmem:[%s2088 + $0x52] sm:$0xff]
        %v2161 = vld [vmem:[%s2088 + $0x62] sm:$0xff]
        %v2162 = vld [vmem:[%s2088 + $0x6a] sm:$0xff]
        %v2163 = vld [vmem:[%s2088 + $0x7a] sm:$0xff]
        %v2164 = vld [vmem:[%s2088 + $0x82] sm:$0xff]
        %v2165 = vld [vmem:[%s2088 + $0x92] sm:$0xff]
        %v2166 = vld [vmem:[%s2088 + $0x9a] sm:$0xff]
        %v2167 = vld [vmem:[%s2088 + $0xaa] sm:$0xff]
        %v2168 = vld [vmem:[%s2088 + $0xb2] sm:$0xff]
        %v2169 = vld [vmem:[%s2088 + $0xc2] sm:$0xff]
        %v2170 = vld [vmem:[%s2088 + $0xca] sm:$0xff]
        %v2171 = vld [vmem:[%s2088 + $0xda] sm:$0xff]
        %v2172 = vld [vmem:[%s2088 + $0xe2] sm:$0xff]
        %v2173 = vld [vmem:[%s2088 + $0xf2] sm:$0xff]
        %v2174 = vld [vmem:[%s2088 + $0xfa] sm:$0xff]
        %v2175 = vld [vmem:[%s2088 + $0x10a] sm:$0xff]
        %v2176 = vld [vmem:[%s2088 + $0x112] sm:$0xff]
        %v2177 = vld [vmem:[%s2088 + $0x122] sm:$0xff]
        %v2178 = vld [vmem:[%s2088 + $0x12a] sm:$0xff]
        %v2179 = vld [vmem:[%s2088 + $0x13a] sm:$0xff]
        %v2180 = vld [vmem:[%s2088 + $0x142] sm:$0xff]
        %v2181 = vld [vmem:[%s2088 + $0x152] sm:$0xff]
        %v2182 = vld [vmem:[%s2088 + $0x15a] sm:$0xff]
        %v2183 = vld [vmem:[%s2088 + $0x16a] sm:$0xff]
        %v2184 = vld [vmem:[%s2088 + $0x172] sm:$0xff]
        %2217 = vrot.lane.b32.xlu0 %v2121, 4
        %v2218 = vpop.permute.xlu0 %2217
        %2219 = vrot.lane.b32.xlu0 %v2122, 4
        %v2220 = vpop.permute.xlu0 %2219
        %2221 = vrot.lane.b32.xlu0 %v2123, 4
        %v2222 = vpop.permute.xlu0 %2221
        %2223 = vrot.lane.b32.xlu0 %v2124, 4
        %v2224 = vpop.permute.xlu0 %2223
        %2225 = vrot.lane.b32.xlu0 %v2125, 4
        %v2226 = vpop.permute.xlu0 %2225
        %2227 = vrot.lane.b32.xlu0 %v2126, 4
        %v2228 = vpop.permute.xlu0 %2227
        %2229 = vrot.lane.b32.xlu0 %v2127, 4
        %v2230 = vpop.permute.xlu0 %2229
        %2231 = vrot.lane.b32.xlu0 %v2128, 4
        %v2232 = vpop.permute.xlu0 %2231
        %2233 = vrot.lane.b32.xlu0 %v2129, 4
        %v2234 = vpop.permute.xlu0 %2233
        %2235 = vrot.lane.b32.xlu0 %v2130, 4
        %v2236 = vpop.permute.xlu0 %2235
        %2237 = vrot.lane.b32.xlu0 %v2131, 4
        %v2238 = vpop.permute.xlu0 %2237
        %2239 = vrot.lane.b32.xlu0 %v2132, 4
        %v2240 = vpop.permute.xlu0 %2239
        %2241 = vrot.lane.b32.xlu0 %v2133, 4
        %v2242 = vpop.permute.xlu0 %2241
        %2243 = vrot.lane.b32.xlu0 %v2134, 4
        %v2244 = vpop.permute.xlu0 %2243
        %2245 = vrot.lane.b32.xlu0 %v2135, 4
        %v2246 = vpop.permute.xlu0 %2245
        %2247 = vrot.lane.b32.xlu0 %v2136, 4
        %v2248 = vpop.permute.xlu0 %2247
        %2249 = vrot.lane.b32.xlu0 %v2137, 4
        %v2250 = vpop.permute.xlu0 %2249
        %2251 = vrot.lane.b32.xlu0 %v2138, 4
        %v2252 = vpop.permute.xlu0 %2251
        %2253 = vrot.lane.b32.xlu0 %v2139, 4
        %v2254 = vpop.permute.xlu0 %2253
        %2255 = vrot.lane.b32.xlu0 %v2140, 4
        %v2256 = vpop.permute.xlu0 %2255
        %2257 = vrot.lane.b32.xlu0 %v2141, 4
        %v2258 = vpop.permute.xlu0 %2257
        %2259 = vrot.lane.b32.xlu0 %v2142, 4
        %v2260 = vpop.permute.xlu0 %2259
        %2261 = vrot.lane.b32.xlu0 %v2143, 4
        %v2262 = vpop.permute.xlu0 %2261
        %2263 = vrot.lane.b32.xlu0 %v2144, 4
        %v2264 = vpop.permute.xlu0 %2263
        %2265 = vrot.lane.b32.xlu0 %v2145, 4
        %v2266 = vpop.permute.xlu0 %2265
        %2267 = vrot.lane.b32.xlu0 %v2146, 4
        %v2268 = vpop.permute.xlu0 %2267
        %2269 = vrot.lane.b32.xlu0 %v2147, 4
        %v2270 = vpop.permute.xlu0 %2269
        %2271 = vrot.lane.b32.xlu0 %v2148, 4
        %v2272 = vpop.permute.xlu0 %2271
        %2273 = vrot.lane.b32.xlu0 %v2149, 4
        %v2274 = vpop.permute.xlu0 %2273
        %2275 = vrot.lane.b32.xlu0 %v2150, 4
        %v2276 = vpop.permute.xlu0 %2275
        %2277 = vrot.lane.b32.xlu0 %v2151, 4
        %v2278 = vpop.permute.xlu0 %2277
        %2279 = vrot.lane.b32.xlu0 %v2152, 4
        %v2280 = vpop.permute.xlu0 %2279
        %2345 = vrot.lane.b32.xlu0 %v2153, 8
        %v2346 = vpop.permute.xlu0 %2345
        %2347 = vrot.lane.b32.xlu0 %v2154, 8
        %v2348 = vpop.permute.xlu0 %2347
        %2349 = vrot.lane.b32.xlu0 %v2155, 8
        %v2350 = vpop.permute.xlu0 %2349
        %2351 = vrot.lane.b32.xlu0 %v2156, 8
        %v2352 = vpop.permute.xlu0 %2351
        %2353 = vrot.lane.b32.xlu0 %v2157, 8
        %v2354 = vpop.permute.xlu0 %2353
        %2355 = vrot.lane.b32.xlu0 %v2158, 8
        %v2356 = vpop.permute.xlu0 %2355
        %2357 = vrot.lane.b32.xlu0 %v2159, 8
        %v2358 = vpop.permute.xlu0 %2357
        %2359 = vrot.lane.b32.xlu0 %v2160, 8
        %v2360 = vpop.permute.xlu0 %2359
        %2361 = vrot.lane.b32.xlu0 %v2161, 8
        %v2362 = vpop.permute.xlu0 %2361
        %2363 = vrot.lane.b32.xlu0 %v2162, 8
        %v2364 = vpop.permute.xlu0 %2363
        %2365 = vrot.lane.b32.xlu0 %v2163, 8
        %v2366 = vpop.permute.xlu0 %2365
        %2367 = vrot.lane.b32.xlu0 %v2164, 8
        %v2368 = vpop.permute.xlu0 %2367
        %2369 = vrot.lane.b32.xlu0 %v2165, 8
        %v2370 = vpop.permute.xlu0 %2369
        %2371 = vrot.lane.b32.xlu0 %v2166, 8
        %v2372 = vpop.permute.xlu0 %2371
        %2373 = vrot.lane.b32.xlu0 %v2167, 8
        %v2374 = vpop.permute.xlu0 %2373
        %2375 = vrot.lane.b32.xlu0 %v2168, 8
        %v2376 = vpop.permute.xlu0 %2375
        %2377 = vrot.lane.b32.xlu0 %v2169, 8
        %v2378 = vpop.permute.xlu0 %2377
        %2379 = vrot.lane.b32.xlu0 %v2170, 8
        %v2380 = vpop.permute.xlu0 %2379
        %2381 = vrot.lane.b32.xlu0 %v2171, 8
        %v2382 = vpop.permute.xlu0 %2381
        %2383 = vrot.lane.b32.xlu0 %v2172, 8
        %v2384 = vpop.permute.xlu0 %2383
        %2385 = vrot.lane.b32.xlu0 %v2173, 8
        %v2386 = vpop.permute.xlu0 %2385
        %2387 = vrot.lane.b32.xlu0 %v2174, 8
        %v2388 = vpop.permute.xlu0 %2387
        %2389 = vrot.lane.b32.xlu0 %v2175, 8
        %v2390 = vpop.permute.xlu0 %2389
        %2391 = vrot.lane.b32.xlu0 %v2176, 8
        %v2392 = vpop.permute.xlu0 %2391
        %2393 = vrot.lane.b32.xlu0 %v2177, 8
        %v2394 = vpop.permute.xlu0 %2393
        %2395 = vrot.lane.b32.xlu0 %v2178, 8
        %v2396 = vpop.permute.xlu0 %2395
        %2397 = vrot.lane.b32.xlu0 %v2179, 8
        %v2398 = vpop.permute.xlu0 %2397
        %2399 = vrot.lane.b32.xlu0 %v2180, 8
        %v2400 = vpop.permute.xlu0 %2399
        %2401 = vrot.lane.b32.xlu0 %v2181, 8
        %v2402 = vpop.permute.xlu0 %2401
        %2403 = vrot.lane.b32.xlu0 %v2182, 8
        %v2404 = vpop.permute.xlu0 %2403
        %2405 = vrot.lane.b32.xlu0 %v2183, 8
        %v2406 = vpop.permute.xlu0 %2405
        %2407 = vrot.lane.b32.xlu0 %v2184, 8
        %v2408 = vpop.permute.xlu0 %2407
        %v2441 = vsel %vm469, %v2089, %v2218
        %v2442 = vsel %vm469, %v2090, %v2220
        %v2443 = vsel %vm469, %v2091, %v2222
        %v2444 = vsel %vm469, %v2092, %v2224
        %v2445 = vsel %vm469, %v2093, %v2226
        %v2446 = vsel %vm469, %v2094, %v2228
        %v2447 = vsel %vm469, %v2095, %v2230
        %v2448 = vsel %vm469, %v2096, %v2232
        %v2449 = vsel %vm469, %v2097, %v2234
        %v2450 = vsel %vm469, %v2098, %v2236
        %v2451 = vsel %vm469, %v2099, %v2238
        %v2452 = vsel %vm469, %v2100, %v2240
        %v2453 = vsel %vm469, %v2101, %v2242
        %v2454 = vsel %vm469, %v2102, %v2244
        %v2455 = vsel %vm469, %v2103, %v2246
        %v2456 = vsel %vm469, %v2104, %v2248
        %v2457 = vsel %vm469, %v2105, %v2250
        %v2458 = vsel %vm469, %v2106, %v2252
        %v2459 = vsel %vm469, %v2107, %v2254
        %v2460 = vsel %vm469, %v2108, %v2256
        %v2461 = vsel %vm469, %v2109, %v2258
        %v2462 = vsel %vm469, %v2110, %v2260
        %v2463 = vsel %vm469, %v2111, %v2262
        %v2464 = vsel %vm469, %v2112, %v2264
        %v2465 = vsel %vm469, %v2113, %v2266
        %v2466 = vsel %vm469, %v2114, %v2268
        %v2467 = vsel %vm469, %v2115, %v2270
        %v2468 = vsel %vm469, %v2116, %v2272
        %v2469 = vsel %vm469, %v2117, %v2274
        %v2470 = vsel %vm469, %v2118, %v2276
        %v2471 = vsel %vm469, %v2119, %v2278
        %v2472 = vsel %vm469, %v2120, %v2280
        %v2473 = vsel %vm974, %v2441, %v2346
        %v2474 = vsel %vm974, %v2442, %v2348
        %v2475 = vsel %vm974, %v2443, %v2350
        %v2476 = vsel %vm974, %v2444, %v2352
        %v2477 = vsel %vm974, %v2445, %v2354
        %v2478 = vsel %vm974, %v2446, %v2356
        %v2479 = vsel %vm974, %v2447, %v2358
        %v2480 = vsel %vm974, %v2448, %v2360
        %v2481 = vsel %vm974, %v2449, %v2362
        %v2482 = vsel %vm974, %v2450, %v2364
        %v2483 = vsel %vm974, %v2451, %v2366
        %v2484 = vsel %vm974, %v2452, %v2368
        %v2485 = vsel %vm974, %v2453, %v2370
        %v2486 = vsel %vm974, %v2454, %v2372
        %v2487 = vsel %vm974, %v2455, %v2374
        %v2488 = vsel %vm974, %v2456, %v2376
        %v2489 = vsel %vm974, %v2457, %v2378
        %v2490 = vsel %vm974, %v2458, %v2380
        %v2491 = vsel %vm974, %v2459, %v2382
        %v2492 = vsel %vm974, %v2460, %v2384
        %v2493 = vsel %vm974, %v2461, %v2386
        %v2494 = vsel %vm974, %v2462, %v2388
        %v2495 = vsel %vm974, %v2463, %v2390
        %v2496 = vsel %vm974, %v2464, %v2392
        %v2497 = vsel %vm974, %v2465, %v2394
        %v2498 = vsel %vm974, %v2466, %v2396
        %v2499 = vsel %vm974, %v2467, %v2398
        %v2500 = vsel %vm974, %v2468, %v2400
        %v2501 = vsel %vm974, %v2469, %v2402
        %v2502 = vsel %vm974, %v2470, %v2404
        %v2503 = vsel %vm974, %v2471, %v2406
        %v2504 = vsel %vm974, %v2472, %v2408
        %v2505 = vld [vmem:[#allocation3] sm:$0xff]
        %v2506 = vld [vmem:[#allocation3 + $0x8] sm:$0xff]
        %v2507 = vld [vmem:[#allocation3 + $0x10] sm:$0xff]
        %v2508 = vld [vmem:[#allocation3 + $0x18] sm:$0xff]
        %v2509 = vld [vmem:[#allocation3 + $0x20] sm:$0xff]
        %v2510 = vld [vmem:[#allocation3 + $0x28] sm:$0xff]
        %v2511 = vld [vmem:[#allocation3 + $0x30] sm:$0xff]
        %v2512 = vld [vmem:[#allocation3 + $0x38] sm:$0xff]
        %v2513 = vld [vmem:[#allocation3 + $0x40] sm:$0xff]
        %v2514 = vld [vmem:[#allocation3 + $0x48] sm:$0xff]
        %v2515 = vld [vmem:[#allocation3 + $0x50] sm:$0xff]
        %v2516 = vld [vmem:[#allocation3 + $0x58] sm:$0xff]
        %v2517 = vld [vmem:[#allocation3 + $0x60] sm:$0xff]
        %v2518 = vld [vmem:[#allocation3 + $0x68] sm:$0xff]
        %v2519 = vld [vmem:[#allocation3 + $0x70] sm:$0xff]
        %v2520 = vld [vmem:[#allocation3 + $0x78] sm:$0xff]
        %v2521 = vld [vmem:[#allocation3 + $0x80] sm:$0xff]
        %v2522 = vld [vmem:[#allocation3 + $0x88] sm:$0xff]
        %v2523 = vld [vmem:[#allocation3 + $0x90] sm:$0xff]
        %v2524 = vld [vmem:[#allocation3 + $0x98] sm:$0xff]
        %v2525 = vld [vmem:[#allocation3 + $0xa0] sm:$0xff]
        %v2526 = vld [vmem:[#allocation3 + $0xa8] sm:$0xff]
        %v2527 = vld [vmem:[#allocation3 + $0xb0] sm:$0xff]
        %v2528 = vld [vmem:[#allocation3 + $0xb8] sm:$0xff]
        %v2529 = vld [vmem:[#allocation3 + $0xc0] sm:$0xff]
        %v2530 = vld [vmem:[#allocation3 + $0xc8] sm:$0xff]
        %v2531 = vld [vmem:[#allocation3 + $0xd0] sm:$0xff]
        %v2532 = vld [vmem:[#allocation3 + $0xd8] sm:$0xff]
        %v2533 = vld [vmem:[#allocation3 + $0xe0] sm:$0xff]
        %v2534 = vld [vmem:[#allocation3 + $0xe8] sm:$0xff]
        %v2535 = vld [vmem:[#allocation3 + $0xf0] sm:$0xff]
        %v2536 = vld [vmem:[#allocation3 + $0xf8] sm:$0xff]
        %v2537 = vpack.c.bf16 %v2474, %v2473
        %v2538 = vpack.c.bf16 %v2476, %v2475
        %v2539 = vpack.c.bf16 %v2478, %v2477
        %v2540 = vpack.c.bf16 %v2480, %v2479
        %v2541 = vpack.c.bf16 %v2482, %v2481
        %v2542 = vpack.c.bf16 %v2484, %v2483
        %v2543 = vpack.c.bf16 %v2486, %v2485
        %v2544 = vpack.c.bf16 %v2488, %v2487
        %v2545 = vpack.c.bf16 %v2490, %v2489
        %v2546 = vpack.c.bf16 %v2492, %v2491
        %v2547 = vpack.c.bf16 %v2494, %v2493
        %v2548 = vpack.c.bf16 %v2496, %v2495
        %v2549 = vpack.c.bf16 %v2498, %v2497
        %v2550 = vpack.c.bf16 %v2500, %v2499
        %v2551 = vpack.c.bf16 %v2502, %v2501
        %v2552 = vpack.c.bf16 %v2504, %v2503
        %s2553 = scalar_lea.vmem [#allocation10], 16
        %v2554 = vld [vmem:[%s2553] sm:$0xf]
        %v2555 = vld [vmem:[%s2553 + $0x4] sm:$0x3]
        %v2558 = vunpack.c.l.b16 %v2554
        %v2559 = vunpack.c.l.b16 %v2555
        %v2560 = vpack.c.b16 %v2559, %v2558
        %v2562 = vsel %vm1062, %v2537, 0
        %v2565 = vsel %vm1062, %v2538, 0
        %v2568 = vsel %vm1062, %v2539, 0
        %v2571 = vsel %vm1062, %v2540, 0
        %v2574 = vsel %vm1062, %v2541, 0
        %v2577 = vsel %vm1062, %v2542, 0
        %v2580 = vsel %vm1062, %v2543, 0
        %v2583 = vsel %vm1062, %v2544, 0
        %v2586 = vsel %vm1062, %v2545, 0
        %v2589 = vsel %vm1062, %v2546, 0
        %v2592 = vsel %vm1062, %v2547, 0
        %v2595 = vsel %vm1062, %v2548, 0
        %v2598 = vsel %vm1062, %v2549, 0
        %v2601 = vsel %vm1062, %v2550, 0
        %v2604 = vsel %vm1062, %v2551, 0
        %v2607 = vsel %vm1062, %v2552, 0
        %v2610 = vsel %vm1111, %v2560, 0
        %2612 = vmatprep.subr.bf16.mxu0 0
        %2613 = vmatpush1.bf16.msra.mxu0 %v2610
        %2614 = vmatprep.subr.bf16.mxu0 0
        %2615 = vmatpush1.bf16.msra.mxu0 0
        %2616 = vmatprep.subr.bf16.mxu0 0
        %2617 = vmatpush1.bf16.msra.mxu0 0
        %2618 = vmatprep.subr.bf16.mxu0 0
        %2619 = vmatpush1.bf16.msra.mxu0 0
        %2620 = vmatprep.subr.bf16.mxu0 0
        %2621 = vmatpush1.bf16.msra.mxu0 0
        %2622 = vmatprep.subr.bf16.mxu0 0
        %2623 = vmatpush1.bf16.msra.mxu0 0
        %2624 = vmatprep.subr.bf16.mxu0 0
        %2625 = vmatpush1.bf16.msra.mxu0 0
        %2626 = vmatprep.subr.bf16.mxu0 0
        %2627 = vmatpush1.bf16.msra.mxu0 0
        %2628 = vmatprep.subr.bf16.mxu0 0
        %2629 = vmatpush1.bf16.msra.mxu0 0
        %2630 = vmatprep.subr.bf16.mxu0 0
        %2631 = vmatpush1.bf16.msra.mxu0 0
        %2632 = vmatprep.subr.bf16.mxu0 0
        %2633 = vmatpush1.bf16.msra.mxu0 0
        %2634 = vmatprep.subr.bf16.mxu0 0
        %2635 = vmatpush1.bf16.msra.mxu0 0
        %2636 = vmatprep.subr.bf16.mxu0 0
        %2637 = vmatpush1.bf16.msra.mxu0 0
        %2638 = vmatprep.subr.bf16.mxu0 0
        %2639 = vmatpush1.bf16.msra.mxu0 0
        %2640 = vmatprep.subr.bf16.mxu0 0
        %2641 = vmatpush1.bf16.msra.mxu0 0
        %2642 = vmatprep.subr.bf16.mxu0 0
        %2643 = vmatpush1.bf16.msra.mxu0 0
        %2644 = vmatprep.mubr.bf16.mxu0 0
        %2645 = vmatmul.mubr.bf16.gmra.mrb[0].mxu0 %v2562
        %v2646 = vpop.f32.mrb[0].mxu0
        %v2647 = vadd.f32 0.0, %v2646
        %v2648 = vpop.f32.mrb[0].mxu0
        %v2649 = vpop.f32.mrb[0].mxu0
        %v2650 = vadd.f32 0.0, %v2649
        %v2651 = vpop.f32.mrb[0].mxu0
        %2652 = vmatprep.mubr.bf16.mxu0 0
        %2653 = vmatmul.mubr.bf16.gmra.mrb[0].mxu0 %v2565
        %v2654 = vpop.f32.mrb[0].mxu0
        %v2655 = vadd.f32 0.0, %v2654
        %v2656 = vpop.f32.mrb[0].mxu0
        %v2657 = vpop.f32.mrb[0].mxu0
        %v2658 = vadd.f32 0.0, %v2657
        %v2659 = vpop.f32.mrb[0].mxu0
        %2660 = vmatprep.mubr.bf16.mxu0 0
        %2661 = vmatmul.mubr.bf16.gmra.mrb[0].mxu0 %v2568
        %v2662 = vpop.f32.mrb[0].mxu0
        %v2663 = vadd.f32 0.0, %v2662
        %v2664 = vpop.f32.mrb[0].mxu0
        %v2665 = vpop.f32.mrb[0].mxu0
        %v2666 = vadd.f32 0.0, %v2665
        %v2667 = vpop.f32.mrb[0].mxu0
        %2668 = vmatprep.mubr.bf16.mxu0 0
        %2669 = vmatmul.mubr.bf16.gmra.mrb[0].mxu0 %v2571
        %v2670 = vpop.f32.mrb[0].mxu0
        %v2671 = vadd.f32 0.0, %v2670
        %v2672 = vpop.f32.mrb[0].mxu0
        %v2673 = vpop.f32.mrb[0].mxu0
        %v2674 = vadd.f32 0.0, %v2673
        %v2675 = vpop.f32.mrb[0].mxu0
        %2676 = vmatprep.mubr.bf16.mxu0 0
        %2677 = vmatmul.mubr.bf16.gmra.mrb[0].mxu0 %v2574
        %v2678 = vpop.f32.mrb[0].mxu0
        %v2679 = vadd.f32 0.0, %v2678
        %v2680 = vpop.f32.mrb[0].mxu0
        %v2681 = vpop.f32.mrb[0].mxu0
        %v2682 = vadd.f32 0.0, %v2681
        %v2683 = vpop.f32.mrb[0].mxu0
        %2684 = vmatprep.mubr.bf16.mxu0 0
        %2685 = vmatmul.mubr.bf16.gmra.mrb[0].mxu0 %v2577
        %v2686 = vpop.f32.mrb[0].mxu0
        %v2687 = vadd.f32 0.0, %v2686
        %v2688 = vpop.f32.mrb[0].mxu0
        %v2689 = vpop.f32.mrb[0].mxu0
        %v2690 = vadd.f32 0.0, %v2689
        %v2691 = vpop.f32.mrb[0].mxu0
        %2692 = vmatprep.mubr.bf16.mxu0 0
        %2693 = vmatmul.mubr.bf16.gmra.mrb[0].mxu0 %v2580
        %v2694 = vpop.f32.mrb[0].mxu0
        %v2695 = vadd.f32 0.0, %v2694
        %v2696 = vpop.f32.mrb[0].mxu0
        %v2697 = vpop.f32.mrb[0].mxu0
        %v2698 = vadd.f32 0.0, %v2697
        %v2699 = vpop.f32.mrb[0].mxu0
        %2700 = vmatprep.mubr.bf16.mxu0 0
        %2701 = vmatmul.mubr.bf16.gmra.mrb[0].mxu0 %v2583
        %v2702 = vpop.f32.mrb[0].mxu0
        %v2703 = vadd.f32 0.0, %v2702
        %v2704 = vpop.f32.mrb[0].mxu0
        %v2705 = vpop.f32.mrb[0].mxu0
        %v2706 = vadd.f32 0.0, %v2705
        %v2707 = vpop.f32.mrb[0].mxu0
        %2708 = vmatprep.mubr.bf16.mxu0 0
        %2709 = vmatmul.mubr.bf16.gmra.mrb[0].mxu0 %v2586
        %v2710 = vpop.f32.mrb[0].mxu0
        %v2711 = vadd.f32 0.0, %v2710
        %v2712 = vpop.f32.mrb[0].mxu0
        %v2713 = vpop.f32.mrb[0].mxu0
        %v2714 = vadd.f32 0.0, %v2713
        %v2715 = vpop.f32.mrb[0].mxu0
        %2716 = vmatprep.mubr.bf16.mxu0 0
        %2717 = vmatmul.mubr.bf16.gmra.mrb[0].mxu0 %v2589
        %v2718 = vpop.f32.mrb[0].mxu0
        %v2719 = vadd.f32 0.0, %v2718
        %v2720 = vpop.f32.mrb[0].mxu0
        %v2721 = vpop.f32.mrb[0].mxu0
        %v2722 = vadd.f32 0.0, %v2721
        %v2723 = vpop.f32.mrb[0].mxu0
        %2724 = vmatprep.mubr.bf16.mxu0 0
        %2725 = vmatmul.mubr.bf16.gmra.mrb[0].mxu0 %v2592
        %v2726 = vpop.f32.mrb[0].mxu0
        %v2727 = vadd.f32 0.0, %v2726
        %v2728 = vpop.f32.mrb[0].mxu0
        %v2729 = vpop.f32.mrb[0].mxu0
        %v2730 = vadd.f32 0.0, %v2729
        %v2731 = vpop.f32.mrb[0].mxu0
        %2732 = vmatprep.mubr.bf16.mxu0 0
        %2733 = vmatmul.mubr.bf16.gmra.mrb[0].mxu0 %v2595
        %v2734 = vpop.f32.mrb[0].mxu0
        %v2735 = vadd.f32 0.0, %v2734
        %v2736 = vpop.f32.mrb[0].mxu0
        %v2737 = vpop.f32.mrb[0].mxu0
        %v2738 = vadd.f32 0.0, %v2737
        %v2739 = vpop.f32.mrb[0].mxu0
        %2740 = vmatprep.mubr.bf16.mxu0 0
        %2741 = vmatmul.mubr.bf16.gmra.mrb[0].mxu0 %v2598
        %v2742 = vpop.f32.mrb[0].mxu0
        %v2743 = vadd.f32 0.0, %v2742
        %v2744 = vpop.f32.mrb[0].mxu0
        %v2745 = vpop.f32.mrb[0].mxu0
        %v2746 = vadd.f32 0.0, %v2745
        %v2747 = vpop.f32.mrb[0].mxu0
        %2748 = vmatprep.mubr.bf16.mxu0 0
        %2749 = vmatmul.mubr.bf16.gmra.mrb[0].mxu0 %v2601
        %v2750 = vpop.f32.mrb[0].mxu0
        %v2751 = vadd.f32 0.0, %v2750
        %v2752 = vpop.f32.mrb[0].mxu0
        %v2753 = vpop.f32.mrb[0].mxu0
        %v2754 = vadd.f32 0.0, %v2753
        %v2755 = vpop.f32.mrb[0].mxu0
        %2756 = vmatprep.mubr.bf16.mxu0 0
        %2757 = vmatmul.mubr.bf16.gmra.mrb[0].mxu0 %v2604
        %v2758 = vpop.f32.mrb[0].mxu0
        %v2759 = vadd.f32 0.0, %v2758
        %v2760 = vpop.f32.mrb[0].mxu0
        %v2761 = vpop.f32.mrb[0].mxu0
        %v2762 = vadd.f32 0.0, %v2761
        %v2763 = vpop.f32.mrb[0].mxu0
        %2764 = vmatprep.mubr.bf16.mxu0 0
        %2765 = vmatmul.mubr.bf16.gmra.mrb[0].mxu0 %v2607
        %v2766 = vpop.f32.mrb[0].mxu0
        %v2767 = vadd.f32 0.0, %v2766
        %v2768 = vpop.f32.mrb[0].mxu0
        %v2769 = vpop.f32.mrb[0].mxu0
        %v2770 = vadd.f32 0.0, %v2769
        %v2771 = vpop.f32.mrb[0].mxu0
        %2772 = vdwg.mxu0
        %v2773 = vadd.f32 %v2505, %v2647
        %v2774 = vadd.f32 %v2506, %v2650
        %v2775 = vadd.f32 %v2507, %v2655
        %v2776 = vadd.f32 %v2508, %v2658
        %v2777 = vadd.f32 %v2509, %v2663
        %v2778 = vadd.f32 %v2510, %v2666
        %v2779 = vadd.f32 %v2511, %v2671
        %v2780 = vadd.f32 %v2512, %v2674
        %v2781 = vadd.f32 %v2513, %v2679
        %v2782 = vadd.f32 %v2514, %v2682
        %v2783 = vadd.f32 %v2515, %v2687
        %v2784 = vadd.f32 %v2516, %v2690
        %v2785 = vadd.f32 %v2517, %v2695
        %v2786 = vadd.f32 %v2518, %v2698
        %v2787 = vadd.f32 %v2519, %v2703
        %v2788 = vadd.f32 %v2520, %v2706
        %v2789 = vadd.f32 %v2521, %v2711
        %v2790 = vadd.f32 %v2522, %v2714
        %v2791 = vadd.f32 %v2523, %v2719
        %v2792 = vadd.f32 %v2524, %v2722
        %v2793 = vadd.f32 %v2525, %v2727
        %v2794 = vadd.f32 %v2526, %v2730
        %v2795 = vadd.f32 %v2527, %v2735
        %v2796 = vadd.f32 %v2528, %v2738
        %v2797 = vadd.f32 %v2529, %v2743
        %v2798 = vadd.f32 %v2530, %v2746
        %v2799 = vadd.f32 %v2531, %v2751
        %v2800 = vadd.f32 %v2532, %v2754
        %v2801 = vadd.f32 %v2533, %v2759
        %v2802 = vadd.f32 %v2534, %v2762
        %v2803 = vadd.f32 %v2535, %v2767
        %v2804 = vadd.f32 %v2536, %v2770
        %2805 = vst.msk [vmem:[#allocation3] sm:$0xff] %vm469, %v2773
        %2806 = vst.msk [vmem:[#allocation3 + $0x8] sm:$0xff] %vm469, %v2774
        %2807 = vst.msk [vmem:[#allocation3 + $0x10] sm:$0xff] %vm469, %v2775
        %2808 = vst.msk [vmem:[#allocation3 + $0x18] sm:$0xff] %vm469, %v2776
        %2809 = vst.msk [vmem:[#allocation3 + $0x20] sm:$0xff] %vm469, %v2777
        %2810 = vst.msk [vmem:[#allocation3 + $0x28] sm:$0xff] %vm469, %v2778
        %2811 = vst.msk [vmem:[#allocation3 + $0x30] sm:$0xff] %vm469, %v2779
        %2812 = vst.msk [vmem:[#allocation3 + $0x38] sm:$0xff] %vm469, %v2780
        %2813 = vst.msk [vmem:[#allocation3 + $0x40] sm:$0xff] %vm469, %v2781
        %2814 = vst.msk [vmem:[#allocation3 + $0x48] sm:$0xff] %vm469, %v2782
        %2815 = vst.msk [vmem:[#allocation3 + $0x50] sm:$0xff] %vm469, %v2783
        %2816 = vst.msk [vmem:[#allocation3 + $0x58] sm:$0xff] %vm469, %v2784
        %2817 = vst.msk [vmem:[#allocation3 + $0x60] sm:$0xff] %vm469, %v2785
        %2818 = vst.msk [vmem:[#allocation3 + $0x68] sm:$0xff] %vm469, %v2786
        %2819 = vst.msk [vmem:[#allocation3 + $0x70] sm:$0xff] %vm469, %v2787
        %2820 = vst.msk [vmem:[#allocation3 + $0x78] sm:$0xff] %vm469, %v2788
        %2821 = vst.msk [vmem:[#allocation3 + $0x80] sm:$0xff] %vm469, %v2789
        %2822 = vst.msk [vmem:[#allocation3 + $0x88] sm:$0xff] %vm469, %v2790
        %2823 = vst.msk [vmem:[#allocation3 + $0x90] sm:$0xff] %vm469, %v2791
        %2824 = vst.msk [vmem:[#allocation3 + $0x98] sm:$0xff] %vm469, %v2792
        %2825 = vst.msk [vmem:[#allocation3 + $0xa0] sm:$0xff] %vm469, %v2793
        %2826 = vst.msk [vmem:[#allocation3 + $0xa8] sm:$0xff] %vm469, %v2794
        %2827 = vst.msk [vmem:[#allocation3 + $0xb0] sm:$0xff] %vm469, %v2795
        %2828 = vst.msk [vmem:[#allocation3 + $0xb8] sm:$0xff] %vm469, %v2796
        %2829 = vst.msk [vmem:[#allocation3 + $0xc0] sm:$0xff] %vm469, %v2797
        %2830 = vst.msk [vmem:[#allocation3 + $0xc8] sm:$0xff] %vm469, %v2798
        %2831 = vst.msk [vmem:[#allocation3 + $0xd0] sm:$0xff] %vm469, %v2799
        %2832 = vst.msk [vmem:[#allocation3 + $0xd8] sm:$0xff] %vm469, %v2800
        %2833 = vst.msk [vmem:[#allocation3 + $0xe0] sm:$0xff] %vm469, %v2801
        %2834 = vst.msk [vmem:[#allocation3 + $0xe8] sm:$0xff] %vm469, %v2802
        %2835 = vst.msk [vmem:[#allocation3 + $0xf0] sm:$0xff] %vm469, %v2803
        %2836 = vst.msk [vmem:[#allocation3 + $0xf8] sm:$0xff] %vm469, %v2804
        %v2837 = vld [vmem:[#allocation3] sm:$0xff]
        %v2838 = vld [vmem:[#allocation3 + $0x8] sm:$0xff]
        %v2839 = vld [vmem:[#allocation3 + $0x10] sm:$0xff]
        %v2840 = vld [vmem:[#allocation3 + $0x18] sm:$0xff]
        %v2841 = vld [vmem:[#allocation3 + $0x20] sm:$0xff]
        %v2842 = vld [vmem:[#allocation3 + $0x28] sm:$0xff]
        %v2843 = vld [vmem:[#allocation3 + $0x30] sm:$0xff]
        %v2844 = vld [vmem:[#allocation3 + $0x38] sm:$0xff]
        %v2845 = vld [vmem:[#allocation3 + $0x40] sm:$0xff]
        %v2846 = vld [vmem:[#allocation3 + $0x48] sm:$0xff]
        %v2847 = vld [vmem:[#allocation3 + $0x50] sm:$0xff]
        %v2848 = vld [vmem:[#allocation3 + $0x58] sm:$0xff]
        %v2849 = vld [vmem:[#allocation3 + $0x60] sm:$0xff]
        %v2850 = vld [vmem:[#allocation3 + $0x68] sm:$0xff]
        %v2851 = vld [vmem:[#allocation3 + $0x70] sm:$0xff]
        %v2852 = vld [vmem:[#allocation3 + $0x78] sm:$0xff]
        %v2853 = vld [vmem:[#allocation3 + $0x80] sm:$0xff]
        %v2854 = vld [vmem:[#allocation3 + $0x88] sm:$0xff]
        %v2855 = vld [vmem:[#allocation3 + $0x90] sm:$0xff]
        %v2856 = vld [vmem:[#allocation3 + $0x98] sm:$0xff]
        %v2857 = vld [vmem:[#allocation3 + $0xa0] sm:$0xff]
        %v2858 = vld [vmem:[#allocation3 + $0xa8] sm:$0xff]
        %v2859 = vld [vmem:[#allocation3 + $0xb0] sm:$0xff]
        %v2860 = vld [vmem:[#allocation3 + $0xb8] sm:$0xff]
        %v2861 = vld [vmem:[#allocation3 + $0xc0] sm:$0xff]
        %v2862 = vld [vmem:[#allocation3 + $0xc8] sm:$0xff]
        %v2863 = vld [vmem:[#allocation3 + $0xd0] sm:$0xff]
        %v2864 = vld [vmem:[#allocation3 + $0xd8] sm:$0xff]
        %v2865 = vld [vmem:[#allocation3 + $0xe0] sm:$0xff]
        %v2866 = vld [vmem:[#allocation3 + $0xe8] sm:$0xff]
        %v2867 = vld [vmem:[#allocation3 + $0xf0] sm:$0xff]
        %v2868 = vld [vmem:[#allocation3 + $0xf8] sm:$0xff]
        %2869 = vst.msk [vmem:[%s313] sm:$0xff] %vm469, %v2837
        %2870 = vst.msk [vmem:[%s313 + $0x8] sm:$0xff] %vm469, %v2838
        %2871 = vst.msk [vmem:[%s313 + $0x10] sm:$0xff] %vm469, %v2839
        %2872 = vst.msk [vmem:[%s313 + $0x18] sm:$0xff] %vm469, %v2840
        %2873 = vst.msk [vmem:[%s313 + $0x20] sm:$0xff] %vm469, %v2841
        %2874 = vst.msk [vmem:[%s313 + $0x28] sm:$0xff] %vm469, %v2842
        %2875 = vst.msk [vmem:[%s313 + $0x30] sm:$0xff] %vm469, %v2843
        %2876 = vst.msk [vmem:[%s313 + $0x38] sm:$0xff] %vm469, %v2844
        %2877 = vst.msk [vmem:[%s313 + $0x40] sm:$0xff] %vm469, %v2845
        %2878 = vst.msk [vmem:[%s313 + $0x48] sm:$0xff] %vm469, %v2846
        %2879 = vst.msk [vmem:[%s313 + $0x50] sm:$0xff] %vm469, %v2847
        %2880 = vst.msk [vmem:[%s313 + $0x58] sm:$0xff] %vm469, %v2848
        %2881 = vst.msk [vmem:[%s313 + $0x60] sm:$0xff] %vm469, %v2849
        %2882 = vst.msk [vmem:[%s313 + $0x68] sm:$0xff] %vm469, %v2850
        %2883 = vst.msk [vmem:[%s313 + $0x70] sm:$0xff] %vm469, %v2851
        %2884 = vst.msk [vmem:[%s313 + $0x78] sm:$0xff] %vm469, %v2852
        %2885 = vst.msk [vmem:[%s313 + $0x80] sm:$0xff] %vm469, %v2853
        %2886 = vst.msk [vmem:[%s313 + $0x88] sm:$0xff] %vm469, %v2854
        %2887 = vst.msk [vmem:[%s313 + $0x90] sm:$0xff] %vm469, %v2855
        %2888 = vst.msk [vmem:[%s313 + $0x98] sm:$0xff] %vm469, %v2856
        %2889 = vst.msk [vmem:[%s313 + $0xa0] sm:$0xff] %vm469, %v2857
        %2890 = vst.msk [vmem:[%s313 + $0xa8] sm:$0xff] %vm469, %v2858
        %2891 = vst.msk [vmem:[%s313 + $0xb0] sm:$0xff] %vm469, %v2859
        %2892 = vst.msk [vmem:[%s313 + $0xb8] sm:$0xff] %vm469, %v2860
        %2893 = vst.msk [vmem:[%s313 + $0xc0] sm:$0xff] %vm469, %v2861
        %2894 = vst.msk [vmem:[%s313 + $0xc8] sm:$0xff] %vm469, %v2862
        %2895 = vst.msk [vmem:[%s313 + $0xd0] sm:$0xff] %vm469, %v2863
        %2896 = vst.msk [vmem:[%s313 + $0xd8] sm:$0xff] %vm469, %v2864
        %2897 = vst.msk [vmem:[%s313 + $0xe0] sm:$0xff] %vm469, %v2865
        %2898 = vst.msk [vmem:[%s313 + $0xe8] sm:$0xff] %vm469, %v2866
        %2899 = vst.msk [vmem:[%s313 + $0xf0] sm:$0xff] %vm469, %v2867
        %2900 = vst.msk [vmem:[%s313 + $0xf8] sm:$0xff] %vm469, %v2868
        %v2901 = vsel %vm469, %v2837, 0.0
        %v2902 = vsel %vm469, %v2838, 0.0
        %v2903 = vadd.f32 %v2901, %v2902
        %v2904 = vsel %vm469, %v2839, 0.0
        %v2905 = vadd.f32 %v2903, %v2904
        %v2906 = vsel %vm469, %v2840, 0.0
        %v2907 = vadd.f32 %v2905, %v2906
        %v2908 = vsel %vm469, %v2841, 0.0
        %v2909 = vadd.f32 %v2907, %v2908
        %v2910 = vsel %vm469, %v2842, 0.0
        %v2911 = vadd.f32 %v2909, %v2910
        %v2912 = vsel %vm469, %v2843, 0.0
        %v2913 = vadd.f32 %v2911, %v2912
        %v2914 = vsel %vm469, %v2844, 0.0
        %v2915 = vadd.f32 %v2913, %v2914
        %v2916 = vsel %vm469, %v2845, 0.0
        %v2917 = vadd.f32 %v2915, %v2916
        %v2918 = vsel %vm469, %v2846, 0.0
        %v2919 = vadd.f32 %v2917, %v2918
        %v2920 = vsel %vm469, %v2847, 0.0
        %v2921 = vadd.f32 %v2919, %v2920
        %v2922 = vsel %vm469, %v2848, 0.0
        %v2923 = vadd.f32 %v2921, %v2922
        %v2924 = vsel %vm469, %v2849, 0.0
        %v2925 = vadd.f32 %v2923, %v2924
        %v2926 = vsel %vm469, %v2850, 0.0
        %v2927 = vadd.f32 %v2925, %v2926
        %v2928 = vsel %vm469, %v2851, 0.0
        %v2929 = vadd.f32 %v2927, %v2928
        %v2930 = vsel %vm469, %v2852, 0.0
        %v2931 = vadd.f32 %v2929, %v2930
        %v2932 = vsel %vm469, %v2853, 0.0
        %v2933 = vadd.f32 %v2931, %v2932
        %v2934 = vsel %vm469, %v2854, 0.0
        %v2935 = vadd.f32 %v2933, %v2934
        %v2936 = vsel %vm469, %v2855, 0.0
        %v2937 = vadd.f32 %v2935, %v2936
        %v2938 = vsel %vm469, %v2856, 0.0
        %v2939 = vadd.f32 %v2937, %v2938
        %v2940 = vsel %vm469, %v2857, 0.0
        %v2941 = vadd.f32 %v2939, %v2940
        %v2942 = vsel %vm469, %v2858, 0.0
        %v2943 = vadd.f32 %v2941, %v2942
        %v2944 = vsel %vm469, %v2859, 0.0
        %v2945 = vadd.f32 %v2943, %v2944
        %v2946 = vsel %vm469, %v2860, 0.0
        %v2947 = vadd.f32 %v2945, %v2946
        %v2948 = vsel %vm469, %v2861, 0.0
        %v2949 = vadd.f32 %v2947, %v2948
        %v2950 = vsel %vm469, %v2862, 0.0
        %v2951 = vadd.f32 %v2949, %v2950
        %v2952 = vsel %vm469, %v2863, 0.0
        %v2953 = vadd.f32 %v2951, %v2952
        %v2954 = vsel %vm469, %v2864, 0.0
        %v2955 = vadd.f32 %v2953, %v2954
        %v2956 = vsel %vm469, %v2865, 0.0
        %v2957 = vadd.f32 %v2955, %v2956
        %v2958 = vsel %vm469, %v2866, 0.0
        %v2959 = vadd.f32 %v2957, %v2958
        %v2960 = vsel %vm469, %v2867, 0.0
        %v2961 = vadd.f32 %v2959, %v2960
        %v2962 = vsel %vm469, %v2868, 0.0
        %v2963 = vadd.f32 %v2961, %v2962
        %v2964 = vrot.slane %v2963, 4
        %v2965 = vadd.f32 %v2963, %v2964
        %v2966 = vrot.slane %v2965, 2
        %v2967 = vadd.f32 %v2965, %v2966
        %v2968 = vrot.slane %v2967, 1
        %v2969 = vadd.f32 %v2967, %v2968
        %vm2970 = vcmask 24576
        %2971 = vst.msk [vmem:[%s319] sm:$0x1] %vm2970, %v2969
        %v2972 = vmul.f32 %v2837, %v2837
        %v2973 = vmul.f32 %v2838, %v2838
        %v2974 = vmul.f32 %v2839, %v2839
        %v2975 = vmul.f32 %v2840, %v2840
        %v2976 = vmul.f32 %v2841, %v2841
        %v2977 = vmul.f32 %v2842, %v2842
        %v2978 = vmul.f32 %v2843, %v2843
        %v2979 = vmul.f32 %v2844, %v2844
        %v2980 = vmul.f32 %v2845, %v2845
        %v2981 = vmul.f32 %v2846, %v2846
        %v2982 = vmul.f32 %v2847, %v2847
        %v2983 = vmul.f32 %v2848, %v2848
        %v2984 = vmul.f32 %v2849, %v2849
        %v2985 = vmul.f32 %v2850, %v2850
        %v2986 = vmul.f32 %v2851, %v2851
        %v2987 = vmul.f32 %v2852, %v2852
        %v2988 = vmul.f32 %v2853, %v2853
        %v2989 = vmul.f32 %v2854, %v2854
        %v2990 = vmul.f32 %v2855, %v2855
        %v2991 = vmul.f32 %v2856, %v2856
        %v2992 = vmul.f32 %v2857, %v2857
        %v2993 = vmul.f32 %v2858, %v2858
        %v2994 = vmul.f32 %v2859, %v2859
        %v2995 = vmul.f32 %v2860, %v2860
        %v2996 = vmul.f32 %v2861, %v2861
        %v2997 = vmul.f32 %v2862, %v2862
        %v2998 = vmul.f32 %v2863, %v2863
        %v2999 = vmul.f32 %v2864, %v2864
        %v3000 = vmul.f32 %v2865, %v2865
        %v3001 = vmul.f32 %v2866, %v2866
        %v3002 = vmul.f32 %v2867, %v2867
        %v3003 = vmul.f32 %v2868, %v2868
        %v3004 = vsel %vm469, %v2972, 0.0
        %v3005 = vsel %vm469, %v2973, 0.0
        %v3006 = vadd.f32 %v3004, %v3005
        %v3007 = vsel %vm469, %v2974, 0.0
        %v3008 = vadd.f32 %v3006, %v3007
        %v3009 = vsel %vm469, %v2975, 0.0
        %v3010 = vadd.f32 %v3008, %v3009
        %v3011 = vsel %vm469, %v2976, 0.0
        %v3012 = vadd.f32 %v3010, %v3011
        %v3013 = vsel %vm469, %v2977, 0.0
        %v3014 = vadd.f32 %v3012, %v3013
        %v3015 = vsel %vm469, %v2978, 0.0
        %v3016 = vadd.f32 %v3014, %v3015
        %v3017 = vsel %vm469, %v2979, 0.0
        %v3018 = vadd.f32 %v3016, %v3017
        %v3019 = vsel %vm469, %v2980, 0.0
        %v3020 = vadd.f32 %v3018, %v3019
        %v3021 = vsel %vm469, %v2981, 0.0
        %v3022 = vadd.f32 %v3020, %v3021
        %v3023 = vsel %vm469, %v2982, 0.0
        %v3024 = vadd.f32 %v3022, %v3023
        %v3025 = vsel %vm469, %v2983, 0.0
        %v3026 = vadd.f32 %v3024, %v3025
        %v3027 = vsel %vm469, %v2984, 0.0
        %v3028 = vadd.f32 %v3026, %v3027
        %v3029 = vsel %vm469, %v2985, 0.0
        %v3030 = vadd.f32 %v3028, %v3029
        %v3031 = vsel %vm469, %v2986, 0.0
        %v3032 = vadd.f32 %v3030, %v3031
        %v3033 = vsel %vm469, %v2987, 0.0
        %v3034 = vadd.f32 %v3032, %v3033
        %v3035 = vsel %vm469, %v2988, 0.0
        %v3036 = vadd.f32 %v3034, %v3035
        %v3037 = vsel %vm469, %v2989, 0.0
        %v3038 = vadd.f32 %v3036, %v3037
        %v3039 = vsel %vm469, %v2990, 0.0
        %v3040 = vadd.f32 %v3038, %v3039
        %v3041 = vsel %vm469, %v2991, 0.0
        %v3042 = vadd.f32 %v3040, %v3041
        %v3043 = vsel %vm469, %v2992, 0.0
        %v3044 = vadd.f32 %v3042, %v3043
        %v3045 = vsel %vm469, %v2993, 0.0
        %v3046 = vadd.f32 %v3044, %v3045
        %v3047 = vsel %vm469, %v2994, 0.0
        %v3048 = vadd.f32 %v3046, %v3047
        %v3049 = vsel %vm469, %v2995, 0.0
        %v3050 = vadd.f32 %v3048, %v3049
        %v3051 = vsel %vm469, %v2996, 0.0
        %v3052 = vadd.f32 %v3050, %v3051
        %v3053 = vsel %vm469, %v2997, 0.0
        %v3054 = vadd.f32 %v3052, %v3053
        %v3055 = vsel %vm469, %v2998, 0.0
        %v3056 = vadd.f32 %v3054, %v3055
        %v3057 = vsel %vm469, %v2999, 0.0
        %v3058 = vadd.f32 %v3056, %v3057
        %v3059 = vsel %vm469, %v3000, 0.0
        %v3060 = vadd.f32 %v3058, %v3059
        %v3061 = vsel %vm469, %v3001, 0.0
        %v3062 = vadd.f32 %v3060, %v3061
        %v3063 = vsel %vm469, %v3002, 0.0
        %v3064 = vadd.f32 %v3062, %v3063
        %v3065 = vsel %vm469, %v3003, 0.0
        %v3066 = vadd.f32 %v3064, %v3065
        %v3067 = vrot.slane %v3066, 4
        %v3068 = vadd.f32 %v3066, %v3067
        %v3069 = vrot.slane %v3068, 2
        %v3070 = vadd.f32 %v3068, %v3069
        %v3071 = vrot.slane %v3070, 1
        %v3072 = vadd.f32 %v3070, %v3071
        %3073 = vst.msk [vmem:[%s325] sm:$0x1] %vm2970, %v3072
        %s3074 = sand.u32 %s126, 1
        %s3075 = scalar_lea.sflag [#allocation6], %s3074
        %s3076 = sand.u32 %s126, 1
        %s3077 = smul.addr %s3076, 256
        %s3078 = scalar_lea.vmem [#allocation12], %s3077
        %s3079 = sand.u32 %s29, 1
        %s3080 = scalar_lea.sflag [#allocation14], %s3079
        %s3081 = sand.u32 %s152, 1
        %s3082 = scalar_lea.vmem [#allocation13], %s3081
        %s3083 = sand.u32 %s29, 1
        %s3084 = scalar_lea.sflag [#allocation14], %s3083
        %s3085 = sand.u32 %s178, 1
        %s3086 = scalar_lea.vmem [#allocation15], %s3085
        // Predicated region
        $region53: #{conv_block_forward.3} parent=35 // pred_check
          %p3087 = pneg %p136
        $region54: #{conv_block_forward.3} parent=35 // pred_check_branch
          %3089 = sbr.rel (%p3087) target = $region56
        $region55: #{conv_block_forward.3} parent=35 // pred_region
          %s3091 = ssub.s32 4096, 4096
          %3092 = vsyncadd %s3075, %s3091
          %s3093 = smul.addr %s29, 32
          %s3094 = smul.addr %s3093, 128
          %s3095 = scalar_lea.hbm %s4, %s3094
          %s3096 = sshll.u32 %s3078, 4
          %s3097 = int_to_ptr.vmem [resolvable:$true] %s3096
          %3102 = dma.vmem_to_hbm [thread:$0]  %s3097, 4096, %s3095, %s3075, 128, 128, 8
        $region56: #{conv_block_forward.3} parent=35 // pred_fallthru
          _
        // Predicated region
        $region57: #{conv_block_forward.3} parent=35 // pred_check
          %p3103 = pneg %p162
        $region58: #{conv_block_forward.3} parent=35 // pred_check_branch
          %3105 = sbr.rel (%p3103) target = $region60
        $region59: #{conv_block_forward.3} parent=35 // pred_region
          %s3107 = ssub.s32 16, 16
          %3108 = vsyncadd %s3080, %s3107
          %s3109 = smul.addr %s29, 16
          %s3110 = scalar_lea.hbm %s5, %s3109
          %s3112 = sshll.u32 %s3082, 4
          %s3113 = int_to_ptr.vmem [resolvable:$true] %s3112
          %3115 = dma.vmem_to_hbm [thread:$0]  %s3113, 16, %s3110, %s3080
        $region60: #{conv_block_forward.3} parent=35 // pred_fallthru
          _
        // Predicated region
        $region61: #{conv_block_forward.3} parent=35 // pred_check
          %p3116 = pneg %p188
        $region62: #{conv_block_forward.3} parent=35 // pred_check_branch
          %3118 = sbr.rel (%p3116) target = $region64
        $region63: #{conv_block_forward.3} parent=35 // pred_region
          %s3120 = ssub.s32 16, 16
          %3121 = vsyncadd %s3084, %s3120
          %s3122 = smul.addr %s29, 16
          %s3123 = scalar_lea.hbm %s6, %s3122
          %s3125 = sshll.u32 %s3086, 4
          %s3126 = int_to_ptr.vmem [resolvable:$true] %s3125
          %3128 = dma.vmem_to_hbm [thread:$0]  %s3126, 16, %s3123, %s3084
        $region64: #{conv_block_forward.3} parent=35 // pred_fallthru
          _
      $region36: #{conv_block_forward.3} parent=5 // pred_fallthru
        _
      %p3129 = scmp.le.s32.totalorder 2, %s24
      // Predicated region
      $region65: #{conv_block_forward.3} parent=5 // pred_check
        %p3130 = pneg %p3129
      $region66: #{conv_block_forward.3} parent=5 // pred_check_branch
        %3132 = sbr.rel (%p3130) target = $region68
      $region67: #{conv_block_forward.3} parent=5 // pred_region
        %s3133 = ssub.s32 %s24, 2
        // Predicated region
        $region69: #{conv_block_forward.3} parent=67 // pred_check
          %p3134 = pneg %p142
        $region70: #{conv_block_forward.3} parent=67 // pred_check_branch
          %3136 = sbr.rel (%p3134) target = $region72
        $region71: #{conv_block_forward.3} parent=67 // pred_region
          %s3137 = sand.u32 %s127, 1
          %s3138 = scalar_lea.sflag [#allocation6], %s3137
          %s3139 = sand.u32 %s127, 1
          %s3140 = smul.addr %s3139, 256
          %s3141 = scalar_lea.vmem [#allocation12], %s3140
          %3142 = dma.done %s3138, 4096
        $region72: #{conv_block_forward.3} parent=67 // pred_fallthru
          _
        // Predicated region
        $region73: #{conv_block_forward.3} parent=67 // pred_check
          %p3143 = pneg %p168
        $region74: #{conv_block_forward.3} parent=67 // pred_check_branch
          %3145 = sbr.rel (%p3143) target = $region76
        $region75: #{conv_block_forward.3} parent=67 // pred_region
          %s3146 = sand.u32 %s30, 1
          %s3147 = scalar_lea.sflag [#allocation14], %s3146
          %s3148 = sand.u32 %s153, 1
          %s3149 = scalar_lea.vmem [#allocation13], %s3148
          %3150 = dma.done %s3147, 16
        $region76: #{conv_block_forward.3} parent=67 // pred_fallthru
          _
        // Predicated region
        $region77: #{conv_block_forward.3} parent=67 // pred_check
          %p3151 = pneg %p194
        $region78: #{conv_block_forward.3} parent=67 // pred_check_branch
          %3153 = sbr.rel (%p3151) target = $region80
        $region79: #{conv_block_forward.3} parent=67 // pred_region
          %s3154 = sand.u32 %s30, 1
          %s3155 = scalar_lea.sflag [#allocation14], %s3154
          %s3156 = sand.u32 %s179, 1
          %s3157 = scalar_lea.vmem [#allocation15], %s3156
          %3158 = dma.done %s3155, 16
        $region80: #{conv_block_forward.3} parent=67 // pred_fallthru
          _
      $region68: #{conv_block_forward.3} parent=5 // pred_fallthru
        _
    $region6: #{conv_block_forward.3} parent=1 // loop_footer
      %s28 = sadd.s32 1, %s24
    $region7: #{conv_block_forward.3} parent=1 // loop_footer_branch
      %23 = sbr.rel target = $region3
    $region8: #{conv_block_forward.3} parent=1 // loop_exit
      _
    %3159 = vsyncpa [#allocation5], 1
    %s3160 = scalar_lea.sflag [#allocation5], 1
    %3161 = vsyncpa %s3160, 1
    %3162 = vsyncpa [#allocation8], 1
    %3163 = vsyncpa [#allocation11], 1
    %3164 = vsyncpa [#allocation6], 1
    %s3165 = scalar_lea.sflag [#allocation6], 1
    %3166 = vsyncpa %s3165, 1
    %3167 = vsyncpa [#allocation14], 1
    %s3168 = scalar_lea.sflag [#allocation14], 1
    %3169 = vsyncpa %s3168, 1

// kernel: conv_block_forward.4
$region0: #{conv_block_forward.4}
  #allocation0 [shape = 'u32[]', space=smem, size = 0x4, offset = 0x4, fixed_abs, tag = 'smem constant byte address 0x4 - core index']
  #allocation1 [shape = 'u32[144,128]{1,0:T(1,128)}', space=vmem, size = 0x12000, scoped, tag = 'internal scratch']
  #allocation2 [shape = 'f32[18,18,4]{2,1,0:T(8,128)}', space=vmem, size = 0x36000, scoped, tag = 'scratch operand']
  #allocation3 [shape = 'f32[256,2]{1,0:T(8,128)}', space=vmem, size = 0x20000, scoped, tag = 'scratch operand']
  %s0 = inlined_call_operand.hbm [shape: f32[2,16,16,4], index: 0, kind: input, shape index: {}]
  %s1 = inlined_call_operand.hbm [shape: f32[1,1,1,4], index: 1, kind: input, shape index: {}]
  %s2 = inlined_call_operand.hbm [shape: f32[1,1,1,4], index: 2, kind: input, shape index: {}]
  %s3 = inlined_call_operand.hbm [shape: bf16[3,12,2], index: 3, kind: input, shape index: {}]
  %s4 = inlined_call_operand.hbm [shape: f32[2,16,16,2], index: 4, kind: output, shape index: {0}]
  %s5 = inlined_call_operand.hbm [shape: f32[2,1,2], index: 5, kind: output, shape index: {1}]
  %s6 = inlined_call_operand.hbm [shape: f32[2,1,2], index: 6, kind: output, shape index: {2}]
  %7 = xla_tuple %s4, %s5, %s6
  %s8 = sld [smem:[#allocation0]]
  $region81: #{conv_block_forward.4} parent=0
    _
  %s10 = ssub.s32 1, %s8
  %s11 = scalar_select 0, %s10, %s8
  $region1: #{conv_block_forward.4} parent=0
    #allocation4 [shape = 'u8[262144]{0}', space=vmem, size = 0x40000, scoped, tag = 'input window, operand 0']
    #allocation5 [shape = 's32[2]{0}', space=sflag, size = 0x8, scoped, tag = 'scoped memory for conv_block_forward.4']
    #allocation6 [shape = 's32[2]{0}', space=sflag, size = 0x8, scoped, tag = 'scoped memory for conv_block_forward.4']
    #allocation7 [shape = 'u8[512]{0}', space=vmem, size = 0x400, scoped, tag = 'input window, operand 1, single buffered']
    #allocation8 [shape = 's32[1]{0}', space=sflag, size = 0x4, scoped, tag = 'scoped memory for conv_block_forward.4']
    #allocation9 [shape = 'u8[512]{0}', space=vmem, size = 0x400, scoped, tag = 'input window, operand 2, single buffered']
    #allocation10 [shape = 'u8[12288]{0}', space=vmem, size = 0x3000, scoped, tag = 'input window, operand 3, single buffered']
    #allocation11 [shape = 's32[1]{0}', space=sflag, size = 0x4, scoped, tag = 'scoped memory for conv_block_forward.4']
    #allocation12 [shape = 'u8[262144]{0}', space=vmem, size = 0x40000, scoped, tag = 'output window, operand 0']
    #allocation13 [shape = 'u8[1024]{0}', space=vmem, size = 0x400, scoped, tag = 'output window, operand 1']
    #allocation14 [shape = 's32[2]{0}', space=sflag, size = 0x8, scoped, tag = 'scoped memory for conv_block_forward.4']
    #allocation15 [shape = 'u8[1024]{0}', space=vmem, size = 0x400, scoped, tag = 'output window, operand 2']
    %12 = vsyncpa [#allocation5], 0
    %s13 = scalar_lea.sflag [#allocation5], 1
    %14 = vsyncpa %s13, 0
    %15 = vsyncpa [#allocation8], 0
    %16 = vsyncpa [#allocation11], 0
    %17 = vsyncpa [#allocation6], 0
    %s18 = scalar_lea.sflag [#allocation6], 1
    %19 = vsyncpa %s18, 0
    %20 = vsyncpa [#allocation14], 0
    %s21 = scalar_lea.sflag [#allocation14], 1
    %22 = vsyncpa %s21, 0
    loop: start=0, step=1, limit=4
    $region2: #{conv_block_forward.4} parent=1 // loop_pre_header
      _
    $region3: #{conv_block_forward.4} parent=1 // loop_header
      %s24 = sphi 0, %s28
      %p25 = scmp.ge.s32.totalorder %s24, 4
      %s34 = sphi 0, %s36
      %s37 = sphi 0, %s34
      %s38 = sphi 0, %s37
      %s54 = sphi 0, %s38
      %s58 = sphi 0, %s58
      %s60 = sphi 0, %s58
      %s61 = sphi 0, %s60
      %s75 = sphi 0, %s61
      %s79 = sphi 0, %s79
      %s81 = sphi 0, %s79
      %s82 = sphi 0, %s81
      %s96 = sphi 0, %s82
      %s100 = sphi 0, %s100
      %s102 = sphi 0, %s100
      %s103 = sphi 0, %s102
      %s117 = sphi 0, %s103
      %s123 = sphi 0, %s125
      %s126 = sphi 0, %s123
      %s127 = sphi 0, %s126
      %s143 = sphi 0, %s127
      %s149 = sphi 0, %s151
      %s152 = sphi 0, %s149
      %s153 = sphi 0, %s152
      %s169 = sphi 0, %s153
      %s175 = sphi 0, %s177
      %s178 = sphi 0, %s175
      %s179 = sphi 0, %s178
      %s195 = sphi 0, %s179
    $region4: #{conv_block_forward.4} parent=1 // loop_header_branch
      %27 = sbr.rel (%p25) target = $region8
    $region5: #{conv_block_forward.4} parent=1 // loop_body
      %s29 = ssub.s32 %s24, 1
      %s30 = ssub.s32 %s24, 2
      %s31 = sadd.s32 %s24, 1
      %s32 = ssub.s32 %s24, %s31
      %p33 = scmp.eq.s32.totalorder %s32, 0
      %s35 = sadd.s32 %s34, 1
      %s36 = scalar_select %p33, %s34, %s35
      %p39 = pneg %p33
      %p40 = scmp.eq.s32.totalorder %s24, 1
      %p41 = por %p39, %p40
      %p42 = scmp.ne.s32.totalorder %s34, %s37
      %p43 = scmp.eq.s32.totalorder %s24, 0
      %p44 = por %p42, %p43
      %p45 = scmp.ne.s32.totalorder %s34, %s37
      %p46 = scmp.eq.s32.totalorder %s29, 1
      %p47 = por %p45, %p46
      %p48 = scmp.ne.s32.totalorder %s37, %s38
      %p49 = scmp.eq.s32.totalorder %s29, 0
      %p50 = por %p48, %p49
      %p51 = scmp.ne.s32.totalorder %s37, %s38
      %p52 = scmp.eq.s32.totalorder %s30, 1
      %p53 = por %p51, %p52
      %p55 = scmp.ne.s32.totalorder %s38, %s54
      %p56 = scmp.eq.s32.totalorder %s30, 0
      %p57 = por %p55, %p56
      %s59 = sadd.s32 %s58, 1
      %p62 = scmp.eq.s32.totalorder %s24, 1
      %p63 = scmp.ne.s32.totalorder %s58, %s60
      %p64 = scmp.eq.s32.totalorder %s24, 0
      %p65 = por %p63, %p64
      %p66 = scmp.ne.s32.totalorder %s58, %s60
      %p67 = scmp.eq.s32.totalorder %s29, 1
      %p68 = por %p66, %p67
      %p69 = scmp.ne.s32.totalorder %s60, %s61
      %p70 = scmp.eq.s32.totalorder %s29, 0
      %p71 = por %p69, %p70
      %p72 = scmp.ne.s32.totalorder %s60, %s61
      %p73 = scmp.eq.s32.totalorder %s30, 1
      %p74 = por %p72, %p73
      %p76 = scmp.ne.s32.totalorder %s61, %s75
      %p77 = scmp.eq.s32.totalorder %s30, 0
      %p78 = por %p76, %p77
      %s80 = sadd.s32 %s79, 1
      %p83 = scmp.eq.s32.totalorder %s24, 1
      %p84 = scmp.ne.s32.totalorder %s79, %s81
      %p85 = scmp.eq.s32.totalorder %s24, 0
      %p86 = por %p84, %p85
      %p87 = scmp.ne.s32.totalorder %s79, %s81
      %p88 = scmp.eq.s32.totalorder %s29, 1
      %p89 = por %p87, %p88
      %p90 = scmp.ne.s32.totalorder %s81, %s82
      %p91 = scmp.eq.s32.totalorder %s29, 0
      %p92 = por %p90, %p91
      %p93 = scmp.ne.s32.totalorder %s81, %s82
      %p94 = scmp.eq.s32.totalorder %s30, 1
      %p95 = por %p93, %p94
      %p97 = scmp.ne.s32.totalorder %s82, %s96
      %p98 = scmp.eq.s32.totalorder %s30, 0
      %p99 = por %p97, %p98
      %s101 = sadd.s32 %s100, 1
      %p104 = scmp.eq.s32.totalorder %s24, 1
      %p105 = scmp.ne.s32.totalorder %s100, %s102
      %p106 = scmp.eq.s32.totalorder %s24, 0
      %p107 = por %p105, %p106
      %p108 = scmp.ne.s32.totalorder %s100, %s102
      %p109 = scmp.eq.s32.totalorder %s29, 1
      %p110 = por %p108, %p109
      %p111 = scmp.ne.s32.totalorder %s102, %s103
      %p112 = scmp.eq.s32.totalorder %s29, 0
      %p113 = por %p111, %p112
      %p114 = scmp.ne.s32.totalorder %s102, %s103
      %p115 = scmp.eq.s32.totalorder %s30, 1
      %p116 = por %p114, %p115
      %p118 = scmp.ne.s32.totalorder %s103, %s117
      %p119 = scmp.eq.s32.totalorder %s30, 0
      %p120 = por %p118, %p119
      %s121 = ssub.s32 %s24, %s31
      %p122 = scmp.eq.s32.totalorder %s121, 0
      %s124 = sadd.s32 %s123, 1
      %s125 = scalar_select %p122, %s123, %s124
      %p128 = pneg %p122
      %p129 = scmp.eq.s32.totalorder %s24, 1
      %p130 = por %p128, %p129
      %p131 = scmp.ne.s32.totalorder %s123, %s126
      %p132 = scmp.eq.s32.totalorder %s24, 0
      %p133 = por %p131, %p132
      %p134 = scmp.ne.s32.totalorder %s123, %s126
      %p135 = scmp.eq.s32.totalorder %s29, 1
      %p136 = por %p134, %p135
      %p137 = scmp.ne.s32.totalorder %s126, %s127
      %p138 = scmp.eq.s32.totalorder %s29, 0
      %p139 = por %p137, %p138
      %p140 = scmp.ne.s32.totalorder %s126, %s127
      %p141 = scmp.eq.s32.totalorder %s30, 1
      %p142 = por %p140, %p141
      %p144 = scmp.ne.s32.totalorder %s127, %s143
      %p145 = scmp.eq.s32.totalorder %s30, 0
      %p146 = por %p144, %p145
      %s147 = ssub.s32 %s24, %s31
      %p148 = scmp.eq.s32.totalorder %s147, 0
      %s150 = sadd.s32 %s149, 1
      %s151 = scalar_select %p148, %s149, %s150
      %p154 = pneg %p148
      %p155 = scmp.eq.s32.totalorder %s24, 1
      %p156 = por %p154, %p155
      %p157 = scmp.ne.s32.totalorder %s149, %s152
      %p158 = scmp.eq.s32.totalorder %s24, 0
      %p159 = por %p157, %p158
      %p160 = scmp.ne.s32.totalorder %s149, %s152
      %p161 = scmp.eq.s32.totalorder %s29, 1
      %p162 = por %p160, %p161
      %p163 = scmp.ne.s32.totalorder %s152, %s153
      %p164 = scmp.eq.s32.totalorder %s29, 0
      %p165 = por %p163, %p164
      %p166 = scmp.ne.s32.totalorder %s152, %s153
      %p167 = scmp.eq.s32.totalorder %s30, 1
      %p168 = por %p166, %p167
      %p170 = scmp.ne.s32.totalorder %s153, %s169
      %p171 = scmp.eq.s32.totalorder %s30, 0
      %p172 = por %p170, %p171
      %s173 = ssub.s32 %s24, %s31
      %p174 = scmp.eq.s32.totalorder %s173, 0
      %s176 = sadd.s32 %s175, 1
      %s177 = scalar_select %p174, %s175, %s176
      %p180 = pneg %p174
      %p181 = scmp.eq.s32.totalorder %s24, 1
      %p182 = por %p180, %p181
      %p183 = scmp.ne.s32.totalorder %s175, %s178
      %p184 = scmp.eq.s32.totalorder %s24, 0
      %p185 = por %p183, %p184
      %p186 = scmp.ne.s32.totalorder %s175, %s178
      %p187 = scmp.eq.s32.totalorder %s29, 1
      %p188 = por %p186, %p187
      %p189 = scmp.ne.s32.totalorder %s178, %s179
      %p190 = scmp.eq.s32.totalorder %s29, 0
      %p191 = por %p189, %p190
      %p192 = scmp.ne.s32.totalorder %s178, %s179
      %p193 = scmp.eq.s32.totalorder %s30, 1
      %p194 = por %p192, %p193
      %p196 = scmp.ne.s32.totalorder %s179, %s195
      %p197 = scmp.eq.s32.totalorder %s30, 0
      %p198 = por %p196, %p197
      %p199 = scmp.le.s32.totalorder 1, %s24
      %p200 = scmp.lt.s32.totalorder %s24, 3
      %p201 = pnand %p199, %p200
      %p202 = pneg %p201
      // Predicated region
      $region9: #{conv_block_forward.4} parent=5 // pred_check
        _
      $region10: #{conv_block_forward.4} parent=5 // pred_check_branch
        %204 = sbr.rel (%p201) target = $region12
      $region11: #{conv_block_forward.4} parent=5 // pred_region
        %s205 = ssub.s32 %s24, 1
        // Predicated region
        $region13: #{conv_block_forward.4} parent=11 // pred_check
          %p206 = pneg %p71
        $region14: #{conv_block_forward.4} parent=11 // pred_check_branch
          %208 = sbr.rel (%p206) target = $region16
        $region15: #{conv_block_forward.4} parent=11 // pred_region
          %s210 = ssub.s32 16, 16
          %211 = vsyncadd [#allocation8], %s210
          %s213 = sshll.u32 [#allocation7], 4
          %s214 = int_to_ptr.vmem [resolvable:$true] %s213
          %216 = dma.hbm_to_vmem [thread:$0]  %s1, 16, %s214, [#allocation8]
        $region16: #{conv_block_forward.4} parent=11 // pred_fallthru
          _
        // Predicated region
        $region17: #{conv_block_forward.4} parent=11 // pred_check
          %p217 = pneg %p92
        $region18: #{conv_block_forward.4} parent=11 // pred_check_branch
          %219 = sbr.rel (%p217) target = $region20
        $region19: #{conv_block_forward.4} parent=11 // pred_region
          %s221 = ssub.s32 16, 16
          %222 = vsyncadd [#allocation8], %s221
          %s224 = sshll.u32 [#allocation9], 4
          %s225 = int_to_ptr.vmem [resolvable:$true] %s224
          %227 = dma.hbm_to_vmem [thread:$0]  %s2, 16, %s225, [#allocation8]
        $region20: #{conv_block_forward.4} parent=11 // pred_fallthru
          _
        // Predicated region
        $region21: #{conv_block_forward.4} parent=11 // pred_check
          %p228 = pneg %p113
        $region22: #{conv_block_forward.4} parent=11 // pred_check_branch
          %230 = sbr.rel (%p228) target = $region24
        $region23: #{conv_block_forward.4} parent=11 // pred_region
          %s232 = ssub.s32 384, 384
          %233 = vsyncadd [#allocation11], %s232
          %s234 = sshll.u32 [#allocation10], 4
          %s235 = int_to_ptr.vmem [resolvable:$true] %s234
          %240 = dma.hbm_to_vmem [thread:$0]  %s3, 384, %s235, [#allocation11], 64, 64, 4
        $region24: #{conv_block_forward.4} parent=11 // pred_fallthru
          _
      $region12: #{conv_block_forward.4} parent=5 // pred_fallthru
        _
      %p241 = scmp.lt.s32.totalorder %s24, 2
      // Predicated region
      $region25: #{conv_block_forward.4} parent=5 // pred_check
        %p242 = pneg %p241
      $region26: #{conv_block_forward.4} parent=5 // pred_check_branch
        %244 = sbr.rel (%p242) target = $region28
      $region27: #{conv_block_forward.4} parent=5 // pred_region
        // Predicated region
        $region29: #{conv_block_forward.4} parent=27 // pred_check
          %p245 = pneg %p44
        $region30: #{conv_block_forward.4} parent=27 // pred_check_branch
          %247 = sbr.rel (%p245) target = $region32
        $region31: #{conv_block_forward.4} parent=27 // pred_region
          %s248 = sand.u32 %s34, 1
          %s249 = scalar_lea.sflag [#allocation5], %s248
          %s250 = sand.u32 %s34, 1
          %s251 = smul.addr %s250, 256
          %s252 = scalar_lea.vmem [#allocation4], %s251
          %s254 = ssub.s32 4096, 4096
          %255 = vsyncadd %s249, %s254
          %s256 = smul.addr %s24, 32
          %s257 = smul.addr %s256, 128
          %s258 = scalar_lea.hbm %s0, %s257
          %s259 = sshll.u32 %s252, 4
          %s260 = int_to_ptr.vmem [resolvable:$true] %s259
          %265 = dma.hbm_to_vmem [thread:$0]  %s258, 4096, %s260, %s249, 128, 128, 8
        $region32: #{conv_block_forward.4} parent=27 // pred_fallthru
          _
      $region28: #{conv_block_forward.4} parent=5 // pred_fallthru
        _
      %p266 = scmp.le.s32.totalorder 1, %s24
      %p267 = scmp.lt.s32.totalorder %s24, 3
      %p268 = pnand %p266, %p267
      %p269 = pneg %p268
      // Predicated region
      $region33: #{conv_block_forward.4} parent=5 // pred_check
        _
      $region34: #{conv_block_forward.4} parent=5 // pred_check_branch
        %271 = sbr.rel (%p268) target = $region36
      $region35: #{conv_block_forward.4} parent=5 // pred_region
        %s272 = ssub.s32 %s24, 1
        %s273 = sand.u32 %s37, 1
        %s274 = scalar_lea.sflag [#allocation5], %s273
        %s275 = sand.u32 %s37, 1
        %s276 = smul.addr %s275, 256
        %s277 = scalar_lea.vmem [#allocation4], %s276
        // Predicated region
        $region37: #{conv_block_forward.4} parent=35 // pred_check
          %p278 = pneg %p50
        $region38: #{conv_block_forward.4} parent=35 // pred_check_branch
          %280 = sbr.rel (%p278) target = $region40
        $region39: #{conv_block_forward.4} parent=35 // pred_region
          %281 = dma.done %s274, 4096
        $region40: #{conv_block_forward.4} parent=35 // pred_fallthru
          _
        // Predicated region
        $region41: #{conv_block_forward.4} parent=35 // pred_check
          %p282 = pneg %p71
        $region42: #{conv_block_forward.4} parent=35 // pred_check_branch
          %284 = sbr.rel (%p282) target = $region44
        $region43: #{conv_block_forward.4} parent=35 // pred_region
          %285 = dma.done [#allocation8], 16
        $region44: #{conv_block_forward.4} parent=35 // pred_fallthru
          _
        // Predicated region
        $region45: #{conv_block_forward.4} parent=35 // pred_check
          %p286 = pneg %p92
        $region46: #{conv_block_forward.4} parent=35 // pred_check_branch
          %288 = sbr.rel (%p286) target = $region48
        $region47: #{conv_block_forward.4} parent=35 // pred_region
          %289 = dma.done [#allocation8], 16
        $region48: #{conv_block_forward.4} parent=35 // pred_fallthru
          _
        // Predicated region
        $region49: #{conv_block_forward.4} parent=35 // pred_check
          %p290 = pneg %p113
        $region50: #{conv_block_forward.4} parent=35 // pred_check_branch
          %292 = sbr.rel (%p290) target = $region52
        $region51: #{conv_block_forward.4} parent=35 // pred_region
          %293 = dma.done [#allocation11], 384
        $region52: #{conv_block_forward.4} parent=35 // pred_fallthru
          _
        %s294 = sand.u32 %s37, 1
        %s295 = scalar_lea.sflag [#allocation5], %s294
        %s296 = sand.u32 %s37, 1
        %s297 = smul.addr %s296, 256
        %s298 = scalar_lea.vmem [#allocation4], %s297
        %p299 = pneg %p50
        %p300 = pneg %p47
        %p301 = pneg %p71
        %p302 = pneg %p68
        %p303 = pneg %p92
        %p304 = pneg %p89
        %p305 = pneg %p113
        %p306 = pneg %p110
        %p307 = pneg %p139
        %p308 = pneg %p136
        %s309 = sand.u32 %s126, 1
        %s310 = scalar_lea.sflag [#allocation6], %s309
        %s311 = sand.u32 %s126, 1
        %s312 = smul.addr %s311, 256
        %s313 = scalar_lea.vmem [#allocation12], %s312
        %p314 = pneg %p165
        %p315 = pneg %p162
        %s316 = sand.u32 %s29, 1
        %s317 = scalar_lea.sflag [#allocation14], %s316
        %s318 = sand.u32 %s152, 1
        %s319 = scalar_lea.vmem [#allocation13], %s318
        %p320 = pneg %p191
        %p321 = pneg %p188
        %s322 = sand.u32 %s29, 1
        %s323 = scalar_lea.sflag [#allocation14], %s322
        %s324 = sand.u32 %s178, 1
        %s325 = scalar_lea.vmem [#allocation15], %s324
        %v327 = vld [vmem:[%s277] sm:$0xff]
        %v328 = vld [vmem:[%s277 + $0x8] sm:$0xff]
        %v329 = vld [vmem:[%s277 + $0x10] sm:$0xff]
        %v330 = vld [vmem:[%s277 + $0x18] sm:$0xff]
        %v331 = vld [vmem:[%s277 + $0x20] sm:$0xff]
        %v332 = vld [vmem:[%s277 + $0x28] sm:$0xff]
        %v333 = vld [vmem:[%s277 + $0x30] sm:$0xff]
        %v334 = vld [vmem:[%s277 + $0x38] sm:$0xff]
        %v335 = vld [vmem:[%s277 + $0x40] sm:$0xff]
        %v336 = vld [vmem:[%s277 + $0x48] sm:$0xff]
        %v337 = vld [vmem:[%s277 + $0x50] sm:$0xff]
        %v338 = vld [vmem:[%s277 + $0x58] sm:$0xff]
        %v339 = vld [vmem:[%s277 + $0x60] sm:$0xff]
        %v340 = vld [vmem:[%s277 + $0x68] sm:$0xff]
        %v341 = vld [vmem:[%s277 + $0x70] sm:$0xff]
        %v342 = vld [vmem:[%s277 + $0x78] sm:$0xff]
        %v343 = vld [vmem:[%s277 + $0x80] sm:$0xff]
        %v344 = vld [vmem:[%s277 + $0x88] sm:$0xff]
        %v345 = vld [vmem:[%s277 + $0x90] sm:$0xff]
        %v346 = vld [vmem:[%s277 + $0x98] sm:$0xff]
        %v347 = vld [vmem:[%s277 + $0xa0] sm:$0xff]
        %v348 = vld [vmem:[%s277 + $0xa8] sm:$0xff]
        %v349 = vld [vmem:[%s277 + $0xb0] sm:$0xff]
        %v350 = vld [vmem:[%s277 + $0xb8] sm:$0xff]
        %v351 = vld [vmem:[%s277 + $0xc0] sm:$0xff]
        %v352 = vld [vmem:[%s277 + $0xc8] sm:$0xff]
        %v353 = vld [vmem:[%s277 + $0xd0] sm:$0xff]
        %v354 = vld [vmem:[%s277 + $0xd8] sm:$0xff]
        %v355 = vld [vmem:[%s277 + $0xe0] sm:$0xff]
        %v356 = vld [vmem:[%s277 + $0xe8] sm:$0xff]
        %v357 = vld [vmem:[%s277 + $0xf0] sm:$0xff]
        %v358 = vld [vmem:[%s277 + $0xf8] sm:$0xff]
        %v359 = vld [vmem:[#allocation7] sm:$0x1]
        %v360 = vld [vmem:[#allocation9] sm:$0x1]
        %v362 = vlaneseq
        %v363 = vshrl.u32 %v362, 7
        %v364 = vsub.s32 0, %v363
        %v365 = vrot.slane %v359, %v364
        %v367 = vmul.f32 %v327, %v365
        %v368 = vmul.f32 %v328, %v365
        %v369 = vmul.f32 %v329, %v365
        %v370 = vmul.f32 %v330, %v365
        %v371 = vmul.f32 %v331, %v365
        %v372 = vmul.f32 %v332, %v365
        %v373 = vmul.f32 %v333, %v365
        %v374 = vmul.f32 %v334, %v365
        %v375 = vmul.f32 %v335, %v365
        %v376 = vmul.f32 %v336, %v365
        %v377 = vmul.f32 %v337, %v365
        %v378 = vmul.f32 %v338, %v365
        %v379 = vmul.f32 %v339, %v365
        %v380 = vmul.f32 %v340, %v365
        %v381 = vmul.f32 %v341, %v365
        %v382 = vmul.f32 %v342, %v365
        %v383 = vmul.f32 %v343, %v365
        %v384 = vmul.f32 %v344, %v365
        %v385 = vmul.f32 %v345, %v365
        %v386 = vmul.f32 %v346, %v365
        %v387 = vmul.f32 %v347, %v365
        %v388 = vmul.f32 %v348, %v365
        %v389 = vmul.f32 %v349, %v365
        %v390 = vmul.f32 %v350, %v365
        %v391 = vmul.f32 %v351, %v365
        %v392 = vmul.f32 %v352, %v365
        %v393 = vmul.f32 %v353, %v365
        %v394 = vmul.f32 %v354, %v365
        %v395 = vmul.f32 %v355, %v365
        %v396 = vmul.f32 %v356, %v365
        %v397 = vmul.f32 %v357, %v365
        %v398 = vmul.f32 %v358, %v365
        %v400 = vlaneseq
        %v401 = vshrl.u32 %v400, 7
        %v402 = vsub.s32 0, %v401
        %v403 = vrot.slane %v360, %v402
        %v405 = vadd.f32 %v367, %v403
        %v406 = vadd.f32 %v368, %v403
        %v407 = vadd.f32 %v369, %v403
        %v408 = vadd.f32 %v370, %v403
        %v409 = vadd.f32 %v371, %v403
        %v410 = vadd.f32 %v372, %v403
        %v411 = vadd.f32 %v373, %v403
        %v412 = vadd.f32 %v374, %v403
        %v413 = vadd.f32 %v375, %v403
        %v414 = vadd.f32 %v376, %v403
        %v415 = vadd.f32 %v377, %v403
        %v416 = vadd.f32 %v378, %v403
        %v417 = vadd.f32 %v379, %v403
        %v418 = vadd.f32 %v380, %v403
        %v419 = vadd.f32 %v381, %v403
        %v420 = vadd.f32 %v382, %v403
        %v421 = vadd.f32 %v383, %v403
        %v422 = vadd.f32 %v384, %v403
        %v423 = vadd.f32 %v385, %v403
        %v424 = vadd.f32 %v386, %v403
        %v425 = vadd.f32 %v387, %v403
        %v426 = vadd.f32 %v388, %v403
        %v427 = vadd.f32 %v389, %v403
        %v428 = vadd.f32 %v390, %v403
        %v429 = vadd.f32 %v391, %v403
        %v430 = vadd.f32 %v392, %v403
        %v431 = vadd.f32 %v393, %v403
        %v432 = vadd.f32 %v394, %v403
        %v433 = vadd.f32 %v395, %v403
        %v434 = vadd.f32 %v396, %v403
        %v435 = vadd.f32 %v397, %v403
        %v436 = vadd.f32 %v398, %v403
        %v437 = vmax.f32 %v405, 0.0
        %v438 = vmax.f32 %v406, 0.0
        %v439 = vmax.f32 %v407, 0.0
        %v440 = vmax.f32 %v408, 0.0
        %v441 = vmax.f32 %v409, 0.0
        %v442 = vmax.f32 %v410, 0.0
        %v443 = vmax.f32 %v411, 0.0
        %v444 = vmax.f32 %v412, 0.0
        %v445 = vmax.f32 %v413, 0.0
        %v446 = vmax.f32 %v414, 0.0
        %v447 = vmax.f32 %v415, 0.0
        %v448 = vmax.f32 %v416, 0.0
        %v449 = vmax.f32 %v417, 0.0
        %v450 = vmax.f32 %v418, 0.0
        %v451 = vmax.f32 %v419, 0.0
        %v452 = vmax.f32 %v420, 0.0
        %v453 = vmax.f32 %v421, 0.0
        %v454 = vmax.f32 %v422, 0.0
        %v455 = vmax.f32 %v423, 0.0
        %v456 = vmax.f32 %v424, 0.0
        %v457 = vmax.f32 %v425, 0.0
        %v458 = vmax.f32 %v426, 0.0
        %v459 = vmax.f32 %v427, 0.0
        %v460 = vmax.f32 %v428, 0.0
        %v461 = vmax.f32 %v429, 0.0
        %v462 = vmax.f32 %v430, 0.0
        %v463 = vmax.f32 %v431, 0.0
        %v464 = vmax.f32 %v432, 0.0
        %v465 = vmax.f32 %v433, 0.0
        %v466 = vmax.f32 %v434, 0.0
        %v467 = vmax.f32 %v435, 0.0
        %v468 = vmax.f32 %v436, 0.0
        %vm469 = vcmask 31744
        %470 = vst.msk [vmem:[#allocation2] sm:$0xff] %vm469, 0.0
        %471 = vst.msk [vmem:[#allocation2 + $0x8] sm:$0xff] %vm469, 0.0
        %vm472 = vcmask 25600
        %473 = vst.msk [vmem:[#allocation2 + $0x10] sm:$0x3] %vm472, 0.0
        %474 = vst.msk [vmem:[#allocation2 + $0x18] sm:$0xff] %vm469, 0.0
        %475 = vst.msk [vmem:[#allocation2 + $0x20] sm:$0xff] %vm469, 0.0
        %476 = vst.msk [vmem:[#allocation2 + $0x28] sm:$0x3] %vm472, 0.0
        %477 = vst.msk [vmem:[#allocation2 + $0x30] sm:$0xff] %vm469, 0.0
        %478 = vst.msk [vmem:[#allocation2 + $0x38] sm:$0xff] %vm469, 0.0
        %479 = vst.msk [vmem:[#allocation2 + $0x40] sm:$0x3] %vm472, 0.0
        %480 = vst.msk [vmem:[#allocation2 + $0x48] sm:$0xff] %vm469, 0.0
        %481 = vst.msk [vmem:[#allocation2 + $0x50] sm:$0xff] %vm469, 0.0
        %482 = vst.msk [vmem:[#allocation2 + $0x58] sm:$0x3] %vm472, 0.0
        %483 = vst.msk [vmem:[#allocation2 + $0x60] sm:$0xff] %vm469, 0.0
        %484 = vst.msk [vmem:[#allocation2 + $0x68] sm:$0xff] %vm469, 0.0
        %485 = vst.msk [vmem:[#allocation2 + $0x70] sm:$0x3] %vm472, 0.0
        %486 = vst.msk [vmem:[#allocation2 + $0x78] sm:$0xff] %vm469, 0.0
        %487 = vst.msk [vmem:[#allocation2 + $0x80] sm:$0xff] %vm469, 0.0
        %488 = vst.msk [vmem:[#allocation2 + $0x88] sm:$0x3] %vm472, 0.0
        %489 = vst.msk [vmem:[#allocation2 + $0x90] sm:$0xff] %vm469, 0.0
        %490 = vst.msk [vmem:[#allocation2 + $0x98] sm:$0xff] %vm469, 0.0
        %491 = vst.msk [vmem:[#allocation2 + $0xa0] sm:$0x3] %vm472, 0.0
        %492 = vst.msk [vmem:[#allocation2 + $0xa8] sm:$0xff] %vm469, 0.0
        %493 = vst.msk [vmem:[#allocation2 + $0xb0] sm:$0xff] %vm469, 0.0
        %494 = vst.msk [vmem:[#allocation2 + $0xb8] sm:$0x3] %vm472, 0.0
        %495 = vst.msk [vmem:[#allocation2 + $0xc0] sm:$0xff] %vm469, 0.0
        %496 = vst.msk [vmem:[#allocation2 + $0xc8] sm:$0xff] %vm469, 0.0
        %497 = vst.msk [vmem:[#allocation2 + $0xd0] sm:$0x3] %vm472, 0.0
        %498 = vst.msk [vmem:[#allocation2 + $0xd8] sm:$0xff] %vm469, 0.0
        %499 = vst.msk [vmem:[#allocation2 + $0xe0] sm:$0xff] %vm469, 0.0
        %500 = vst.msk [vmem:[#allocation2 + $0xe8] sm:$0x3] %vm472, 0.0
        %501 = vst.msk [vmem:[#allocation2 + $0xf0] sm:$0xff] %vm469, 0.0
        %502 = vst.msk [vmem:[#allocation2 + $0xf8] sm:$0xff] %vm469, 0.0
        %503 = vst.msk [vmem:[#allocation2 + $0x100] sm:$0x3] %vm472, 0.0
        %504 = vst.msk [vmem:[#allocation2 + $0x108] sm:$0xff] %vm469, 0.0
        %505 = vst.msk [vmem:[#allocation2 + $0x110] sm:$0xff] %vm469, 0.0
        %506 = vst.msk [vmem:[#allocation2 + $0x118] sm:$0x3] %vm472, 0.0
        %507 = vst.msk [vmem:[#allocation2 + $0x120] sm:$0xff] %vm469, 0.0
        %508 = vst.msk [vmem:[#allocation2 + $0x128] sm:$0xff] %vm469, 0.0
        %509 = vst.msk [vmem:[#allocation2 + $0x130] sm:$0x3] %vm472, 0.0
        %510 = vst.msk [vmem:[#allocation2 + $0x138] sm:$0xff] %vm469, 0.0
        %511 = vst.msk [vmem:[#allocation2 + $0x140] sm:$0xff] %vm469, 0.0
        %512 = vst.msk [vmem:[#allocation2 + $0x148] sm:$0x3] %vm472, 0.0
        %513 = vst.msk [vmem:[#allocation2 + $0x150] sm:$0xff] %vm469, 0.0
        %514 = vst.msk [vmem:[#allocation2 + $0x158] sm:$0xff] %vm469, 0.0
        %515 = vst.msk [vmem:[#allocation2 + $0x160] sm:$0x3] %vm472, 0.0
        %516 = vst.msk [vmem:[#allocation2 + $0x168] sm:$0xff] %vm469, 0.0
        %517 = vst.msk [vmem:[#allocation2 + $0x170] sm:$0xff] %vm469, 0.0
        %518 = vst.msk [vmem:[#allocation2 + $0x178] sm:$0x3] %vm472, 0.0
        %519 = vst.msk [vmem:[#allocation2 + $0x180] sm:$0xff] %vm469, 0.0
        %520 = vst.msk [vmem:[#allocation2 + $0x188] sm:$0xff] %vm469, 0.0
        %521 = vst.msk [vmem:[#allocation2 + $0x190] sm:$0x3] %vm472, 0.0
        %522 = vst.msk [vmem:[#allocation2 + $0x198] sm:$0xff] %vm469, 0.0
        %523 = vst.msk [vmem:[#allocation2 + $0x1a0] sm:$0xff] %vm469, 0.0
        %524 = vst.msk [vmem:[#allocation2 + $0x1a8] sm:$0x3] %vm472, 0.0
        %s525 = scalar_lea.vmem [#allocation2], 24
        %526 = vst.msk [vmem:[%s525 + $0x1] sm:$0xff] %vm469, %v437
        %527 = vst.msk [vmem:[%s525 + $0x9] sm:$0xff] %vm469, %v438
        %528 = vst.msk [vmem:[%s525 + $0x19] sm:$0xff] %vm469, %v439
        %529 = vst.msk [vmem:[%s525 + $0x21] sm:$0xff] %vm469, %v440
        %530 = vst.msk [vmem:[%s525 + $0x31] sm:$0xff] %vm469, %v441
        %531 = vst.msk [vmem:[%s525 + $0x39] sm:$0xff] %vm469, %v442
        %532 = vst.msk [vmem:[%s525 + $0x49] sm:$0xff] %vm469, %v443
        %533 = vst.msk [vmem:[%s525 + $0x51] sm:$0xff] %vm469, %v444
        %534 = vst.msk [vmem:[%s525 + $0x61] sm:$0xff] %vm469, %v445
        %535 = vst.msk [vmem:[%s525 + $0x69] sm:$0xff] %vm469, %v446
        %536 = vst.msk [vmem:[%s525 + $0x79] sm:$0xff] %vm469, %v447
        %537 = vst.msk [vmem:[%s525 + $0x81] sm:$0xff] %vm469, %v448
        %538 = vst.msk [vmem:[%s525 + $0x91] sm:$0xff] %vm469, %v449
        %539 = vst.msk [vmem:[%s525 + $0x99] sm:$0xff] %vm469, %v450
        %540 = vst.msk [vmem:[%s525 + $0xa9] sm:$0xff] %vm469, %v451
        %541 = vst.msk [vmem:[%s525 + $0xb1] sm:$0xff] %vm469, %v452
        %542 = vst.msk [vmem:[%s525 + $0xc1] sm:$0xff] %vm469, %v453
        %543 = vst.msk [vmem:[%s525 + $0xc9] sm:$0xff] %vm469, %v454
        %544 = vst.msk [vmem:[%s525 + $0xd9] sm:$0xff] %vm469, %v455
        %545 = vst.msk [vmem:[%s525 + $0xe1] sm:$0xff] %vm469, %v456
        %546 = vst.msk [vmem:[%s525 + $0xf1] sm:$0xff] %vm469, %v457
        %547 = vst.msk [vmem:[%s525 + $0xf9] sm:$0xff] %vm469, %v458
        %548 = vst.msk [vmem:[%s525 + $0x109] sm:$0xff] %vm469, %v459
        %549 = vst.msk [vmem:[%s525 + $0x111] sm:$0xff] %vm469, %v460
        %550 = vst.msk [vmem:[%s525 + $0x121] sm:$0xff] %vm469, %v461
        %551 = vst.msk [vmem:[%s525 + $0x129] sm:$0xff] %vm469, %v462
        %552 = vst.msk [vmem:[%s525 + $0x139] sm:$0xff] %vm469, %v463
        %553 = vst.msk [vmem:[%s525 + $0x141] sm:$0xff] %vm469, %v464
        %554 = vst.msk [vmem:[%s525 + $0x151] sm:$0xff] %vm469, %v465
        %555 = vst.msk [vmem:[%s525 + $0x159] sm:$0xff] %vm469, %v466
        %556 = vst.msk [vmem:[%s525 + $0x169] sm:$0xff] %vm469, %v467
        %557 = vst.msk [vmem:[%s525 + $0x171] sm:$0xff] %vm469, %v468
        %vm558 = vcmask 15360
        %559 = vst.msk [vmem:[#allocation3] sm:$0xff] %vm558, 0.0
        %560 = vst.msk [vmem:[#allocation3 + $0x8] sm:$0xff] %vm558, 0.0
        %561 = vst.msk [vmem:[#allocation3 + $0x10] sm:$0xff] %vm558, 0.0
        %562 = vst.msk [vmem:[#allocation3 + $0x18] sm:$0xff] %vm558, 0.0
        %563 = vst.msk [vmem:[#allocation3 + $0x20] sm:$0xff] %vm558, 0.0
        %564 = vst.msk [vmem:[#allocation3 + $0x28] sm:$0xff] %vm558, 0.0
        %565 = vst.msk [vmem:[#allocation3 + $0x30] sm:$0xff] %vm558, 0.0
        %566 = vst.msk [vmem:[#allocation3 + $0x38] sm:$0xff] %vm558, 0.0
        %567 = vst.msk [vmem:[#allocation3 + $0x40] sm:$0xff] %vm558, 0.0
        %568 = vst.msk [vmem:[#allocation3 + $0x48] sm:$0xff] %vm558, 0.0
        %569 = vst.msk [vmem:[#allocation3 + $0x50] sm:$0xff] %vm558, 0.0
        %570 = vst.msk [vmem:[#allocation3 + $0x58] sm:$0xff] %vm558, 0.0
        %571 = vst.msk [vmem:[#allocation3 + $0x60] sm:$0xff] %vm558, 0.0
        %572 = vst.msk [vmem:[#allocation3 + $0x68] sm:$0xff] %vm558, 0.0
        %573 = vst.msk [vmem:[#allocation3 + $0x70] sm:$0xff] %vm558, 0.0
        %574 = vst.msk [vmem:[#allocation3 + $0x78] sm:$0xff] %vm558, 0.0
        %575 = vst.msk [vmem:[#allocation3 + $0x80] sm:$0xff] %vm558, 0.0
        %576 = vst.msk [vmem:[#allocation3 + $0x88] sm:$0xff] %vm558, 0.0
        %577 = vst.msk [vmem:[#allocation3 + $0x90] sm:$0xff] %vm558, 0.0
        %578 = vst.msk [vmem:[#allocation3 + $0x98] sm:$0xff] %vm558, 0.0
        %579 = vst.msk [vmem:[#allocation3 + $0xa0] sm:$0xff] %vm558, 0.0
        %580 = vst.msk [vmem:[#allocation3 + $0xa8] sm:$0xff] %vm558, 0.0
        %581 = vst.msk [vmem:[#allocation3 + $0xb0] sm:$0xff] %vm558, 0.0
        %582 = vst.msk [vmem:[#allocation3 + $0xb8] sm:$0xff] %vm558, 0.0
        %583 = vst.msk [vmem:[#allocation3 + $0xc0] sm:$0xff] %vm558, 0.0
        %584 = vst.msk [vmem:[#allocation3 + $0xc8] sm:$0xff] %vm558, 0.0
        %585 = vst.msk [vmem:[#allocation3 + $0xd0] sm:$0xff] %vm558, 0.0
        %586 = vst.msk [vmem:[#allocation3 + $0xd8] sm:$0xff] %vm558, 0.0
        %587 = vst.msk [vmem:[#allocation3 + $0xe0] sm:$0xff] %vm558, 0.0
        %588 = vst.msk [vmem:[#allocation3 + $0xe8] sm:$0xff] %vm558, 0.0
        %589 = vst.msk [vmem:[#allocation3 + $0xf0] sm:$0xff] %vm558, 0.0
        %590 = vst.msk [vmem:[#allocation3 + $0xf8] sm:$0xff] %vm558, 0.0
        %v591 = vld [vmem:[#allocation2] sm:$0xff]
        %v592 = vld [vmem:[#allocation2 + $0x8] sm:$0xff]
        %v593 = vld [vmem:[#allocation2 + $0x18] sm:$0xff]
        %v594 = vld [vmem:[#allocation2 + $0x20] sm:$0xff]
        %v595 = vld [vmem:[#allocation2 + $0x30] sm:$0xff]
        %v596 = vld [vmem:[#allocation2 + $0x38] sm:$0xff]
        %v597 = vld [vmem:[#allocation2 + $0x48] sm:$0xff]
        %v598 = vld [vmem:[#allocation2 + $0x50] sm:$0xff]
        %v599 = vld [vmem:[#allocation2 + $0x60] sm:$0xff]
        %v600 = vld [vmem:[#allocation2 + $0x68] sm:$0xff]
        %v601 = vld [vmem:[#allocation2 + $0x78] sm:$0xff]
        %v602 = vld [vmem:[#allocation2 + $0x80] sm:$0xff]
        %v603 = vld [vmem:[#allocation2 + $0x90] sm:$0xff]
        %v604 = vld [vmem:[#allocation2 + $0x98] sm:$0xff]
        %v605 = vld [vmem:[#allocation2 + $0xa8] sm:$0xff]
        %v606 = vld [vmem:[#allocation2 + $0xb0] sm:$0xff]
        %v607 = vld [vmem:[#allocation2 + $0xc0] sm:$0xff]
        %v608 = vld [vmem:[#allocation2 + $0xc8] sm:$0xff]
        %v609 = vld [vmem:[#allocation2 + $0xd8] sm:$0xff]
        %v610 = vld [vmem:[#allocation2 + $0xe0] sm:$0xff]
        %v611 = vld [vmem:[#allocation2 + $0xf0] sm:$0xff]
        %v612 = vld [vmem:[#allocation2 + $0xf8] sm:$0xff]
        %v613 = vld [vmem:[#allocation2 + $0x108] sm:$0xff]
        %v614 = vld [vmem:[#allocation2 + $0x110] sm:$0xff]
        %v615 = vld [vmem:[#allocation2 + $0x120] sm:$0xff]
        %v616 = vld [vmem:[#allocation2 + $0x128] sm:$0xff]
        %v617 = vld [vmem:[#allocation2 + $0x138] sm:$0xff]
        %v618 = vld [vmem:[#allocation2 + $0x140] sm:$0xff]
        %v619 = vld [vmem:[#allocation2 + $0x150] sm:$0xff]
        %v620 = vld [vmem:[#allocation2 + $0x158] sm:$0xff]
        %v621 = vld [vmem:[#allocation2 + $0x168] sm:$0xff]
        %v622 = vld [vmem:[#allocation2 + $0x170] sm:$0xff]
        %v623 = vld [vmem:[#allocation2 + $0x1] sm:$0xff]
        %v624 = vld [vmem:[#allocation2 + $0x9] sm:$0xff]
        %v625 = vld [vmem:[#allocation2 + $0x19] sm:$0xff]
        %v626 = vld [vmem:[#allocation2 + $0x21] sm:$0xff]
        %v627 = vld [vmem:[#allocation2 + $0x31] sm:$0xff]
        %v628 = vld [vmem:[#allocation2 + $0x39] sm:$0xff]
        %v629 = vld [vmem:[#allocation2 + $0x49] sm:$0xff]
        %v630 = vld [vmem:[#allocation2 + $0x51] sm:$0xff]
        %v631 = vld [vmem:[#allocation2 + $0x61] sm:$0xff]
        %v632 = vld [vmem:[#allocation2 + $0x69] sm:$0xff]
        %v633 = vld [vmem:[#allocation2 + $0x79] sm:$0xff]
        %v634 = vld [vmem:[#allocation2 + $0x81] sm:$0xff]
        %v635 = vld [vmem:[#allocation2 + $0x91] sm:$0xff]
        %v636 = vld [vmem:[#allocation2 + $0x99] sm:$0xff]
        %v637 = vld [vmem:[#allocation2 + $0xa9] sm:$0xff]
        %v638 = vld [vmem:[#allocation2 + $0xb1] sm:$0xff]
        %v639 = vld [vmem:[#allocation2 + $0xc1] sm:$0xff]
        %v640 = vld [vmem:[#allocation2 + $0xc9] sm:$0xff]
        %v641 = vld [vmem:[#allocation2 + $0xd9] sm:$0xff]
        %v642 = vld [vmem:[#allocation2 + $0xe1] sm:$0xff]
        %v643 = vld [vmem:[#allocation2 + $0xf1] sm:$0xff]
        %v644 = vld [vmem:[#allocation2 + $0xf9] sm:$0xff]
        %v645 = vld [vmem:[#allocation2 + $0x109] sm:$0xff]
        %v646 = vld [vmem:[#allocation2 + $0x111] sm:$0xff]
        %v647 = vld [vmem:[#allocation2 + $0x121] sm:$0xff]
        %v648 = vld [vmem:[#allocation2 + $0x129] sm:$0xff]
        %v649 = vld [vmem:[#allocation2 + $0x139] sm:$0xff]
        %v650 = vld [vmem:[#allocation2 + $0x141] sm:$0xff]
        %v651 = vld [vmem:[#allocation2 + $0x151] sm:$0xff]
        %v652 = vld [vmem:[#allocation2 + $0x159] sm:$0xff]
        %v653 = vld [vmem:[#allocation2 + $0x169] sm:$0xff]
        %v654 = vld [vmem:[#allocation2 + $0x171] sm:$0xff]
        %v655 = vld [vmem:[#allocation2 + $0x2] sm:$0xff]
        %v656 = vld [vmem:[#allocation2 + $0xa] sm:$0xff]
        %v657 = vld [vmem:[#allocation2 + $0x1a] sm:$0xff]
        %v658 = vld [vmem:[#allocation2 + $0x22] sm:$0xff]
        %v659 = vld [vmem:[#allocation2 + $0x32] sm:$0xff]
        %v660 = vld [vmem:[#allocation2 + $0x3a] sm:$0xff]
        %v661 = vld [vmem:[#allocation2 + $0x4a] sm:$0xff]
        %v662 = vld [vmem:[#allocation2 + $0x52] sm:$0xff]
        %v663 = vld [vmem:[#allocation2 + $0x62] sm:$0xff]
        %v664 = vld [vmem:[#allocation2 + $0x6a] sm:$0xff]
        %v665 = vld [vmem:[#allocation2 + $0x7a] sm:$0xff]
        %v666 = vld [vmem:[#allocation2 + $0x82] sm:$0xff]
        %v667 = vld [vmem:[#allocation2 + $0x92] sm:$0xff]
        %v668 = vld [vmem:[#allocation2 + $0x9a] sm:$0xff]
        %v669 = vld [vmem:[#allocation2 + $0xaa] sm:$0xff]
        %v670 = vld [vmem:[#allocation2 + $0xb2] sm:$0xff]
        %v671 = vld [vmem:[#allocation2 + $0xc2] sm:$0xff]
        %v672 = vld [vmem:[#allocation2 + $0xca] sm:$0xff]
        %v673 = vld [vmem:[#allocation2 + $0xda] sm:$0xff]
        %v674 = vld [vmem:[#allocation2 + $0xe2] sm:$0xff]
        %v675 = vld [vmem:[#allocation2 + $0xf2] sm:$0xff]
        %v676 = vld [vmem:[#allocation2 + $0xfa] sm:$0xff]
        %v677 = vld [vmem:[#allocation2 + $0x10a] sm:$0xff]
        %v678 = vld [vmem:[#allocation2 + $0x112] sm:$0xff]
        %v679 = vld [vmem:[#allocation2 + $0x122] sm:$0xff]
        %v680 = vld [vmem:[#allocation2 + $0x12a] sm:$0xff]
        %v681 = vld [vmem:[#allocation2 + $0x13a] sm:$0xff]
        %v682 = vld [vmem:[#allocation2 + $0x142] sm:$0xff]
        %v683 = vld [vmem:[#allocation2 + $0x152] sm:$0xff]
        %v684 = vld [vmem:[#allocation2 + $0x15a] sm:$0xff]
        %v685 = vld [vmem:[#allocation2 + $0x16a] sm:$0xff]
        %v686 = vld [vmem:[#allocation2 + $0x172] sm:$0xff]
        %719 = vrot.lane.b32.xlu0 %v623, 4
        %v720 = vpop.permute.xlu0 %719
        %721 = vrot.lane.b32.xlu0 %v624, 4
        %v722 = vpop.permute.xlu0 %721
        %723 = vrot.lane.b32.xlu0 %v625, 4
        %v724 = vpop.permute.xlu0 %723
        %725 = vrot.lane.b32.xlu0 %v626, 4
        %v726 = vpop.permute.xlu0 %725
        %727 = vrot.lane.b32.xlu0 %v627, 4
        %v728 = vpop.permute.xlu0 %727
        %729 = vrot.lane.b32.xlu0 %v628, 4
        %v730 = vpop.permute.xlu0 %729
        %731 = vrot.lane.b32.xlu0 %v629, 4
        %v732 = vpop.permute.xlu0 %731
        %733 = vrot.lane.b32.xlu0 %v630, 4
        %v734 = vpop.permute.xlu0 %733
        %735 = vrot.lane.b32.xlu0 %v631, 4
        %v736 = vpop.permute.xlu0 %735
        %737 = vrot.lane.b32.xlu0 %v632, 4
        %v738 = vpop.permute.xlu0 %737
        %739 = vrot.lane.b32.xlu0 %v633, 4
        %v740 = vpop.permute.xlu0 %739
        %741 = vrot.lane.b32.xlu0 %v634, 4
        %v742 = vpop.permute.xlu0 %741
        %743 = vrot.lane.b32.xlu0 %v635, 4
        %v744 = vpop.permute.xlu0 %743
        %745 = vrot.lane.b32.xlu0 %v636, 4
        %v746 = vpop.permute.xlu0 %745
        %747 = vrot.lane.b32.xlu0 %v637, 4
        %v748 = vpop.permute.xlu0 %747
        %749 = vrot.lane.b32.xlu0 %v638, 4
        %v750 = vpop.permute.xlu0 %749
        %751 = vrot.lane.b32.xlu0 %v639, 4
        %v752 = vpop.permute.xlu0 %751
        %753 = vrot.lane.b32.xlu0 %v640, 4
        %v754 = vpop.permute.xlu0 %753
        %755 = vrot.lane.b32.xlu0 %v641, 4
        %v756 = vpop.permute.xlu0 %755
        %757 = vrot.lane.b32.xlu0 %v642, 4
        %v758 = vpop.permute.xlu0 %757
        %759 = vrot.lane.b32.xlu0 %v643, 4
        %v760 = vpop.permute.xlu0 %759
        %761 = vrot.lane.b32.xlu0 %v644, 4
        %v762 = vpop.permute.xlu0 %761
        %763 = vrot.lane.b32.xlu0 %v645, 4
        %v764 = vpop.permute.xlu0 %763
        %765 = vrot.lane.b32.xlu0 %v646, 4
        %v766 = vpop.permute.xlu0 %765
        %767 = vrot.lane.b32.xlu0 %v647, 4
        %v768 = vpop.permute.xlu0 %767
        %769 = vrot.lane.b32.xlu0 %v648, 4
        %v770 = vpop.permute.xlu0 %769
        %771 = vrot.lane.b32.xlu0 %v649, 4
        %v772 = vpop.permute.xlu0 %771
        %773 = vrot.lane.b32.xlu0 %v650, 4
        %v774 = vpop.permute.xlu0 %773
        %775 = vrot.lane.b32.xlu0 %v651, 4
        %v776 = vpop.permute.xlu0 %775
        %777 = vrot.lane.b32.xlu0 %v652, 4
        %v778 = vpop.permute.xlu0 %777
        %779 = vrot.lane.b32.xlu0 %v653, 4
        %v780 = vpop.permute.xlu0 %779
        %781 = vrot.lane.b32.xlu0 %v654, 4
        %v782 = vpop.permute.xlu0 %781
        %847 = vrot.lane.b32.xlu0 %v655, 8
        %v848 = vpop.permute.xlu0 %847
        %849 = vrot.lane.b32.xlu0 %v656, 8
        %v850 = vpop.permute.xlu0 %849
        %851 = vrot.lane.b32.xlu0 %v657, 8
        %v852 = vpop.permute.xlu0 %851
        %853 = vrot.lane.b32.xlu0 %v658, 8
        %v854 = vpop.permute.xlu0 %853
        %855 = vrot.lane.b32.xlu0 %v659, 8
        %v856 = vpop.permute.xlu0 %855
        %857 = vrot.lane.b32.xlu0 %v660, 8
        %v858 = vpop.permute.xlu0 %857
        %859 = vrot.lane.b32.xlu0 %v661, 8
        %v860 = vpop.permute.xlu0 %859
        %861 = vrot.lane.b32.xlu0 %v662, 8
        %v862 = vpop.permute.xlu0 %861
        %863 = vrot.lane.b32.xlu0 %v663, 8
        %v864 = vpop.permute.xlu0 %863
        %865 = vrot.lane.b32.xlu0 %v664, 8
        %v866 = vpop.permute.xlu0 %865
        %867 = vrot.lane.b32.xlu0 %v665, 8
        %v868 = vpop.permute.xlu0 %867
        %869 = vrot.lane.b32.xlu0 %v666, 8
        %v870 = vpop.permute.xlu0 %869
        %871 = vrot.lane.b32.xlu0 %v667, 8
        %v872 = vpop.permute.xlu0 %871
        %873 = vrot.lane.b32.xlu0 %v668, 8
        %v874 = vpop.permute.xlu0 %873
        %875 = vrot.lane.b32.xlu0 %v669, 8
        %v876 = vpop.permute.xlu0 %875
        %877 = vrot.lane.b32.xlu0 %v670, 8
        %v878 = vpop.permute.xlu0 %877
        %879 = vrot.lane.b32.xlu0 %v671, 8
        %v880 = vpop.permute.xlu0 %879
        %881 = vrot.lane.b32.xlu0 %v672, 8
        %v882 = vpop.permute.xlu0 %881
        %883 = vrot.lane.b32.xlu0 %v673, 8
        %v884 = vpop.permute.xlu0 %883
        %885 = vrot.lane.b32.xlu0 %v674, 8
        %v886 = vpop.permute.xlu0 %885
        %887 = vrot.lane.b32.xlu0 %v675, 8
        %v888 = vpop.permute.xlu0 %887
        %889 = vrot.lane.b32.xlu0 %v676, 8
        %v890 = vpop.permute.xlu0 %889
        %891 = vrot.lane.b32.xlu0 %v677, 8
        %v892 = vpop.permute.xlu0 %891
        %893 = vrot.lane.b32.xlu0 %v678, 8
        %v894 = vpop.permute.xlu0 %893
        %895 = vrot.lane.b32.xlu0 %v679, 8
        %v896 = vpop.permute.xlu0 %895
        %897 = vrot.lane.b32.xlu0 %v680, 8
        %v898 = vpop.permute.xlu0 %897
        %899 = vrot.lane.b32.xlu0 %v681, 8
        %v900 = vpop.permute.xlu0 %899
        %901 = vrot.lane.b32.xlu0 %v682, 8
        %v902 = vpop.permute.xlu0 %901
        %903 = vrot.lane.b32.xlu0 %v683, 8
        %v904 = vpop.permute.xlu0 %903
        %905 = vrot.lane.b32.xlu0 %v684, 8
        %v906 = vpop.permute.xlu0 %905
        %907 = vrot.lane.b32.xlu0 %v685, 8
        %v908 = vpop.permute.xlu0 %907
        %909 = vrot.lane.b32.xlu0 %v686, 8
        %v910 = vpop.permute.xlu0 %909
        %v943 = vsel %vm469, %v591, %v720
        %v944 = vsel %vm469, %v592, %v722
        %v945 = vsel %vm469, %v593, %v724
        %v946 = vsel %vm469, %v594, %v726
        %v947 = vsel %vm469, %v595, %v728
        %v948 = vsel %vm469, %v596, %v730
        %v949 = vsel %vm469, %v597, %v732
        %v950 = vsel %vm469, %v598, %v734
        %v951 = vsel %vm469, %v599, %v736
        %v952 = vsel %vm469, %v600, %v738
        %v953 = vsel %vm469, %v601, %v740
        %v954 = vsel %vm469, %v602, %v742
        %v955 = vsel %vm469, %v603, %v744
        %v956 = vsel %vm469, %v604, %v746
        %v957 = vsel %vm469, %v605, %v748
        %v958 = vsel %vm469, %v606, %v750
        %v959 = vsel %vm469, %v607, %v752
        %v960 = vsel %vm469, %v608, %v754
        %v961 = vsel %vm469, %v609, %v756
        %v962 = vsel %vm469, %v610, %v758
        %v963 = vsel %vm469, %v611, %v760
        %v964 = vsel %vm469, %v612, %v762
        %v965 = vsel %vm469, %v613, %v764
        %v966 = vsel %vm469, %v614, %v766
        %v967 = vsel %vm469, %v615, %v768
        %v968 = vsel %vm469, %v616, %v770
        %v969 = vsel %vm469, %v617, %v772
        %v970 = vsel %vm469, %v618, %v774
        %v971 = vsel %vm469, %v619, %v776
        %v972 = vsel %vm469, %v620, %v778
        %v973 = vsel %vm469, %v621, %v780
        %v974 = vsel %vm469, %v622, %v782
        %vm975 = vcmask 64512
        %v976 = vsel %vm975, %v943, %v848
        %v977 = vsel %vm975, %v944, %v850
        %v978 = vsel %vm975, %v945, %v852
        %v979 = vsel %vm975, %v946, %v854
        %v980 = vsel %vm975, %v947, %v856
        %v981 = vsel %vm975, %v948, %v858
        %v982 = vsel %vm975, %v949, %v860
        %v983 = vsel %vm975, %v950, %v862
        %v984 = vsel %vm975, %v951, %v864
        %v985 = vsel %vm975, %v952, %v866
        %v986 = vsel %vm975, %v953, %v868
        %v987 = vsel %vm975, %v954, %v870
        %v988 = vsel %vm975, %v955, %v872
        %v989 = vsel %vm975, %v956, %v874
        %v990 = vsel %vm975, %v957, %v876
        %v991 = vsel %vm975, %v958, %v878
        %v992 = vsel %vm975, %v959, %v880
        %v993 = vsel %vm975, %v960, %v882
        %v994 = vsel %vm975, %v961, %v884
        %v995 = vsel %vm975, %v962, %v886
        %v996 = vsel %vm975, %v963, %v888
        %v997 = vsel %vm975, %v964, %v890
        %v998 = vsel %vm975, %v965, %v892
        %v999 = vsel %vm975, %v966, %v894
        %v1000 = vsel %vm975, %v967, %v896
        %v1001 = vsel %vm975, %v968, %v898
        %v1002 = vsel %vm975, %v969, %v900
        %v1003 = vsel %vm975, %v970, %v902
        %v1004 = vsel %vm975, %v971, %v904
        %v1005 = vsel %vm975, %v972, %v906
        %v1006 = vsel %vm975, %v973, %v908
        %v1007 = vsel %vm975, %v974, %v910
        %v1008 = vld [vmem:[#allocation3] sm:$0xff]
        %v1009 = vld [vmem:[#allocation3 + $0x8] sm:$0xff]
        %v1010 = vld [vmem:[#allocation3 + $0x10] sm:$0xff]
        %v1011 = vld [vmem:[#allocation3 + $0x18] sm:$0xff]
        %v1012 = vld [vmem:[#allocation3 + $0x20] sm:$0xff]
        %v1013 = vld [vmem:[#allocation3 + $0x28] sm:$0xff]
        %v1014 = vld [vmem:[#allocation3 + $0x30] sm:$0xff]
        %v1015 = vld [vmem:[#allocation3 + $0x38] sm:$0xff]
        %v1016 = vld [vmem:[#allocation3 + $0x40] sm:$0xff]
        %v1017 = vld [vmem:[#allocation3 + $0x48] sm:$0xff]
        %v1018 = vld [vmem:[#allocation3 + $0x50] sm:$0xff]
        %v1019 = vld [vmem:[#allocation3 + $0x58] sm:$0xff]
        %v1020 = vld [vmem:[#allocation3 + $0x60] sm:$0xff]
        %v1021 = vld [vmem:[#allocation3 + $0x68] sm:$0xff]
        %v1022 = vld [vmem:[#allocation3 + $0x70] sm:$0xff]
        %v1023 = vld [vmem:[#allocation3 + $0x78] sm:$0xff]
        %v1024 = vld [vmem:[#allocation3 + $0x80] sm:$0xff]
        %v1025 = vld [vmem:[#allocation3 + $0x88] sm:$0xff]
        %v1026 = vld [vmem:[#allocation3 + $0x90] sm:$0xff]
        %v1027 = vld [vmem:[#allocation3 + $0x98] sm:$0xff]
        %v1028 = vld [vmem:[#allocation3 + $0xa0] sm:$0xff]
        %v1029 = vld [vmem:[#allocation3 + $0xa8] sm:$0xff]
        %v1030 = vld [vmem:[#allocation3 + $0xb0] sm:$0xff]
        %v1031 = vld [vmem:[#allocation3 + $0xb8] sm:$0xff]
        %v1032 = vld [vmem:[#allocation3 + $0xc0] sm:$0xff]
        %v1033 = vld [vmem:[#allocation3 + $0xc8] sm:$0xff]
        %v1034 = vld [vmem:[#allocation3 + $0xd0] sm:$0xff]
        %v1035 = vld [vmem:[#allocation3 + $0xd8] sm:$0xff]
        %v1036 = vld [vmem:[#allocation3 + $0xe0] sm:$0xff]
        %v1037 = vld [vmem:[#allocation3 + $0xe8] sm:$0xff]
        %v1038 = vld [vmem:[#allocation3 + $0xf0] sm:$0xff]
        %v1039 = vld [vmem:[#allocation3 + $0xf8] sm:$0xff]
        %v1040 = vpack.c.bf16 %v977, %v976
        %v1041 = vpack.c.bf16 %v979, %v978
        %v1042 = vpack.c.bf16 %v981, %v980
        %v1043 = vpack.c.bf16 %v983, %v982
        %v1044 = vpack.c.bf16 %v985, %v984
        %v1045 = vpack.c.bf16 %v987, %v986
        %v1046 = vpack.c.bf16 %v989, %v988
        %v1047 = vpack.c.bf16 %v991, %v990
        %v1048 = vpack.c.bf16 %v993, %v992
        %v1049 = vpack.c.bf16 %v995, %v994
        %v1050 = vpack.c.bf16 %v997, %v996
        %v1051 = vpack.c.bf16 %v999, %v998
        %v1052 = vpack.c.bf16 %v1001, %v1000
        %v1053 = vpack.c.bf16 %v1003, %v1002
        %v1054 = vpack.c.bf16 %v1005, %v1004
        %v1055 = vpack.c.bf16 %v1007, %v1006
        %v1056 = vld [vmem:[#allocation10] sm:$0xf]
        %v1057 = vld [vmem:[#allocation10 + $0x4] sm:$0x3]
        %v1060 = vunpack.c.l.b16 %v1056
        %v1061 = vunpack.c.l.b16 %v1057
        %v1062 = vpack.c.b16 %v1061, %v1060
        %vm1063 = vcmask 97280
        %v1065 = vsel %vm1063, %v1040, 0
        %v1068 = vsel %vm1063, %v1041, 0
        %v1071 = vsel %vm1063, %v1042, 0
        %v1074 = vsel %vm1063, %v1043, 0
        %v1077 = vsel %vm1063, %v1044, 0
        %v1080 = vsel %vm1063, %v1045, 0
        %v1083 = vsel %vm1063, %v1046, 0
        %v1086 = vsel %vm1063, %v1047, 0
        %v1089 = vsel %vm1063, %v1048, 0
        %v1092 = vsel %vm1063, %v1049, 0
        %v1095 = vsel %vm1063, %v1050, 0
        %v1098 = vsel %vm1063, %v1051, 0
        %v1101 = vsel %vm1063, %v1052, 0
        %v1104 = vsel %vm1063, %v1053, 0
        %v1107 = vsel %vm1063, %v1054, 0
        %v1110 = vsel %vm1063, %v1055, 0
        %vm1112 = vcmask 1045504
        %v1114 = vsel %vm1112, %v1062, 0
        %1116 = vmatprep.subr.bf16.mxu0 0
        %1117 = vmatpush1.bf16.msra.mxu0 %v1114
        %1118 = vmatprep.subr.bf16.mxu0 0
        %1119 = vmatpush1.bf16.msra.mxu0 0
        %1120 = vmatprep.subr.bf16.mxu0 0
        %1121 = vmatpush1.bf16.msra.mxu0 0
        %1122 = vmatprep.subr.bf16.mxu0 0
        %1123 = vmatpush1.bf16.msra.mxu0 0
        %1124 = vmatprep.subr.bf16.mxu0 0
        %1125 = vmatpush1.bf16.msra.mxu0 0
        %1126 = vmatprep.subr.bf16.mxu0 0
        %1127 = vmatpush1.bf16.msra.mxu0 0
        %1128 = vmatprep.subr.bf16.mxu0 0
        %1129 = vmatpush1.bf16.msra.mxu0 0
        %1130 = vmatprep.subr.bf16.mxu0 0
        %1131 = vmatpush1.bf16.msra.mxu0 0
        %1132 = vmatprep.subr.bf16.mxu0 0
        %1133 = vmatpush1.bf16.msra.mxu0 0
        %1134 = vmatprep.subr.bf16.mxu0 0
        %1135 = vmatpush1.bf16.msra.mxu0 0
        %1136 = vmatprep.subr.bf16.mxu0 0
        %1137 = vmatpush1.bf16.msra.mxu0 0
        %1138 = vmatprep.subr.bf16.mxu0 0
        %1139 = vmatpush1.bf16.msra.mxu0 0
        %1140 = vmatprep.subr.bf16.mxu0 0
        %1141 = vmatpush1.bf16.msra.mxu0 0
        %1142 = vmatprep.subr.bf16.mxu0 0
        %1143 = vmatpush1.bf16.msra.mxu0 0
        %1144 = vmatprep.subr.bf16.mxu0 0
        %1145 = vmatpush1.bf16.msra.mxu0 0
        %1146 = vmatprep.subr.bf16.mxu0 0
        %1147 = vmatpush1.bf16.msra.mxu0 0
        %1148 = vmatprep.mubr.bf16.mxu0 0
        %1149 = vmatmul.mubr.bf16.gmra.mrb[0].mxu0 %v1065
        %v1150 = vpop.f32.mrb[0].mxu0
        %v1151 = vadd.f32 0.0, %v1150
        %v1152 = vpop.f32.mrb[0].mxu0
        %v1153 = vpop.f32.mrb[0].mxu0
        %v1154 = vadd.f32 0.0, %v1153
        %v1155 = vpop.f32.mrb[0].mxu0
        %1156 = vmatprep.mubr.bf16.mxu0 0
        %1157 = vmatmul.mubr.bf16.gmra.mrb[0].mxu0 %v1068
        %v1158 = vpop.f32.mrb[0].mxu0
        %v1159 = vadd.f32 0.0, %v1158
        %v1160 = vpop.f32.mrb[0].mxu0
        %v1161 = vpop.f32.mrb[0].mxu0
        %v1162 = vadd.f32 0.0, %v1161
        %v1163 = vpop.f32.mrb[0].mxu0
        %1164 = vmatprep.mubr.bf16.mxu0 0
        %1165 = vmatmul.mubr.bf16.gmra.mrb[0].mxu0 %v1071
        %v1166 = vpop.f32.mrb[0].mxu0
        %v1167 = vadd.f32 0.0, %v1166
        %v1168 = vpop.f32.mrb[0].mxu0
        %v1169 = vpop.f32.mrb[0].mxu0
        %v1170 = vadd.f32 0.0, %v1169
        %v1171 = vpop.f32.mrb[0].mxu0
        %1172 = vmatprep.mubr.bf16.mxu0 0
        %1173 = vmatmul.mubr.bf16.gmra.mrb[0].mxu0 %v1074
        %v1174 = vpop.f32.mrb[0].mxu0
        %v1175 = vadd.f32 0.0, %v1174
        %v1176 = vpop.f32.mrb[0].mxu0
        %v1177 = vpop.f32.mrb[0].mxu0
        %v1178 = vadd.f32 0.0, %v1177
        %v1179 = vpop.f32.mrb[0].mxu0
        %1180 = vmatprep.mubr.bf16.mxu0 0
        %1181 = vmatmul.mubr.bf16.gmra.mrb[0].mxu0 %v1077
        %v1182 = vpop.f32.mrb[0].mxu0
        %v1183 = vadd.f32 0.0, %v1182
        %v1184 = vpop.f32.mrb[0].mxu0
        %v1185 = vpop.f32.mrb[0].mxu0
        %v1186 = vadd.f32 0.0, %v1185
        %v1187 = vpop.f32.mrb[0].mxu0
        %1188 = vmatprep.mubr.bf16.mxu0 0
        %1189 = vmatmul.mubr.bf16.gmra.mrb[0].mxu0 %v1080
        %v1190 = vpop.f32.mrb[0].mxu0
        %v1191 = vadd.f32 0.0, %v1190
        %v1192 = vpop.f32.mrb[0].mxu0
        %v1193 = vpop.f32.mrb[0].mxu0
        %v1194 = vadd.f32 0.0, %v1193
        %v1195 = vpop.f32.mrb[0].mxu0
        %1196 = vmatprep.mubr.bf16.mxu0 0
        %1197 = vmatmul.mubr.bf16.gmra.mrb[0].mxu0 %v1083
        %v1198 = vpop.f32.mrb[0].mxu0
        %v1199 = vadd.f32 0.0, %v1198
        %v1200 = vpop.f32.mrb[0].mxu0
        %v1201 = vpop.f32.mrb[0].mxu0
        %v1202 = vadd.f32 0.0, %v1201
        %v1203 = vpop.f32.mrb[0].mxu0
        %1204 = vmatprep.mubr.bf16.mxu0 0
        %1205 = vmatmul.mubr.bf16.gmra.mrb[0].mxu0 %v1086
        %v1206 = vpop.f32.mrb[0].mxu0
        %v1207 = vadd.f32 0.0, %v1206
        %v1208 = vpop.f32.mrb[0].mxu0
        %v1209 = vpop.f32.mrb[0].mxu0
        %v1210 = vadd.f32 0.0, %v1209
        %v1211 = vpop.f32.mrb[0].mxu0
        %1212 = vmatprep.mubr.bf16.mxu0 0
        %1213 = vmatmul.mubr.bf16.gmra.mrb[0].mxu0 %v1089
        %v1214 = vpop.f32.mrb[0].mxu0
        %v1215 = vadd.f32 0.0, %v1214
        %v1216 = vpop.f32.mrb[0].mxu0
        %v1217 = vpop.f32.mrb[0].mxu0
        %v1218 = vadd.f32 0.0, %v1217
        %v1219 = vpop.f32.mrb[0].mxu0
        %1220 = vmatprep.mubr.bf16.mxu0 0
        %1221 = vmatmul.mubr.bf16.gmra.mrb[0].mxu0 %v1092
        %v1222 = vpop.f32.mrb[0].mxu0
        %v1223 = vadd.f32 0.0, %v1222
        %v1224 = vpop.f32.mrb[0].mxu0
        %v1225 = vpop.f32.mrb[0].mxu0
        %v1226 = vadd.f32 0.0, %v1225
        %v1227 = vpop.f32.mrb[0].mxu0
        %1228 = vmatprep.mubr.bf16.mxu0 0
        %1229 = vmatmul.mubr.bf16.gmra.mrb[0].mxu0 %v1095
        %v1230 = vpop.f32.mrb[0].mxu0
        %v1231 = vadd.f32 0.0, %v1230
        %v1232 = vpop.f32.mrb[0].mxu0
        %v1233 = vpop.f32.mrb[0].mxu0
        %v1234 = vadd.f32 0.0, %v1233
        %v1235 = vpop.f32.mrb[0].mxu0
        %1236 = vmatprep.mubr.bf16.mxu0 0
        %1237 = vmatmul.mubr.bf16.gmra.mrb[0].mxu0 %v1098
        %v1238 = vpop.f32.mrb[0].mxu0
        %v1239 = vadd.f32 0.0, %v1238
        %v1240 = vpop.f32.mrb[0].mxu0
        %v1241 = vpop.f32.mrb[0].mxu0
        %v1242 = vadd.f32 0.0, %v1241
        %v1243 = vpop.f32.mrb[0].mxu0
        %1244 = vmatprep.mubr.bf16.mxu0 0
        %1245 = vmatmul.mubr.bf16.gmra.mrb[0].mxu0 %v1101
        %v1246 = vpop.f32.mrb[0].mxu0
        %v1247 = vadd.f32 0.0, %v1246
        %v1248 = vpop.f32.mrb[0].mxu0
        %v1249 = vpop.f32.mrb[0].mxu0
        %v1250 = vadd.f32 0.0, %v1249
        %v1251 = vpop.f32.mrb[0].mxu0
        %1252 = vmatprep.mubr.bf16.mxu0 0
        %1253 = vmatmul.mubr.bf16.gmra.mrb[0].mxu0 %v1104
        %v1254 = vpop.f32.mrb[0].mxu0
        %v1255 = vadd.f32 0.0, %v1254
        %v1256 = vpop.f32.mrb[0].mxu0
        %v1257 = vpop.f32.mrb[0].mxu0
        %v1258 = vadd.f32 0.0, %v1257
        %v1259 = vpop.f32.mrb[0].mxu0
        %1260 = vmatprep.mubr.bf16.mxu0 0
        %1261 = vmatmul.mubr.bf16.gmra.mrb[0].mxu0 %v1107
        %v1262 = vpop.f32.mrb[0].mxu0
        %v1263 = vadd.f32 0.0, %v1262
        %v1264 = vpop.f32.mrb[0].mxu0
        %v1265 = vpop.f32.mrb[0].mxu0
        %v1266 = vadd.f32 0.0, %v1265
        %v1267 = vpop.f32.mrb[0].mxu0
        %1268 = vmatprep.mubr.bf16.mxu0 0
        %1269 = vmatmul.mubr.bf16.gmra.mrb[0].mxu0 %v1110
        %v1270 = vpop.f32.mrb[0].mxu0
        %v1271 = vadd.f32 0.0, %v1270
        %v1272 = vpop.f32.mrb[0].mxu0
        %v1273 = vpop.f32.mrb[0].mxu0
        %v1274 = vadd.f32 0.0, %v1273
        %v1275 = vpop.f32.mrb[0].mxu0
        %1276 = vdwg.mxu0
        %v1277 = vadd.f32 %v1008, %v1151
        %v1278 = vadd.f32 %v1009, %v1154
        %v1279 = vadd.f32 %v1010, %v1159
        %v1280 = vadd.f32 %v1011, %v1162
        %v1281 = vadd.f32 %v1012, %v1167
        %v1282 = vadd.f32 %v1013, %v1170
        %v1283 = vadd.f32 %v1014, %v1175
        %v1284 = vadd.f32 %v1015, %v1178
        %v1285 = vadd.f32 %v1016, %v1183
        %v1286 = vadd.f32 %v1017, %v1186
        %v1287 = vadd.f32 %v1018, %v1191
        %v1288 = vadd.f32 %v1019, %v1194
        %v1289 = vadd.f32 %v1020, %v1199
        %v1290 = vadd.f32 %v1021, %v1202
        %v1291 = vadd.f32 %v1022, %v1207
        %v1292 = vadd.f32 %v1023, %v1210
        %v1293 = vadd.f32 %v1024, %v1215
        %v1294 = vadd.f32 %v1025, %v1218
        %v1295 = vadd.f32 %v1026, %v1223
        %v1296 = vadd.f32 %v1027, %v1226
        %v1297 = vadd.f32 %v1028, %v1231
        %v1298 = vadd.f32 %v1029, %v1234
        %v1299 = vadd.f32 %v1030, %v1239
        %v1300 = vadd.f32 %v1031, %v1242
        %v1301 = vadd.f32 %v1032, %v1247
        %v1302 = vadd.f32 %v1033, %v1250
        %v1303 = vadd.f32 %v1034, %v1255
        %v1304 = vadd.f32 %v1035, %v1258
        %v1305 = vadd.f32 %v1036, %v1263
        %v1306 = vadd.f32 %v1037, %v1266
        %v1307 = vadd.f32 %v1038, %v1271
        %v1308 = vadd.f32 %v1039, %v1274
        %1309 = vst.msk [vmem:[#allocation3] sm:$0xff] %vm558, %v1277
        %1310 = vst.msk [vmem:[#allocation3 + $0x8] sm:$0xff] %vm558, %v1278
        %1311 = vst.msk [vmem:[#allocation3 + $0x10] sm:$0xff] %vm558, %v1279
        %1312 = vst.msk [vmem:[#allocation3 + $0x18] sm:$0xff] %vm558, %v1280
        %1313 = vst.msk [vmem:[#allocation3 + $0x20] sm:$0xff] %vm558, %v1281
        %1314 = vst.msk [vmem:[#allocation3 + $0x28] sm:$0xff] %vm558, %v1282
        %1315 = vst.msk [vmem:[#allocation3 + $0x30] sm:$0xff] %vm558, %v1283
        %1316 = vst.msk [vmem:[#allocation3 + $0x38] sm:$0xff] %vm558, %v1284
        %1317 = vst.msk [vmem:[#allocation3 + $0x40] sm:$0xff] %vm558, %v1285
        %1318 = vst.msk [vmem:[#allocation3 + $0x48] sm:$0xff] %vm558, %v1286
        %1319 = vst.msk [vmem:[#allocation3 + $0x50] sm:$0xff] %vm558, %v1287
        %1320 = vst.msk [vmem:[#allocation3 + $0x58] sm:$0xff] %vm558, %v1288
        %1321 = vst.msk [vmem:[#allocation3 + $0x60] sm:$0xff] %vm558, %v1289
        %1322 = vst.msk [vmem:[#allocation3 + $0x68] sm:$0xff] %vm558, %v1290
        %1323 = vst.msk [vmem:[#allocation3 + $0x70] sm:$0xff] %vm558, %v1291
        %1324 = vst.msk [vmem:[#allocation3 + $0x78] sm:$0xff] %vm558, %v1292
        %1325 = vst.msk [vmem:[#allocation3 + $0x80] sm:$0xff] %vm558, %v1293
        %1326 = vst.msk [vmem:[#allocation3 + $0x88] sm:$0xff] %vm558, %v1294
        %1327 = vst.msk [vmem:[#allocation3 + $0x90] sm:$0xff] %vm558, %v1295
        %1328 = vst.msk [vmem:[#allocation3 + $0x98] sm:$0xff] %vm558, %v1296
        %1329 = vst.msk [vmem:[#allocation3 + $0xa0] sm:$0xff] %vm558, %v1297
        %1330 = vst.msk [vmem:[#allocation3 + $0xa8] sm:$0xff] %vm558, %v1298
        %1331 = vst.msk [vmem:[#allocation3 + $0xb0] sm:$0xff] %vm558, %v1299
        %1332 = vst.msk [vmem:[#allocation3 + $0xb8] sm:$0xff] %vm558, %v1300
        %1333 = vst.msk [vmem:[#allocation3 + $0xc0] sm:$0xff] %vm558, %v1301
        %1334 = vst.msk [vmem:[#allocation3 + $0xc8] sm:$0xff] %vm558, %v1302
        %1335 = vst.msk [vmem:[#allocation3 + $0xd0] sm:$0xff] %vm558, %v1303
        %1336 = vst.msk [vmem:[#allocation3 + $0xd8] sm:$0xff] %vm558, %v1304
        %1337 = vst.msk [vmem:[#allocation3 + $0xe0] sm:$0xff] %vm558, %v1305
        %1338 = vst.msk [vmem:[#allocation3 + $0xe8] sm:$0xff] %vm558, %v1306
        %1339 = vst.msk [vmem:[#allocation3 + $0xf0] sm:$0xff] %vm558, %v1307
        %1340 = vst.msk [vmem:[#allocation3 + $0xf8] sm:$0xff] %vm558, %v1308
        %v1341 = vld [vmem:[%s525] sm:$0xff]
        %v1342 = vld [vmem:[%s525 + $0x8] sm:$0xff]
        %v1343 = vld [vmem:[%s525 + $0x18] sm:$0xff]
        %v1344 = vld [vmem:[%s525 + $0x20] sm:$0xff]
        %v1345 = vld [vmem:[%s525 + $0x30] sm:$0xff]
        %v1346 = vld [vmem:[%s525 + $0x38] sm:$0xff]
        %v1347 = vld [vmem:[%s525 + $0x48] sm:$0xff]
        %v1348 = vld [vmem:[%s525 + $0x50] sm:$0xff]
        %v1349 = vld [vmem:[%s525 + $0x60] sm:$0xff]
        %v1350 = vld [vmem:[%s525 + $0x68] sm:$0xff]
        %v1351 = vld [vmem:[%s525 + $0x78] sm:$0xff]
        %v1352 = vld [vmem:[%s525 + $0x80] sm:$0xff]
        %v1353 = vld [vmem:[%s525 + $0x90] sm:$0xff]
        %v1354 = vld [vmem:[%s525 + $0x98] sm:$0xff]
        %v1355 = vld [vmem:[%s525 + $0xa8] sm:$0xff]
        %v1356 = vld [vmem:[%s525 + $0xb0] sm:$0xff]
        %v1357 = vld [vmem:[%s525 + $0xc0] sm:$0xff]
        %v1358 = vld [vmem:[%s525 + $0xc8] sm:$0xff]
        %v1359 = vld [vmem:[%s525 + $0xd8] sm:$0xff]
        %v1360 = vld [vmem:[%s525 + $0xe0] sm:$0xff]
        %v1361 = vld [vmem:[%s525 + $0xf0] sm:$0xff]
        %v1362 = vld [vmem:[%s525 + $0xf8] sm:$0xff]
        %v1363 = vld [vmem:[%s525 + $0x108] sm:$0xff]
        %v1364 = vld [vmem:[%s525 + $0x110] sm:$0xff]
        %v1365 = vld [vmem:[%s525 + $0x120] sm:$0xff]
        %v1366 = vld [vmem:[%s525 + $0x128] sm:$0xff]
        %v1367 = vld [vmem:[%s525 + $0x138] sm:$0xff]
        %v1368 = vld [vmem:[%s525 + $0x140] sm:$0xff]
        %v1369 = vld [vmem:[%s525 + $0x150] sm:$0xff]
        %v1370 = vld [vmem:[%s525 + $0x158] sm:$0xff]
        %v1371 = vld [vmem:[%s525 + $0x168] sm:$0xff]
        %v1372 = vld [vmem:[%s525 + $0x170] sm:$0xff]
        %v1373 = vld [vmem:[%s525 + $0x1] sm:$0xff]
        %v1374 = vld [vmem:[%s525 + $0x9] sm:$0xff]
        %v1375 = vld [vmem:[%s525 + $0x19] sm:$0xff]
        %v1376 = vld [vmem:[%s525 + $0x21] sm:$0xff]
        %v1377 = vld [vmem:[%s525 + $0x31] sm:$0xff]
        %v1378 = vld [vmem:[%s525 + $0x39] sm:$0xff]
        %v1379 = vld [vmem:[%s525 + $0x49] sm:$0xff]
        %v1380 = vld [vmem:[%s525 + $0x51] sm:$0xff]
        %v1381 = vld [vmem:[%s525 + $0x61] sm:$0xff]
        %v1382 = vld [vmem:[%s525 + $0x69] sm:$0xff]
        %v1383 = vld [vmem:[%s525 + $0x79] sm:$0xff]
        %v1384 = vld [vmem:[%s525 + $0x81] sm:$0xff]
        %v1385 = vld [vmem:[%s525 + $0x91] sm:$0xff]
        %v1386 = vld [vmem:[%s525 + $0x99] sm:$0xff]
        %v1387 = vld [vmem:[%s525 + $0xa9] sm:$0xff]
        %v1388 = vld [vmem:[%s525 + $0xb1] sm:$0xff]
        %v1389 = vld [vmem:[%s525 + $0xc1] sm:$0xff]
        %v1390 = vld [vmem:[%s525 + $0xc9] sm:$0xff]
        %v1391 = vld [vmem:[%s525 + $0xd9] sm:$0xff]
        %v1392 = vld [vmem:[%s525 + $0xe1] sm:$0xff]
        %v1393 = vld [vmem:[%s525 + $0xf1] sm:$0xff]
        %v1394 = vld [vmem:[%s525 + $0xf9] sm:$0xff]
        %v1395 = vld [vmem:[%s525 + $0x109] sm:$0xff]
        %v1396 = vld [vmem:[%s525 + $0x111] sm:$0xff]
        %v1397 = vld [vmem:[%s525 + $0x121] sm:$0xff]
        %v1398 = vld [vmem:[%s525 + $0x129] sm:$0xff]
        %v1399 = vld [vmem:[%s525 + $0x139] sm:$0xff]
        %v1400 = vld [vmem:[%s525 + $0x141] sm:$0xff]
        %v1401 = vld [vmem:[%s525 + $0x151] sm:$0xff]
        %v1402 = vld [vmem:[%s525 + $0x159] sm:$0xff]
        %v1403 = vld [vmem:[%s525 + $0x169] sm:$0xff]
        %v1404 = vld [vmem:[%s525 + $0x171] sm:$0xff]
        %v1405 = vld [vmem:[%s525 + $0x2] sm:$0xff]
        %v1406 = vld [vmem:[%s525 + $0xa] sm:$0xff]
        %v1407 = vld [vmem:[%s525 + $0x1a] sm:$0xff]
        %v1408 = vld [vmem:[%s525 + $0x22] sm:$0xff]
        %v1409 = vld [vmem:[%s525 + $0x32] sm:$0xff]
        %v1410 = vld [vmem:[%s525 + $0x3a] sm:$0xff]
        %v1411 = vld [vmem:[%s525 + $0x4a] sm:$0xff]
        %v1412 = vld [vmem:[%s525 + $0x52] sm:$0xff]
        %v1413 = vld [vmem:[%s525 + $0x62] sm:$0xff]
        %v1414 = vld [vmem:[%s525 + $0x6a] sm:$0xff]
        %v1415 = vld [vmem:[%s525 + $0x7a] sm:$0xff]
        %v1416 = vld [vmem:[%s525 + $0x82] sm:$0xff]
        %v1417 = vld [vmem:[%s525 + $0x92] sm:$0xff]
        %v1418 = vld [vmem:[%s525 + $0x9a] sm:$0xff]
        %v1419 = vld [vmem:[%s525 + $0xaa] sm:$0xff]
        %v1420 = vld [vmem:[%s525 + $0xb2] sm:$0xff]
        %v1421 = vld [vmem:[%s525 + $0xc2] sm:$0xff]
        %v1422 = vld [vmem:[%s525 + $0xca] sm:$0xff]
        %v1423 = vld [vmem:[%s525 + $0xda] sm:$0xff]
        %v1424 = vld [vmem:[%s525 + $0xe2] sm:$0xff]
        %v1425 = vld [vmem:[%s525 + $0xf2] sm:$0xff]
        %v1426 = vld [vmem:[%s525 + $0xfa] sm:$0xff]
        %v1427 = vld [vmem:[%s525 + $0x10a] sm:$0xff]
        %v1428 = vld [vmem:[%s525 + $0x112] sm:$0xff]
        %v1429 = vld [vmem:[%s525 + $0x122] sm:$0xff]
        %v1430 = vld [vmem:[%s525 + $0x12a] sm:$0xff]
        %v1431 = vld [vmem:[%s525 + $0x13a] sm:$0xff]
        %v1432 = vld [vmem:[%s525 + $0x142] sm:$0xff]
        %v1433 = vld [vmem:[%s525 + $0x152] sm:$0xff]
        %v1434 = vld [vmem:[%s525 + $0x15a] sm:$0xff]
        %v1435 = vld [vmem:[%s525 + $0x16a] sm:$0xff]
        %v1436 = vld [vmem:[%s525 + $0x172] sm:$0xff]
        %1469 = vrot.lane.b32.xlu0 %v1373, 4
        %v1470 = vpop.permute.xlu0 %1469
        %1471 = vrot.lane.b32.xlu0 %v1374, 4
        %v1472 = vpop.permute.xlu0 %1471
        %1473 = vrot.lane.b32.xlu0 %v1375, 4
        %v1474 = vpop.permute.xlu0 %1473
        %1475 = vrot.lane.b32.xlu0 %v1376, 4
        %v1476 = vpop.permute.xlu0 %1475
        %1477 = vrot.lane.b32.xlu0 %v1377, 4
        %v1478 = vpop.permute.xlu0 %1477
        %1479 = vrot.lane.b32.xlu0 %v1378, 4
        %v1480 = vpop.permute.xlu0 %1479
        %1481 = vrot.lane.b32.xlu0 %v1379, 4
        %v1482 = vpop.permute.xlu0 %1481
        %1483 = vrot.lane.b32.xlu0 %v1380, 4
        %v1484 = vpop.permute.xlu0 %1483
        %1485 = vrot.lane.b32.xlu0 %v1381, 4
        %v1486 = vpop.permute.xlu0 %1485
        %1487 = vrot.lane.b32.xlu0 %v1382, 4
        %v1488 = vpop.permute.xlu0 %1487
        %1489 = vrot.lane.b32.xlu0 %v1383, 4
        %v1490 = vpop.permute.xlu0 %1489
        %1491 = vrot.lane.b32.xlu0 %v1384, 4
        %v1492 = vpop.permute.xlu0 %1491
        %1493 = vrot.lane.b32.xlu0 %v1385, 4
        %v1494 = vpop.permute.xlu0 %1493
        %1495 = vrot.lane.b32.xlu0 %v1386, 4
        %v1496 = vpop.permute.xlu0 %1495
        %1497 = vrot.lane.b32.xlu0 %v1387, 4
        %v1498 = vpop.permute.xlu0 %1497
        %1499 = vrot.lane.b32.xlu0 %v1388, 4
        %v1500 = vpop.permute.xlu0 %1499
        %1501 = vrot.lane.b32.xlu0 %v1389, 4
        %v1502 = vpop.permute.xlu0 %1501
        %1503 = vrot.lane.b32.xlu0 %v1390, 4
        %v1504 = vpop.permute.xlu0 %1503
        %1505 = vrot.lane.b32.xlu0 %v1391, 4
        %v1506 = vpop.permute.xlu0 %1505
        %1507 = vrot.lane.b32.xlu0 %v1392, 4
        %v1508 = vpop.permute.xlu0 %1507
        %1509 = vrot.lane.b32.xlu0 %v1393, 4
        %v1510 = vpop.permute.xlu0 %1509
        %1511 = vrot.lane.b32.xlu0 %v1394, 4
        %v1512 = vpop.permute.xlu0 %1511
        %1513 = vrot.lane.b32.xlu0 %v1395, 4
        %v1514 = vpop.permute.xlu0 %1513
        %1515 = vrot.lane.b32.xlu0 %v1396, 4
        %v1516 = vpop.permute.xlu0 %1515
        %1517 = vrot.lane.b32.xlu0 %v1397, 4
        %v1518 = vpop.permute.xlu0 %1517
        %1519 = vrot.lane.b32.xlu0 %v1398, 4
        %v1520 = vpop.permute.xlu0 %1519
        %1521 = vrot.lane.b32.xlu0 %v1399, 4
        %v1522 = vpop.permute.xlu0 %1521
        %1523 = vrot.lane.b32.xlu0 %v1400, 4
        %v1524 = vpop.permute.xlu0 %1523
        %1525 = vrot.lane.b32.xlu0 %v1401, 4
        %v1526 = vpop.permute.xlu0 %1525
        %1527 = vrot.lane.b32.xlu0 %v1402, 4
        %v1528 = vpop.permute.xlu0 %1527
        %1529 = vrot.lane.b32.xlu0 %v1403, 4
        %v1530 = vpop.permute.xlu0 %1529
        %1531 = vrot.lane.b32.xlu0 %v1404, 4
        %v1532 = vpop.permute.xlu0 %1531
        %1597 = vrot.lane.b32.xlu0 %v1405, 8
        %v1598 = vpop.permute.xlu0 %1597
        %1599 = vrot.lane.b32.xlu0 %v1406, 8
        %v1600 = vpop.permute.xlu0 %1599
        %1601 = vrot.lane.b32.xlu0 %v1407, 8
        %v1602 = vpop.permute.xlu0 %1601
        %1603 = vrot.lane.b32.xlu0 %v1408, 8
        %v1604 = vpop.permute.xlu0 %1603
        %1605 = vrot.lane.b32.xlu0 %v1409, 8
        %v1606 = vpop.permute.xlu0 %1605
        %1607 = vrot.lane.b32.xlu0 %v1410, 8
        %v1608 = vpop.permute.xlu0 %1607
        %1609 = vrot.lane.b32.xlu0 %v1411, 8
        %v1610 = vpop.permute.xlu0 %1609
        %1611 = vrot.lane.b32.xlu0 %v1412, 8
        %v1612 = vpop.permute.xlu0 %1611
        %1613 = vrot.lane.b32.xlu0 %v1413, 8
        %v1614 = vpop.permute.xlu0 %1613
        %1615 = vrot.lane.b32.xlu0 %v1414, 8
        %v1616 = vpop.permute.xlu0 %1615
        %1617 = vrot.lane.b32.xlu0 %v1415, 8
        %v1618 = vpop.permute.xlu0 %1617
        %1619 = vrot.lane.b32.xlu0 %v1416, 8
        %v1620 = vpop.permute.xlu0 %1619
        %1621 = vrot.lane.b32.xlu0 %v1417, 8
        %v1622 = vpop.permute.xlu0 %1621
        %1623 = vrot.lane.b32.xlu0 %v1418, 8
        %v1624 = vpop.permute.xlu0 %1623
        %1625 = vrot.lane.b32.xlu0 %v1419, 8
        %v1626 = vpop.permute.xlu0 %1625
        %1627 = vrot.lane.b32.xlu0 %v1420, 8
        %v1628 = vpop.permute.xlu0 %1627
        %1629 = vrot.lane.b32.xlu0 %v1421, 8
        %v1630 = vpop.permute.xlu0 %1629
        %1631 = vrot.lane.b32.xlu0 %v1422, 8
        %v1632 = vpop.permute.xlu0 %1631
        %1633 = vrot.lane.b32.xlu0 %v1423, 8
        %v1634 = vpop.permute.xlu0 %1633
        %1635 = vrot.lane.b32.xlu0 %v1424, 8
        %v1636 = vpop.permute.xlu0 %1635
        %1637 = vrot.lane.b32.xlu0 %v1425, 8
        %v1638 = vpop.permute.xlu0 %1637
        %1639 = vrot.lane.b32.xlu0 %v1426, 8
        %v1640 = vpop.permute.xlu0 %1639
        %1641 = vrot.lane.b32.xlu0 %v1427, 8
        %v1642 = vpop.permute.xlu0 %1641
        %1643 = vrot.lane.b32.xlu0 %v1428, 8
        %v1644 = vpop.permute.xlu0 %1643
        %1645 = vrot.lane.b32.xlu0 %v1429, 8
        %v1646 = vpop.permute.xlu0 %1645
        %1647 = vrot.lane.b32.xlu0 %v1430, 8
        %v1648 = vpop.permute.xlu0 %1647
        %1649 = vrot.lane.b32.xlu0 %v1431, 8
        %v1650 = vpop.permute.xlu0 %1649
        %1651 = vrot.lane.b32.xlu0 %v1432, 8
        %v1652 = vpop.permute.xlu0 %1651
        %1653 = vrot.lane.b32.xlu0 %v1433, 8
        %v1654 = vpop.permute.xlu0 %1653
        %1655 = vrot.lane.b32.xlu0 %v1434, 8
        %v1656 = vpop.permute.xlu0 %1655
        %1657 = vrot.lane.b32.xlu0 %v1435, 8
        %v1658 = vpop.permute.xlu0 %1657
        %1659 = vrot.lane.b32.xlu0 %v1436, 8
        %v1660 = vpop.permute.xlu0 %1659
        %v1693 = vsel %vm469, %v1341, %v1470
        %v1694 = vsel %vm469, %v1342, %v1472
        %v1695 = vsel %vm469, %v1343, %v1474
        %v1696 = vsel %vm469, %v1344, %v1476
        %v1697 = vsel %vm469, %v1345, %v1478
        %v1698 = vsel %vm469, %v1346, %v1480
        %v1699 = vsel %vm469, %v1347, %v1482
        %v1700 = vsel %vm469, %v1348, %v1484
        %v1701 = vsel %vm469, %v1349, %v1486
        %v1702 = vsel %vm469, %v1350, %v1488
        %v1703 = vsel %vm469, %v1351, %v1490
        %v1704 = vsel %vm469, %v1352, %v1492
        %v1705 = vsel %vm469, %v1353, %v1494
        %v1706 = vsel %vm469, %v1354, %v1496
        %v1707 = vsel %vm469, %v1355, %v1498
        %v1708 = vsel %vm469, %v1356, %v1500
        %v1709 = vsel %vm469, %v1357, %v1502
        %v1710 = vsel %vm469, %v1358, %v1504
        %v1711 = vsel %vm469, %v1359, %v1506
        %v1712 = vsel %vm469, %v1360, %v1508
        %v1713 = vsel %vm469, %v1361, %v1510
        %v1714 = vsel %vm469, %v1362, %v1512
        %v1715 = vsel %vm469, %v1363, %v1514
        %v1716 = vsel %vm469, %v1364, %v1516
        %v1717 = vsel %vm469, %v1365, %v1518
        %v1718 = vsel %vm469, %v1366, %v1520
        %v1719 = vsel %vm469, %v1367, %v1522
        %v1720 = vsel %vm469, %v1368, %v1524
        %v1721 = vsel %vm469, %v1369, %v1526
        %v1722 = vsel %vm469, %v1370, %v1528
        %v1723 = vsel %vm469, %v1371, %v1530
        %v1724 = vsel %vm469, %v1372, %v1532
        %v1725 = vsel %vm975, %v1693, %v1598
        %v1726 = vsel %vm975, %v1694, %v1600
        %v1727 = vsel %vm975, %v1695, %v1602
        %v1728 = vsel %vm975, %v1696, %v1604
        %v1729 = vsel %vm975, %v1697, %v1606
        %v1730 = vsel %vm975, %v1698, %v1608
        %v1731 = vsel %vm975, %v1699, %v1610
        %v1732 = vsel %vm975, %v1700, %v1612
        %v1733 = vsel %vm975, %v1701, %v1614
        %v1734 = vsel %vm975, %v1702, %v1616
        %v1735 = vsel %vm975, %v1703, %v1618
        %v1736 = vsel %vm975, %v1704, %v1620
        %v1737 = vsel %vm975, %v1705, %v1622
        %v1738 = vsel %vm975, %v1706, %v1624
        %v1739 = vsel %vm975, %v1707, %v1626
        %v1740 = vsel %vm975, %v1708, %v1628
        %v1741 = vsel %vm975, %v1709, %v1630
        %v1742 = vsel %vm975, %v1710, %v1632
        %v1743 = vsel %vm975, %v1711, %v1634
        %v1744 = vsel %vm975, %v1712, %v1636
        %v1745 = vsel %vm975, %v1713, %v1638
        %v1746 = vsel %vm975, %v1714, %v1640
        %v1747 = vsel %vm975, %v1715, %v1642
        %v1748 = vsel %vm975, %v1716, %v1644
        %v1749 = vsel %vm975, %v1717, %v1646
        %v1750 = vsel %vm975, %v1718, %v1648
        %v1751 = vsel %vm975, %v1719, %v1650
        %v1752 = vsel %vm975, %v1720, %v1652
        %v1753 = vsel %vm975, %v1721, %v1654
        %v1754 = vsel %vm975, %v1722, %v1656
        %v1755 = vsel %vm975, %v1723, %v1658
        %v1756 = vsel %vm975, %v1724, %v1660
        %v1757 = vld [vmem:[#allocation3] sm:$0xff]
        %v1758 = vld [vmem:[#allocation3 + $0x8] sm:$0xff]
        %v1759 = vld [vmem:[#allocation3 + $0x10] sm:$0xff]
        %v1760 = vld [vmem:[#allocation3 + $0x18] sm:$0xff]
        %v1761 = vld [vmem:[#allocation3 + $0x20] sm:$0xff]
        %v1762 = vld [vmem:[#allocation3 + $0x28] sm:$0xff]
        %v1763 = vld [vmem:[#allocation3 + $0x30] sm:$0xff]
        %v1764 = vld [vmem:[#allocation3 + $0x38] sm:$0xff]
        %v1765 = vld [vmem:[#allocation3 + $0x40] sm:$0xff]
        %v1766 = vld [vmem:[#allocation3 + $0x48] sm:$0xff]
        %v1767 = vld [vmem:[#allocation3 + $0x50] sm:$0xff]
        %v1768 = vld [vmem:[#allocation3 + $0x58] sm:$0xff]
        %v1769 = vld [vmem:[#allocation3 + $0x60] sm:$0xff]
        %v1770 = vld [vmem:[#allocation3 + $0x68] sm:$0xff]
        %v1771 = vld [vmem:[#allocation3 + $0x70] sm:$0xff]
        %v1772 = vld [vmem:[#allocation3 + $0x78] sm:$0xff]
        %v1773 = vld [vmem:[#allocation3 + $0x80] sm:$0xff]
        %v1774 = vld [vmem:[#allocation3 + $0x88] sm:$0xff]
        %v1775 = vld [vmem:[#allocation3 + $0x90] sm:$0xff]
        %v1776 = vld [vmem:[#allocation3 + $0x98] sm:$0xff]
        %v1777 = vld [vmem:[#allocation3 + $0xa0] sm:$0xff]
        %v1778 = vld [vmem:[#allocation3 + $0xa8] sm:$0xff]
        %v1779 = vld [vmem:[#allocation3 + $0xb0] sm:$0xff]
        %v1780 = vld [vmem:[#allocation3 + $0xb8] sm:$0xff]
        %v1781 = vld [vmem:[#allocation3 + $0xc0] sm:$0xff]
        %v1782 = vld [vmem:[#allocation3 + $0xc8] sm:$0xff]
        %v1783 = vld [vmem:[#allocation3 + $0xd0] sm:$0xff]
        %v1784 = vld [vmem:[#allocation3 + $0xd8] sm:$0xff]
        %v1785 = vld [vmem:[#allocation3 + $0xe0] sm:$0xff]
        %v1786 = vld [vmem:[#allocation3 + $0xe8] sm:$0xff]
        %v1787 = vld [vmem:[#allocation3 + $0xf0] sm:$0xff]
        %v1788 = vld [vmem:[#allocation3 + $0xf8] sm:$0xff]
        %v1789 = vpack.c.bf16 %v1726, %v1725
        %v1790 = vpack.c.bf16 %v1728, %v1727
        %v1791 = vpack.c.bf16 %v1730, %v1729
        %v1792 = vpack.c.bf16 %v1732, %v1731
        %v1793 = vpack.c.bf16 %v1734, %v1733
        %v1794 = vpack.c.bf16 %v1736, %v1735
        %v1795 = vpack.c.bf16 %v1738, %v1737
        %v1796 = vpack.c.bf16 %v1740, %v1739
        %v1797 = vpack.c.bf16 %v1742, %v1741
        %v1798 = vpack.c.bf16 %v1744, %v1743
        %v1799 = vpack.c.bf16 %v1746, %v1745
        %v1800 = vpack.c.bf16 %v1748, %v1747
        %v1801 = vpack.c.bf16 %v1750, %v1749
        %v1802 = vpack.c.bf16 %v1752, %v1751
        %v1803 = vpack.c.bf16 %v1754, %v1753
        %v1804 = vpack.c.bf16 %v1756, %v1755
        %s1805 = scalar_lea.vmem [#allocation10], 8
        %v1806 = vld [vmem:[%s1805] sm:$0xf]
        %v1807 = vld [vmem:[%s1805 + $0x4] sm:$0x3]
        %v1810 = vunpack.c.l.b16 %v1806
        %v1811 = vunpack.c.l.b16 %v1807
        %v1812 = vpack.c.b16 %v1811, %v1810
        %v1814 = vsel %vm1063, %v1789, 0
        %v1817 = vsel %vm1063, %v1790, 0
        %v1820 = vsel %vm1063, %v1791, 0
        %v1823 = vsel %vm1063, %v1792, 0
        %v1826 = vsel %vm1063, %v1793, 0
        %v1829 = vsel %vm1063, %v1794, 0
        %v1832 = vsel %vm1063, %v1795, 0
        %v1835 = vsel %vm1063, %v1796, 0
        %v1838 = vsel %vm1063, %v1797, 0
        %v1841 = vsel %vm1063, %v1798, 0
        %v1844 = vsel %vm1063, %v1799, 0
        %v1847 = vsel %vm1063, %v1800, 0
        %v1850 = vsel %vm1063, %v1801, 0
        %v1853 = vsel %vm1063, %v1802, 0
        %v1856 = vsel %vm1063, %v1803, 0
        %v1859 = vsel %vm1063, %v1804, 0
        %v1862 = vsel %vm1112, %v1812, 0
        %1864 = vmatprep.subr.bf16.mxu0 0
        %1865 = vmatpush1.bf16.msra.mxu0 %v1862
        %1866 = vmatprep.subr.bf16.mxu0 0
        %1867 = vmatpush1.bf16.msra.mxu0 0
        %1868 = vmatprep.subr.bf16.mxu0 0
        %1869 = vmatpush1.bf16.msra.mxu0 0
        %1870 = vmatprep.subr.bf16.mxu0 0
        %1871 = vmatpush1.bf16.msra.mxu0 0
        %1872 = vmatprep.subr.bf16.mxu0 0
        %1873 = vmatpush1.bf16.msra.mxu0 0
        %1874 = vmatprep.subr.bf16.mxu0 0
        %1875 = vmatpush1.bf16.msra.mxu0 0
        %1876 = vmatprep.subr.bf16.mxu0 0
        %1877 = vmatpush1.bf16.msra.mxu0 0
        %1878 = vmatprep.subr.bf16.mxu0 0
        %1879 = vmatpush1.bf16.msra.mxu0 0
        %1880 = vmatprep.subr.bf16.mxu0 0
        %1881 = vmatpush1.bf16.msra.mxu0 0
        %1882 = vmatprep.subr.bf16.mxu0 0
        %1883 = vmatpush1.bf16.msra.mxu0 0
        %1884 = vmatprep.subr.bf16.mxu0 0
        %1885 = vmatpush1.bf16.msra.mxu0 0
        %1886 = vmatprep.subr.bf16.mxu0 0
        %1887 = vmatpush1.bf16.msra.mxu0 0
        %1888 = vmatprep.subr.bf16.mxu0 0
        %1889 = vmatpush1.bf16.msra.mxu0 0
        %1890 = vmatprep.subr.bf16.mxu0 0
        %1891 = vmatpush1.bf16.msra.mxu0 0
        %1892 = vmatprep.subr.bf16.mxu0 0
        %1893 = vmatpush1.bf16.msra.mxu0 0
        %1894 = vmatprep.subr.bf16.mxu0 0
        %1895 = vmatpush1.bf16.msra.mxu0 0
        %1896 = vmatprep.mubr.bf16.mxu0 0
        %1897 = vmatmul.mubr.bf16.gmra.mrb[0].mxu0 %v1814
        %v1898 = vpop.f32.mrb[0].mxu0
        %v1899 = vadd.f32 0.0, %v1898
        %v1900 = vpop.f32.mrb[0].mxu0
        %v1901 = vpop.f32.mrb[0].mxu0
        %v1902 = vadd.f32 0.0, %v1901
        %v1903 = vpop.f32.mrb[0].mxu0
        %1904 = vmatprep.mubr.bf16.mxu0 0
        %1905 = vmatmul.mubr.bf16.gmra.mrb[0].mxu0 %v1817
        %v1906 = vpop.f32.mrb[0].mxu0
        %v1907 = vadd.f32 0.0, %v1906
        %v1908 = vpop.f32.mrb[0].mxu0
        %v1909 = vpop.f32.mrb[0].mxu0
        %v1910 = vadd.f32 0.0, %v1909
        %v1911 = vpop.f32.mrb[0].mxu0
        %1912 = vmatprep.mubr.bf16.mxu0 0
        %1913 = vmatmul.mubr.bf16.gmra.mrb[0].mxu0 %v1820
        %v1914 = vpop.f32.mrb[0].mxu0
        %v1915 = vadd.f32 0.0, %v1914
        %v1916 = vpop.f32.mrb[0].mxu0
        %v1917 = vpop.f32.mrb[0].mxu0
        %v1918 = vadd.f32 0.0, %v1917
        %v1919 = vpop.f32.mrb[0].mxu0
        %1920 = vmatprep.mubr.bf16.mxu0 0
        %1921 = vmatmul.mubr.bf16.gmra.mrb[0].mxu0 %v1823
        %v1922 = vpop.f32.mrb[0].mxu0
        %v1923 = vadd.f32 0.0, %v1922
        %v1924 = vpop.f32.mrb[0].mxu0
        %v1925 = vpop.f32.mrb[0].mxu0
        %v1926 = vadd.f32 0.0, %v1925
        %v1927 = vpop.f32.mrb[0].mxu0
        %1928 = vmatprep.mubr.bf16.mxu0 0
        %1929 = vmatmul.mubr.bf16.gmra.mrb[0].mxu0 %v1826
        %v1930 = vpop.f32.mrb[0].mxu0
        %v1931 = vadd.f32 0.0, %v1930
        %v1932 = vpop.f32.mrb[0].mxu0
        %v1933 = vpop.f32.mrb[0].mxu0
        %v1934 = vadd.f32 0.0, %v1933
        %v1935 = vpop.f32.mrb[0].mxu0
        %1936 = vmatprep.mubr.bf16.mxu0 0
        %1937 = vmatmul.mubr.bf16.gmra.mrb[0].mxu0 %v1829
        %v1938 = vpop.f32.mrb[0].mxu0
        %v1939 = vadd.f32 0.0, %v1938
        %v1940 = vpop.f32.mrb[0].mxu0
        %v1941 = vpop.f32.mrb[0].mxu0
        %v1942 = vadd.f32 0.0, %v1941
        %v1943 = vpop.f32.mrb[0].mxu0
        %1944 = vmatprep.mubr.bf16.mxu0 0
        %1945 = vmatmul.mubr.bf16.gmra.mrb[0].mxu0 %v1832
        %v1946 = vpop.f32.mrb[0].mxu0
        %v1947 = vadd.f32 0.0, %v1946
        %v1948 = vpop.f32.mrb[0].mxu0
        %v1949 = vpop.f32.mrb[0].mxu0
        %v1950 = vadd.f32 0.0, %v1949
        %v1951 = vpop.f32.mrb[0].mxu0
        %1952 = vmatprep.mubr.bf16.mxu0 0
        %1953 = vmatmul.mubr.bf16.gmra.mrb[0].mxu0 %v1835
        %v1954 = vpop.f32.mrb[0].mxu0
        %v1955 = vadd.f32 0.0, %v1954
        %v1956 = vpop.f32.mrb[0].mxu0
        %v1957 = vpop.f32.mrb[0].mxu0
        %v1958 = vadd.f32 0.0, %v1957
        %v1959 = vpop.f32.mrb[0].mxu0
        %1960 = vmatprep.mubr.bf16.mxu0 0
        %1961 = vmatmul.mubr.bf16.gmra.mrb[0].mxu0 %v1838
        %v1962 = vpop.f32.mrb[0].mxu0
        %v1963 = vadd.f32 0.0, %v1962
        %v1964 = vpop.f32.mrb[0].mxu0
        %v1965 = vpop.f32.mrb[0].mxu0
        %v1966 = vadd.f32 0.0, %v1965
        %v1967 = vpop.f32.mrb[0].mxu0
        %1968 = vmatprep.mubr.bf16.mxu0 0
        %1969 = vmatmul.mubr.bf16.gmra.mrb[0].mxu0 %v1841
        %v1970 = vpop.f32.mrb[0].mxu0
        %v1971 = vadd.f32 0.0, %v1970
        %v1972 = vpop.f32.mrb[0].mxu0
        %v1973 = vpop.f32.mrb[0].mxu0
        %v1974 = vadd.f32 0.0, %v1973
        %v1975 = vpop.f32.mrb[0].mxu0
        %1976 = vmatprep.mubr.bf16.mxu0 0
        %1977 = vmatmul.mubr.bf16.gmra.mrb[0].mxu0 %v1844
        %v1978 = vpop.f32.mrb[0].mxu0
        %v1979 = vadd.f32 0.0, %v1978
        %v1980 = vpop.f32.mrb[0].mxu0
        %v1981 = vpop.f32.mrb[0].mxu0
        %v1982 = vadd.f32 0.0, %v1981
        %v1983 = vpop.f32.mrb[0].mxu0
        %1984 = vmatprep.mubr.bf16.mxu0 0
        %1985 = vmatmul.mubr.bf16.gmra.mrb[0].mxu0 %v1847
        %v1986 = vpop.f32.mrb[0].mxu0
        %v1987 = vadd.f32 0.0, %v1986
        %v1988 = vpop.f32.mrb[0].mxu0
        %v1989 = vpop.f32.mrb[0].mxu0
        %v1990 = vadd.f32 0.0, %v1989
        %v1991 = vpop.f32.mrb[0].mxu0
        %1992 = vmatprep.mubr.bf16.mxu0 0
        %1993 = vmatmul.mubr.bf16.gmra.mrb[0].mxu0 %v1850
        %v1994 = vpop.f32.mrb[0].mxu0
        %v1995 = vadd.f32 0.0, %v1994
        %v1996 = vpop.f32.mrb[0].mxu0
        %v1997 = vpop.f32.mrb[0].mxu0
        %v1998 = vadd.f32 0.0, %v1997
        %v1999 = vpop.f32.mrb[0].mxu0
        %2000 = vmatprep.mubr.bf16.mxu0 0
        %2001 = vmatmul.mubr.bf16.gmra.mrb[0].mxu0 %v1853
        %v2002 = vpop.f32.mrb[0].mxu0
        %v2003 = vadd.f32 0.0, %v2002
        %v2004 = vpop.f32.mrb[0].mxu0
        %v2005 = vpop.f32.mrb[0].mxu0
        %v2006 = vadd.f32 0.0, %v2005
        %v2007 = vpop.f32.mrb[0].mxu0
        %2008 = vmatprep.mubr.bf16.mxu0 0
        %2009 = vmatmul.mubr.bf16.gmra.mrb[0].mxu0 %v1856
        %v2010 = vpop.f32.mrb[0].mxu0
        %v2011 = vadd.f32 0.0, %v2010
        %v2012 = vpop.f32.mrb[0].mxu0
        %v2013 = vpop.f32.mrb[0].mxu0
        %v2014 = vadd.f32 0.0, %v2013
        %v2015 = vpop.f32.mrb[0].mxu0
        %2016 = vmatprep.mubr.bf16.mxu0 0
        %2017 = vmatmul.mubr.bf16.gmra.mrb[0].mxu0 %v1859
        %v2018 = vpop.f32.mrb[0].mxu0
        %v2019 = vadd.f32 0.0, %v2018
        %v2020 = vpop.f32.mrb[0].mxu0
        %v2021 = vpop.f32.mrb[0].mxu0
        %v2022 = vadd.f32 0.0, %v2021
        %v2023 = vpop.f32.mrb[0].mxu0
        %2024 = vdwg.mxu0
        %v2025 = vadd.f32 %v1757, %v1899
        %v2026 = vadd.f32 %v1758, %v1902
        %v2027 = vadd.f32 %v1759, %v1907
        %v2028 = vadd.f32 %v1760, %v1910
        %v2029 = vadd.f32 %v1761, %v1915
        %v2030 = vadd.f32 %v1762, %v1918
        %v2031 = vadd.f32 %v1763, %v1923
        %v2032 = vadd.f32 %v1764, %v1926
        %v2033 = vadd.f32 %v1765, %v1931
        %v2034 = vadd.f32 %v1766, %v1934
        %v2035 = vadd.f32 %v1767, %v1939
        %v2036 = vadd.f32 %v1768, %v1942
        %v2037 = vadd.f32 %v1769, %v1947
        %v2038 = vadd.f32 %v1770, %v1950
        %v2039 = vadd.f32 %v1771, %v1955
        %v2040 = vadd.f32 %v1772, %v1958
        %v2041 = vadd.f32 %v1773, %v1963
        %v2042 = vadd.f32 %v1774, %v1966
        %v2043 = vadd.f32 %v1775, %v1971
        %v2044 = vadd.f32 %v1776, %v1974
        %v2045 = vadd.f32 %v1777, %v1979
        %v2046 = vadd.f32 %v1778, %v1982
        %v2047 = vadd.f32 %v1779, %v1987
        %v2048 = vadd.f32 %v1780, %v1990
        %v2049 = vadd.f32 %v1781, %v1995
        %v2050 = vadd.f32 %v1782, %v1998
        %v2051 = vadd.f32 %v1783, %v2003
        %v2052 = vadd.f32 %v1784, %v2006
        %v2053 = vadd.f32 %v1785, %v2011
        %v2054 = vadd.f32 %v1786, %v2014
        %v2055 = vadd.f32 %v1787, %v2019
        %v2056 = vadd.f32 %v1788, %v2022
        %2057 = vst.msk [vmem:[#allocation3] sm:$0xff] %vm558, %v2025
        %2058 = vst.msk [vmem:[#allocation3 + $0x8] sm:$0xff] %vm558, %v2026
        %2059 = vst.msk [vmem:[#allocation3 + $0x10] sm:$0xff] %vm558, %v2027
        %2060 = vst.msk [vmem:[#allocation3 + $0x18] sm:$0xff] %vm558, %v2028
        %2061 = vst.msk [vmem:[#allocation3 + $0x20] sm:$0xff] %vm558, %v2029
        %2062 = vst.msk [vmem:[#allocation3 + $0x28] sm:$0xff] %vm558, %v2030
        %2063 = vst.msk [vmem:[#allocation3 + $0x30] sm:$0xff] %vm558, %v2031
        %2064 = vst.msk [vmem:[#allocation3 + $0x38] sm:$0xff] %vm558, %v2032
        %2065 = vst.msk [vmem:[#allocation3 + $0x40] sm:$0xff] %vm558, %v2033
        %2066 = vst.msk [vmem:[#allocation3 + $0x48] sm:$0xff] %vm558, %v2034
        %2067 = vst.msk [vmem:[#allocation3 + $0x50] sm:$0xff] %vm558, %v2035
        %2068 = vst.msk [vmem:[#allocation3 + $0x58] sm:$0xff] %vm558, %v2036
        %2069 = vst.msk [vmem:[#allocation3 + $0x60] sm:$0xff] %vm558, %v2037
        %2070 = vst.msk [vmem:[#allocation3 + $0x68] sm:$0xff] %vm558, %v2038
        %2071 = vst.msk [vmem:[#allocation3 + $0x70] sm:$0xff] %vm558, %v2039
        %2072 = vst.msk [vmem:[#allocation3 + $0x78] sm:$0xff] %vm558, %v2040
        %2073 = vst.msk [vmem:[#allocation3 + $0x80] sm:$0xff] %vm558, %v2041
        %2074 = vst.msk [vmem:[#allocation3 + $0x88] sm:$0xff] %vm558, %v2042
        %2075 = vst.msk [vmem:[#allocation3 + $0x90] sm:$0xff] %vm558, %v2043
        %2076 = vst.msk [vmem:[#allocation3 + $0x98] sm:$0xff] %vm558, %v2044
        %2077 = vst.msk [vmem:[#allocation3 + $0xa0] sm:$0xff] %vm558, %v2045
        %2078 = vst.msk [vmem:[#allocation3 + $0xa8] sm:$0xff] %vm558, %v2046
        %2079 = vst.msk [vmem:[#allocation3 + $0xb0] sm:$0xff] %vm558, %v2047
        %2080 = vst.msk [vmem:[#allocation3 + $0xb8] sm:$0xff] %vm558, %v2048
        %2081 = vst.msk [vmem:[#allocation3 + $0xc0] sm:$0xff] %vm558, %v2049
        %2082 = vst.msk [vmem:[#allocation3 + $0xc8] sm:$0xff] %vm558, %v2050
        %2083 = vst.msk [vmem:[#allocation3 + $0xd0] sm:$0xff] %vm558, %v2051
        %2084 = vst.msk [vmem:[#allocation3 + $0xd8] sm:$0xff] %vm558, %v2052
        %2085 = vst.msk [vmem:[#allocation3 + $0xe0] sm:$0xff] %vm558, %v2053
        %2086 = vst.msk [vmem:[#allocation3 + $0xe8] sm:$0xff] %vm558, %v2054
        %2087 = vst.msk [vmem:[#allocation3 + $0xf0] sm:$0xff] %vm558, %v2055
        %2088 = vst.msk [vmem:[#allocation3 + $0xf8] sm:$0xff] %vm558, %v2056
        %s2089 = scalar_lea.vmem [#allocation2], 48
        %v2090 = vld [vmem:[%s2089] sm:$0xff]
        %v2091 = vld [vmem:[%s2089 + $0x8] sm:$0xff]
        %v2092 = vld [vmem:[%s2089 + $0x18] sm:$0xff]
        %v2093 = vld [vmem:[%s2089 + $0x20] sm:$0xff]
        %v2094 = vld [vmem:[%s2089 + $0x30] sm:$0xff]
        %v2095 = vld [vmem:[%s2089 + $0x38] sm:$0xff]
        %v2096 = vld [vmem:[%s2089 + $0x48] sm:$0xff]
        %v2097 = vld [vmem:[%s2089 + $0x50] sm:$0xff]
        %v2098 = vld [vmem:[%s2089 + $0x60] sm:$0xff]
        %v2099 = vld [vmem:[%s2089 + $0x68] sm:$0xff]
        %v2100 = vld [vmem:[%s2089 + $0x78] sm:$0xff]
        %v2101 = vld [vmem:[%s2089 + $0x80] sm:$0xff]
        %v2102 = vld [vmem:[%s2089 + $0x90] sm:$0xff]
        %v2103 = vld [vmem:[%s2089 + $0x98] sm:$0xff]
        %v2104 = vld [vmem:[%s2089 + $0xa8] sm:$0xff]
        %v2105 = vld [vmem:[%s2089 + $0xb0] sm:$0xff]
        %v2106 = vld [vmem:[%s2089 + $0xc0] sm:$0xff]
        %v2107 = vld [vmem:[%s2089 + $0xc8] sm:$0xff]
        %v2108 = vld [vmem:[%s2089 + $0xd8] sm:$0xff]
        %v2109 = vld [vmem:[%s2089 + $0xe0] sm:$0xff]
        %v2110 = vld [vmem:[%s2089 + $0xf0] sm:$0xff]
        %v2111 = vld [vmem:[%s2089 + $0xf8] sm:$0xff]
        %v2112 = vld [vmem:[%s2089 + $0x108] sm:$0xff]
        %v2113 = vld [vmem:[%s2089 + $0x110] sm:$0xff]
        %v2114 = vld [vmem:[%s2089 + $0x120] sm:$0xff]
        %v2115 = vld [vmem:[%s2089 + $0x128] sm:$0xff]
        %v2116 = vld [vmem:[%s2089 + $0x138] sm:$0xff]
        %v2117 = vld [vmem:[%s2089 + $0x140] sm:$0xff]
        %v2118 = vld [vmem:[%s2089 + $0x150] sm:$0xff]
        %v2119 = vld [vmem:[%s2089 + $0x158] sm:$0xff]
        %v2120 = vld [vmem:[%s2089 + $0x168] sm:$0xff]
        %v2121 = vld [vmem:[%s2089 + $0x170] sm:$0xff]
        %v2122 = vld [vmem:[%s2089 + $0x1] sm:$0xff]
        %v2123 = vld [vmem:[%s2089 + $0x9] sm:$0xff]
        %v2124 = vld [vmem:[%s2089 + $0x19] sm:$0xff]
        %v2125 = vld [vmem:[%s2089 + $0x21] sm:$0xff]
        %v2126 = vld [vmem:[%s2089 + $0x31] sm:$0xff]
        %v2127 = vld [vmem:[%s2089 + $0x39] sm:$0xff]
        %v2128 = vld [vmem:[%s2089 + $0x49] sm:$0xff]
        %v2129 = vld [vmem:[%s2089 + $0x51] sm:$0xff]
        %v2130 = vld [vmem:[%s2089 + $0x61] sm:$0xff]
        %v2131 = vld [vmem:[%s2089 + $0x69] sm:$0xff]
        %v2132 = vld [vmem:[%s2089 + $0x79] sm:$0xff]
        %v2133 = vld [vmem:[%s2089 + $0x81] sm:$0xff]
        %v2134 = vld [vmem:[%s2089 + $0x91] sm:$0xff]
        %v2135 = vld [vmem:[%s2089 + $0x99] sm:$0xff]
        %v2136 = vld [vmem:[%s2089 + $0xa9] sm:$0xff]
        %v2137 = vld [vmem:[%s2089 + $0xb1] sm:$0xff]
        %v2138 = vld [vmem:[%s2089 + $0xc1] sm:$0xff]
        %v2139 = vld [vmem:[%s2089 + $0xc9] sm:$0xff]
        %v2140 = vld [vmem:[%s2089 + $0xd9] sm:$0xff]
        %v2141 = vld [vmem:[%s2089 + $0xe1] sm:$0xff]
        %v2142 = vld [vmem:[%s2089 + $0xf1] sm:$0xff]
        %v2143 = vld [vmem:[%s2089 + $0xf9] sm:$0xff]
        %v2144 = vld [vmem:[%s2089 + $0x109] sm:$0xff]
        %v2145 = vld [vmem:[%s2089 + $0x111] sm:$0xff]
        %v2146 = vld [vmem:[%s2089 + $0x121] sm:$0xff]
        %v2147 = vld [vmem:[%s2089 + $0x129] sm:$0xff]
        %v2148 = vld [vmem:[%s2089 + $0x139] sm:$0xff]
        %v2149 = vld [vmem:[%s2089 + $0x141] sm:$0xff]
        %v2150 = vld [vmem:[%s2089 + $0x151] sm:$0xff]
        %v2151 = vld [vmem:[%s2089 + $0x159] sm:$0xff]
        %v2152 = vld [vmem:[%s2089 + $0x169] sm:$0xff]
        %v2153 = vld [vmem:[%s2089 + $0x171] sm:$0xff]
        %v2154 = vld [vmem:[%s2089 + $0x2] sm:$0xff]
        %v2155 = vld [vmem:[%s2089 + $0xa] sm:$0xff]
        %v2156 = vld [vmem:[%s2089 + $0x1a] sm:$0xff]
        %v2157 = vld [vmem:[%s2089 + $0x22] sm:$0xff]
        %v2158 = vld [vmem:[%s2089 + $0x32] sm:$0xff]
        %v2159 = vld [vmem:[%s2089 + $0x3a] sm:$0xff]
        %v2160 = vld [vmem:[%s2089 + $0x4a] sm:$0xff]
        %v2161 = vld [vmem:[%s2089 + $0x52] sm:$0xff]
        %v2162 = vld [vmem:[%s2089 + $0x62] sm:$0xff]
        %v2163 = vld [vmem:[%s2089 + $0x6a] sm:$0xff]
        %v2164 = vld [vmem:[%s2089 + $0x7a] sm:$0xff]
        %v2165 = vld [vmem:[%s2089 + $0x82] sm:$0xff]
        %v2166 = vld [vmem:[%s2089 + $0x92] sm:$0xff]
        %v2167 = vld [vmem:[%s2089 + $0x9a] sm:$0xff]
        %v2168 = vld [vmem:[%s2089 + $0xaa] sm:$0xff]
        %v2169 = vld [vmem:[%s2089 + $0xb2] sm:$0xff]
        %v2170 = vld [vmem:[%s2089 + $0xc2] sm:$0xff]
        %v2171 = vld [vmem:[%s2089 + $0xca] sm:$0xff]
        %v2172 = vld [vmem:[%s2089 + $0xda] sm:$0xff]
        %v2173 = vld [vmem:[%s2089 + $0xe2] sm:$0xff]
        %v2174 = vld [vmem:[%s2089 + $0xf2] sm:$0xff]
        %v2175 = vld [vmem:[%s2089 + $0xfa] sm:$0xff]
        %v2176 = vld [vmem:[%s2089 + $0x10a] sm:$0xff]
        %v2177 = vld [vmem:[%s2089 + $0x112] sm:$0xff]
        %v2178 = vld [vmem:[%s2089 + $0x122] sm:$0xff]
        %v2179 = vld [vmem:[%s2089 + $0x12a] sm:$0xff]
        %v2180 = vld [vmem:[%s2089 + $0x13a] sm:$0xff]
        %v2181 = vld [vmem:[%s2089 + $0x142] sm:$0xff]
        %v2182 = vld [vmem:[%s2089 + $0x152] sm:$0xff]
        %v2183 = vld [vmem:[%s2089 + $0x15a] sm:$0xff]
        %v2184 = vld [vmem:[%s2089 + $0x16a] sm:$0xff]
        %v2185 = vld [vmem:[%s2089 + $0x172] sm:$0xff]
        %2218 = vrot.lane.b32.xlu0 %v2122, 4
        %v2219 = vpop.permute.xlu0 %2218
        %2220 = vrot.lane.b32.xlu0 %v2123, 4
        %v2221 = vpop.permute.xlu0 %2220
        %2222 = vrot.lane.b32.xlu0 %v2124, 4
        %v2223 = vpop.permute.xlu0 %2222
        %2224 = vrot.lane.b32.xlu0 %v2125, 4
        %v2225 = vpop.permute.xlu0 %2224
        %2226 = vrot.lane.b32.xlu0 %v2126, 4
        %v2227 = vpop.permute.xlu0 %2226
        %2228 = vrot.lane.b32.xlu0 %v2127, 4
        %v2229 = vpop.permute.xlu0 %2228
        %2230 = vrot.lane.b32.xlu0 %v2128, 4
        %v2231 = vpop.permute.xlu0 %2230
        %2232 = vrot.lane.b32.xlu0 %v2129, 4
        %v2233 = vpop.permute.xlu0 %2232
        %2234 = vrot.lane.b32.xlu0 %v2130, 4
        %v2235 = vpop.permute.xlu0 %2234
        %2236 = vrot.lane.b32.xlu0 %v2131, 4
        %v2237 = vpop.permute.xlu0 %2236
        %2238 = vrot.lane.b32.xlu0 %v2132, 4
        %v2239 = vpop.permute.xlu0 %2238
        %2240 = vrot.lane.b32.xlu0 %v2133, 4
        %v2241 = vpop.permute.xlu0 %2240
        %2242 = vrot.lane.b32.xlu0 %v2134, 4
        %v2243 = vpop.permute.xlu0 %2242
        %2244 = vrot.lane.b32.xlu0 %v2135, 4
        %v2245 = vpop.permute.xlu0 %2244
        %2246 = vrot.lane.b32.xlu0 %v2136, 4
        %v2247 = vpop.permute.xlu0 %2246
        %2248 = vrot.lane.b32.xlu0 %v2137, 4
        %v2249 = vpop.permute.xlu0 %2248
        %2250 = vrot.lane.b32.xlu0 %v2138, 4
        %v2251 = vpop.permute.xlu0 %2250
        %2252 = vrot.lane.b32.xlu0 %v2139, 4
        %v2253 = vpop.permute.xlu0 %2252
        %2254 = vrot.lane.b32.xlu0 %v2140, 4
        %v2255 = vpop.permute.xlu0 %2254
        %2256 = vrot.lane.b32.xlu0 %v2141, 4
        %v2257 = vpop.permute.xlu0 %2256
        %2258 = vrot.lane.b32.xlu0 %v2142, 4
        %v2259 = vpop.permute.xlu0 %2258
        %2260 = vrot.lane.b32.xlu0 %v2143, 4
        %v2261 = vpop.permute.xlu0 %2260
        %2262 = vrot.lane.b32.xlu0 %v2144, 4
        %v2263 = vpop.permute.xlu0 %2262
        %2264 = vrot.lane.b32.xlu0 %v2145, 4
        %v2265 = vpop.permute.xlu0 %2264
        %2266 = vrot.lane.b32.xlu0 %v2146, 4
        %v2267 = vpop.permute.xlu0 %2266
        %2268 = vrot.lane.b32.xlu0 %v2147, 4
        %v2269 = vpop.permute.xlu0 %2268
        %2270 = vrot.lane.b32.xlu0 %v2148, 4
        %v2271 = vpop.permute.xlu0 %2270
        %2272 = vrot.lane.b32.xlu0 %v2149, 4
        %v2273 = vpop.permute.xlu0 %2272
        %2274 = vrot.lane.b32.xlu0 %v2150, 4
        %v2275 = vpop.permute.xlu0 %2274
        %2276 = vrot.lane.b32.xlu0 %v2151, 4
        %v2277 = vpop.permute.xlu0 %2276
        %2278 = vrot.lane.b32.xlu0 %v2152, 4
        %v2279 = vpop.permute.xlu0 %2278
        %2280 = vrot.lane.b32.xlu0 %v2153, 4
        %v2281 = vpop.permute.xlu0 %2280
        %2346 = vrot.lane.b32.xlu0 %v2154, 8
        %v2347 = vpop.permute.xlu0 %2346
        %2348 = vrot.lane.b32.xlu0 %v2155, 8
        %v2349 = vpop.permute.xlu0 %2348
        %2350 = vrot.lane.b32.xlu0 %v2156, 8
        %v2351 = vpop.permute.xlu0 %2350
        %2352 = vrot.lane.b32.xlu0 %v2157, 8
        %v2353 = vpop.permute.xlu0 %2352
        %2354 = vrot.lane.b32.xlu0 %v2158, 8
        %v2355 = vpop.permute.xlu0 %2354
        %2356 = vrot.lane.b32.xlu0 %v2159, 8
        %v2357 = vpop.permute.xlu0 %2356
        %2358 = vrot.lane.b32.xlu0 %v2160, 8
        %v2359 = vpop.permute.xlu0 %2358
        %2360 = vrot.lane.b32.xlu0 %v2161, 8
        %v2361 = vpop.permute.xlu0 %2360
        %2362 = vrot.lane.b32.xlu0 %v2162, 8
        %v2363 = vpop.permute.xlu0 %2362
        %2364 = vrot.lane.b32.xlu0 %v2163, 8
        %v2365 = vpop.permute.xlu0 %2364
        %2366 = vrot.lane.b32.xlu0 %v2164, 8
        %v2367 = vpop.permute.xlu0 %2366
        %2368 = vrot.lane.b32.xlu0 %v2165, 8
        %v2369 = vpop.permute.xlu0 %2368
        %2370 = vrot.lane.b32.xlu0 %v2166, 8
        %v2371 = vpop.permute.xlu0 %2370
        %2372 = vrot.lane.b32.xlu0 %v2167, 8
        %v2373 = vpop.permute.xlu0 %2372
        %2374 = vrot.lane.b32.xlu0 %v2168, 8
        %v2375 = vpop.permute.xlu0 %2374
        %2376 = vrot.lane.b32.xlu0 %v2169, 8
        %v2377 = vpop.permute.xlu0 %2376
        %2378 = vrot.lane.b32.xlu0 %v2170, 8
        %v2379 = vpop.permute.xlu0 %2378
        %2380 = vrot.lane.b32.xlu0 %v2171, 8
        %v2381 = vpop.permute.xlu0 %2380
        %2382 = vrot.lane.b32.xlu0 %v2172, 8
        %v2383 = vpop.permute.xlu0 %2382
        %2384 = vrot.lane.b32.xlu0 %v2173, 8
        %v2385 = vpop.permute.xlu0 %2384
        %2386 = vrot.lane.b32.xlu0 %v2174, 8
        %v2387 = vpop.permute.xlu0 %2386
        %2388 = vrot.lane.b32.xlu0 %v2175, 8
        %v2389 = vpop.permute.xlu0 %2388
        %2390 = vrot.lane.b32.xlu0 %v2176, 8
        %v2391 = vpop.permute.xlu0 %2390
        %2392 = vrot.lane.b32.xlu0 %v2177, 8
        %v2393 = vpop.permute.xlu0 %2392
        %2394 = vrot.lane.b32.xlu0 %v2178, 8
        %v2395 = vpop.permute.xlu0 %2394
        %2396 = vrot.lane.b32.xlu0 %v2179, 8
        %v2397 = vpop.permute.xlu0 %2396
        %2398 = vrot.lane.b32.xlu0 %v2180, 8
        %v2399 = vpop.permute.xlu0 %2398
        %2400 = vrot.lane.b32.xlu0 %v2181, 8
        %v2401 = vpop.permute.xlu0 %2400
        %2402 = vrot.lane.b32.xlu0 %v2182, 8
        %v2403 = vpop.permute.xlu0 %2402
        %2404 = vrot.lane.b32.xlu0 %v2183, 8
        %v2405 = vpop.permute.xlu0 %2404
        %2406 = vrot.lane.b32.xlu0 %v2184, 8
        %v2407 = vpop.permute.xlu0 %2406
        %2408 = vrot.lane.b32.xlu0 %v2185, 8
        %v2409 = vpop.permute.xlu0 %2408
        %v2442 = vsel %vm469, %v2090, %v2219
        %v2443 = vsel %vm469, %v2091, %v2221
        %v2444 = vsel %vm469, %v2092, %v2223
        %v2445 = vsel %vm469, %v2093, %v2225
        %v2446 = vsel %vm469, %v2094, %v2227
        %v2447 = vsel %vm469, %v2095, %v2229
        %v2448 = vsel %vm469, %v2096, %v2231
        %v2449 = vsel %vm469, %v2097, %v2233
        %v2450 = vsel %vm469, %v2098, %v2235
        %v2451 = vsel %vm469, %v2099, %v2237
        %v2452 = vsel %vm469, %v2100, %v2239
        %v2453 = vsel %vm469, %v2101, %v2241
        %v2454 = vsel %vm469, %v2102, %v2243
        %v2455 = vsel %vm469, %v2103, %v2245
        %v2456 = vsel %vm469, %v2104, %v2247
        %v2457 = vsel %vm469, %v2105, %v2249
        %v2458 = vsel %vm469, %v2106, %v2251
        %v2459 = vsel %vm469, %v2107, %v2253
        %v2460 = vsel %vm469, %v2108, %v2255
        %v2461 = vsel %vm469, %v2109, %v2257
        %v2462 = vsel %vm469, %v2110, %v2259
        %v2463 = vsel %vm469, %v2111, %v2261
        %v2464 = vsel %vm469, %v2112, %v2263
        %v2465 = vsel %vm469, %v2113, %v2265
        %v2466 = vsel %vm469, %v2114, %v2267
        %v2467 = vsel %vm469, %v2115, %v2269
        %v2468 = vsel %vm469, %v2116, %v2271
        %v2469 = vsel %vm469, %v2117, %v2273
        %v2470 = vsel %vm469, %v2118, %v2275
        %v2471 = vsel %vm469, %v2119, %v2277
        %v2472 = vsel %vm469, %v2120, %v2279
        %v2473 = vsel %vm469, %v2121, %v2281
        %v2474 = vsel %vm975, %v2442, %v2347
        %v2475 = vsel %vm975, %v2443, %v2349
        %v2476 = vsel %vm975, %v2444, %v2351
        %v2477 = vsel %vm975, %v2445, %v2353
        %v2478 = vsel %vm975, %v2446, %v2355
        %v2479 = vsel %vm975, %v2447, %v2357
        %v2480 = vsel %vm975, %v2448, %v2359
        %v2481 = vsel %vm975, %v2449, %v2361
        %v2482 = vsel %vm975, %v2450, %v2363
        %v2483 = vsel %vm975, %v2451, %v2365
        %v2484 = vsel %vm975, %v2452, %v2367
        %v2485 = vsel %vm975, %v2453, %v2369
        %v2486 = vsel %vm975, %v2454, %v2371
        %v2487 = vsel %vm975, %v2455, %v2373
        %v2488 = vsel %vm975, %v2456, %v2375
        %v2489 = vsel %vm975, %v2457, %v2377
        %v2490 = vsel %vm975, %v2458, %v2379
        %v2491 = vsel %vm975, %v2459, %v2381
        %v2492 = vsel %vm975, %v2460, %v2383
        %v2493 = vsel %vm975, %v2461, %v2385
        %v2494 = vsel %vm975, %v2462, %v2387
        %v2495 = vsel %vm975, %v2463, %v2389
        %v2496 = vsel %vm975, %v2464, %v2391
        %v2497 = vsel %vm975, %v2465, %v2393
        %v2498 = vsel %vm975, %v2466, %v2395
        %v2499 = vsel %vm975, %v2467, %v2397
        %v2500 = vsel %vm975, %v2468, %v2399
        %v2501 = vsel %vm975, %v2469, %v2401
        %v2502 = vsel %vm975, %v2470, %v2403
        %v2503 = vsel %vm975, %v2471, %v2405
        %v2504 = vsel %vm975, %v2472, %v2407
        %v2505 = vsel %vm975, %v2473, %v2409
        %v2506 = vld [vmem:[#allocation3] sm:$0xff]
        %v2507 = vld [vmem:[#allocation3 + $0x8] sm:$0xff]
        %v2508 = vld [vmem:[#allocation3 + $0x10] sm:$0xff]
        %v2509 = vld [vmem:[#allocation3 + $0x18] sm:$0xff]
        %v2510 = vld [vmem:[#allocation3 + $0x20] sm:$0xff]
        %v2511 = vld [vmem:[#allocation3 + $0x28] sm:$0xff]
        %v2512 = vld [vmem:[#allocation3 + $0x30] sm:$0xff]
        %v2513 = vld [vmem:[#allocation3 + $0x38] sm:$0xff]
        %v2514 = vld [vmem:[#allocation3 + $0x40] sm:$0xff]
        %v2515 = vld [vmem:[#allocation3 + $0x48] sm:$0xff]
        %v2516 = vld [vmem:[#allocation3 + $0x50] sm:$0xff]
        %v2517 = vld [vmem:[#allocation3 + $0x58] sm:$0xff]
        %v2518 = vld [vmem:[#allocation3 + $0x60] sm:$0xff]
        %v2519 = vld [vmem:[#allocation3 + $0x68] sm:$0xff]
        %v2520 = vld [vmem:[#allocation3 + $0x70] sm:$0xff]
        %v2521 = vld [vmem:[#allocation3 + $0x78] sm:$0xff]
        %v2522 = vld [vmem:[#allocation3 + $0x80] sm:$0xff]
        %v2523 = vld [vmem:[#allocation3 + $0x88] sm:$0xff]
        %v2524 = vld [vmem:[#allocation3 + $0x90] sm:$0xff]
        %v2525 = vld [vmem:[#allocation3 + $0x98] sm:$0xff]
        %v2526 = vld [vmem:[#allocation3 + $0xa0] sm:$0xff]
        %v2527 = vld [vmem:[#allocation3 + $0xa8] sm:$0xff]
        %v2528 = vld [vmem:[#allocation3 + $0xb0] sm:$0xff]
        %v2529 = vld [vmem:[#allocation3 + $0xb8] sm:$0xff]
        %v2530 = vld [vmem:[#allocation3 + $0xc0] sm:$0xff]
        %v2531 = vld [vmem:[#allocation3 + $0xc8] sm:$0xff]
        %v2532 = vld [vmem:[#allocation3 + $0xd0] sm:$0xff]
        %v2533 = vld [vmem:[#allocation3 + $0xd8] sm:$0xff]
        %v2534 = vld [vmem:[#allocation3 + $0xe0] sm:$0xff]
        %v2535 = vld [vmem:[#allocation3 + $0xe8] sm:$0xff]
        %v2536 = vld [vmem:[#allocation3 + $0xf0] sm:$0xff]
        %v2537 = vld [vmem:[#allocation3 + $0xf8] sm:$0xff]
        %v2538 = vpack.c.bf16 %v2475, %v2474
        %v2539 = vpack.c.bf16 %v2477, %v2476
        %v2540 = vpack.c.bf16 %v2479, %v2478
        %v2541 = vpack.c.bf16 %v2481, %v2480
        %v2542 = vpack.c.bf16 %v2483, %v2482
        %v2543 = vpack.c.bf16 %v2485, %v2484
        %v2544 = vpack.c.bf16 %v2487, %v2486
        %v2545 = vpack.c.bf16 %v2489, %v2488
        %v2546 = vpack.c.bf16 %v2491, %v2490
        %v2547 = vpack.c.bf16 %v2493, %v2492
        %v2548 = vpack.c.bf16 %v2495, %v2494
        %v2549 = vpack.c.bf16 %v2497, %v2496
        %v2550 = vpack.c.bf16 %v2499, %v2498
        %v2551 = vpack.c.bf16 %v2501, %v2500
        %v2552 = vpack.c.bf16 %v2503, %v2502
        %v2553 = vpack.c.bf16 %v2505, %v2504
        %s2554 = scalar_lea.vmem [#allocation10], 16
        %v2555 = vld [vmem:[%s2554] sm:$0xf]
        %v2556 = vld [vmem:[%s2554 + $0x4] sm:$0x3]
        %v2559 = vunpack.c.l.b16 %v2555
        %v2560 = vunpack.c.l.b16 %v2556
        %v2561 = vpack.c.b16 %v2560, %v2559
        %v2563 = vsel %vm1063, %v2538, 0
        %v2566 = vsel %vm1063, %v2539, 0
        %v2569 = vsel %vm1063, %v2540, 0
        %v2572 = vsel %vm1063, %v2541, 0
        %v2575 = vsel %vm1063, %v2542, 0
        %v2578 = vsel %vm1063, %v2543, 0
        %v2581 = vsel %vm1063, %v2544, 0
        %v2584 = vsel %vm1063, %v2545, 0
        %v2587 = vsel %vm1063, %v2546, 0
        %v2590 = vsel %vm1063, %v2547, 0
        %v2593 = vsel %vm1063, %v2548, 0
        %v2596 = vsel %vm1063, %v2549, 0
        %v2599 = vsel %vm1063, %v2550, 0
        %v2602 = vsel %vm1063, %v2551, 0
        %v2605 = vsel %vm1063, %v2552, 0
        %v2608 = vsel %vm1063, %v2553, 0
        %v2611 = vsel %vm1112, %v2561, 0
        %2613 = vmatprep.subr.bf16.mxu0 0
        %2614 = vmatpush1.bf16.msra.mxu0 %v2611
        %2615 = vmatprep.subr.bf16.mxu0 0
        %2616 = vmatpush1.bf16.msra.mxu0 0
        %2617 = vmatprep.subr.bf16.mxu0 0
        %2618 = vmatpush1.bf16.msra.mxu0 0
        %2619 = vmatprep.subr.bf16.mxu0 0
        %2620 = vmatpush1.bf16.msra.mxu0 0
        %2621 = vmatprep.subr.bf16.mxu0 0
        %2622 = vmatpush1.bf16.msra.mxu0 0
        %2623 = vmatprep.subr.bf16.mxu0 0
        %2624 = vmatpush1.bf16.msra.mxu0 0
        %2625 = vmatprep.subr.bf16.mxu0 0
        %2626 = vmatpush1.bf16.msra.mxu0 0
        %2627 = vmatprep.subr.bf16.mxu0 0
        %2628 = vmatpush1.bf16.msra.mxu0 0
        %2629 = vmatprep.subr.bf16.mxu0 0
        %2630 = vmatpush1.bf16.msra.mxu0 0
        %2631 = vmatprep.subr.bf16.mxu0 0
        %2632 = vmatpush1.bf16.msra.mxu0 0
        %2633 = vmatprep.subr.bf16.mxu0 0
        %2634 = vmatpush1.bf16.msra.mxu0 0
        %2635 = vmatprep.subr.bf16.mxu0 0
        %2636 = vmatpush1.bf16.msra.mxu0 0
        %2637 = vmatprep.subr.bf16.mxu0 0
        %2638 = vmatpush1.bf16.msra.mxu0 0
        %2639 = vmatprep.subr.bf16.mxu0 0
        %2640 = vmatpush1.bf16.msra.mxu0 0
        %2641 = vmatprep.subr.bf16.mxu0 0
        %2642 = vmatpush1.bf16.msra.mxu0 0
        %2643 = vmatprep.subr.bf16.mxu0 0
        %2644 = vmatpush1.bf16.msra.mxu0 0
        %2645 = vmatprep.mubr.bf16.mxu0 0
        %2646 = vmatmul.mubr.bf16.gmra.mrb[0].mxu0 %v2563
        %v2647 = vpop.f32.mrb[0].mxu0
        %v2648 = vadd.f32 0.0, %v2647
        %v2649 = vpop.f32.mrb[0].mxu0
        %v2650 = vpop.f32.mrb[0].mxu0
        %v2651 = vadd.f32 0.0, %v2650
        %v2652 = vpop.f32.mrb[0].mxu0
        %2653 = vmatprep.mubr.bf16.mxu0 0
        %2654 = vmatmul.mubr.bf16.gmra.mrb[0].mxu0 %v2566
        %v2655 = vpop.f32.mrb[0].mxu0
        %v2656 = vadd.f32 0.0, %v2655
        %v2657 = vpop.f32.mrb[0].mxu0
        %v2658 = vpop.f32.mrb[0].mxu0
        %v2659 = vadd.f32 0.0, %v2658
        %v2660 = vpop.f32.mrb[0].mxu0
        %2661 = vmatprep.mubr.bf16.mxu0 0
        %2662 = vmatmul.mubr.bf16.gmra.mrb[0].mxu0 %v2569
        %v2663 = vpop.f32.mrb[0].mxu0
        %v2664 = vadd.f32 0.0, %v2663
        %v2665 = vpop.f32.mrb[0].mxu0
        %v2666 = vpop.f32.mrb[0].mxu0
        %v2667 = vadd.f32 0.0, %v2666
        %v2668 = vpop.f32.mrb[0].mxu0
        %2669 = vmatprep.mubr.bf16.mxu0 0
        %2670 = vmatmul.mubr.bf16.gmra.mrb[0].mxu0 %v2572
        %v2671 = vpop.f32.mrb[0].mxu0
        %v2672 = vadd.f32 0.0, %v2671
        %v2673 = vpop.f32.mrb[0].mxu0
        %v2674 = vpop.f32.mrb[0].mxu0
        %v2675 = vadd.f32 0.0, %v2674
        %v2676 = vpop.f32.mrb[0].mxu0
        %2677 = vmatprep.mubr.bf16.mxu0 0
        %2678 = vmatmul.mubr.bf16.gmra.mrb[0].mxu0 %v2575
        %v2679 = vpop.f32.mrb[0].mxu0
        %v2680 = vadd.f32 0.0, %v2679
        %v2681 = vpop.f32.mrb[0].mxu0
        %v2682 = vpop.f32.mrb[0].mxu0
        %v2683 = vadd.f32 0.0, %v2682
        %v2684 = vpop.f32.mrb[0].mxu0
        %2685 = vmatprep.mubr.bf16.mxu0 0
        %2686 = vmatmul.mubr.bf16.gmra.mrb[0].mxu0 %v2578
        %v2687 = vpop.f32.mrb[0].mxu0
        %v2688 = vadd.f32 0.0, %v2687
        %v2689 = vpop.f32.mrb[0].mxu0
        %v2690 = vpop.f32.mrb[0].mxu0
        %v2691 = vadd.f32 0.0, %v2690
        %v2692 = vpop.f32.mrb[0].mxu0
        %2693 = vmatprep.mubr.bf16.mxu0 0
        %2694 = vmatmul.mubr.bf16.gmra.mrb[0].mxu0 %v2581
        %v2695 = vpop.f32.mrb[0].mxu0
        %v2696 = vadd.f32 0.0, %v2695
        %v2697 = vpop.f32.mrb[0].mxu0
        %v2698 = vpop.f32.mrb[0].mxu0
        %v2699 = vadd.f32 0.0, %v2698
        %v2700 = vpop.f32.mrb[0].mxu0
        %2701 = vmatprep.mubr.bf16.mxu0 0
        %2702 = vmatmul.mubr.bf16.gmra.mrb[0].mxu0 %v2584
        %v2703 = vpop.f32.mrb[0].mxu0
        %v2704 = vadd.f32 0.0, %v2703
        %v2705 = vpop.f32.mrb[0].mxu0
        %v2706 = vpop.f32.mrb[0].mxu0
        %v2707 = vadd.f32 0.0, %v2706
        %v2708 = vpop.f32.mrb[0].mxu0
        %2709 = vmatprep.mubr.bf16.mxu0 0
        %2710 = vmatmul.mubr.bf16.gmra.mrb[0].mxu0 %v2587
        %v2711 = vpop.f32.mrb[0].mxu0
        %v2712 = vadd.f32 0.0, %v2711
        %v2713 = vpop.f32.mrb[0].mxu0
        %v2714 = vpop.f32.mrb[0].mxu0
        %v2715 = vadd.f32 0.0, %v2714
        %v2716 = vpop.f32.mrb[0].mxu0
        %2717 = vmatprep.mubr.bf16.mxu0 0
        %2718 = vmatmul.mubr.bf16.gmra.mrb[0].mxu0 %v2590
        %v2719 = vpop.f32.mrb[0].mxu0
        %v2720 = vadd.f32 0.0, %v2719
        %v2721 = vpop.f32.mrb[0].mxu0
        %v2722 = vpop.f32.mrb[0].mxu0
        %v2723 = vadd.f32 0.0, %v2722
        %v2724 = vpop.f32.mrb[0].mxu0
        %2725 = vmatprep.mubr.bf16.mxu0 0
        %2726 = vmatmul.mubr.bf16.gmra.mrb[0].mxu0 %v2593
        %v2727 = vpop.f32.mrb[0].mxu0
        %v2728 = vadd.f32 0.0, %v2727
        %v2729 = vpop.f32.mrb[0].mxu0
        %v2730 = vpop.f32.mrb[0].mxu0
        %v2731 = vadd.f32 0.0, %v2730
        %v2732 = vpop.f32.mrb[0].mxu0
        %2733 = vmatprep.mubr.bf16.mxu0 0
        %2734 = vmatmul.mubr.bf16.gmra.mrb[0].mxu0 %v2596
        %v2735 = vpop.f32.mrb[0].mxu0
        %v2736 = vadd.f32 0.0, %v2735
        %v2737 = vpop.f32.mrb[0].mxu0
        %v2738 = vpop.f32.mrb[0].mxu0
        %v2739 = vadd.f32 0.0, %v2738
        %v2740 = vpop.f32.mrb[0].mxu0
        %2741 = vmatprep.mubr.bf16.mxu0 0
        %2742 = vmatmul.mubr.bf16.gmra.mrb[0].mxu0 %v2599
        %v2743 = vpop.f32.mrb[0].mxu0
        %v2744 = vadd.f32 0.0, %v2743
        %v2745 = vpop.f32.mrb[0].mxu0
        %v2746 = vpop.f32.mrb[0].mxu0
        %v2747 = vadd.f32 0.0, %v2746
        %v2748 = vpop.f32.mrb[0].mxu0
        %2749 = vmatprep.mubr.bf16.mxu0 0
        %2750 = vmatmul.mubr.bf16.gmra.mrb[0].mxu0 %v2602
        %v2751 = vpop.f32.mrb[0].mxu0
        %v2752 = vadd.f32 0.0, %v2751
        %v2753 = vpop.f32.mrb[0].mxu0
        %v2754 = vpop.f32.mrb[0].mxu0
        %v2755 = vadd.f32 0.0, %v2754
        %v2756 = vpop.f32.mrb[0].mxu0
        %2757 = vmatprep.mubr.bf16.mxu0 0
        %2758 = vmatmul.mubr.bf16.gmra.mrb[0].mxu0 %v2605
        %v2759 = vpop.f32.mrb[0].mxu0
        %v2760 = vadd.f32 0.0, %v2759
        %v2761 = vpop.f32.mrb[0].mxu0
        %v2762 = vpop.f32.mrb[0].mxu0
        %v2763 = vadd.f32 0.0, %v2762
        %v2764 = vpop.f32.mrb[0].mxu0
        %2765 = vmatprep.mubr.bf16.mxu0 0
        %2766 = vmatmul.mubr.bf16.gmra.mrb[0].mxu0 %v2608
        %v2767 = vpop.f32.mrb[0].mxu0
        %v2768 = vadd.f32 0.0, %v2767
        %v2769 = vpop.f32.mrb[0].mxu0
        %v2770 = vpop.f32.mrb[0].mxu0
        %v2771 = vadd.f32 0.0, %v2770
        %v2772 = vpop.f32.mrb[0].mxu0
        %2773 = vdwg.mxu0
        %v2774 = vadd.f32 %v2506, %v2648
        %v2775 = vadd.f32 %v2507, %v2651
        %v2776 = vadd.f32 %v2508, %v2656
        %v2777 = vadd.f32 %v2509, %v2659
        %v2778 = vadd.f32 %v2510, %v2664
        %v2779 = vadd.f32 %v2511, %v2667
        %v2780 = vadd.f32 %v2512, %v2672
        %v2781 = vadd.f32 %v2513, %v2675
        %v2782 = vadd.f32 %v2514, %v2680
        %v2783 = vadd.f32 %v2515, %v2683
        %v2784 = vadd.f32 %v2516, %v2688
        %v2785 = vadd.f32 %v2517, %v2691
        %v2786 = vadd.f32 %v2518, %v2696
        %v2787 = vadd.f32 %v2519, %v2699
        %v2788 = vadd.f32 %v2520, %v2704
        %v2789 = vadd.f32 %v2521, %v2707
        %v2790 = vadd.f32 %v2522, %v2712
        %v2791 = vadd.f32 %v2523, %v2715
        %v2792 = vadd.f32 %v2524, %v2720
        %v2793 = vadd.f32 %v2525, %v2723
        %v2794 = vadd.f32 %v2526, %v2728
        %v2795 = vadd.f32 %v2527, %v2731
        %v2796 = vadd.f32 %v2528, %v2736
        %v2797 = vadd.f32 %v2529, %v2739
        %v2798 = vadd.f32 %v2530, %v2744
        %v2799 = vadd.f32 %v2531, %v2747
        %v2800 = vadd.f32 %v2532, %v2752
        %v2801 = vadd.f32 %v2533, %v2755
        %v2802 = vadd.f32 %v2534, %v2760
        %v2803 = vadd.f32 %v2535, %v2763
        %v2804 = vadd.f32 %v2536, %v2768
        %v2805 = vadd.f32 %v2537, %v2771
        %2806 = vst.msk [vmem:[#allocation3] sm:$0xff] %vm558, %v2774
        %2807 = vst.msk [vmem:[#allocation3 + $0x8] sm:$0xff] %vm558, %v2775
        %2808 = vst.msk [vmem:[#allocation3 + $0x10] sm:$0xff] %vm558, %v2776
        %2809 = vst.msk [vmem:[#allocation3 + $0x18] sm:$0xff] %vm558, %v2777
        %2810 = vst.msk [vmem:[#allocation3 + $0x20] sm:$0xff] %vm558, %v2778
        %2811 = vst.msk [vmem:[#allocation3 + $0x28] sm:$0xff] %vm558, %v2779
        %2812 = vst.msk [vmem:[#allocation3 + $0x30] sm:$0xff] %vm558, %v2780
        %2813 = vst.msk [vmem:[#allocation3 + $0x38] sm:$0xff] %vm558, %v2781
        %2814 = vst.msk [vmem:[#allocation3 + $0x40] sm:$0xff] %vm558, %v2782
        %2815 = vst.msk [vmem:[#allocation3 + $0x48] sm:$0xff] %vm558, %v2783
        %2816 = vst.msk [vmem:[#allocation3 + $0x50] sm:$0xff] %vm558, %v2784
        %2817 = vst.msk [vmem:[#allocation3 + $0x58] sm:$0xff] %vm558, %v2785
        %2818 = vst.msk [vmem:[#allocation3 + $0x60] sm:$0xff] %vm558, %v2786
        %2819 = vst.msk [vmem:[#allocation3 + $0x68] sm:$0xff] %vm558, %v2787
        %2820 = vst.msk [vmem:[#allocation3 + $0x70] sm:$0xff] %vm558, %v2788
        %2821 = vst.msk [vmem:[#allocation3 + $0x78] sm:$0xff] %vm558, %v2789
        %2822 = vst.msk [vmem:[#allocation3 + $0x80] sm:$0xff] %vm558, %v2790
        %2823 = vst.msk [vmem:[#allocation3 + $0x88] sm:$0xff] %vm558, %v2791
        %2824 = vst.msk [vmem:[#allocation3 + $0x90] sm:$0xff] %vm558, %v2792
        %2825 = vst.msk [vmem:[#allocation3 + $0x98] sm:$0xff] %vm558, %v2793
        %2826 = vst.msk [vmem:[#allocation3 + $0xa0] sm:$0xff] %vm558, %v2794
        %2827 = vst.msk [vmem:[#allocation3 + $0xa8] sm:$0xff] %vm558, %v2795
        %2828 = vst.msk [vmem:[#allocation3 + $0xb0] sm:$0xff] %vm558, %v2796
        %2829 = vst.msk [vmem:[#allocation3 + $0xb8] sm:$0xff] %vm558, %v2797
        %2830 = vst.msk [vmem:[#allocation3 + $0xc0] sm:$0xff] %vm558, %v2798
        %2831 = vst.msk [vmem:[#allocation3 + $0xc8] sm:$0xff] %vm558, %v2799
        %2832 = vst.msk [vmem:[#allocation3 + $0xd0] sm:$0xff] %vm558, %v2800
        %2833 = vst.msk [vmem:[#allocation3 + $0xd8] sm:$0xff] %vm558, %v2801
        %2834 = vst.msk [vmem:[#allocation3 + $0xe0] sm:$0xff] %vm558, %v2802
        %2835 = vst.msk [vmem:[#allocation3 + $0xe8] sm:$0xff] %vm558, %v2803
        %2836 = vst.msk [vmem:[#allocation3 + $0xf0] sm:$0xff] %vm558, %v2804
        %2837 = vst.msk [vmem:[#allocation3 + $0xf8] sm:$0xff] %vm558, %v2805
        %v2838 = vld [vmem:[#allocation3] sm:$0xff]
        %v2839 = vld [vmem:[#allocation3 + $0x8] sm:$0xff]
        %v2840 = vld [vmem:[#allocation3 + $0x10] sm:$0xff]
        %v2841 = vld [vmem:[#allocation3 + $0x18] sm:$0xff]
        %v2842 = vld [vmem:[#allocation3 + $0x20] sm:$0xff]
        %v2843 = vld [vmem:[#allocation3 + $0x28] sm:$0xff]
        %v2844 = vld [vmem:[#allocation3 + $0x30] sm:$0xff]
        %v2845 = vld [vmem:[#allocation3 + $0x38] sm:$0xff]
        %v2846 = vld [vmem:[#allocation3 + $0x40] sm:$0xff]
        %v2847 = vld [vmem:[#allocation3 + $0x48] sm:$0xff]
        %v2848 = vld [vmem:[#allocation3 + $0x50] sm:$0xff]
        %v2849 = vld [vmem:[#allocation3 + $0x58] sm:$0xff]
        %v2850 = vld [vmem:[#allocation3 + $0x60] sm:$0xff]
        %v2851 = vld [vmem:[#allocation3 + $0x68] sm:$0xff]
        %v2852 = vld [vmem:[#allocation3 + $0x70] sm:$0xff]
        %v2853 = vld [vmem:[#allocation3 + $0x78] sm:$0xff]
        %v2854 = vld [vmem:[#allocation3 + $0x80] sm:$0xff]
        %v2855 = vld [vmem:[#allocation3 + $0x88] sm:$0xff]
        %v2856 = vld [vmem:[#allocation3 + $0x90] sm:$0xff]
        %v2857 = vld [vmem:[#allocation3 + $0x98] sm:$0xff]
        %v2858 = vld [vmem:[#allocation3 + $0xa0] sm:$0xff]
        %v2859 = vld [vmem:[#allocation3 + $0xa8] sm:$0xff]
        %v2860 = vld [vmem:[#allocation3 + $0xb0] sm:$0xff]
        %v2861 = vld [vmem:[#allocation3 + $0xb8] sm:$0xff]
        %v2862 = vld [vmem:[#allocation3 + $0xc0] sm:$0xff]
        %v2863 = vld [vmem:[#allocation3 + $0xc8] sm:$0xff]
        %v2864 = vld [vmem:[#allocation3 + $0xd0] sm:$0xff]
        %v2865 = vld [vmem:[#allocation3 + $0xd8] sm:$0xff]
        %v2866 = vld [vmem:[#allocation3 + $0xe0] sm:$0xff]
        %v2867 = vld [vmem:[#allocation3 + $0xe8] sm:$0xff]
        %v2868 = vld [vmem:[#allocation3 + $0xf0] sm:$0xff]
        %v2869 = vld [vmem:[#allocation3 + $0xf8] sm:$0xff]
        %2870 = vst.msk [vmem:[%s313] sm:$0xff] %vm558, %v2838
        %2871 = vst.msk [vmem:[%s313 + $0x8] sm:$0xff] %vm558, %v2839
        %2872 = vst.msk [vmem:[%s313 + $0x10] sm:$0xff] %vm558, %v2840
        %2873 = vst.msk [vmem:[%s313 + $0x18] sm:$0xff] %vm558, %v2841
        %2874 = vst.msk [vmem:[%s313 + $0x20] sm:$0xff] %vm558, %v2842
        %2875 = vst.msk [vmem:[%s313 + $0x28] sm:$0xff] %vm558, %v2843
        %2876 = vst.msk [vmem:[%s313 + $0x30] sm:$0xff] %vm558, %v2844
        %2877 = vst.msk [vmem:[%s313 + $0x38] sm:$0xff] %vm558, %v2845
        %2878 = vst.msk [vmem:[%s313 + $0x40] sm:$0xff] %vm558, %v2846
        %2879 = vst.msk [vmem:[%s313 + $0x48] sm:$0xff] %vm558, %v2847
        %2880 = vst.msk [vmem:[%s313 + $0x50] sm:$0xff] %vm558, %v2848
        %2881 = vst.msk [vmem:[%s313 + $0x58] sm:$0xff] %vm558, %v2849
        %2882 = vst.msk [vmem:[%s313 + $0x60] sm:$0xff] %vm558, %v2850
        %2883 = vst.msk [vmem:[%s313 + $0x68] sm:$0xff] %vm558, %v2851
        %2884 = vst.msk [vmem:[%s313 + $0x70] sm:$0xff] %vm558, %v2852
        %2885 = vst.msk [vmem:[%s313 + $0x78] sm:$0xff] %vm558, %v2853
        %2886 = vst.msk [vmem:[%s313 + $0x80] sm:$0xff] %vm558, %v2854
        %2887 = vst.msk [vmem:[%s313 + $0x88] sm:$0xff] %vm558, %v2855
        %2888 = vst.msk [vmem:[%s313 + $0x90] sm:$0xff] %vm558, %v2856
        %2889 = vst.msk [vmem:[%s313 + $0x98] sm:$0xff] %vm558, %v2857
        %2890 = vst.msk [vmem:[%s313 + $0xa0] sm:$0xff] %vm558, %v2858
        %2891 = vst.msk [vmem:[%s313 + $0xa8] sm:$0xff] %vm558, %v2859
        %2892 = vst.msk [vmem:[%s313 + $0xb0] sm:$0xff] %vm558, %v2860
        %2893 = vst.msk [vmem:[%s313 + $0xb8] sm:$0xff] %vm558, %v2861
        %2894 = vst.msk [vmem:[%s313 + $0xc0] sm:$0xff] %vm558, %v2862
        %2895 = vst.msk [vmem:[%s313 + $0xc8] sm:$0xff] %vm558, %v2863
        %2896 = vst.msk [vmem:[%s313 + $0xd0] sm:$0xff] %vm558, %v2864
        %2897 = vst.msk [vmem:[%s313 + $0xd8] sm:$0xff] %vm558, %v2865
        %2898 = vst.msk [vmem:[%s313 + $0xe0] sm:$0xff] %vm558, %v2866
        %2899 = vst.msk [vmem:[%s313 + $0xe8] sm:$0xff] %vm558, %v2867
        %2900 = vst.msk [vmem:[%s313 + $0xf0] sm:$0xff] %vm558, %v2868
        %2901 = vst.msk [vmem:[%s313 + $0xf8] sm:$0xff] %vm558, %v2869
        %v2902 = vsel %vm558, %v2838, 0.0
        %v2903 = vsel %vm558, %v2839, 0.0
        %v2904 = vadd.f32 %v2902, %v2903
        %v2905 = vsel %vm558, %v2840, 0.0
        %v2906 = vadd.f32 %v2904, %v2905
        %v2907 = vsel %vm558, %v2841, 0.0
        %v2908 = vadd.f32 %v2906, %v2907
        %v2909 = vsel %vm558, %v2842, 0.0
        %v2910 = vadd.f32 %v2908, %v2909
        %v2911 = vsel %vm558, %v2843, 0.0
        %v2912 = vadd.f32 %v2910, %v2911
        %v2913 = vsel %vm558, %v2844, 0.0
        %v2914 = vadd.f32 %v2912, %v2913
        %v2915 = vsel %vm558, %v2845, 0.0
        %v2916 = vadd.f32 %v2914, %v2915
        %v2917 = vsel %vm558, %v2846, 0.0
        %v2918 = vadd.f32 %v2916, %v2917
        %v2919 = vsel %vm558, %v2847, 0.0
        %v2920 = vadd.f32 %v2918, %v2919
        %v2921 = vsel %vm558, %v2848, 0.0
        %v2922 = vadd.f32 %v2920, %v2921
        %v2923 = vsel %vm558, %v2849, 0.0
        %v2924 = vadd.f32 %v2922, %v2923
        %v2925 = vsel %vm558, %v2850, 0.0
        %v2926 = vadd.f32 %v2924, %v2925
        %v2927 = vsel %vm558, %v2851, 0.0
        %v2928 = vadd.f32 %v2926, %v2927
        %v2929 = vsel %vm558, %v2852, 0.0
        %v2930 = vadd.f32 %v2928, %v2929
        %v2931 = vsel %vm558, %v2853, 0.0
        %v2932 = vadd.f32 %v2930, %v2931
        %v2933 = vsel %vm558, %v2854, 0.0
        %v2934 = vadd.f32 %v2932, %v2933
        %v2935 = vsel %vm558, %v2855, 0.0
        %v2936 = vadd.f32 %v2934, %v2935
        %v2937 = vsel %vm558, %v2856, 0.0
        %v2938 = vadd.f32 %v2936, %v2937
        %v2939 = vsel %vm558, %v2857, 0.0
        %v2940 = vadd.f32 %v2938, %v2939
        %v2941 = vsel %vm558, %v2858, 0.0
        %v2942 = vadd.f32 %v2940, %v2941
        %v2943 = vsel %vm558, %v2859, 0.0
        %v2944 = vadd.f32 %v2942, %v2943
        %v2945 = vsel %vm558, %v2860, 0.0
        %v2946 = vadd.f32 %v2944, %v2945
        %v2947 = vsel %vm558, %v2861, 0.0
        %v2948 = vadd.f32 %v2946, %v2947
        %v2949 = vsel %vm558, %v2862, 0.0
        %v2950 = vadd.f32 %v2948, %v2949
        %v2951 = vsel %vm558, %v2863, 0.0
        %v2952 = vadd.f32 %v2950, %v2951
        %v2953 = vsel %vm558, %v2864, 0.0
        %v2954 = vadd.f32 %v2952, %v2953
        %v2955 = vsel %vm558, %v2865, 0.0
        %v2956 = vadd.f32 %v2954, %v2955
        %v2957 = vsel %vm558, %v2866, 0.0
        %v2958 = vadd.f32 %v2956, %v2957
        %v2959 = vsel %vm558, %v2867, 0.0
        %v2960 = vadd.f32 %v2958, %v2959
        %v2961 = vsel %vm558, %v2868, 0.0
        %v2962 = vadd.f32 %v2960, %v2961
        %v2963 = vsel %vm558, %v2869, 0.0
        %v2964 = vadd.f32 %v2962, %v2963
        %v2965 = vrot.slane %v2964, 4
        %v2966 = vadd.f32 %v2964, %v2965
        %v2967 = vrot.slane %v2966, 2
        %v2968 = vadd.f32 %v2966, %v2967
        %v2969 = vrot.slane %v2968, 1
        %v2970 = vadd.f32 %v2968, %v2969
        %vm2971 = vcmask 8192
        %2972 = vst.msk [vmem:[%s319] sm:$0x1] %vm2971, %v2970
        %v2973 = vmul.f32 %v2838, %v2838
        %v2974 = vmul.f32 %v2839, %v2839
        %v2975 = vmul.f32 %v2840, %v2840
        %v2976 = vmul.f32 %v2841, %v2841
        %v2977 = vmul.f32 %v2842, %v2842
        %v2978 = vmul.f32 %v2843, %v2843
        %v2979 = vmul.f32 %v2844, %v2844
        %v2980 = vmul.f32 %v2845, %v2845
        %v2981 = vmul.f32 %v2846, %v2846
        %v2982 = vmul.f32 %v2847, %v2847
        %v2983 = vmul.f32 %v2848, %v2848
        %v2984 = vmul.f32 %v2849, %v2849
        %v2985 = vmul.f32 %v2850, %v2850
        %v2986 = vmul.f32 %v2851, %v2851
        %v2987 = vmul.f32 %v2852, %v2852
        %v2988 = vmul.f32 %v2853, %v2853
        %v2989 = vmul.f32 %v2854, %v2854
        %v2990 = vmul.f32 %v2855, %v2855
        %v2991 = vmul.f32 %v2856, %v2856
        %v2992 = vmul.f32 %v2857, %v2857
        %v2993 = vmul.f32 %v2858, %v2858
        %v2994 = vmul.f32 %v2859, %v2859
        %v2995 = vmul.f32 %v2860, %v2860
        %v2996 = vmul.f32 %v2861, %v2861
        %v2997 = vmul.f32 %v2862, %v2862
        %v2998 = vmul.f32 %v2863, %v2863
        %v2999 = vmul.f32 %v2864, %v2864
        %v3000 = vmul.f32 %v2865, %v2865
        %v3001 = vmul.f32 %v2866, %v2866
        %v3002 = vmul.f32 %v2867, %v2867
        %v3003 = vmul.f32 %v2868, %v2868
        %v3004 = vmul.f32 %v2869, %v2869
        %v3005 = vsel %vm558, %v2973, 0.0
        %v3006 = vsel %vm558, %v2974, 0.0
        %v3007 = vadd.f32 %v3005, %v3006
        %v3008 = vsel %vm558, %v2975, 0.0
        %v3009 = vadd.f32 %v3007, %v3008
        %v3010 = vsel %vm558, %v2976, 0.0
        %v3011 = vadd.f32 %v3009, %v3010
        %v3012 = vsel %vm558, %v2977, 0.0
        %v3013 = vadd.f32 %v3011, %v3012
        %v3014 = vsel %vm558, %v2978, 0.0
        %v3015 = vadd.f32 %v3013, %v3014
        %v3016 = vsel %vm558, %v2979, 0.0
        %v3017 = vadd.f32 %v3015, %v3016
        %v3018 = vsel %vm558, %v2980, 0.0
        %v3019 = vadd.f32 %v3017, %v3018
        %v3020 = vsel %vm558, %v2981, 0.0
        %v3021 = vadd.f32 %v3019, %v3020
        %v3022 = vsel %vm558, %v2982, 0.0
        %v3023 = vadd.f32 %v3021, %v3022
        %v3024 = vsel %vm558, %v2983, 0.0
        %v3025 = vadd.f32 %v3023, %v3024
        %v3026 = vsel %vm558, %v2984, 0.0
        %v3027 = vadd.f32 %v3025, %v3026
        %v3028 = vsel %vm558, %v2985, 0.0
        %v3029 = vadd.f32 %v3027, %v3028
        %v3030 = vsel %vm558, %v2986, 0.0
        %v3031 = vadd.f32 %v3029, %v3030
        %v3032 = vsel %vm558, %v2987, 0.0
        %v3033 = vadd.f32 %v3031, %v3032
        %v3034 = vsel %vm558, %v2988, 0.0
        %v3035 = vadd.f32 %v3033, %v3034
        %v3036 = vsel %vm558, %v2989, 0.0
        %v3037 = vadd.f32 %v3035, %v3036
        %v3038 = vsel %vm558, %v2990, 0.0
        %v3039 = vadd.f32 %v3037, %v3038
        %v3040 = vsel %vm558, %v2991, 0.0
        %v3041 = vadd.f32 %v3039, %v3040
        %v3042 = vsel %vm558, %v2992, 0.0
        %v3043 = vadd.f32 %v3041, %v3042
        %v3044 = vsel %vm558, %v2993, 0.0
        %v3045 = vadd.f32 %v3043, %v3044
        %v3046 = vsel %vm558, %v2994, 0.0
        %v3047 = vadd.f32 %v3045, %v3046
        %v3048 = vsel %vm558, %v2995, 0.0
        %v3049 = vadd.f32 %v3047, %v3048
        %v3050 = vsel %vm558, %v2996, 0.0
        %v3051 = vadd.f32 %v3049, %v3050
        %v3052 = vsel %vm558, %v2997, 0.0
        %v3053 = vadd.f32 %v3051, %v3052
        %v3054 = vsel %vm558, %v2998, 0.0
        %v3055 = vadd.f32 %v3053, %v3054
        %v3056 = vsel %vm558, %v2999, 0.0
        %v3057 = vadd.f32 %v3055, %v3056
        %v3058 = vsel %vm558, %v3000, 0.0
        %v3059 = vadd.f32 %v3057, %v3058
        %v3060 = vsel %vm558, %v3001, 0.0
        %v3061 = vadd.f32 %v3059, %v3060
        %v3062 = vsel %vm558, %v3002, 0.0
        %v3063 = vadd.f32 %v3061, %v3062
        %v3064 = vsel %vm558, %v3003, 0.0
        %v3065 = vadd.f32 %v3063, %v3064
        %v3066 = vsel %vm558, %v3004, 0.0
        %v3067 = vadd.f32 %v3065, %v3066
        %v3068 = vrot.slane %v3067, 4
        %v3069 = vadd.f32 %v3067, %v3068
        %v3070 = vrot.slane %v3069, 2
        %v3071 = vadd.f32 %v3069, %v3070
        %v3072 = vrot.slane %v3071, 1
        %v3073 = vadd.f32 %v3071, %v3072
        %3074 = vst.msk [vmem:[%s325] sm:$0x1] %vm2971, %v3073
        %s3075 = sand.u32 %s126, 1
        %s3076 = scalar_lea.sflag [#allocation6], %s3075
        %s3077 = sand.u32 %s126, 1
        %s3078 = smul.addr %s3077, 256
        %s3079 = scalar_lea.vmem [#allocation12], %s3078
        %s3080 = sand.u32 %s29, 1
        %s3081 = scalar_lea.sflag [#allocation14], %s3080
        %s3082 = sand.u32 %s152, 1
        %s3083 = scalar_lea.vmem [#allocation13], %s3082
        %s3084 = sand.u32 %s29, 1
        %s3085 = scalar_lea.sflag [#allocation14], %s3084
        %s3086 = sand.u32 %s178, 1
        %s3087 = scalar_lea.vmem [#allocation15], %s3086
        // Predicated region
        $region53: #{conv_block_forward.4} parent=35 // pred_check
          %p3088 = pneg %p136
        $region54: #{conv_block_forward.4} parent=35 // pred_check_branch
          %3090 = sbr.rel (%p3088) target = $region56
        $region55: #{conv_block_forward.4} parent=35 // pred_region
          %s3092 = ssub.s32 4096, 4096
          %3093 = vsyncadd %s3076, %s3092
          %s3094 = smul.addr %s29, 32
          %s3095 = smul.addr %s3094, 128
          %s3096 = scalar_lea.hbm %s4, %s3095
          %s3097 = sshll.u32 %s3079, 4
          %s3098 = int_to_ptr.vmem [resolvable:$true] %s3097
          %3103 = dma.vmem_to_hbm [thread:$0]  %s3098, 4096, %s3096, %s3076, 128, 128, 8
        $region56: #{conv_block_forward.4} parent=35 // pred_fallthru
          _
        // Predicated region
        $region57: #{conv_block_forward.4} parent=35 // pred_check
          %p3104 = pneg %p162
        $region58: #{conv_block_forward.4} parent=35 // pred_check_branch
          %3106 = sbr.rel (%p3104) target = $region60
        $region59: #{conv_block_forward.4} parent=35 // pred_region
          %s3108 = ssub.s32 16, 16
          %3109 = vsyncadd %s3081, %s3108
          %s3110 = smul.addr %s29, 16
          %s3111 = scalar_lea.hbm %s5, %s3110
          %s3113 = sshll.u32 %s3083, 4
          %s3114 = int_to_ptr.vmem [resolvable:$true] %s3113
          %3116 = dma.vmem_to_hbm [thread:$0]  %s3114, 16, %s3111, %s3081
        $region60: #{conv_block_forward.4} parent=35 // pred_fallthru
          _
        // Predicated region
        $region61: #{conv_block_forward.4} parent=35 // pred_check
          %p3117 = pneg %p188
        $region62: #{conv_block_forward.4} parent=35 // pred_check_branch
          %3119 = sbr.rel (%p3117) target = $region64
        $region63: #{conv_block_forward.4} parent=35 // pred_region
          %s3121 = ssub.s32 16, 16
          %3122 = vsyncadd %s3085, %s3121
          %s3123 = smul.addr %s29, 16
          %s3124 = scalar_lea.hbm %s6, %s3123
          %s3126 = sshll.u32 %s3087, 4
          %s3127 = int_to_ptr.vmem [resolvable:$true] %s3126
          %3129 = dma.vmem_to_hbm [thread:$0]  %s3127, 16, %s3124, %s3085
        $region64: #{conv_block_forward.4} parent=35 // pred_fallthru
          _
      $region36: #{conv_block_forward.4} parent=5 // pred_fallthru
        _
      %p3130 = scmp.le.s32.totalorder 2, %s24
      // Predicated region
      $region65: #{conv_block_forward.4} parent=5 // pred_check
        %p3131 = pneg %p3130
      $region66: #{conv_block_forward.4} parent=5 // pred_check_branch
        %3133 = sbr.rel (%p3131) target = $region68
      $region67: #{conv_block_forward.4} parent=5 // pred_region
        %s3134 = ssub.s32 %s24, 2
        // Predicated region
        $region69: #{conv_block_forward.4} parent=67 // pred_check
          %p3135 = pneg %p142
        $region70: #{conv_block_forward.4} parent=67 // pred_check_branch
          %3137 = sbr.rel (%p3135) target = $region72
        $region71: #{conv_block_forward.4} parent=67 // pred_region
          %s3138 = sand.u32 %s127, 1
          %s3139 = scalar_lea.sflag [#allocation6], %s3138
          %s3140 = sand.u32 %s127, 1
          %s3141 = smul.addr %s3140, 256
          %s3142 = scalar_lea.vmem [#allocation12], %s3141
          %3143 = dma.done %s3139, 4096
        $region72: #{conv_block_forward.4} parent=67 // pred_fallthru
          _
        // Predicated region
        $region73: #{conv_block_forward.4} parent=67 // pred_check
          %p3144 = pneg %p168
        $region74: #{conv_block_forward.4} parent=67 // pred_check_branch
          %3146 = sbr.rel (%p3144) target = $region76
        $region75: #{conv_block_forward.4} parent=67 // pred_region
          %s3147 = sand.u32 %s30, 1
          %s3148 = scalar_lea.sflag [#allocation14], %s3147
          %s3149 = sand.u32 %s153, 1
          %s3150 = scalar_lea.vmem [#allocation13], %s3149
          %3151 = dma.done %s3148, 16
        $region76: #{conv_block_forward.4} parent=67 // pred_fallthru
          _
        // Predicated region
        $region77: #{conv_block_forward.4} parent=67 // pred_check
          %p3152 = pneg %p194
        $region78: #{conv_block_forward.4} parent=67 // pred_check_branch
          %3154 = sbr.rel (%p3152) target = $region80
        $region79: #{conv_block_forward.4} parent=67 // pred_region
          %s3155 = sand.u32 %s30, 1
          %s3156 = scalar_lea.sflag [#allocation14], %s3155
          %s3157 = sand.u32 %s179, 1
          %s3158 = scalar_lea.vmem [#allocation15], %s3157
          %3159 = dma.done %s3156, 16
        $region80: #{conv_block_forward.4} parent=67 // pred_fallthru
          _
      $region68: #{conv_block_forward.4} parent=5 // pred_fallthru
        _
    $region6: #{conv_block_forward.4} parent=1 // loop_footer
      %s28 = sadd.s32 1, %s24
    $region7: #{conv_block_forward.4} parent=1 // loop_footer_branch
      %23 = sbr.rel target = $region3
    $region8: #{conv_block_forward.4} parent=1 // loop_exit
      _
    %3160 = vsyncpa [#allocation5], 1
    %s3161 = scalar_lea.sflag [#allocation5], 1
    %3162 = vsyncpa %s3161, 1
    %3163 = vsyncpa [#allocation8], 1
    %3164 = vsyncpa [#allocation11], 1
    %3165 = vsyncpa [#allocation6], 1
    %s3166 = scalar_lea.sflag [#allocation6], 1
    %3167 = vsyncpa %s3166, 1
    %3168 = vsyncpa [#allocation14], 1
    %s3169 = scalar_lea.sflag [#allocation14], 1
    %3170 = vsyncpa %s3169, 1

// kernel: conv_block_forward.5
$region0: #{conv_block_forward.5}
  #allocation0 [shape = 'u32[]', space=smem, size = 0x4, offset = 0x4, fixed_abs, tag = 'smem constant byte address 0x4 - core index']
  #allocation1 [shape = 'u32[144,128]{1,0:T(1,128)}', space=vmem, size = 0x12000, scoped, tag = 'internal scratch']
  #allocation2 [shape = 'f32[18,18,2]{2,1,0:T(8,128)}', space=vmem, size = 0x36000, scoped, tag = 'scratch operand']
  #allocation3 [shape = 'f32[256,2]{1,0:T(8,128)}', space=vmem, size = 0x20000, scoped, tag = 'scratch operand']
  %s0 = inlined_call_operand.hbm [shape: f32[2,16,16,2], index: 0, kind: input, shape index: {}]
  %s1 = inlined_call_operand.hbm [shape: f32[1,1,1,2], index: 1, kind: input, shape index: {}]
  %s2 = inlined_call_operand.hbm [shape: f32[1,1,1,2], index: 2, kind: input, shape index: {}]
  %s3 = inlined_call_operand.hbm [shape: bf16[3,6,2], index: 3, kind: input, shape index: {}]
  %s4 = inlined_call_operand.hbm [shape: f32[2,16,16,4], index: 4, kind: input, shape index: {}]
  %s5 = inlined_call_operand.hbm [shape: f32[2,16,16,4], index: 5, kind: input, shape index: {}]
  %s6 = inlined_call_operand.hbm [shape: f32[1,1,1,4], index: 6, kind: input, shape index: {}]
  %s7 = inlined_call_operand.hbm [shape: f32[1,1,1,4], index: 7, kind: input, shape index: {}]
  %s8 = inlined_call_operand.hbm [shape: bf16[4,8], index: 8, kind: input, shape index: {}]
  %s9 = inlined_call_operand.hbm [shape: f32[2,16,16,8], index: 9, kind: output, shape index: {}]
  %s10 = sld [smem:[#allocation0]]
  $region105: #{conv_block_forward.5} parent=0
    _
  %s12 = ssub.s32 1, %s10
  %s13 = scalar_select 0, %s12, %s10
  $region1: #{conv_block_forward.5} parent=0
    #allocation4 [shape = 'u8[262144]{0}', space=vmem, size = 0x40000, scoped, tag = 'input window, operand 0']
    #allocation5 [shape = 's32[2]{0}', space=sflag, size = 0x8, scoped, tag = 'scoped memory for conv_block_forward.5']
    #allocation6 [shape = 's32[2]{0}', space=sflag, size = 0x8, scoped, tag = 'scoped memory for conv_block_forward.5']
    #allocation7 [shape = 'u8[512]{0}', space=vmem, size = 0x400, scoped, tag = 'input window, operand 1, single buffered']
    #allocation8 [shape = 's32[1]{0}', space=sflag, size = 0x4, scoped, tag = 'scoped memory for conv_block_forward.5']
    #allocation9 [shape = 'u8[512]{0}', space=vmem, size = 0x400, scoped, tag = 'input window, operand 2, single buffered']
    #allocation10 [shape = 'u8[6144]{0}', space=vmem, size = 0x1800, scoped, tag = 'input window, operand 3, single buffered']
    #allocation11 [shape = 's32[1]{0}', space=sflag, size = 0x4, scoped, tag = 'scoped memory for conv_block_forward.5']
    #allocation12 [shape = 'u8[262144]{0}', space=vmem, size = 0x40000, scoped, tag = 'input window, operand 4']
    #allocation13 [shape = 'u8[262144]{0}', space=vmem, size = 0x40000, scoped, tag = 'input window, operand 5']
    #allocation14 [shape = 'u8[512]{0}', space=vmem, size = 0x400, scoped, tag = 'input window, operand 6, single buffered']
    #allocation15 [shape = 'u8[512]{0}', space=vmem, size = 0x400, scoped, tag = 'input window, operand 7, single buffered']
    #allocation16 [shape = 'u8[1024]{0}', space=vmem, size = 0x400, scoped, tag = 'input window, operand 8, single buffered']
    #allocation17 [shape = 's32[1]{0}', space=sflag, size = 0x4, scoped, tag = 'scoped memory for conv_block_forward.5']
    #allocation18 [shape = 'u8[262144]{0}', space=vmem, size = 0x40000, scoped, tag = 'output window, operand 0']
    %14 = vsyncpa [#allocation5], 0
    %s15 = scalar_lea.sflag [#allocation5], 1
    %16 = vsyncpa %s15, 0
    %17 = vsyncpa [#allocation8], 0
    %18 = vsyncpa [#allocation11], 0
    %19 = vsyncpa [#allocation17], 0
    %20 = vsyncpa [#allocation6], 0
    %s21 = scalar_lea.sflag [#allocation6], 1
    %22 = vsyncpa %s21, 0
    loop: start=0, step=1, limit=4
    $region2: #{conv_block_forward.5} parent=1 // loop_pre_header
      _
    $region3: #{conv_block_forward.5} parent=1 // loop_header
      %s24 = sphi 0, %s28
      %p25 = scmp.ge.s32.totalorder %s24, 4
      %s34 = sphi 0, %s36
      %s37 = sphi 0, %s34
      %s38 = sphi 0, %s37
      %s54 = sphi 0, %s38
      %s58 = sphi 0, %s58
      %s60 = sphi 0, %s58
      %s61 = sphi 0, %s60
      %s75 = sphi 0, %s61
      %s79 = sphi 0, %s79
      %s81 = sphi 0, %s79
      %s82 = sphi 0, %s81
      %s96 = sphi 0, %s82
      %s100 = sphi 0, %s100
      %s102 = sphi 0, %s100
      %s103 = sphi 0, %s102
      %s117 = sphi 0, %s103
      %s123 = sphi 0, %s125
      %s126 = sphi 0, %s123
      %s127 = sphi 0, %s126
      %s143 = sphi 0, %s127
      %s149 = sphi 0, %s151
      %s152 = sphi 0, %s149
      %s153 = sphi 0, %s152
      %s169 = sphi 0, %s153
      %s173 = sphi 0, %s173
      %s175 = sphi 0, %s173
      %s176 = sphi 0, %s175
      %s190 = sphi 0, %s176
      %s194 = sphi 0, %s194
      %s196 = sphi 0, %s194
      %s197 = sphi 0, %s196
      %s211 = sphi 0, %s197
      %s215 = sphi 0, %s215
      %s217 = sphi 0, %s215
      %s218 = sphi 0, %s217
      %s232 = sphi 0, %s218
      %s238 = sphi 0, %s240
      %s241 = sphi 0, %s238
      %s242 = sphi 0, %s241
      %s258 = sphi 0, %s242
    $region4: #{conv_block_forward.5} parent=1 // loop_header_branch
      %27 = sbr.rel (%p25) target = $region8
    $region5: #{conv_block_forward.5} parent=1 // loop_body
      %s29 = ssub.s32 %s24, 1
      %s30 = ssub.s32 %s24, 2
      %s31 = sadd.s32 %s24, 1
      %s32 = ssub.s32 %s24, %s31
      %p33 = scmp.eq.s32.totalorder %s32, 0
      %s35 = sadd.s32 %s34, 1
      %s36 = scalar_select %p33, %s34, %s35
      %p39 = pneg %p33
      %p40 = scmp.eq.s32.totalorder %s24, 1
      %p41 = por %p39, %p40
      %p42 = scmp.ne.s32.totalorder %s34, %s37
      %p43 = scmp.eq.s32.totalorder %s24, 0
      %p44 = por %p42, %p43
      %p45 = scmp.ne.s32.totalorder %s34, %s37
      %p46 = scmp.eq.s32.totalorder %s29, 1
      %p47 = por %p45, %p46
      %p48 = scmp.ne.s32.totalorder %s37, %s38
      %p49 = scmp.eq.s32.totalorder %s29, 0
      %p50 = por %p48, %p49
      %p51 = scmp.ne.s32.totalorder %s37, %s38
      %p52 = scmp.eq.s32.totalorder %s30, 1
      %p53 = por %p51, %p52
      %p55 = scmp.ne.s32.totalorder %s38, %s54
      %p56 = scmp.eq.s32.totalorder %s30, 0
      %p57 = por %p55, %p56
      %s59 = sadd.s32 %s58, 1
      %p62 = scmp.eq.s32.totalorder %s24, 1
      %p63 = scmp.ne.s32.totalorder %s58, %s60
      %p64 = scmp.eq.s32.totalorder %s24, 0
      %p65 = por %p63, %p64
      %p66 = scmp.ne.s32.totalorder %s58, %s60
      %p67 = scmp.eq.s32.totalorder %s29, 1
      %p68 = por %p66, %p67
      %p69 = scmp.ne.s32.totalorder %s60, %s61
      %p70 = scmp.eq.s32.totalorder %s29, 0
      %p71 = por %p69, %p70
      %p72 = scmp.ne.s32.totalorder %s60, %s61
      %p73 = scmp.eq.s32.totalorder %s30, 1
      %p74 = por %p72, %p73
      %p76 = scmp.ne.s32.totalorder %s61, %s75
      %p77 = scmp.eq.s32.totalorder %s30, 0
      %p78 = por %p76, %p77
      %s80 = sadd.s32 %s79, 1
      %p83 = scmp.eq.s32.totalorder %s24, 1
      %p84 = scmp.ne.s32.totalorder %s79, %s81
      %p85 = scmp.eq.s32.totalorder %s24, 0
      %p86 = por %p84, %p85
      %p87 = scmp.ne.s32.totalorder %s79, %s81
      %p88 = scmp.eq.s32.totalorder %s29, 1
      %p89 = por %p87, %p88
      %p90 = scmp.ne.s32.totalorder %s81, %s82
      %p91 = scmp.eq.s32.totalorder %s29, 0
      %p92 = por %p90, %p91
      %p93 = scmp.ne.s32.totalorder %s81, %s82
      %p94 = scmp.eq.s32.totalorder %s30, 1
      %p95 = por %p93, %p94
      %p97 = scmp.ne.s32.totalorder %s82, %s96
      %p98 = scmp.eq.s32.totalorder %s30, 0
      %p99 = por %p97, %p98
      %s101 = sadd.s32 %s100, 1
      %p104 = scmp.eq.s32.totalorder %s24, 1
      %p105 = scmp.ne.s32.totalorder %s100, %s102
      %p106 = scmp.eq.s32.totalorder %s24, 0
      %p107 = por %p105, %p106
      %p108 = scmp.ne.s32.totalorder %s100, %s102
      %p109 = scmp.eq.s32.totalorder %s29, 1
      %p110 = por %p108, %p109
      %p111 = scmp.ne.s32.totalorder %s102, %s103
      %p112 = scmp.eq.s32.totalorder %s29, 0
      %p113 = por %p111, %p112
      %p114 = scmp.ne.s32.totalorder %s102, %s103
      %p115 = scmp.eq.s32.totalorder %s30, 1
      %p116 = por %p114, %p115
      %p118 = scmp.ne.s32.totalorder %s103, %s117
      %p119 = scmp.eq.s32.totalorder %s30, 0
      %p120 = por %p118, %p119
      %s121 = ssub.s32 %s24, %s31
      %p122 = scmp.eq.s32.totalorder %s121, 0
      %s124 = sadd.s32 %s123, 1
      %s125 = scalar_select %p122, %s123, %s124
      %p128 = pneg %p122
      %p129 = scmp.eq.s32.totalorder %s24, 1
      %p130 = por %p128, %p129
      %p131 = scmp.ne.s32.totalorder %s123, %s126
      %p132 = scmp.eq.s32.totalorder %s24, 0
      %p133 = por %p131, %p132
      %p134 = scmp.ne.s32.totalorder %s123, %s126
      %p135 = scmp.eq.s32.totalorder %s29, 1
      %p136 = por %p134, %p135
      %p137 = scmp.ne.s32.totalorder %s126, %s127
      %p138 = scmp.eq.s32.totalorder %s29, 0
      %p139 = por %p137, %p138
      %p140 = scmp.ne.s32.totalorder %s126, %s127
      %p141 = scmp.eq.s32.totalorder %s30, 1
      %p142 = por %p140, %p141
      %p144 = scmp.ne.s32.totalorder %s127, %s143
      %p145 = scmp.eq.s32.totalorder %s30, 0
      %p146 = por %p144, %p145
      %s147 = ssub.s32 %s24, %s31
      %p148 = scmp.eq.s32.totalorder %s147, 0
      %s150 = sadd.s32 %s149, 1
      %s151 = scalar_select %p148, %s149, %s150
      %p154 = pneg %p148
      %p155 = scmp.eq.s32.totalorder %s24, 1
      %p156 = por %p154, %p155
      %p157 = scmp.ne.s32.totalorder %s149, %s152
      %p158 = scmp.eq.s32.totalorder %s24, 0
      %p159 = por %p157, %p158
      %p160 = scmp.ne.s32.totalorder %s149, %s152
      %p161 = scmp.eq.s32.totalorder %s29, 1
      %p162 = por %p160, %p161
      %p163 = scmp.ne.s32.totalorder %s152, %s153
      %p164 = scmp.eq.s32.totalorder %s29, 0
      %p165 = por %p163, %p164
      %p166 = scmp.ne.s32.totalorder %s152, %s153
      %p167 = scmp.eq.s32.totalorder %s30, 1
      %p168 = por %p166, %p167
      %p170 = scmp.ne.s32.totalorder %s153, %s169
      %p171 = scmp.eq.s32.totalorder %s30, 0
      %p172 = por %p170, %p171
      %s174 = sadd.s32 %s173, 1
      %p177 = scmp.eq.s32.totalorder %s24, 1
      %p178 = scmp.ne.s32.totalorder %s173, %s175
      %p179 = scmp.eq.s32.totalorder %s24, 0
      %p180 = por %p178, %p179
      %p181 = scmp.ne.s32.totalorder %s173, %s175
      %p182 = scmp.eq.s32.totalorder %s29, 1
      %p183 = por %p181, %p182
      %p184 = scmp.ne.s32.totalorder %s175, %s176
      %p185 = scmp.eq.s32.totalorder %s29, 0
      %p186 = por %p184, %p185
      %p187 = scmp.ne.s32.totalorder %s175, %s176
      %p188 = scmp.eq.s32.totalorder %s30, 1
      %p189 = por %p187, %p188
      %p191 = scmp.ne.s32.totalorder %s176, %s190
      %p192 = scmp.eq.s32.totalorder %s30, 0
      %p193 = por %p191, %p192
      %s195 = sadd.s32 %s194, 1
      %p198 = scmp.eq.s32.totalorder %s24, 1
      %p199 = scmp.ne.s32.totalorder %s194, %s196
      %p200 = scmp.eq.s32.totalorder %s24, 0
      %p201 = por %p199, %p200
      %p202 = scmp.ne.s32.totalorder %s194, %s196
      %p203 = scmp.eq.s32.totalorder %s29, 1
      %p204 = por %p202, %p203
      %p205 = scmp.ne.s32.totalorder %s196, %s197
      %p206 = scmp.eq.s32.totalorder %s29, 0
      %p207 = por %p205, %p206
      %p208 = scmp.ne.s32.totalorder %s196, %s197
      %p209 = scmp.eq.s32.totalorder %s30, 1
      %p210 = por %p208, %p209
      %p212 = scmp.ne.s32.totalorder %s197, %s211
      %p213 = scmp.eq.s32.totalorder %s30, 0
      %p214 = por %p212, %p213
      %s216 = sadd.s32 %s215, 1
      %p219 = scmp.eq.s32.totalorder %s24, 1
      %p220 = scmp.ne.s32.totalorder %s215, %s217
      %p221 = scmp.eq.s32.totalorder %s24, 0
      %p222 = por %p220, %p221
      %p223 = scmp.ne.s32.totalorder %s215, %s217
      %p224 = scmp.eq.s32.totalorder %s29, 1
      %p225 = por %p223, %p224
      %p226 = scmp.ne.s32.totalorder %s217, %s218
      %p227 = scmp.eq.s32.totalorder %s29, 0
      %p228 = por %p226, %p227
      %p229 = scmp.ne.s32.totalorder %s217, %s218
      %p230 = scmp.eq.s32.totalorder %s30, 1
      %p231 = por %p229, %p230
      %p233 = scmp.ne.s32.totalorder %s218, %s232
      %p234 = scmp.eq.s32.totalorder %s30, 0
      %p235 = por %p233, %p234
      %s236 = ssub.s32 %s24, %s31
      %p237 = scmp.eq.s32.totalorder %s236, 0
      %s239 = sadd.s32 %s238, 1
      %s240 = scalar_select %p237, %s238, %s239
      %p243 = pneg %p237
      %p244 = scmp.eq.s32.totalorder %s24, 1
      %p245 = por %p243, %p244
      %p246 = scmp.ne.s32.totalorder %s238, %s241
      %p247 = scmp.eq.s32.totalorder %s24, 0
      %p248 = por %p246, %p247
      %p249 = scmp.ne.s32.totalorder %s238, %s241
      %p250 = scmp.eq.s32.totalorder %s29, 1
      %p251 = por %p249, %p250
      %p252 = scmp.ne.s32.totalorder %s241, %s242
      %p253 = scmp.eq.s32.totalorder %s29, 0
      %p254 = por %p252, %p253
      %p255 = scmp.ne.s32.totalorder %s241, %s242
      %p256 = scmp.eq.s32.totalorder %s30, 1
      %p257 = por %p255, %p256
      %p259 = scmp.ne.s32.totalorder %s242, %s258
      %p260 = scmp.eq.s32.totalorder %s30, 0
      %p261 = por %p259, %p260
      %p262 = scmp.le.s32.totalorder 1, %s24
      %p263 = scmp.lt.s32.totalorder %s24, 3
      %p264 = pnand %p262, %p263
      %p265 = pneg %p264
      // Predicated region
      $region9: #{conv_block_forward.5} parent=5 // pred_check
        _
      $region10: #{conv_block_forward.5} parent=5 // pred_check_branch
        %267 = sbr.rel (%p264) target = $region12
      $region11: #{conv_block_forward.5} parent=5 // pred_region
        %s268 = ssub.s32 %s24, 1
        // Predicated region
        $region13: #{conv_block_forward.5} parent=11 // pred_check
          %p269 = pneg %p71
        $region14: #{conv_block_forward.5} parent=11 // pred_check_branch
          %271 = sbr.rel (%p269) target = $region16
        $region15: #{conv_block_forward.5} parent=11 // pred_region
          %s273 = ssub.s32 16, 16
          %274 = vsyncadd [#allocation8], %s273
          %s276 = sshll.u32 [#allocation7], 4
          %s277 = int_to_ptr.vmem [resolvable:$true] %s276
          %279 = dma.hbm_to_vmem [thread:$0]  %s1, 16, %s277, [#allocation8]
        $region16: #{conv_block_forward.5} parent=11 // pred_fallthru
          _
        // Predicated region
        $region17: #{conv_block_forward.5} parent=11 // pred_check
          %p280 = pneg %p92
        $region18: #{conv_block_forward.5} parent=11 // pred_check_branch
          %282 = sbr.rel (%p280) target = $region20
        $region19: #{conv_block_forward.5} parent=11 // pred_region
          %s284 = ssub.s32 16, 16
          %285 = vsyncadd [#allocation8], %s284
          %s287 = sshll.u32 [#allocation9], 4
          %s288 = int_to_ptr.vmem [resolvable:$true] %s287
          %290 = dma.hbm_to_vmem [thread:$0]  %s2, 16, %s288, [#allocation8]
        $region20: #{conv_block_forward.5} parent=11 // pred_fallthru
          _
        // Predicated region
        $region21: #{conv_block_forward.5} parent=11 // pred_check
          %p291 = pneg %p113
        $region22: #{conv_block_forward.5} parent=11 // pred_check_branch
          %293 = sbr.rel (%p291) target = $region24
        $region23: #{conv_block_forward.5} parent=11 // pred_region
          %s295 = ssub.s32 192, 192
          %296 = vsyncadd [#allocation11], %s295
          %s297 = sshll.u32 [#allocation10], 4
          %s298 = int_to_ptr.vmem [resolvable:$true] %s297
          %303 = dma.hbm_to_vmem [thread:$0]  %s3, 192, %s298, [#allocation11], 64, 64, 4
        $region24: #{conv_block_forward.5} parent=11 // pred_fallthru
          _
        // Predicated region
        $region25: #{conv_block_forward.5} parent=11 // pred_check
          %p304 = pneg %p186
        $region26: #{conv_block_forward.5} parent=11 // pred_check_branch
          %306 = sbr.rel (%p304) target = $region28
        $region27: #{conv_block_forward.5} parent=11 // pred_region
          %s308 = ssub.s32 16, 16
          %309 = vsyncadd [#allocation8], %s308
          %s311 = sshll.u32 [#allocation14], 4
          %s312 = int_to_ptr.vmem [resolvable:$true] %s311
          %314 = dma.hbm_to_vmem [thread:$0]  %s6, 16, %s312, [#allocation8]
        $region28: #{conv_block_forward.5} parent=11 // pred_fallthru
          _
        // Predicated region
        $region29: #{conv_block_forward.5} parent=11 // pred_check
          %p315 = pneg %p207
        $region30: #{conv_block_forward.5} parent=11 // pred_check_branch
          %317 = sbr.rel (%p315) target = $region32
        $region31: #{conv_block_forward.5} parent=11 // pred_region
          %s319 = ssub.s32 16, 16
          %320 = vsyncadd [#allocation11], %s319
          %s322 = sshll.u32 [#allocation15], 4
          %s323 = int_to_ptr.vmem [resolvable:$true] %s322
          %325 = dma.hbm_to_vmem [thread:$0]  %s7, 16, %s323, [#allocation11]
        $region32: #{conv_block_forward.5} parent=11 // pred_fallthru
          _
        // Predicated region
        $region33: #{conv_block_forward.5} parent=11 // pred_check
          %p326 = pneg %p228
        $region34: #{conv_block_forward.5} parent=11 // pred_check_branch
          %328 = sbr.rel (%p326) target = $region36
        $region35: #{conv_block_forward.5} parent=11 // pred_region
          %s330 = ssub.s32 32, 32
          %331 = vsyncadd [#allocation17], %s330
          %s333 = sshll.u32 [#allocation16], 4
          %s334 = int_to_ptr.vmem [resolvable:$true] %s333
          %336 = dma.hbm_to_vmem [thread:$0]  %s8, 32, %s334, [#allocation17]
        $region36: #{conv_block_forward.5} parent=11 // pred_fallthru
          _
      $region12: #{conv_block_forward.5} parent=5 // pred_fallthru
        _
      %p337 = scmp.lt.s32.totalorder %s24, 2
      // Predicated region
      $region37: #{conv_block_forward.5} parent=5 // pred_check
        %p338 = pneg %p337
      $region38: #{conv_block_forward.5} parent=5 // pred_check_branch
        %340 = sbr.rel (%p338) target = $region40
      $region39: #{conv_block_forward.5} parent=5 // pred_region
        // Predicated region
        $region41: #{conv_block_forward.5} parent=39 // pred_check
          %p341 = pneg %p44
        $region42: #{conv_block_forward.5} parent=39 // pred_check_branch
          %343 = sbr.rel (%p341) target = $region44
        $region43: #{conv_block_forward.5} parent=39 // pred_region
          %s344 = sand.u32 %s24, 1
          %s345 = scalar_lea.sflag [#allocation5], %s344
          %s346 = sand.u32 %s34, 1
          %s347 = smul.addr %s346, 256
          %s348 = scalar_lea.vmem [#allocation4], %s347
          %s350 = ssub.s32 4096, 4096
          %351 = vsyncadd %s345, %s350
          %s352 = smul.addr %s24, 32
          %s353 = smul.addr %s352, 128
          %s354 = scalar_lea.hbm %s0, %s353
          %s355 = sshll.u32 %s348, 4
          %s356 = int_to_ptr.vmem [resolvable:$true] %s355
          %361 = dma.hbm_to_vmem [thread:$0]  %s354, 4096, %s356, %s345, 128, 128, 8
        $region44: #{conv_block_forward.5} parent=39 // pred_fallthru
          _
        // Predicated region
        $region45: #{conv_block_forward.5} parent=39 // pred_check
          %p362 = pneg %p133
        $region46: #{conv_block_forward.5} parent=39 // pred_check_branch
          %364 = sbr.rel (%p362) target = $region48
        $region47: #{conv_block_forward.5} parent=39 // pred_region
          %s365 = sand.u32 %s24, 1
          %s366 = scalar_lea.sflag [#allocation5], %s365
          %s367 = sand.u32 %s123, 1
          %s368 = smul.addr %s367, 256
          %s369 = scalar_lea.vmem [#allocation12], %s368
          %s371 = ssub.s32 4096, 4096
          %372 = vsyncadd %s366, %s371
          %s373 = smul.addr %s24, 32
          %s374 = smul.addr %s373, 128
          %s375 = scalar_lea.hbm %s4, %s374
          %s376 = sshll.u32 %s369, 4
          %s377 = int_to_ptr.vmem [resolvable:$true] %s376
          %382 = dma.hbm_to_vmem [thread:$0]  %s375, 4096, %s377, %s366, 128, 128, 8
        $region48: #{conv_block_forward.5} parent=39 // pred_fallthru
          _
        // Predicated region
        $region49: #{conv_block_forward.5} parent=39 // pred_check
          %p383 = pneg %p159
        $region50: #{conv_block_forward.5} parent=39 // pred_check_branch
          %385 = sbr.rel (%p383) target = $region52
        $region51: #{conv_block_forward.5} parent=39 // pred_region
          %s386 = sand.u32 %s24, 1
          %s387 = scalar_lea.sflag [#allocation5], %s386
          %s388 = sand.u32 %s149, 1
          %s389 = smul.addr %s388, 256
          %s390 = scalar_lea.vmem [#allocation13], %s389
          %s392 = ssub.s32 4096, 4096
          %393 = vsyncadd %s387, %s392
          %s394 = smul.addr %s24, 32
          %s395 = smul.addr %s394, 128
          %s396 = scalar_lea.hbm %s5, %s395
          %s397 = sshll.u32 %s390, 4
          %s398 = int_to_ptr.vmem [resolvable:$true] %s397
          %403 = dma.hbm_to_vmem [thread:$0]  %s396, 4096, %s398, %s387, 128, 128, 8
        $region52: #{conv_block_forward.5} parent=39 // pred_fallthru
          _
      $region40: #{conv_block_forward.5} parent=5 // pred_fallthru
        _
      %p404 = scmp.le.s32.totalorder 1, %s24
      %p405 = scmp.lt.s32.totalorder %s24, 3
      %p406 = pnand %p404, %p405
      %p407 = pneg %p406
      // Predicated region
      $region53: #{conv_block_forward.5} parent=5 // pred_check
        _
      $region54: #{conv_block_forward.5} parent=5 // pred_check_branch
        %409 = sbr.rel (%p406) target = $region56
      $region55: #{conv_block_forward.5} parent=5 // pred_region
        %s410 = ssub.s32 %s24, 1
        %s411 = sand.u32 %s29, 1
        %s412 = scalar_lea.sflag [#allocation5], %s411
        %s413 = sand.u32 %s37, 1
        %s414 = smul.addr %s413, 256
        %s415 = scalar_lea.vmem [#allocation4], %s414
        // Predicated region
        $region57: #{conv_block_forward.5} parent=55 // pred_check
          %p416 = pneg %p50
        $region58: #{conv_block_forward.5} parent=55 // pred_check_branch
          %418 = sbr.rel (%p416) target = $region60
        $region59: #{conv_block_forward.5} parent=55 // pred_region
          %419 = dma.done %s412, 4096
        $region60: #{conv_block_forward.5} parent=55 // pred_fallthru
          _
        // Predicated region
        $region61: #{conv_block_forward.5} parent=55 // pred_check
          %p420 = pneg %p71
        $region62: #{conv_block_forward.5} parent=55 // pred_check_branch
          %422 = sbr.rel (%p420) target = $region64
        $region63: #{conv_block_forward.5} parent=55 // pred_region
          %423 = dma.done [#allocation8], 16
        $region64: #{conv_block_forward.5} parent=55 // pred_fallthru
          _
        // Predicated region
        $region65: #{conv_block_forward.5} parent=55 // pred_check
          %p424 = pneg %p92
        $region66: #{conv_block_forward.5} parent=55 // pred_check_branch
          %426 = sbr.rel (%p424) target = $region68
        $region67: #{conv_block_forward.5} parent=55 // pred_region
          %427 = dma.done [#allocation8], 16
        $region68: #{conv_block_forward.5} parent=55 // pred_fallthru
          _
        // Predicated region
        $region69: #{conv_block_forward.5} parent=55 // pred_check
          %p428 = pneg %p113
        $region70: #{conv_block_forward.5} parent=55 // pred_check_branch
          %430 = sbr.rel (%p428) target = $region72
        $region71: #{conv_block_forward.5} parent=55 // pred_region
          %431 = dma.done [#allocation11], 192
        $region72: #{conv_block_forward.5} parent=55 // pred_fallthru
          _
        %s432 = sand.u32 %s29, 1
        %s433 = scalar_lea.sflag [#allocation5], %s432
        %s434 = sand.u32 %s126, 1
        %s435 = smul.addr %s434, 256
        %s436 = scalar_lea.vmem [#allocation12], %s435
        // Predicated region
        $region73: #{conv_block_forward.5} parent=55 // pred_check
          %p437 = pneg %p139
        $region74: #{conv_block_forward.5} parent=55 // pred_check_branch
          %439 = sbr.rel (%p437) target = $region76
        $region75: #{conv_block_forward.5} parent=55 // pred_region
          %440 = dma.done %s433, 4096
        $region76: #{conv_block_forward.5} parent=55 // pred_fallthru
          _
        %s441 = sand.u32 %s29, 1
        %s442 = scalar_lea.sflag [#allocation5], %s441
        %s443 = sand.u32 %s152, 1
        %s444 = smul.addr %s443, 256
        %s445 = scalar_lea.vmem [#allocation13], %s444
        // Predicated region
        $region77: #{conv_block_forward.5} parent=55 // pred_check
          %p446 = pneg %p165
        $region78: #{conv_block_forward.5} parent=55 // pred_check_branch
          %448 = sbr.rel (%p446) target = $region80
        $region79: #{conv_block_forward.5} parent=55 // pred_region
          %449 = dma.done %s442, 4096
        $region80: #{conv_block_forward.5} parent=55 // pred_fallthru
          _
        // Predicated region
        $region81: #{conv_block_forward.5} parent=55 // pred_check
          %p450 = pneg %p186
        $region82: #{conv_block_forward.5} parent=55 // pred_check_branch
          %452 = sbr.rel (%p450) target = $region84
        $region83: #{conv_block_forward.5} parent=55 // pred_region
          %453 = dma.done [#allocation8], 16
        $region84: #{conv_block_forward.5} parent=55 // pred_fallthru
          _
        // Predicated region
        $region85: #{conv_block_forward.5} parent=55 // pred_check
          %p454 = pneg %p207
        $region86: #{conv_block_forward.5} parent=55 // pred_check_branch
          %456 = sbr.rel (%p454) target = $region88
        $region87: #{conv_block_forward.5} parent=55 // pred_region
          %457 = dma.done [#allocation11], 16
        $region88: #{conv_block_forward.5} parent=55 // pred_fallthru
          _
        // Predicated region
        $region89: #{conv_block_forward.5} parent=55 // pred_check
          %p458 = pneg %p228
        $region90: #{conv_block_forward.5} parent=55 // pred_check_branch
          %460 = sbr.rel (%p458) target = $region92
        $region91: #{conv_block_forward.5} parent=55 // pred_region
          %461 = dma.done [#allocation17], 32
        $region92: #{conv_block_forward.5} parent=55 // pred_fallthru
          _
        %s462 = sand.u32 %s29, 1
        %s463 = scalar_lea.sflag [#allocation5], %s462
        %s464 = sand.u32 %s37, 1
        %s465 = smul.addr %s464, 256
        %s466 = scalar_lea.vmem [#allocation4], %s465
        %p467 = pneg %p50
        %p468 = pneg %p47
        %p469 = pneg %p71
        %p470 = pneg %p68
        %p471 = pneg %p92
        %p472 = pneg %p89
        %p473 = pneg %p113
        %p474 = pneg %p110
        %s475 = sand.u32 %s29, 1
        %s476 = scalar_lea.sflag [#allocation5], %s475
        %s477 = sand.u32 %s126, 1
        %s478 = smul.addr %s477, 256
        %s479 = scalar_lea.vmem [#allocation12], %s478
        %p480 = pneg %p139
        %p481 = pneg %p136
        %s482 = sand.u32 %s29, 1
        %s483 = scalar_lea.sflag [#allocation5], %s482
        %s484 = sand.u32 %s152, 1
        %s485 = smul.addr %s484, 256
        %s486 = scalar_lea.vmem [#allocation13], %s485
        %p487 = pneg %p165
        %p488 = pneg %p162
        %p489 = pneg %p186
        %p490 = pneg %p183
        %p491 = pneg %p207
        %p492 = pneg %p204
        %p493 = pneg %p228
        %p494 = pneg %p225
        %p495 = pneg %p254
        %p496 = pneg %p251
        %s497 = sand.u32 %s241, 1
        %s498 = scalar_lea.sflag [#allocation6], %s497
        %s499 = sand.u32 %s241, 1
        %s500 = smul.addr %s499, 256
        %s501 = scalar_lea.vmem [#allocation18], %s500
        %v503 = vld [vmem:[%s415] sm:$0xff]
        %v504 = vld [vmem:[%s415 + $0x8] sm:$0xff]
        %v505 = vld [vmem:[%s415 + $0x10] sm:$0xff]
        %v506 = vld [vmem:[%s415 + $0x18] sm:$0xff]
        %v507 = vld [vmem:[%s415 + $0x20] sm:$0xff]
        %v508 = vld [vmem:[%s415 + $0x28] sm:$0xff]
        %v509 = vld [vmem:[%s415 + $0x30] sm:$0xff]
        %v510 = vld [vmem:[%s415 + $0x38] sm:$0xff]
        %v511 = vld [vmem:[%s415 + $0x40] sm:$0xff]
        %v512 = vld [vmem:[%s415 + $0x48] sm:$0xff]
        %v513 = vld [vmem:[%s415 + $0x50] sm:$0xff]
        %v514 = vld [vmem:[%s415 + $0x58] sm:$0xff]
        %v515 = vld [vmem:[%s415 + $0x60] sm:$0xff]
        %v516 = vld [vmem:[%s415 + $0x68] sm:$0xff]
        %v517 = vld [vmem:[%s415 + $0x70] sm:$0xff]
        %v518 = vld [vmem:[%s415 + $0x78] sm:$0xff]
        %v519 = vld [vmem:[%s415 + $0x80] sm:$0xff]
        %v520 = vld [vmem:[%s415 + $0x88] sm:$0xff]
        %v521 = vld [vmem:[%s415 + $0x90] sm:$0xff]
        %v522 = vld [vmem:[%s415 + $0x98] sm:$0xff]
        %v523 = vld [vmem:[%s415 + $0xa0] sm:$0xff]
        %v524 = vld [vmem:[%s415 + $0xa8] sm:$0xff]
        %v525 = vld [vmem:[%s415 + $0xb0] sm:$0xff]
        %v526 = vld [vmem:[%s415 + $0xb8] sm:$0xff]
        %v527 = vld [vmem:[%s415 + $0xc0] sm:$0xff]
        %v528 = vld [vmem:[%s415 + $0xc8] sm:$0xff]
        %v529 = vld [vmem:[%s415 + $0xd0] sm:$0xff]
        %v530 = vld [vmem:[%s415 + $0xd8] sm:$0xff]
        %v531 = vld [vmem:[%s415 + $0xe0] sm:$0xff]
        %v532 = vld [vmem:[%s415 + $0xe8] sm:$0xff]
        %v533 = vld [vmem:[%s415 + $0xf0] sm:$0xff]
        %v534 = vld [vmem:[%s415 + $0xf8] sm:$0xff]
        %v535 = vld [vmem:[%s445] sm:$0xff]
        %v536 = vld [vmem:[%s445 + $0x8] sm:$0xff]
        %v537 = vld [vmem:[%s445 + $0x10] sm:$0xff]
        %v538 = vld [vmem:[%s445 + $0x18] sm:$0xff]
        %v539 = vld [vmem:[%s445 + $0x20] sm:$0xff]
        %v540 = vld [vmem:[%s445 + $0x28] sm:$0xff]
        %v541 = vld [vmem:[%s445 + $0x30] sm:$0xff]
        %v542 = vld [vmem:[%s445 + $0x38] sm:$0xff]
        %v543 = vld [vmem:[%s445 + $0x40] sm:$0xff]
        %v544 = vld [vmem:[%s445 + $0x48] sm:$0xff]
        %v545 = vld [vmem:[%s445 + $0x50] sm:$0xff]
        %v546 = vld [vmem:[%s445 + $0x58] sm:$0xff]
        %v547 = vld [vmem:[%s445 + $0x60] sm:$0xff]
        %v548 = vld [vmem:[%s445 + $0x68] sm:$0xff]
        %v549 = vld [vmem:[%s445 + $0x70] sm:$0xff]
        %v550 = vld [vmem:[%s445 + $0x78] sm:$0xff]
        %v551 = vld [vmem:[%s445 + $0x80] sm:$0xff]
        %v552 = vld [vmem:[%s445 + $0x88] sm:$0xff]
        %v553 = vld [vmem:[%s445 + $0x90] sm:$0xff]
        %v554 = vld [vmem:[%s445 + $0x98] sm:$0xff]
        %v555 = vld [vmem:[%s445 + $0xa0] sm:$0xff]
        %v556 = vld [vmem:[%s445 + $0xa8] sm:$0xff]
        %v557 = vld [vmem:[%s445 + $0xb0] sm:$0xff]
        %v558 = vld [vmem:[%s445 + $0xb8] sm:$0xff]
        %v559 = vld [vmem:[%s445 + $0xc0] sm:$0xff]
        %v560 = vld [vmem:[%s445 + $0xc8] sm:$0xff]
        %v561 = vld [vmem:[%s445 + $0xd0] sm:$0xff]
        %v562 = vld [vmem:[%s445 + $0xd8] sm:$0xff]
        %v563 = vld [vmem:[%s445 + $0xe0] sm:$0xff]
        %v564 = vld [vmem:[%s445 + $0xe8] sm:$0xff]
        %v565 = vld [vmem:[%s445 + $0xf0] sm:$0xff]
        %v566 = vld [vmem:[%s445 + $0xf8] sm:$0xff]
        %v567 = vld [vmem:[#allocation7] sm:$0x1]
        %v568 = vld [vmem:[#allocation9] sm:$0x1]
        %v570 = vlaneseq
        %v571 = vshrl.u32 %v570, 7
        %v572 = vsub.s32 0, %v571
        %v573 = vrot.slane %v567, %v572
        %v575 = vmul.f32 %v503, %v573
        %v576 = vmul.f32 %v504, %v573
        %v577 = vmul.f32 %v505, %v573
        %v578 = vmul.f32 %v506, %v573
        %v579 = vmul.f32 %v507, %v573
        %v580 = vmul.f32 %v508, %v573
        %v581 = vmul.f32 %v509, %v573
        %v582 = vmul.f32 %v510, %v573
        %v583 = vmul.f32 %v511, %v573
        %v584 = vmul.f32 %v512, %v573
        %v585 = vmul.f32 %v513, %v573
        %v586 = vmul.f32 %v514, %v573
        %v587 = vmul.f32 %v515, %v573
        %v588 = vmul.f32 %v516, %v573
        %v589 = vmul.f32 %v517, %v573
        %v590 = vmul.f32 %v518, %v573
        %v591 = vmul.f32 %v519, %v573
        %v592 = vmul.f32 %v520, %v573
        %v593 = vmul.f32 %v521, %v573
        %v594 = vmul.f32 %v522, %v573
        %v595 = vmul.f32 %v523, %v573
        %v596 = vmul.f32 %v524, %v573
        %v597 = vmul.f32 %v525, %v573
        %v598 = vmul.f32 %v526, %v573
        %v599 = vmul.f32 %v527, %v573
        %v600 = vmul.f32 %v528, %v573
        %v601 = vmul.f32 %v529, %v573
        %v602 = vmul.f32 %v530, %v573
        %v603 = vmul.f32 %v531, %v573
        %v604 = vmul.f32 %v532, %v573
        %v605 = vmul.f32 %v533, %v573
        %v606 = vmul.f32 %v534, %v573
        %v608 = vlaneseq
        %v609 = vshrl.u32 %v608, 7
        %v610 = vsub.s32 0, %v609
        %v611 = vrot.slane %v568, %v610
        %v613 = vadd.f32 %v575, %v611
        %v614 = vadd.f32 %v576, %v611
        %v615 = vadd.f32 %v577, %v611
        %v616 = vadd.f32 %v578, %v611
        %v617 = vadd.f32 %v579, %v611
        %v618 = vadd.f32 %v580, %v611
        %v619 = vadd.f32 %v581, %v611
        %v620 = vadd.f32 %v582, %v611
        %v621 = vadd.f32 %v583, %v611
        %v622 = vadd.f32 %v584, %v611
        %v623 = vadd.f32 %v585, %v611
        %v624 = vadd.f32 %v586, %v611
        %v625 = vadd.f32 %v587, %v611
        %v626 = vadd.f32 %v588, %v611
        %v627 = vadd.f32 %v589, %v611
        %v628 = vadd.f32 %v590, %v611
        %v629 = vadd.f32 %v591, %v611
        %v630 = vadd.f32 %v592, %v611
        %v631 = vadd.f32 %v593, %v611
        %v632 = vadd.f32 %v594, %v611
        %v633 = vadd.f32 %v595, %v611
        %v634 = vadd.f32 %v596, %v611
        %v635 = vadd.f32 %v597, %v611
        %v636 = vadd.f32 %v598, %v611
        %v637 = vadd.f32 %v599, %v611
        %v638 = vadd.f32 %v600, %v611
        %v639 = vadd.f32 %v601, %v611
        %v640 = vadd.f32 %v602, %v611
        %v641 = vadd.f32 %v603, %v611
        %v642 = vadd.f32 %v604, %v611
        %v643 = vadd.f32 %v605, %v611
        %v644 = vadd.f32 %v606, %v611
        %v645 = vmax.f32 %v613, 0.0
        %v646 = vmax.f32 %v614, 0.0
        %v647 = vmax.f32 %v615, 0.0
        %v648 = vmax.f32 %v616, 0.0
        %v649 = vmax.f32 %v617, 0.0
        %v650 = vmax.f32 %v618, 0.0
        %v651 = vmax.f32 %v619, 0.0
        %v652 = vmax.f32 %v620, 0.0
        %v653 = vmax.f32 %v621, 0.0
        %v654 = vmax.f32 %v622, 0.0
        %v655 = vmax.f32 %v623, 0.0
        %v656 = vmax.f32 %v624, 0.0
        %v657 = vmax.f32 %v625, 0.0
        %v658 = vmax.f32 %v626, 0.0
        %v659 = vmax.f32 %v627, 0.0
        %v660 = vmax.f32 %v628, 0.0
        %v661 = vmax.f32 %v629, 0.0
        %v662 = vmax.f32 %v630, 0.0
        %v663 = vmax.f32 %v631, 0.0
        %v664 = vmax.f32 %v632, 0.0
        %v665 = vmax.f32 %v633, 0.0
        %v666 = vmax.f32 %v634, 0.0
        %v667 = vmax.f32 %v635, 0.0
        %v668 = vmax.f32 %v636, 0.0
        %v669 = vmax.f32 %v637, 0.0
        %v670 = vmax.f32 %v638, 0.0
        %v671 = vmax.f32 %v639, 0.0
        %v672 = vmax.f32 %v640, 0.0
        %v673 = vmax.f32 %v641, 0.0
        %v674 = vmax.f32 %v642, 0.0
        %v675 = vmax.f32 %v643, 0.0
        %v676 = vmax.f32 %v644, 0.0
        %vm677 = vcmask 15360
        %678 = vst.msk [vmem:[#allocation2] sm:$0xff] %vm677, 0.0
        %679 = vst.msk [vmem:[#allocation2 + $0x8] sm:$0xff] %vm677, 0.0
        %vm680 = vcmask 9216
        %681 = vst.msk [vmem:[#allocation2 + $0x10] sm:$0x3] %vm680, 0.0
        %682 = vst.msk [vmem:[#allocation2 + $0x18] sm:$0xff] %vm677, 0.0
        %683 = vst.msk [vmem:[#allocation2 + $0x20] sm:$0xff] %vm677, 0.0
        %684 = vst.msk [vmem:[#allocation2 + $0x28] sm:$0x3] %vm680, 0.0
        %685 = vst.msk [vmem:[#allocation2 + $0x30] sm:$0xff] %vm677, 0.0
        %686 = vst.msk [vmem:[#allocation2 + $0x38] sm:$0xff] %vm677, 0.0
        %687 = vst.msk [vmem:[#allocation2 + $0x40] sm:$0x3] %vm680, 0.0
        %688 = vst.msk [vmem:[#allocation2 + $0x48] sm:$0xff] %vm677, 0.0
        %689 = vst.msk [vmem:[#allocation2 + $0x50] sm:$0xff] %vm677, 0.0
        %690 = vst.msk [vmem:[#allocation2 + $0x58] sm:$0x3] %vm680, 0.0
        %691 = vst.msk [vmem:[#allocation2 + $0x60] sm:$0xff] %vm677, 0.0
        %692 = vst.msk [vmem:[#allocation2 + $0x68] sm:$0xff] %vm677, 0.0
        %693 = vst.msk [vmem:[#allocation2 + $0x70] sm:$0x3] %vm680, 0.0
        %694 = vst.msk [vmem:[#allocation2 + $0x78] sm:$0xff] %vm677, 0.0
        %695 = vst.msk [vmem:[#allocation2 + $0x80] sm:$0xff] %vm677, 0.0
        %696 = vst.msk [vmem:[#allocation2 + $0x88] sm:$0x3] %vm680, 0.0
        %697 = vst.msk [vmem:[#allocation2 + $0x90] sm:$0xff] %vm677, 0.0
        %698 = vst.msk [vmem:[#allocation2 + $0x98] sm:$0xff] %vm677, 0.0
        %699 = vst.msk [vmem:[#allocation2 + $0xa0] sm:$0x3] %vm680, 0.0
        %700 = vst.msk [vmem:[#allocation2 + $0xa8] sm:$0xff] %vm677, 0.0
        %701 = vst.msk [vmem:[#allocation2 + $0xb0] sm:$0xff] %vm677, 0.0
        %702 = vst.msk [vmem:[#allocation2 + $0xb8] sm:$0x3] %vm680, 0.0
        %703 = vst.msk [vmem:[#allocation2 + $0xc0] sm:$0xff] %vm677, 0.0
        %704 = vst.msk [vmem:[#allocation2 + $0xc8] sm:$0xff] %vm677, 0.0
        %705 = vst.msk [vmem:[#allocation2 + $0xd0] sm:$0x3] %vm680, 0.0
        %706 = vst.msk [vmem:[#allocation2 + $0xd8] sm:$0xff] %vm677, 0.0
        %707 = vst.msk [vmem:[#allocation2 + $0xe0] sm:$0xff] %vm677, 0.0
        %708 = vst.msk [vmem:[#allocation2 + $0xe8] sm:$0x3] %vm680, 0.0
        %709 = vst.msk [vmem:[#allocation2 + $0xf0] sm:$0xff] %vm677, 0.0
        %710 = vst.msk [vmem:[#allocation2 + $0xf8] sm:$0xff] %vm677, 0.0
        %711 = vst.msk [vmem:[#allocation2 + $0x100] sm:$0x3] %vm680, 0.0
        %712 = vst.msk [vmem:[#allocation2 + $0x108] sm:$0xff] %vm677, 0.0
        %713 = vst.msk [vmem:[#allocation2 + $0x110] sm:$0xff] %vm677, 0.0
        %714 = vst.msk [vmem:[#allocation2 + $0x118] sm:$0x3] %vm680, 0.0
        %715 = vst.msk [vmem:[#allocation2 + $0x120] sm:$0xff] %vm677, 0.0
        %716 = vst.msk [vmem:[#allocation2 + $0x128] sm:$0xff] %vm677, 0.0
        %717 = vst.msk [vmem:[#allocation2 + $0x130] sm:$0x3] %vm680, 0.0
        %718 = vst.msk [vmem:[#allocation2 + $0x138] sm:$0xff] %vm677, 0.0
        %719 = vst.msk [vmem:[#allocation2 + $0x140] sm:$0xff] %vm677, 0.0
        %720 = vst.msk [vmem:[#allocation2 + $0x148] sm:$0x3] %vm680, 0.0
        %721 = vst.msk [vmem:[#allocation2 + $0x150] sm:$0xff] %vm677, 0.0
        %722 = vst.msk [vmem:[#allocation2 + $0x158] sm:$0xff] %vm677, 0.0
        %723 = vst.msk [vmem:[#allocation2 + $0x160] sm:$0x3] %vm680, 0.0
        %724 = vst.msk [vmem:[#allocation2 + $0x168] sm:$0xff] %vm677, 0.0
        %725 = vst.msk [vmem:[#allocation2 + $0x170] sm:$0xff] %vm677, 0.0
        %726 = vst.msk [vmem:[#allocation2 + $0x178] sm:$0x3] %vm680, 0.0
        %727 = vst.msk [vmem:[#allocation2 + $0x180] sm:$0xff] %vm677, 0.0
        %728 = vst.msk [vmem:[#allocation2 + $0x188] sm:$0xff] %vm677, 0.0
        %729 = vst.msk [vmem:[#allocation2 + $0x190] sm:$0x3] %vm680, 0.0
        %730 = vst.msk [vmem:[#allocation2 + $0x198] sm:$0xff] %vm677, 0.0
        %731 = vst.msk [vmem:[#allocation2 + $0x1a0] sm:$0xff] %vm677, 0.0
        %732 = vst.msk [vmem:[#allocation2 + $0x1a8] sm:$0x3] %vm680, 0.0
        %s733 = scalar_lea.vmem [#allocation2], 24
        %734 = vst.msk [vmem:[%s733 + $0x1] sm:$0xff] %vm677, %v645
        %735 = vst.msk [vmem:[%s733 + $0x9] sm:$0xff] %vm677, %v646
        %736 = vst.msk [vmem:[%s733 + $0x19] sm:$0xff] %vm677, %v647
        %737 = vst.msk [vmem:[%s733 + $0x21] sm:$0xff] %vm677, %v648
        %738 = vst.msk [vmem:[%s733 + $0x31] sm:$0xff] %vm677, %v649
        %739 = vst.msk [vmem:[%s733 + $0x39] sm:$0xff] %vm677, %v650
        %740 = vst.msk [vmem:[%s733 + $0x49] sm:$0xff] %vm677, %v651
        %741 = vst.msk [vmem:[%s733 + $0x51] sm:$0xff] %vm677, %v652
        %742 = vst.msk [vmem:[%s733 + $0x61] sm:$0xff] %vm677, %v653
        %743 = vst.msk [vmem:[%s733 + $0x69] sm:$0xff] %vm677, %v654
        %744 = vst.msk [vmem:[%s733 + $0x79] sm:$0xff] %vm677, %v655
        %745 = vst.msk [vmem:[%s733 + $0x81] sm:$0xff] %vm677, %v656
        %746 = vst.msk [vmem:[%s733 + $0x91] sm:$0xff] %vm677, %v657
        %747 = vst.msk [vmem:[%s733 + $0x99] sm:$0xff] %vm677, %v658
        %748 = vst.msk [vmem:[%s733 + $0xa9] sm:$0xff] %vm677, %v659
        %749 = vst.msk [vmem:[%s733 + $0xb1] sm:$0xff] %vm677, %v660
        %750 = vst.msk [vmem:[%s733 + $0xc1] sm:$0xff] %vm677, %v661
        %751 = vst.msk [vmem:[%s733 + $0xc9] sm:$0xff] %vm677, %v662
        %752 = vst.msk [vmem:[%s733 + $0xd9] sm:$0xff] %vm677, %v663
        %753 = vst.msk [vmem:[%s733 + $0xe1] sm:$0xff] %vm677, %v664
        %754 = vst.msk [vmem:[%s733 + $0xf1] sm:$0xff] %vm677, %v665
        %755 = vst.msk [vmem:[%s733 + $0xf9] sm:$0xff] %vm677, %v666
        %756 = vst.msk [vmem:[%s733 + $0x109] sm:$0xff] %vm677, %v667
        %757 = vst.msk [vmem:[%s733 + $0x111] sm:$0xff] %vm677, %v668
        %758 = vst.msk [vmem:[%s733 + $0x121] sm:$0xff] %vm677, %v669
        %759 = vst.msk [vmem:[%s733 + $0x129] sm:$0xff] %vm677, %v670
        %760 = vst.msk [vmem:[%s733 + $0x139] sm:$0xff] %vm677, %v671
        %761 = vst.msk [vmem:[%s733 + $0x141] sm:$0xff] %vm677, %v672
        %762 = vst.msk [vmem:[%s733 + $0x151] sm:$0xff] %vm677, %v673
        %763 = vst.msk [vmem:[%s733 + $0x159] sm:$0xff] %vm677, %v674
        %764 = vst.msk [vmem:[%s733 + $0x169] sm:$0xff] %vm677, %v675
        %765 = vst.msk [vmem:[%s733 + $0x171] sm:$0xff] %vm677, %v676
        %766 = vst.msk [vmem:[#allocation3] sm:$0xff] %vm677, 0.0
        %767 = vst.msk [vmem:[#allocation3 + $0x8] sm:$0xff] %vm677, 0.0
        %768 = vst.msk [vmem:[#allocation3 + $0x10] sm:$0xff] %vm677, 0.0
        %769 = vst.msk [vmem:[#allocation3 + $0x18] sm:$0xff] %vm677, 0.0
        %770 = vst.msk [vmem:[#allocation3 + $0x20] sm:$0xff] %vm677, 0.0
        %771 = vst.msk [vmem:[#allocation3 + $0x28] sm:$0xff] %vm677, 0.0
        %772 = vst.msk [vmem:[#allocation3 + $0x30] sm:$0xff] %vm677, 0.0
        %773 = vst.msk [vmem:[#allocation3 + $0x38] sm:$0xff] %vm677, 0.0
        %774 = vst.msk [vmem:[#allocation3 + $0x40] sm:$0xff] %vm677, 0.0
        %775 = vst.msk [vmem:[#allocation3 + $0x48] sm:$0xff] %vm677, 0.0
        %776 = vst.msk [vmem:[#allocation3 + $0x50] sm:$0xff] %vm677, 0.0
        %777 = vst.msk [vmem:[#allocation3 + $0x58] sm:$0xff] %vm677, 0.0
        %778 = vst.msk [vmem:[#allocation3 + $0x60] sm:$0xff] %vm677, 0.0
        %779 = vst.msk [vmem:[#allocation3 + $0x68] sm:$0xff] %vm677, 0.0
        %780 = vst.msk [vmem:[#allocation3 + $0x70] sm:$0xff] %vm677, 0.0
        %781 = vst.msk [vmem:[#allocation3 + $0x78] sm:$0xff] %vm677, 0.0
        %782 = vst.msk [vmem:[#allocation3 + $0x80] sm:$0xff] %vm677, 0.0
        %783 = vst.msk [vmem:[#allocation3 + $0x88] sm:$0xff] %vm677, 0.0
        %784 = vst.msk [vmem:[#allocation3 + $0x90] sm:$0xff] %vm677, 0.0
        %785 = vst.msk [vmem:[#allocation3 + $0x98] sm:$0xff] %vm677, 0.0
        %786 = vst.msk [vmem:[#allocation3 + $0xa0] sm:$0xff] %vm677, 0.0
        %787 = vst.msk [vmem:[#allocation3 + $0xa8] sm:$0xff] %vm677, 0.0
        %788 = vst.msk [vmem:[#allocation3 + $0xb0] sm:$0xff] %vm677, 0.0
        %789 = vst.msk [vmem:[#allocation3 + $0xb8] sm:$0xff] %vm677, 0.0
        %790 = vst.msk [vmem:[#allocation3 + $0xc0] sm:$0xff] %vm677, 0.0
        %791 = vst.msk [vmem:[#allocation3 + $0xc8] sm:$0xff] %vm677, 0.0
        %792 = vst.msk [vmem:[#allocation3 + $0xd0] sm:$0xff] %vm677, 0.0
        %793 = vst.msk [vmem:[#allocation3 + $0xd8] sm:$0xff] %vm677, 0.0
        %794 = vst.msk [vmem:[#allocation3 + $0xe0] sm:$0xff] %vm677, 0.0
        %795 = vst.msk [vmem:[#allocation3 + $0xe8] sm:$0xff] %vm677, 0.0
        %796 = vst.msk [vmem:[#allocation3 + $0xf0] sm:$0xff] %vm677, 0.0
        %797 = vst.msk [vmem:[#allocation3 + $0xf8] sm:$0xff] %vm677, 0.0
        %v798 = vld [vmem:[#allocation2] sm:$0xff]
        %v799 = vld [vmem:[#allocation2 + $0x8] sm:$0xff]
        %v800 = vld [vmem:[#allocation2 + $0x18] sm:$0xff]
        %v801 = vld [vmem:[#allocation2 + $0x20] sm:$0xff]
        %v802 = vld [vmem:[#allocation2 + $0x30] sm:$0xff]
        %v803 = vld [vmem:[#allocation2 + $0x38] sm:$0xff]
        %v804 = vld [vmem:[#allocation2 + $0x48] sm:$0xff]
        %v805 = vld [vmem:[#allocation2 + $0x50] sm:$0xff]
        %v806 = vld [vmem:[#allocation2 + $0x60] sm:$0xff]
        %v807 = vld [vmem:[#allocation2 + $0x68] sm:$0xff]
        %v808 = vld [vmem:[#allocation2 + $0x78] sm:$0xff]
        %v809 = vld [vmem:[#allocation2 + $0x80] sm:$0xff]
        %v810 = vld [vmem:[#allocation2 + $0x90] sm:$0xff]
        %v811 = vld [vmem:[#allocation2 + $0x98] sm:$0xff]
        %v812 = vld [vmem:[#allocation2 + $0xa8] sm:$0xff]
        %v813 = vld [vmem:[#allocation2 + $0xb0] sm:$0xff]
        %v814 = vld [vmem:[#allocation2 + $0xc0] sm:$0xff]
        %v815 = vld [vmem:[#allocation2 + $0xc8] sm:$0xff]
        %v816 = vld [vmem:[#allocation2 + $0xd8] sm:$0xff]
        %v817 = vld [vmem:[#allocation2 + $0xe0] sm:$0xff]
        %v818 = vld [vmem:[#allocation2 + $0xf0] sm:$0xff]
        %v819 = vld [vmem:[#allocation2 + $0xf8] sm:$0xff]
        %v820 = vld [vmem:[#allocation2 + $0x108] sm:$0xff]
        %v821 = vld [vmem:[#allocation2 + $0x110] sm:$0xff]
        %v822 = vld [vmem:[#allocation2 + $0x120] sm:$0xff]
        %v823 = vld [vmem:[#allocation2 + $0x128] sm:$0xff]
        %v824 = vld [vmem:[#allocation2 + $0x138] sm:$0xff]
        %v825 = vld [vmem:[#allocation2 + $0x140] sm:$0xff]
        %v826 = vld [vmem:[#allocation2 + $0x150] sm:$0xff]
        %v827 = vld [vmem:[#allocation2 + $0x158] sm:$0xff]
        %v828 = vld [vmem:[#allocation2 + $0x168] sm:$0xff]
        %v829 = vld [vmem:[#allocation2 + $0x170] sm:$0xff]
        %v830 = vld [vmem:[#allocation2 + $0x1] sm:$0xff]
        %v831 = vld [vmem:[#allocation2 + $0x9] sm:$0xff]
        %v832 = vld [vmem:[#allocation2 + $0x19] sm:$0xff]
        %v833 = vld [vmem:[#allocation2 + $0x21] sm:$0xff]
        %v834 = vld [vmem:[#allocation2 + $0x31] sm:$0xff]
        %v835 = vld [vmem:[#allocation2 + $0x39] sm:$0xff]
        %v836 = vld [vmem:[#allocation2 + $0x49] sm:$0xff]
        %v837 = vld [vmem:[#allocation2 + $0x51] sm:$0xff]
        %v838 = vld [vmem:[#allocation2 + $0x61] sm:$0xff]
        %v839 = vld [vmem:[#allocation2 + $0x69] sm:$0xff]
        %v840 = vld [vmem:[#allocation2 + $0x79] sm:$0xff]
        %v841 = vld [vmem:[#allocation2 + $0x81] sm:$0xff]
        %v842 = vld [vmem:[#allocation2 + $0x91] sm:$0xff]
        %v843 = vld [vmem:[#allocation2 + $0x99] sm:$0xff]
        %v844 = vld [vmem:[#allocation2 + $0xa9] sm:$0xff]
        %v845 = vld [vmem:[#allocation2 + $0xb1] sm:$0xff]
        %v846 = vld [vmem:[#allocation2 + $0xc1] sm:$0xff]
        %v847 = vld [vmem:[#allocation2 + $0xc9] sm:$0xff]
        %v848 = vld [vmem:[#allocation2 + $0xd9] sm:$0xff]
        %v849 = vld [vmem:[#allocation2 + $0xe1] sm:$0xff]
        %v850 = vld [vmem:[#allocation2 + $0xf1] sm:$0xff]
        %v851 = vld [vmem:[#allocation2 + $0xf9] sm:$0xff]
        %v852 = vld [vmem:[#allocation2 + $0x109] sm:$0xff]
        %v853 = vld [vmem:[#allocation2 + $0x111] sm:$0xff]
        %v854 = vld [vmem:[#allocation2 + $0x121] sm:$0xff]
        %v855 = vld [vmem:[#allocation2 + $0x129] sm:$0xff]
        %v856 = vld [vmem:[#allocation2 + $0x139] sm:$0xff]
        %v857 = vld [vmem:[#allocation2 + $0x141] sm:$0xff]
        %v858 = vld [vmem:[#allocation2 + $0x151] sm:$0xff]
        %v859 = vld [vmem:[#allocation2 + $0x159] sm:$0xff]
        %v860 = vld [vmem:[#allocation2 + $0x169] sm:$0xff]
        %v861 = vld [vmem:[#allocation2 + $0x171] sm:$0xff]
        %v862 = vld [vmem:[#allocation2 + $0x2] sm:$0xff]
        %v863 = vld [vmem:[#allocation2 + $0xa] sm:$0xff]
        %v864 = vld [vmem:[#allocation2 + $0x1a] sm:$0xff]
        %v865 = vld [vmem:[#allocation2 + $0x22] sm:$0xff]
        %v866 = vld [vmem:[#allocation2 + $0x32] sm:$0xff]
        %v867 = vld [vmem:[#allocation2 + $0x3a] sm:$0xff]
        %v868 = vld [vmem:[#allocation2 + $0x4a] sm:$0xff]
        %v869 = vld [vmem:[#allocation2 + $0x52] sm:$0xff]
        %v870 = vld [vmem:[#allocation2 + $0x62] sm:$0xff]
        %v871 = vld [vmem:[#allocation2 + $0x6a] sm:$0xff]
        %v872 = vld [vmem:[#allocation2 + $0x7a] sm:$0xff]
        %v873 = vld [vmem:[#allocation2 + $0x82] sm:$0xff]
        %v874 = vld [vmem:[#allocation2 + $0x92] sm:$0xff]
        %v875 = vld [vmem:[#allocation2 + $0x9a] sm:$0xff]
        %v876 = vld [vmem:[#allocation2 + $0xaa] sm:$0xff]
        %v877 = vld [vmem:[#allocation2 + $0xb2] sm:$0xff]
        %v878 = vld [vmem:[#allocation2 + $0xc2] sm:$0xff]
        %v879 = vld [vmem:[#allocation2 + $0xca] sm:$0xff]
        %v880 = vld [vmem:[#allocation2 + $0xda] sm:$0xff]
        %v881 = vld [vmem:[#allocation2 + $0xe2] sm:$0xff]
        %v882 = vld [vmem:[#allocation2 + $0xf2] sm:$0xff]
        %v883 = vld [vmem:[#allocation2 + $0xfa] sm:$0xff]
        %v884 = vld [vmem:[#allocation2 + $0x10a] sm:$0xff]
        %v885 = vld [vmem:[#allocation2 + $0x112] sm:$0xff]
        %v886 = vld [vmem:[#allocation2 + $0x122] sm:$0xff]
        %v887 = vld [vmem:[#allocation2 + $0x12a] sm:$0xff]
        %v888 = vld [vmem:[#allocation2 + $0x13a] sm:$0xff]
        %v889 = vld [vmem:[#allocation2 + $0x142] sm:$0xff]
        %v890 = vld [vmem:[#allocation2 + $0x152] sm:$0xff]
        %v891 = vld [vmem:[#allocation2 + $0x15a] sm:$0xff]
        %v892 = vld [vmem:[#allocation2 + $0x16a] sm:$0xff]
        %v893 = vld [vmem:[#allocation2 + $0x172] sm:$0xff]
        %926 = vrot.lane.b32.xlu0 %v830, 2
        %v927 = vpop.permute.xlu0 %926
        %928 = vrot.lane.b32.xlu0 %v831, 2
        %v929 = vpop.permute.xlu0 %928
        %930 = vrot.lane.b32.xlu0 %v832, 2
        %v931 = vpop.permute.xlu0 %930
        %932 = vrot.lane.b32.xlu0 %v833, 2
        %v933 = vpop.permute.xlu0 %932
        %934 = vrot.lane.b32.xlu0 %v834, 2
        %v935 = vpop.permute.xlu0 %934
        %936 = vrot.lane.b32.xlu0 %v835, 2
        %v937 = vpop.permute.xlu0 %936
        %938 = vrot.lane.b32.xlu0 %v836, 2
        %v939 = vpop.permute.xlu0 %938
        %940 = vrot.lane.b32.xlu0 %v837, 2
        %v941 = vpop.permute.xlu0 %940
        %942 = vrot.lane.b32.xlu0 %v838, 2
        %v943 = vpop.permute.xlu0 %942
        %944 = vrot.lane.b32.xlu0 %v839, 2
        %v945 = vpop.permute.xlu0 %944
        %946 = vrot.lane.b32.xlu0 %v840, 2
        %v947 = vpop.permute.xlu0 %946
        %948 = vrot.lane.b32.xlu0 %v841, 2
        %v949 = vpop.permute.xlu0 %948
        %950 = vrot.lane.b32.xlu0 %v842, 2
        %v951 = vpop.permute.xlu0 %950
        %952 = vrot.lane.b32.xlu0 %v843, 2
        %v953 = vpop.permute.xlu0 %952
        %954 = vrot.lane.b32.xlu0 %v844, 2
        %v955 = vpop.permute.xlu0 %954
        %956 = vrot.lane.b32.xlu0 %v845, 2
        %v957 = vpop.permute.xlu0 %956
        %958 = vrot.lane.b32.xlu0 %v846, 2
        %v959 = vpop.permute.xlu0 %958
        %960 = vrot.lane.b32.xlu0 %v847, 2
        %v961 = vpop.permute.xlu0 %960
        %962 = vrot.lane.b32.xlu0 %v848, 2
        %v963 = vpop.permute.xlu0 %962
        %964 = vrot.lane.b32.xlu0 %v849, 2
        %v965 = vpop.permute.xlu0 %964
        %966 = vrot.lane.b32.xlu0 %v850, 2
        %v967 = vpop.permute.xlu0 %966
        %968 = vrot.lane.b32.xlu0 %v851, 2
        %v969 = vpop.permute.xlu0 %968
        %970 = vrot.lane.b32.xlu0 %v852, 2
        %v971 = vpop.permute.xlu0 %970
        %972 = vrot.lane.b32.xlu0 %v853, 2
        %v973 = vpop.permute.xlu0 %972
        %974 = vrot.lane.b32.xlu0 %v854, 2
        %v975 = vpop.permute.xlu0 %974
        %976 = vrot.lane.b32.xlu0 %v855, 2
        %v977 = vpop.permute.xlu0 %976
        %978 = vrot.lane.b32.xlu0 %v856, 2
        %v979 = vpop.permute.xlu0 %978
        %980 = vrot.lane.b32.xlu0 %v857, 2
        %v981 = vpop.permute.xlu0 %980
        %982 = vrot.lane.b32.xlu0 %v858, 2
        %v983 = vpop.permute.xlu0 %982
        %984 = vrot.lane.b32.xlu0 %v859, 2
        %v985 = vpop.permute.xlu0 %984
        %986 = vrot.lane.b32.xlu0 %v860, 2
        %v987 = vpop.permute.xlu0 %986
        %988 = vrot.lane.b32.xlu0 %v861, 2
        %v989 = vpop.permute.xlu0 %988
        %1054 = vrot.lane.b32.xlu0 %v862, 4
        %v1055 = vpop.permute.xlu0 %1054
        %1056 = vrot.lane.b32.xlu0 %v863, 4
        %v1057 = vpop.permute.xlu0 %1056
        %1058 = vrot.lane.b32.xlu0 %v864, 4
        %v1059 = vpop.permute.xlu0 %1058
        %1060 = vrot.lane.b32.xlu0 %v865, 4
        %v1061 = vpop.permute.xlu0 %1060
        %1062 = vrot.lane.b32.xlu0 %v866, 4
        %v1063 = vpop.permute.xlu0 %1062
        %1064 = vrot.lane.b32.xlu0 %v867, 4
        %v1065 = vpop.permute.xlu0 %1064
        %1066 = vrot.lane.b32.xlu0 %v868, 4
        %v1067 = vpop.permute.xlu0 %1066
        %1068 = vrot.lane.b32.xlu0 %v869, 4
        %v1069 = vpop.permute.xlu0 %1068
        %1070 = vrot.lane.b32.xlu0 %v870, 4
        %v1071 = vpop.permute.xlu0 %1070
        %1072 = vrot.lane.b32.xlu0 %v871, 4
        %v1073 = vpop.permute.xlu0 %1072
        %1074 = vrot.lane.b32.xlu0 %v872, 4
        %v1075 = vpop.permute.xlu0 %1074
        %1076 = vrot.lane.b32.xlu0 %v873, 4
        %v1077 = vpop.permute.xlu0 %1076
        %1078 = vrot.lane.b32.xlu0 %v874, 4
        %v1079 = vpop.permute.xlu0 %1078
        %1080 = vrot.lane.b32.xlu0 %v875, 4
        %v1081 = vpop.permute.xlu0 %1080
        %1082 = vrot.lane.b32.xlu0 %v876, 4
        %v1083 = vpop.permute.xlu0 %1082
        %1084 = vrot.lane.b32.xlu0 %v877, 4
        %v1085 = vpop.permute.xlu0 %1084
        %1086 = vrot.lane.b32.xlu0 %v878, 4
        %v1087 = vpop.permute.xlu0 %1086
        %1088 = vrot.lane.b32.xlu0 %v879, 4
        %v1089 = vpop.permute.xlu0 %1088
        %1090 = vrot.lane.b32.xlu0 %v880, 4
        %v1091 = vpop.permute.xlu0 %1090
        %1092 = vrot.lane.b32.xlu0 %v881, 4
        %v1093 = vpop.permute.xlu0 %1092
        %1094 = vrot.lane.b32.xlu0 %v882, 4
        %v1095 = vpop.permute.xlu0 %1094
        %1096 = vrot.lane.b32.xlu0 %v883, 4
        %v1097 = vpop.permute.xlu0 %1096
        %1098 = vrot.lane.b32.xlu0 %v884, 4
        %v1099 = vpop.permute.xlu0 %1098
        %1100 = vrot.lane.b32.xlu0 %v885, 4
        %v1101 = vpop.permute.xlu0 %1100
        %1102 = vrot.lane.b32.xlu0 %v886, 4
        %v1103 = vpop.permute.xlu0 %1102
        %1104 = vrot.lane.b32.xlu0 %v887, 4
        %v1105 = vpop.permute.xlu0 %1104
        %1106 = vrot.lane.b32.xlu0 %v888, 4
        %v1107 = vpop.permute.xlu0 %1106
        %1108 = vrot.lane.b32.xlu0 %v889, 4
        %v1109 = vpop.permute.xlu0 %1108
        %1110 = vrot.lane.b32.xlu0 %v890, 4
        %v1111 = vpop.permute.xlu0 %1110
        %1112 = vrot.lane.b32.xlu0 %v891, 4
        %v1113 = vpop.permute.xlu0 %1112
        %1114 = vrot.lane.b32.xlu0 %v892, 4
        %v1115 = vpop.permute.xlu0 %1114
        %1116 = vrot.lane.b32.xlu0 %v893, 4
        %v1117 = vpop.permute.xlu0 %1116
        %v1150 = vsel %vm677, %v798, %v927
        %v1151 = vsel %vm677, %v799, %v929
        %v1152 = vsel %vm677, %v800, %v931
        %v1153 = vsel %vm677, %v801, %v933
        %v1154 = vsel %vm677, %v802, %v935
        %v1155 = vsel %vm677, %v803, %v937
        %v1156 = vsel %vm677, %v804, %v939
        %v1157 = vsel %vm677, %v805, %v941
        %v1158 = vsel %vm677, %v806, %v943
        %v1159 = vsel %vm677, %v807, %v945
        %v1160 = vsel %vm677, %v808, %v947
        %v1161 = vsel %vm677, %v809, %v949
        %v1162 = vsel %vm677, %v810, %v951
        %v1163 = vsel %vm677, %v811, %v953
        %v1164 = vsel %vm677, %v812, %v955
        %v1165 = vsel %vm677, %v813, %v957
        %v1166 = vsel %vm677, %v814, %v959
        %v1167 = vsel %vm677, %v815, %v961
        %v1168 = vsel %vm677, %v816, %v963
        %v1169 = vsel %vm677, %v817, %v965
        %v1170 = vsel %vm677, %v818, %v967
        %v1171 = vsel %vm677, %v819, %v969
        %v1172 = vsel %vm677, %v820, %v971
        %v1173 = vsel %vm677, %v821, %v973
        %v1174 = vsel %vm677, %v822, %v975
        %v1175 = vsel %vm677, %v823, %v977
        %v1176 = vsel %vm677, %v824, %v979
        %v1177 = vsel %vm677, %v825, %v981
        %v1178 = vsel %vm677, %v826, %v983
        %v1179 = vsel %vm677, %v827, %v985
        %v1180 = vsel %vm677, %v828, %v987
        %v1181 = vsel %vm677, %v829, %v989
        %vm1182 = vcmask 31744
        %v1183 = vsel %vm1182, %v1150, %v1055
        %v1184 = vsel %vm1182, %v1151, %v1057
        %v1185 = vsel %vm1182, %v1152, %v1059
        %v1186 = vsel %vm1182, %v1153, %v1061
        %v1187 = vsel %vm1182, %v1154, %v1063
        %v1188 = vsel %vm1182, %v1155, %v1065
        %v1189 = vsel %vm1182, %v1156, %v1067
        %v1190 = vsel %vm1182, %v1157, %v1069
        %v1191 = vsel %vm1182, %v1158, %v1071
        %v1192 = vsel %vm1182, %v1159, %v1073
        %v1193 = vsel %vm1182, %v1160, %v1075
        %v1194 = vsel %vm1182, %v1161, %v1077
        %v1195 = vsel %vm1182, %v1162, %v1079
        %v1196 = vsel %vm1182, %v1163, %v1081
        %v1197 = vsel %vm1182, %v1164, %v1083
        %v1198 = vsel %vm1182, %v1165, %v1085
        %v1199 = vsel %vm1182, %v1166, %v1087
        %v1200 = vsel %vm1182, %v1167, %v1089
        %v1201 = vsel %vm1182, %v1168, %v1091
        %v1202 = vsel %vm1182, %v1169, %v1093
        %v1203 = vsel %vm1182, %v1170, %v1095
        %v1204 = vsel %vm1182, %v1171, %v1097
        %v1205 = vsel %vm1182, %v1172, %v1099
        %v1206 = vsel %vm1182, %v1173, %v1101
        %v1207 = vsel %vm1182, %v1174, %v1103
        %v1208 = vsel %vm1182, %v1175, %v1105
        %v1209 = vsel %vm1182, %v1176, %v1107
        %v1210 = vsel %vm1182, %v1177, %v1109
        %v1211 = vsel %vm1182, %v1178, %v1111
        %v1212 = vsel %vm1182, %v1179, %v1113
        %v1213 = vsel %vm1182, %v1180, %v1115
        %v1214 = vsel %vm1182, %v1181, %v1117
        %v1215 = vld [vmem:[#allocation3] sm:$0xff]
        %v1216 = vld [vmem:[#allocation3 + $0x8] sm:$0xff]
        %v1217 = vld [vmem:[#allocation3 + $0x10] sm:$0xff]
        %v1218 = vld [vmem:[#allocation3 + $0x18] sm:$0xff]
        %v1219 = vld [vmem:[#allocation3 + $0x20] sm:$0xff]
        %v1220 = vld [vmem:[#allocation3 + $0x28] sm:$0xff]
        %v1221 = vld [vmem:[#allocation3 + $0x30] sm:$0xff]
        %v1222 = vld [vmem:[#allocation3 + $0x38] sm:$0xff]
        %v1223 = vld [vmem:[#allocation3 + $0x40] sm:$0xff]
        %v1224 = vld [vmem:[#allocation3 + $0x48] sm:$0xff]
        %v1225 = vld [vmem:[#allocation3 + $0x50] sm:$0xff]
        %v1226 = vld [vmem:[#allocation3 + $0x58] sm:$0xff]
        %v1227 = vld [vmem:[#allocation3 + $0x60] sm:$0xff]
        %v1228 = vld [vmem:[#allocation3 + $0x68] sm:$0xff]
        %v1229 = vld [vmem:[#allocation3 + $0x70] sm:$0xff]
        %v1230 = vld [vmem:[#allocation3 + $0x78] sm:$0xff]
        %v1231 = vld [vmem:[#allocation3 + $0x80] sm:$0xff]
        %v1232 = vld [vmem:[#allocation3 + $0x88] sm:$0xff]
        %v1233 = vld [vmem:[#allocation3 + $0x90] sm:$0xff]
        %v1234 = vld [vmem:[#allocation3 + $0x98] sm:$0xff]
        %v1235 = vld [vmem:[#allocation3 + $0xa0] sm:$0xff]
        %v1236 = vld [vmem:[#allocation3 + $0xa8] sm:$0xff]
        %v1237 = vld [vmem:[#allocation3 + $0xb0] sm:$0xff]
        %v1238 = vld [vmem:[#allocation3 + $0xb8] sm:$0xff]
        %v1239 = vld [vmem:[#allocation3 + $0xc0] sm:$0xff]
        %v1240 = vld [vmem:[#allocation3 + $0xc8] sm:$0xff]
        %v1241 = vld [vmem:[#allocation3 + $0xd0] sm:$0xff]
        %v1242 = vld [vmem:[#allocation3 + $0xd8] sm:$0xff]
        %v1243 = vld [vmem:[#allocation3 + $0xe0] sm:$0xff]
        %v1244 = vld [vmem:[#allocation3 + $0xe8] sm:$0xff]
        %v1245 = vld [vmem:[#allocation3 + $0xf0] sm:$0xff]
        %v1246 = vld [vmem:[#allocation3 + $0xf8] sm:$0xff]
        %v1247 = vpack.c.bf16 %v1184, %v1183
        %v1248 = vpack.c.bf16 %v1186, %v1185
        %v1249 = vpack.c.bf16 %v1188, %v1187
        %v1250 = vpack.c.bf16 %v1190, %v1189
        %v1251 = vpack.c.bf16 %v1192, %v1191
        %v1252 = vpack.c.bf16 %v1194, %v1193
        %v1253 = vpack.c.bf16 %v1196, %v1195
        %v1254 = vpack.c.bf16 %v1198, %v1197
        %v1255 = vpack.c.bf16 %v1200, %v1199
        %v1256 = vpack.c.bf16 %v1202, %v1201
        %v1257 = vpack.c.bf16 %v1204, %v1203
        %v1258 = vpack.c.bf16 %v1206, %v1205
        %v1259 = vpack.c.bf16 %v1208, %v1207
        %v1260 = vpack.c.bf16 %v1210, %v1209
        %v1261 = vpack.c.bf16 %v1212, %v1211
        %v1262 = vpack.c.bf16 %v1214, %v1213
        %v1263 = vld [vmem:[#allocation10] sm:$0x7]
        %vm1264 = vcmask 48128
        %v1266 = vsel %vm1264, %v1247, 0
        %v1269 = vsel %vm1264, %v1248, 0
        %v1272 = vsel %vm1264, %v1249, 0
        %v1275 = vsel %vm1264, %v1250, 0
        %v1278 = vsel %vm1264, %v1251, 0
        %v1281 = vsel %vm1264, %v1252, 0
        %v1284 = vsel %vm1264, %v1253, 0
        %v1287 = vsel %vm1264, %v1254, 0
        %v1290 = vsel %vm1264, %v1255, 0
        %v1293 = vsel %vm1264, %v1256, 0
        %v1296 = vsel %vm1264, %v1257, 0
        %v1299 = vsel %vm1264, %v1258, 0
        %v1302 = vsel %vm1264, %v1259, 0
        %v1305 = vsel %vm1264, %v1260, 0
        %v1308 = vsel %vm1264, %v1261, 0
        %v1311 = vsel %vm1264, %v1262, 0
        %vm1313 = vcmask 1042432
        %v1315 = vsel %vm1313, %v1263, 0
        %1317 = vmatprep.subr.bf16.mxu0 0
        %1318 = vmatpush1.bf16.msra.mxu0 %v1315
        %1319 = vmatprep.subr.bf16.mxu0 0
        %1320 = vmatpush1.bf16.msra.mxu0 0
        %1321 = vmatprep.subr.bf16.mxu0 0
        %1322 = vmatpush1.bf16.msra.mxu0 0
        %1323 = vmatprep.subr.bf16.mxu0 0
        %1324 = vmatpush1.bf16.msra.mxu0 0
        %1325 = vmatprep.subr.bf16.mxu0 0
        %1326 = vmatpush1.bf16.msra.mxu0 0
        %1327 = vmatprep.subr.bf16.mxu0 0
        %1328 = vmatpush1.bf16.msra.mxu0 0
        %1329 = vmatprep.subr.bf16.mxu0 0
        %1330 = vmatpush1.bf16.msra.mxu0 0
        %1331 = vmatprep.subr.bf16.mxu0 0
        %1332 = vmatpush1.bf16.msra.mxu0 0
        %1333 = vmatprep.subr.bf16.mxu0 0
        %1334 = vmatpush1.bf16.msra.mxu0 0
        %1335 = vmatprep.subr.bf16.mxu0 0
        %1336 = vmatpush1.bf16.msra.mxu0 0
        %1337 = vmatprep.subr.bf16.mxu0 0
        %1338 = vmatpush1.bf16.msra.mxu0 0
        %1339 = vmatprep.subr.bf16.mxu0 0
        %1340 = vmatpush1.bf16.msra.mxu0 0
        %1341 = vmatprep.subr.bf16.mxu0 0
        %1342 = vmatpush1.bf16.msra.mxu0 0
        %1343 = vmatprep.subr.bf16.mxu0 0
        %1344 = vmatpush1.bf16.msra.mxu0 0
        %1345 = vmatprep.subr.bf16.mxu0 0
        %1346 = vmatpush1.bf16.msra.mxu0 0
        %1347 = vmatprep.subr.bf16.mxu0 0
        %1348 = vmatpush1.bf16.msra.mxu0 0
        %1349 = vmatprep.mubr.bf16.mxu0 0
        %1350 = vmatmul.mubr.bf16.gmra.mrb[0].mxu0 %v1266
        %v1351 = vpop.f32.mrb[0].mxu0
        %v1352 = vadd.f32 0.0, %v1351
        %v1353 = vpop.f32.mrb[0].mxu0
        %v1354 = vpop.f32.mrb[0].mxu0
        %v1355 = vadd.f32 0.0, %v1354
        %v1356 = vpop.f32.mrb[0].mxu0
        %1357 = vmatprep.mubr.bf16.mxu0 0
        %1358 = vmatmul.mubr.bf16.gmra.mrb[0].mxu0 %v1269
        %v1359 = vpop.f32.mrb[0].mxu0
        %v1360 = vadd.f32 0.0, %v1359
        %v1361 = vpop.f32.mrb[0].mxu0
        %v1362 = vpop.f32.mrb[0].mxu0
        %v1363 = vadd.f32 0.0, %v1362
        %v1364 = vpop.f32.mrb[0].mxu0
        %1365 = vmatprep.mubr.bf16.mxu0 0
        %1366 = vmatmul.mubr.bf16.gmra.mrb[0].mxu0 %v1272
        %v1367 = vpop.f32.mrb[0].mxu0
        %v1368 = vadd.f32 0.0, %v1367
        %v1369 = vpop.f32.mrb[0].mxu0
        %v1370 = vpop.f32.mrb[0].mxu0
        %v1371 = vadd.f32 0.0, %v1370
        %v1372 = vpop.f32.mrb[0].mxu0
        %1373 = vmatprep.mubr.bf16.mxu0 0
        %1374 = vmatmul.mubr.bf16.gmra.mrb[0].mxu0 %v1275
        %v1375 = vpop.f32.mrb[0].mxu0
        %v1376 = vadd.f32 0.0, %v1375
        %v1377 = vpop.f32.mrb[0].mxu0
        %v1378 = vpop.f32.mrb[0].mxu0
        %v1379 = vadd.f32 0.0, %v1378
        %v1380 = vpop.f32.mrb[0].mxu0
        %1381 = vmatprep.mubr.bf16.mxu0 0
        %1382 = vmatmul.mubr.bf16.gmra.mrb[0].mxu0 %v1278
        %v1383 = vpop.f32.mrb[0].mxu0
        %v1384 = vadd.f32 0.0, %v1383
        %v1385 = vpop.f32.mrb[0].mxu0
        %v1386 = vpop.f32.mrb[0].mxu0
        %v1387 = vadd.f32 0.0, %v1386
        %v1388 = vpop.f32.mrb[0].mxu0
        %1389 = vmatprep.mubr.bf16.mxu0 0
        %1390 = vmatmul.mubr.bf16.gmra.mrb[0].mxu0 %v1281
        %v1391 = vpop.f32.mrb[0].mxu0
        %v1392 = vadd.f32 0.0, %v1391
        %v1393 = vpop.f32.mrb[0].mxu0
        %v1394 = vpop.f32.mrb[0].mxu0
        %v1395 = vadd.f32 0.0, %v1394
        %v1396 = vpop.f32.mrb[0].mxu0
        %1397 = vmatprep.mubr.bf16.mxu0 0
        %1398 = vmatmul.mubr.bf16.gmra.mrb[0].mxu0 %v1284
        %v1399 = vpop.f32.mrb[0].mxu0
        %v1400 = vadd.f32 0.0, %v1399
        %v1401 = vpop.f32.mrb[0].mxu0
        %v1402 = vpop.f32.mrb[0].mxu0
        %v1403 = vadd.f32 0.0, %v1402
        %v1404 = vpop.f32.mrb[0].mxu0
        %1405 = vmatprep.mubr.bf16.mxu0 0
        %1406 = vmatmul.mubr.bf16.gmra.mrb[0].mxu0 %v1287
        %v1407 = vpop.f32.mrb[0].mxu0
        %v1408 = vadd.f32 0.0, %v1407
        %v1409 = vpop.f32.mrb[0].mxu0
        %v1410 = vpop.f32.mrb[0].mxu0
        %v1411 = vadd.f32 0.0, %v1410
        %v1412 = vpop.f32.mrb[0].mxu0
        %1413 = vmatprep.mubr.bf16.mxu0 0
        %1414 = vmatmul.mubr.bf16.gmra.mrb[0].mxu0 %v1290
        %v1415 = vpop.f32.mrb[0].mxu0
        %v1416 = vadd.f32 0.0, %v1415
        %v1417 = vpop.f32.mrb[0].mxu0
        %v1418 = vpop.f32.mrb[0].mxu0
        %v1419 = vadd.f32 0.0, %v1418
        %v1420 = vpop.f32.mrb[0].mxu0
        %1421 = vmatprep.mubr.bf16.mxu0 0
        %1422 = vmatmul.mubr.bf16.gmra.mrb[0].mxu0 %v1293
        %v1423 = vpop.f32.mrb[0].mxu0
        %v1424 = vadd.f32 0.0, %v1423
        %v1425 = vpop.f32.mrb[0].mxu0
        %v1426 = vpop.f32.mrb[0].mxu0
        %v1427 = vadd.f32 0.0, %v1426
        %v1428 = vpop.f32.mrb[0].mxu0
        %1429 = vmatprep.mubr.bf16.mxu0 0
        %1430 = vmatmul.mubr.bf16.gmra.mrb[0].mxu0 %v1296
        %v1431 = vpop.f32.mrb[0].mxu0
        %v1432 = vadd.f32 0.0, %v1431
        %v1433 = vpop.f32.mrb[0].mxu0
        %v1434 = vpop.f32.mrb[0].mxu0
        %v1435 = vadd.f32 0.0, %v1434
        %v1436 = vpop.f32.mrb[0].mxu0
        %1437 = vmatprep.mubr.bf16.mxu0 0
        %1438 = vmatmul.mubr.bf16.gmra.mrb[0].mxu0 %v1299
        %v1439 = vpop.f32.mrb[0].mxu0
        %v1440 = vadd.f32 0.0, %v1439
        %v1441 = vpop.f32.mrb[0].mxu0
        %v1442 = vpop.f32.mrb[0].mxu0
        %v1443 = vadd.f32 0.0, %v1442
        %v1444 = vpop.f32.mrb[0].mxu0
        %1445 = vmatprep.mubr.bf16.mxu0 0
        %1446 = vmatmul.mubr.bf16.gmra.mrb[0].mxu0 %v1302
        %v1447 = vpop.f32.mrb[0].mxu0
        %v1448 = vadd.f32 0.0, %v1447
        %v1449 = vpop.f32.mrb[0].mxu0
        %v1450 = vpop.f32.mrb[0].mxu0
        %v1451 = vadd.f32 0.0, %v1450
        %v1452 = vpop.f32.mrb[0].mxu0
        %1453 = vmatprep.mubr.bf16.mxu0 0
        %1454 = vmatmul.mubr.bf16.gmra.mrb[0].mxu0 %v1305
        %v1455 = vpop.f32.mrb[0].mxu0
        %v1456 = vadd.f32 0.0, %v1455
        %v1457 = vpop.f32.mrb[0].mxu0
        %v1458 = vpop.f32.mrb[0].mxu0
        %v1459 = vadd.f32 0.0, %v1458
        %v1460 = vpop.f32.mrb[0].mxu0
        %1461 = vmatprep.mubr.bf16.mxu0 0
        %1462 = vmatmul.mubr.bf16.gmra.mrb[0].mxu0 %v1308
        %v1463 = vpop.f32.mrb[0].mxu0
        %v1464 = vadd.f32 0.0, %v1463
        %v1465 = vpop.f32.mrb[0].mxu0
        %v1466 = vpop.f32.mrb[0].mxu0
        %v1467 = vadd.f32 0.0, %v1466
        %v1468 = vpop.f32.mrb[0].mxu0
        %1469 = vmatprep.mubr.bf16.mxu0 0
        %1470 = vmatmul.mubr.bf16.gmra.mrb[0].mxu0 %v1311
        %v1471 = vpop.f32.mrb[0].mxu0
        %v1472 = vadd.f32 0.0, %v1471
        %v1473 = vpop.f32.mrb[0].mxu0
        %v1474 = vpop.f32.mrb[0].mxu0
        %v1475 = vadd.f32 0.0, %v1474
        %v1476 = vpop.f32.mrb[0].mxu0
        %1477 = vdwg.mxu0
        %v1478 = vadd.f32 %v1215, %v1352
        %v1479 = vadd.f32 %v1216, %v1355
        %v1480 = vadd.f32 %v1217, %v1360
        %v1481 = vadd.f32 %v1218, %v1363
        %v1482 = vadd.f32 %v1219, %v1368
        %v1483 = vadd.f32 %v1220, %v1371
        %v1484 = vadd.f32 %v1221, %v1376
        %v1485 = vadd.f32 %v1222, %v1379
        %v1486 = vadd.f32 %v1223, %v1384
        %v1487 = vadd.f32 %v1224, %v1387
        %v1488 = vadd.f32 %v1225, %v1392
        %v1489 = vadd.f32 %v1226, %v1395
        %v1490 = vadd.f32 %v1227, %v1400
        %v1491 = vadd.f32 %v1228, %v1403
        %v1492 = vadd.f32 %v1229, %v1408
        %v1493 = vadd.f32 %v1230, %v1411
        %v1494 = vadd.f32 %v1231, %v1416
        %v1495 = vadd.f32 %v1232, %v1419
        %v1496 = vadd.f32 %v1233, %v1424
        %v1497 = vadd.f32 %v1234, %v1427
        %v1498 = vadd.f32 %v1235, %v1432
        %v1499 = vadd.f32 %v1236, %v1435
        %v1500 = vadd.f32 %v1237, %v1440
        %v1501 = vadd.f32 %v1238, %v1443
        %v1502 = vadd.f32 %v1239, %v1448
        %v1503 = vadd.f32 %v1240, %v1451
        %v1504 = vadd.f32 %v1241, %v1456
        %v1505 = vadd.f32 %v1242, %v1459
        %v1506 = vadd.f32 %v1243, %v1464
        %v1507 = vadd.f32 %v1244, %v1467
        %v1508 = vadd.f32 %v1245, %v1472
        %v1509 = vadd.f32 %v1246, %v1475
        %1510 = vst.msk [vmem:[#allocation3] sm:$0xff] %vm677, %v1478
        %1511 = vst.msk [vmem:[#allocation3 + $0x8] sm:$0xff] %vm677, %v1479
        %1512 = vst.msk [vmem:[#allocation3 + $0x10] sm:$0xff] %vm677, %v1480
        %1513 = vst.msk [vmem:[#allocation3 + $0x18] sm:$0xff] %vm677, %v1481
        %1514 = vst.msk [vmem:[#allocation3 + $0x20] sm:$0xff] %vm677, %v1482
        %1515 = vst.msk [vmem:[#allocation3 + $0x28] sm:$0xff] %vm677, %v1483
        %1516 = vst.msk [vmem:[#allocation3 + $0x30] sm:$0xff] %vm677, %v1484
        %1517 = vst.msk [vmem:[#allocation3 + $0x38] sm:$0xff] %vm677, %v1485
        %1518 = vst.msk [vmem:[#allocation3 + $0x40] sm:$0xff] %vm677, %v1486
        %1519 = vst.msk [vmem:[#allocation3 + $0x48] sm:$0xff] %vm677, %v1487
        %1520 = vst.msk [vmem:[#allocation3 + $0x50] sm:$0xff] %vm677, %v1488
        %1521 = vst.msk [vmem:[#allocation3 + $0x58] sm:$0xff] %vm677, %v1489
        %1522 = vst.msk [vmem:[#allocation3 + $0x60] sm:$0xff] %vm677, %v1490
        %1523 = vst.msk [vmem:[#allocation3 + $0x68] sm:$0xff] %vm677, %v1491
        %1524 = vst.msk [vmem:[#allocation3 + $0x70] sm:$0xff] %vm677, %v1492
        %1525 = vst.msk [vmem:[#allocation3 + $0x78] sm:$0xff] %vm677, %v1493
        %1526 = vst.msk [vmem:[#allocation3 + $0x80] sm:$0xff] %vm677, %v1494
        %1527 = vst.msk [vmem:[#allocation3 + $0x88] sm:$0xff] %vm677, %v1495
        %1528 = vst.msk [vmem:[#allocation3 + $0x90] sm:$0xff] %vm677, %v1496
        %1529 = vst.msk [vmem:[#allocation3 + $0x98] sm:$0xff] %vm677, %v1497
        %1530 = vst.msk [vmem:[#allocation3 + $0xa0] sm:$0xff] %vm677, %v1498
        %1531 = vst.msk [vmem:[#allocation3 + $0xa8] sm:$0xff] %vm677, %v1499
        %1532 = vst.msk [vmem:[#allocation3 + $0xb0] sm:$0xff] %vm677, %v1500
        %1533 = vst.msk [vmem:[#allocation3 + $0xb8] sm:$0xff] %vm677, %v1501
        %1534 = vst.msk [vmem:[#allocation3 + $0xc0] sm:$0xff] %vm677, %v1502
        %1535 = vst.msk [vmem:[#allocation3 + $0xc8] sm:$0xff] %vm677, %v1503
        %1536 = vst.msk [vmem:[#allocation3 + $0xd0] sm:$0xff] %vm677, %v1504
        %1537 = vst.msk [vmem:[#allocation3 + $0xd8] sm:$0xff] %vm677, %v1505
        %1538 = vst.msk [vmem:[#allocation3 + $0xe0] sm:$0xff] %vm677, %v1506
        %1539 = vst.msk [vmem:[#allocation3 + $0xe8] sm:$0xff] %vm677, %v1507
        %1540 = vst.msk [vmem:[#allocation3 + $0xf0] sm:$0xff] %vm677, %v1508
        %1541 = vst.msk [vmem:[#allocation3 + $0xf8] sm:$0xff] %vm677, %v1509
        %v1542 = vld [vmem:[%s733] sm:$0xff]
        %v1543 = vld [vmem:[%s733 + $0x8] sm:$0xff]
        %v1544 = vld [vmem:[%s733 + $0x18] sm:$0xff]
        %v1545 = vld [vmem:[%s733 + $0x20] sm:$0xff]
        %v1546 = vld [vmem:[%s733 + $0x30] sm:$0xff]
        %v1547 = vld [vmem:[%s733 + $0x38] sm:$0xff]
        %v1548 = vld [vmem:[%s733 + $0x48] sm:$0xff]
        %v1549 = vld [vmem:[%s733 + $0x50] sm:$0xff]
        %v1550 = vld [vmem:[%s733 + $0x60] sm:$0xff]
        %v1551 = vld [vmem:[%s733 + $0x68] sm:$0xff]
        %v1552 = vld [vmem:[%s733 + $0x78] sm:$0xff]
        %v1553 = vld [vmem:[%s733 + $0x80] sm:$0xff]
        %v1554 = vld [vmem:[%s733 + $0x90] sm:$0xff]
        %v1555 = vld [vmem:[%s733 + $0x98] sm:$0xff]
        %v1556 = vld [vmem:[%s733 + $0xa8] sm:$0xff]
        %v1557 = vld [vmem:[%s733 + $0xb0] sm:$0xff]
        %v1558 = vld [vmem:[%s733 + $0xc0] sm:$0xff]
        %v1559 = vld [vmem:[%s733 + $0xc8] sm:$0xff]
        %v1560 = vld [vmem:[%s733 + $0xd8] sm:$0xff]
        %v1561 = vld [vmem:[%s733 + $0xe0] sm:$0xff]
        %v1562 = vld [vmem:[%s733 + $0xf0] sm:$0xff]
        %v1563 = vld [vmem:[%s733 + $0xf8] sm:$0xff]
        %v1564 = vld [vmem:[%s733 + $0x108] sm:$0xff]
        %v1565 = vld [vmem:[%s733 + $0x110] sm:$0xff]
        %v1566 = vld [vmem:[%s733 + $0x120] sm:$0xff]
        %v1567 = vld [vmem:[%s733 + $0x128] sm:$0xff]
        %v1568 = vld [vmem:[%s733 + $0x138] sm:$0xff]
        %v1569 = vld [vmem:[%s733 + $0x140] sm:$0xff]
        %v1570 = vld [vmem:[%s733 + $0x150] sm:$0xff]
        %v1571 = vld [vmem:[%s733 + $0x158] sm:$0xff]
        %v1572 = vld [vmem:[%s733 + $0x168] sm:$0xff]
        %v1573 = vld [vmem:[%s733 + $0x170] sm:$0xff]
        %v1574 = vld [vmem:[%s733 + $0x1] sm:$0xff]
        %v1575 = vld [vmem:[%s733 + $0x9] sm:$0xff]
        %v1576 = vld [vmem:[%s733 + $0x19] sm:$0xff]
        %v1577 = vld [vmem:[%s733 + $0x21] sm:$0xff]
        %v1578 = vld [vmem:[%s733 + $0x31] sm:$0xff]
        %v1579 = vld [vmem:[%s733 + $0x39] sm:$0xff]
        %v1580 = vld [vmem:[%s733 + $0x49] sm:$0xff]
        %v1581 = vld [vmem:[%s733 + $0x51] sm:$0xff]
        %v1582 = vld [vmem:[%s733 + $0x61] sm:$0xff]
        %v1583 = vld [vmem:[%s733 + $0x69] sm:$0xff]
        %v1584 = vld [vmem:[%s733 + $0x79] sm:$0xff]
        %v1585 = vld [vmem:[%s733 + $0x81] sm:$0xff]
        %v1586 = vld [vmem:[%s733 + $0x91] sm:$0xff]
        %v1587 = vld [vmem:[%s733 + $0x99] sm:$0xff]
        %v1588 = vld [vmem:[%s733 + $0xa9] sm:$0xff]
        %v1589 = vld [vmem:[%s733 + $0xb1] sm:$0xff]
        %v1590 = vld [vmem:[%s733 + $0xc1] sm:$0xff]
        %v1591 = vld [vmem:[%s733 + $0xc9] sm:$0xff]
        %v1592 = vld [vmem:[%s733 + $0xd9] sm:$0xff]
        %v1593 = vld [vmem:[%s733 + $0xe1] sm:$0xff]
        %v1594 = vld [vmem:[%s733 + $0xf1] sm:$0xff]
        %v1595 = vld [vmem:[%s733 + $0xf9] sm:$0xff]
        %v1596 = vld [vmem:[%s733 + $0x109] sm:$0xff]
        %v1597 = vld [vmem:[%s733 + $0x111] sm:$0xff]
        %v1598 = vld [vmem:[%s733 + $0x121] sm:$0xff]
        %v1599 = vld [vmem:[%s733 + $0x129] sm:$0xff]
        %v1600 = vld [vmem:[%s733 + $0x139] sm:$0xff]
        %v1601 = vld [vmem:[%s733 + $0x141] sm:$0xff]
        %v1602 = vld [vmem:[%s733 + $0x151] sm:$0xff]
        %v1603 = vld [vmem:[%s733 + $0x159] sm:$0xff]
        %v1604 = vld [vmem:[%s733 + $0x169] sm:$0xff]
        %v1605 = vld [vmem:[%s733 + $0x171] sm:$0xff]
        %v1606 = vld [vmem:[%s733 + $0x2] sm:$0xff]
        %v1607 = vld [vmem:[%s733 + $0xa] sm:$0xff]
        %v1608 = vld [vmem:[%s733 + $0x1a] sm:$0xff]
        %v1609 = vld [vmem:[%s733 + $0x22] sm:$0xff]
        %v1610 = vld [vmem:[%s733 + $0x32] sm:$0xff]
        %v1611 = vld [vmem:[%s733 + $0x3a] sm:$0xff]
        %v1612 = vld [vmem:[%s733 + $0x4a] sm:$0xff]
        %v1613 = vld [vmem:[%s733 + $0x52] sm:$0xff]
        %v1614 = vld [vmem:[%s733 + $0x62] sm:$0xff]
        %v1615 = vld [vmem:[%s733 + $0x6a] sm:$0xff]
        %v1616 = vld [vmem:[%s733 + $0x7a] sm:$0xff]
        %v1617 = vld [vmem:[%s733 + $0x82] sm:$0xff]
        %v1618 = vld [vmem:[%s733 + $0x92] sm:$0xff]
        %v1619 = vld [vmem:[%s733 + $0x9a] sm:$0xff]
        %v1620 = vld [vmem:[%s733 + $0xaa] sm:$0xff]
        %v1621 = vld [vmem:[%s733 + $0xb2] sm:$0xff]
        %v1622 = vld [vmem:[%s733 + $0xc2] sm:$0xff]
        %v1623 = vld [vmem:[%s733 + $0xca] sm:$0xff]
        %v1624 = vld [vmem:[%s733 + $0xda] sm:$0xff]
        %v1625 = vld [vmem:[%s733 + $0xe2] sm:$0xff]
        %v1626 = vld [vmem:[%s733 + $0xf2] sm:$0xff]
        %v1627 = vld [vmem:[%s733 + $0xfa] sm:$0xff]
        %v1628 = vld [vmem:[%s733 + $0x10a] sm:$0xff]
        %v1629 = vld [vmem:[%s733 + $0x112] sm:$0xff]
        %v1630 = vld [vmem:[%s733 + $0x122] sm:$0xff]
        %v1631 = vld [vmem:[%s733 + $0x12a] sm:$0xff]
        %v1632 = vld [vmem:[%s733 + $0x13a] sm:$0xff]
        %v1633 = vld [vmem:[%s733 + $0x142] sm:$0xff]
        %v1634 = vld [vmem:[%s733 + $0x152] sm:$0xff]
        %v1635 = vld [vmem:[%s733 + $0x15a] sm:$0xff]
        %v1636 = vld [vmem:[%s733 + $0x16a] sm:$0xff]
        %v1637 = vld [vmem:[%s733 + $0x172] sm:$0xff]
        %1670 = vrot.lane.b32.xlu0 %v1574, 2
        %v1671 = vpop.permute.xlu0 %1670
        %1672 = vrot.lane.b32.xlu0 %v1575, 2
        %v1673 = vpop.permute.xlu0 %1672
        %1674 = vrot.lane.b32.xlu0 %v1576, 2
        %v1675 = vpop.permute.xlu0 %1674
        %1676 = vrot.lane.b32.xlu0 %v1577, 2
        %v1677 = vpop.permute.xlu0 %1676
        %1678 = vrot.lane.b32.xlu0 %v1578, 2
        %v1679 = vpop.permute.xlu0 %1678
        %1680 = vrot.lane.b32.xlu0 %v1579, 2
        %v1681 = vpop.permute.xlu0 %1680
        %1682 = vrot.lane.b32.xlu0 %v1580, 2
        %v1683 = vpop.permute.xlu0 %1682
        %1684 = vrot.lane.b32.xlu0 %v1581, 2
        %v1685 = vpop.permute.xlu0 %1684
        %1686 = vrot.lane.b32.xlu0 %v1582, 2
        %v1687 = vpop.permute.xlu0 %1686
        %1688 = vrot.lane.b32.xlu0 %v1583, 2
        %v1689 = vpop.permute.xlu0 %1688
        %1690 = vrot.lane.b32.xlu0 %v1584, 2
        %v1691 = vpop.permute.xlu0 %1690
        %1692 = vrot.lane.b32.xlu0 %v1585, 2
        %v1693 = vpop.permute.xlu0 %1692
        %1694 = vrot.lane.b32.xlu0 %v1586, 2
        %v1695 = vpop.permute.xlu0 %1694
        %1696 = vrot.lane.b32.xlu0 %v1587, 2
        %v1697 = vpop.permute.xlu0 %1696
        %1698 = vrot.lane.b32.xlu0 %v1588, 2
        %v1699 = vpop.permute.xlu0 %1698
        %1700 = vrot.lane.b32.xlu0 %v1589, 2
        %v1701 = vpop.permute.xlu0 %1700
        %1702 = vrot.lane.b32.xlu0 %v1590, 2
        %v1703 = vpop.permute.xlu0 %1702
        %1704 = vrot.lane.b32.xlu0 %v1591, 2
        %v1705 = vpop.permute.xlu0 %1704
        %1706 = vrot.lane.b32.xlu0 %v1592, 2
        %v1707 = vpop.permute.xlu0 %1706
        %1708 = vrot.lane.b32.xlu0 %v1593, 2
        %v1709 = vpop.permute.xlu0 %1708
        %1710 = vrot.lane.b32.xlu0 %v1594, 2
        %v1711 = vpop.permute.xlu0 %1710
        %1712 = vrot.lane.b32.xlu0 %v1595, 2
        %v1713 = vpop.permute.xlu0 %1712
        %1714 = vrot.lane.b32.xlu0 %v1596, 2
        %v1715 = vpop.permute.xlu0 %1714
        %1716 = vrot.lane.b32.xlu0 %v1597, 2
        %v1717 = vpop.permute.xlu0 %1716
        %1718 = vrot.lane.b32.xlu0 %v1598, 2
        %v1719 = vpop.permute.xlu0 %1718
        %1720 = vrot.lane.b32.xlu0 %v1599, 2
        %v1721 = vpop.permute.xlu0 %1720
        %1722 = vrot.lane.b32.xlu0 %v1600, 2
        %v1723 = vpop.permute.xlu0 %1722
        %1724 = vrot.lane.b32.xlu0 %v1601, 2
        %v1725 = vpop.permute.xlu0 %1724
        %1726 = vrot.lane.b32.xlu0 %v1602, 2
        %v1727 = vpop.permute.xlu0 %1726
        %1728 = vrot.lane.b32.xlu0 %v1603, 2
        %v1729 = vpop.permute.xlu0 %1728
        %1730 = vrot.lane.b32.xlu0 %v1604, 2
        %v1731 = vpop.permute.xlu0 %1730
        %1732 = vrot.lane.b32.xlu0 %v1605, 2
        %v1733 = vpop.permute.xlu0 %1732
        %1798 = vrot.lane.b32.xlu0 %v1606, 4
        %v1799 = vpop.permute.xlu0 %1798
        %1800 = vrot.lane.b32.xlu0 %v1607, 4
        %v1801 = vpop.permute.xlu0 %1800
        %1802 = vrot.lane.b32.xlu0 %v1608, 4
        %v1803 = vpop.permute.xlu0 %1802
        %1804 = vrot.lane.b32.xlu0 %v1609, 4
        %v1805 = vpop.permute.xlu0 %1804
        %1806 = vrot.lane.b32.xlu0 %v1610, 4
        %v1807 = vpop.permute.xlu0 %1806
        %1808 = vrot.lane.b32.xlu0 %v1611, 4
        %v1809 = vpop.permute.xlu0 %1808
        %1810 = vrot.lane.b32.xlu0 %v1612, 4
        %v1811 = vpop.permute.xlu0 %1810
        %1812 = vrot.lane.b32.xlu0 %v1613, 4
        %v1813 = vpop.permute.xlu0 %1812
        %1814 = vrot.lane.b32.xlu0 %v1614, 4
        %v1815 = vpop.permute.xlu0 %1814
        %1816 = vrot.lane.b32.xlu0 %v1615, 4
        %v1817 = vpop.permute.xlu0 %1816
        %1818 = vrot.lane.b32.xlu0 %v1616, 4
        %v1819 = vpop.permute.xlu0 %1818
        %1820 = vrot.lane.b32.xlu0 %v1617, 4
        %v1821 = vpop.permute.xlu0 %1820
        %1822 = vrot.lane.b32.xlu0 %v1618, 4
        %v1823 = vpop.permute.xlu0 %1822
        %1824 = vrot.lane.b32.xlu0 %v1619, 4
        %v1825 = vpop.permute.xlu0 %1824
        %1826 = vrot.lane.b32.xlu0 %v1620, 4
        %v1827 = vpop.permute.xlu0 %1826
        %1828 = vrot.lane.b32.xlu0 %v1621, 4
        %v1829 = vpop.permute.xlu0 %1828
        %1830 = vrot.lane.b32.xlu0 %v1622, 4
        %v1831 = vpop.permute.xlu0 %1830
        %1832 = vrot.lane.b32.xlu0 %v1623, 4
        %v1833 = vpop.permute.xlu0 %1832
        %1834 = vrot.lane.b32.xlu0 %v1624, 4
        %v1835 = vpop.permute.xlu0 %1834
        %1836 = vrot.lane.b32.xlu0 %v1625, 4
        %v1837 = vpop.permute.xlu0 %1836
        %1838 = vrot.lane.b32.xlu0 %v1626, 4
        %v1839 = vpop.permute.xlu0 %1838
        %1840 = vrot.lane.b32.xlu0 %v1627, 4
        %v1841 = vpop.permute.xlu0 %1840
        %1842 = vrot.lane.b32.xlu0 %v1628, 4
        %v1843 = vpop.permute.xlu0 %1842
        %1844 = vrot.lane.b32.xlu0 %v1629, 4
        %v1845 = vpop.permute.xlu0 %1844
        %1846 = vrot.lane.b32.xlu0 %v1630, 4
        %v1847 = vpop.permute.xlu0 %1846
        %1848 = vrot.lane.b32.xlu0 %v1631, 4
        %v1849 = vpop.permute.xlu0 %1848
        %1850 = vrot.lane.b32.xlu0 %v1632, 4
        %v1851 = vpop.permute.xlu0 %1850
        %1852 = vrot.lane.b32.xlu0 %v1633, 4
        %v1853 = vpop.permute.xlu0 %1852
        %1854 = vrot.lane.b32.xlu0 %v1634, 4
        %v1855 = vpop.permute.xlu0 %1854
        %1856 = vrot.lane.b32.xlu0 %v1635, 4
        %v1857 = vpop.permute.xlu0 %1856
        %1858 = vrot.lane.b32.xlu0 %v1636, 4
        %v1859 = vpop.permute.xlu0 %1858
        %1860 = vrot.lane.b32.xlu0 %v1637, 4
        %v1861 = vpop.permute.xlu0 %1860
        %v1894 = vsel %vm677, %v1542, %v1671
        %v1895 = vsel %vm677, %v1543, %v1673
        %v1896 = vsel %vm677, %v1544, %v1675
        %v1897 = vsel %vm677, %v1545, %v1677
        %v1898 = vsel %vm677, %v1546, %v1679
        %v1899 = vsel %vm677, %v1547, %v1681
        %v1900 = vsel %vm677, %v1548, %v1683
        %v1901 = vsel %vm677, %v1549, %v1685
        %v1902 = vsel %vm677, %v1550, %v1687
        %v1903 = vsel %vm677, %v1551, %v1689
        %v1904 = vsel %vm677, %v1552, %v1691
        %v1905 = vsel %vm677, %v1553, %v1693
        %v1906 = vsel %vm677, %v1554, %v1695
        %v1907 = vsel %vm677, %v1555, %v1697
        %v1908 = vsel %vm677, %v1556, %v1699
        %v1909 = vsel %vm677, %v1557, %v1701
        %v1910 = vsel %vm677, %v1558, %v1703
        %v1911 = vsel %vm677, %v1559, %v1705
        %v1912 = vsel %vm677, %v1560, %v1707
        %v1913 = vsel %vm677, %v1561, %v1709
        %v1914 = vsel %vm677, %v1562, %v1711
        %v1915 = vsel %vm677, %v1563, %v1713
        %v1916 = vsel %vm677, %v1564, %v1715
        %v1917 = vsel %vm677, %v1565, %v1717
        %v1918 = vsel %vm677, %v1566, %v1719
        %v1919 = vsel %vm677, %v1567, %v1721
        %v1920 = vsel %vm677, %v1568, %v1723
        %v1921 = vsel %vm677, %v1569, %v1725
        %v1922 = vsel %vm677, %v1570, %v1727
        %v1923 = vsel %vm677, %v1571, %v1729
        %v1924 = vsel %vm677, %v1572, %v1731
        %v1925 = vsel %vm677, %v1573, %v1733
        %v1926 = vsel %vm1182, %v1894, %v1799
        %v1927 = vsel %vm1182, %v1895, %v1801
        %v1928 = vsel %vm1182, %v1896, %v1803
        %v1929 = vsel %vm1182, %v1897, %v1805
        %v1930 = vsel %vm1182, %v1898, %v1807
        %v1931 = vsel %vm1182, %v1899, %v1809
        %v1932 = vsel %vm1182, %v1900, %v1811
        %v1933 = vsel %vm1182, %v1901, %v1813
        %v1934 = vsel %vm1182, %v1902, %v1815
        %v1935 = vsel %vm1182, %v1903, %v1817
        %v1936 = vsel %vm1182, %v1904, %v1819
        %v1937 = vsel %vm1182, %v1905, %v1821
        %v1938 = vsel %vm1182, %v1906, %v1823
        %v1939 = vsel %vm1182, %v1907, %v1825
        %v1940 = vsel %vm1182, %v1908, %v1827
        %v1941 = vsel %vm1182, %v1909, %v1829
        %v1942 = vsel %vm1182, %v1910, %v1831
        %v1943 = vsel %vm1182, %v1911, %v1833
        %v1944 = vsel %vm1182, %v1912, %v1835
        %v1945 = vsel %vm1182, %v1913, %v1837
        %v1946 = vsel %vm1182, %v1914, %v1839
        %v1947 = vsel %vm1182, %v1915, %v1841
        %v1948 = vsel %vm1182, %v1916, %v1843
        %v1949 = vsel %vm1182, %v1917, %v1845
        %v1950 = vsel %vm1182, %v1918, %v1847
        %v1951 = vsel %vm1182, %v1919, %v1849
        %v1952 = vsel %vm1182, %v1920, %v1851
        %v1953 = vsel %vm1182, %v1921, %v1853
        %v1954 = vsel %vm1182, %v1922, %v1855
        %v1955 = vsel %vm1182, %v1923, %v1857
        %v1956 = vsel %vm1182, %v1924, %v1859
        %v1957 = vsel %vm1182, %v1925, %v1861
        %v1958 = vld [vmem:[#allocation3] sm:$0xff]
        %v1959 = vld [vmem:[#allocation3 + $0x8] sm:$0xff]
        %v1960 = vld [vmem:[#allocation3 + $0x10] sm:$0xff]
        %v1961 = vld [vmem:[#allocation3 + $0x18] sm:$0xff]
        %v1962 = vld [vmem:[#allocation3 + $0x20] sm:$0xff]
        %v1963 = vld [vmem:[#allocation3 + $0x28] sm:$0xff]
        %v1964 = vld [vmem:[#allocation3 + $0x30] sm:$0xff]
        %v1965 = vld [vmem:[#allocation3 + $0x38] sm:$0xff]
        %v1966 = vld [vmem:[#allocation3 + $0x40] sm:$0xff]
        %v1967 = vld [vmem:[#allocation3 + $0x48] sm:$0xff]
        %v1968 = vld [vmem:[#allocation3 + $0x50] sm:$0xff]
        %v1969 = vld [vmem:[#allocation3 + $0x58] sm:$0xff]
        %v1970 = vld [vmem:[#allocation3 + $0x60] sm:$0xff]
        %v1971 = vld [vmem:[#allocation3 + $0x68] sm:$0xff]
        %v1972 = vld [vmem:[#allocation3 + $0x70] sm:$0xff]
        %v1973 = vld [vmem:[#allocation3 + $0x78] sm:$0xff]
        %v1974 = vld [vmem:[#allocation3 + $0x80] sm:$0xff]
        %v1975 = vld [vmem:[#allocation3 + $0x88] sm:$0xff]
        %v1976 = vld [vmem:[#allocation3 + $0x90] sm:$0xff]
        %v1977 = vld [vmem:[#allocation3 + $0x98] sm:$0xff]
        %v1978 = vld [vmem:[#allocation3 + $0xa0] sm:$0xff]
        %v1979 = vld [vmem:[#allocation3 + $0xa8] sm:$0xff]
        %v1980 = vld [vmem:[#allocation3 + $0xb0] sm:$0xff]
        %v1981 = vld [vmem:[#allocation3 + $0xb8] sm:$0xff]
        %v1982 = vld [vmem:[#allocation3 + $0xc0] sm:$0xff]
        %v1983 = vld [vmem:[#allocation3 + $0xc8] sm:$0xff]
        %v1984 = vld [vmem:[#allocation3 + $0xd0] sm:$0xff]
        %v1985 = vld [vmem:[#allocation3 + $0xd8] sm:$0xff]
        %v1986 = vld [vmem:[#allocation3 + $0xe0] sm:$0xff]
        %v1987 = vld [vmem:[#allocation3 + $0xe8] sm:$0xff]
        %v1988 = vld [vmem:[#allocation3 + $0xf0] sm:$0xff]
        %v1989 = vld [vmem:[#allocation3 + $0xf8] sm:$0xff]
        %v1990 = vpack.c.bf16 %v1927, %v1926
        %v1991 = vpack.c.bf16 %v1929, %v1928
        %v1992 = vpack.c.bf16 %v1931, %v1930
        %v1993 = vpack.c.bf16 %v1933, %v1932
        %v1994 = vpack.c.bf16 %v1935, %v1934
        %v1995 = vpack.c.bf16 %v1937, %v1936
        %v1996 = vpack.c.bf16 %v1939, %v1938
        %v1997 = vpack.c.bf16 %v1941, %v1940
        %v1998 = vpack.c.bf16 %v1943, %v1942
        %v1999 = vpack.c.bf16 %v1945, %v1944
        %v2000 = vpack.c.bf16 %v1947, %v1946
        %v2001 = vpack.c.bf16 %v1949, %v1948
        %v2002 = vpack.c.bf16 %v1951, %v1950
        %v2003 = vpack.c.bf16 %v1953, %v1952
        %v2004 = vpack.c.bf16 %v1955, %v1954
        %v2005 = vpack.c.bf16 %v1957, %v1956
        %s2006 = scalar_lea.vmem [#allocation10], 4
        %v2007 = vld [vmem:[%s2006] sm:$0x7]
        %v2009 = vsel %vm1264, %v1990, 0
        %v2012 = vsel %vm1264, %v1991, 0
        %v2015 = vsel %vm1264, %v1992, 0
        %v2018 = vsel %vm1264, %v1993, 0
        %v2021 = vsel %vm1264, %v1994, 0
        %v2024 = vsel %vm1264, %v1995, 0
        %v2027 = vsel %vm1264, %v1996, 0
        %v2030 = vsel %vm1264, %v1997, 0
        %v2033 = vsel %vm1264, %v1998, 0
        %v2036 = vsel %vm1264, %v1999, 0
        %v2039 = vsel %vm1264, %v2000, 0
        %v2042 = vsel %vm1264, %v2001, 0
        %v2045 = vsel %vm1264, %v2002, 0
        %v2048 = vsel %vm1264, %v2003, 0
        %v2051 = vsel %vm1264, %v2004, 0
        %v2054 = vsel %vm1264, %v2005, 0
        %v2057 = vsel %vm1313, %v2007, 0
        %2059 = vmatprep.subr.bf16.mxu0 0
        %2060 = vmatpush1.bf16.msra.mxu0 %v2057
        %2061 = vmatprep.subr.bf16.mxu0 0
        %2062 = vmatpush1.bf16.msra.mxu0 0
        %2063 = vmatprep.subr.bf16.mxu0 0
        %2064 = vmatpush1.bf16.msra.mxu0 0
        %2065 = vmatprep.subr.bf16.mxu0 0
        %2066 = vmatpush1.bf16.msra.mxu0 0
        %2067 = vmatprep.subr.bf16.mxu0 0
        %2068 = vmatpush1.bf16.msra.mxu0 0
        %2069 = vmatprep.subr.bf16.mxu0 0
        %2070 = vmatpush1.bf16.msra.mxu0 0
        %2071 = vmatprep.subr.bf16.mxu0 0
        %2072 = vmatpush1.bf16.msra.mxu0 0
        %2073 = vmatprep.subr.bf16.mxu0 0
        %2074 = vmatpush1.bf16.msra.mxu0 0
        %2075 = vmatprep.subr.bf16.mxu0 0
        %2076 = vmatpush1.bf16.msra.mxu0 0
        %2077 = vmatprep.subr.bf16.mxu0 0
        %2078 = vmatpush1.bf16.msra.mxu0 0
        %2079 = vmatprep.subr.bf16.mxu0 0
        %2080 = vmatpush1.bf16.msra.mxu0 0
        %2081 = vmatprep.subr.bf16.mxu0 0
        %2082 = vmatpush1.bf16.msra.mxu0 0
        %2083 = vmatprep.subr.bf16.mxu0 0
        %2084 = vmatpush1.bf16.msra.mxu0 0
        %2085 = vmatprep.subr.bf16.mxu0 0
        %2086 = vmatpush1.bf16.msra.mxu0 0
        %2087 = vmatprep.subr.bf16.mxu0 0
        %2088 = vmatpush1.bf16.msra.mxu0 0
        %2089 = vmatprep.subr.bf16.mxu0 0
        %2090 = vmatpush1.bf16.msra.mxu0 0
        %2091 = vmatprep.mubr.bf16.mxu0 0
        %2092 = vmatmul.mubr.bf16.gmra.mrb[0].mxu0 %v2009
        %v2093 = vpop.f32.mrb[0].mxu0
        %v2094 = vadd.f32 0.0, %v2093
        %v2095 = vpop.f32.mrb[0].mxu0
        %v2096 = vpop.f32.mrb[0].mxu0
        %v2097 = vadd.f32 0.0, %v2096
        %v2098 = vpop.f32.mrb[0].mxu0
        %2099 = vmatprep.mubr.bf16.mxu0 0
        %2100 = vmatmul.mubr.bf16.gmra.mrb[0].mxu0 %v2012
        %v2101 = vpop.f32.mrb[0].mxu0
        %v2102 = vadd.f32 0.0, %v2101
        %v2103 = vpop.f32.mrb[0].mxu0
        %v2104 = vpop.f32.mrb[0].mxu0
        %v2105 = vadd.f32 0.0, %v2104
        %v2106 = vpop.f32.mrb[0].mxu0
        %2107 = vmatprep.mubr.bf16.mxu0 0
        %2108 = vmatmul.mubr.bf16.gmra.mrb[0].mxu0 %v2015
        %v2109 = vpop.f32.mrb[0].mxu0
        %v2110 = vadd.f32 0.0, %v2109
        %v2111 = vpop.f32.mrb[0].mxu0
        %v2112 = vpop.f32.mrb[0].mxu0
        %v2113 = vadd.f32 0.0, %v2112
        %v2114 = vpop.f32.mrb[0].mxu0
        %2115 = vmatprep.mubr.bf16.mxu0 0
        %2116 = vmatmul.mubr.bf16.gmra.mrb[0].mxu0 %v2018
        %v2117 = vpop.f32.mrb[0].mxu0
        %v2118 = vadd.f32 0.0, %v2117
        %v2119 = vpop.f32.mrb[0].mxu0
        %v2120 = vpop.f32.mrb[0].mxu0
        %v2121 = vadd.f32 0.0, %v2120
        %v2122 = vpop.f32.mrb[0].mxu0
        %2123 = vmatprep.mubr.bf16.mxu0 0
        %2124 = vmatmul.mubr.bf16.gmra.mrb[0].mxu0 %v2021
        %v2125 = vpop.f32.mrb[0].mxu0
        %v2126 = vadd.f32 0.0, %v2125
        %v2127 = vpop.f32.mrb[0].mxu0
        %v2128 = vpop.f32.mrb[0].mxu0
        %v2129 = vadd.f32 0.0, %v2128
        %v2130 = vpop.f32.mrb[0].mxu0
        %2131 = vmatprep.mubr.bf16.mxu0 0
        %2132 = vmatmul.mubr.bf16.gmra.mrb[0].mxu0 %v2024
        %v2133 = vpop.f32.mrb[0].mxu0
        %v2134 = vadd.f32 0.0, %v2133
        %v2135 = vpop.f32.mrb[0].mxu0
        %v2136 = vpop.f32.mrb[0].mxu0
        %v2137 = vadd.f32 0.0, %v2136
        %v2138 = vpop.f32.mrb[0].mxu0
        %2139 = vmatprep.mubr.bf16.mxu0 0
        %2140 = vmatmul.mubr.bf16.gmra.mrb[0].mxu0 %v2027
        %v2141 = vpop.f32.mrb[0].mxu0
        %v2142 = vadd.f32 0.0, %v2141
        %v2143 = vpop.f32.mrb[0].mxu0
        %v2144 = vpop.f32.mrb[0].mxu0
        %v2145 = vadd.f32 0.0, %v2144
        %v2146 = vpop.f32.mrb[0].mxu0
        %2147 = vmatprep.mubr.bf16.mxu0 0
        %2148 = vmatmul.mubr.bf16.gmra.mrb[0].mxu0 %v2030
        %v2149 = vpop.f32.mrb[0].mxu0
        %v2150 = vadd.f32 0.0, %v2149
        %v2151 = vpop.f32.mrb[0].mxu0
        %v2152 = vpop.f32.mrb[0].mxu0
        %v2153 = vadd.f32 0.0, %v2152
        %v2154 = vpop.f32.mrb[0].mxu0
        %2155 = vmatprep.mubr.bf16.mxu0 0
        %2156 = vmatmul.mubr.bf16.gmra.mrb[0].mxu0 %v2033
        %v2157 = vpop.f32.mrb[0].mxu0
        %v2158 = vadd.f32 0.0, %v2157
        %v2159 = vpop.f32.mrb[0].mxu0
        %v2160 = vpop.f32.mrb[0].mxu0
        %v2161 = vadd.f32 0.0, %v2160
        %v2162 = vpop.f32.mrb[0].mxu0
        %2163 = vmatprep.mubr.bf16.mxu0 0
        %2164 = vmatmul.mubr.bf16.gmra.mrb[0].mxu0 %v2036
        %v2165 = vpop.f32.mrb[0].mxu0
        %v2166 = vadd.f32 0.0, %v2165
        %v2167 = vpop.f32.mrb[0].mxu0
        %v2168 = vpop.f32.mrb[0].mxu0
        %v2169 = vadd.f32 0.0, %v2168
        %v2170 = vpop.f32.mrb[0].mxu0
        %2171 = vmatprep.mubr.bf16.mxu0 0
        %2172 = vmatmul.mubr.bf16.gmra.mrb[0].mxu0 %v2039
        %v2173 = vpop.f32.mrb[0].mxu0
        %v2174 = vadd.f32 0.0, %v2173
        %v2175 = vpop.f32.mrb[0].mxu0
        %v2176 = vpop.f32.mrb[0].mxu0
        %v2177 = vadd.f32 0.0, %v2176
        %v2178 = vpop.f32.mrb[0].mxu0
        %2179 = vmatprep.mubr.bf16.mxu0 0
        %2180 = vmatmul.mubr.bf16.gmra.mrb[0].mxu0 %v2042
        %v2181 = vpop.f32.mrb[0].mxu0
        %v2182 = vadd.f32 0.0, %v2181
        %v2183 = vpop.f32.mrb[0].mxu0
        %v2184 = vpop.f32.mrb[0].mxu0
        %v2185 = vadd.f32 0.0, %v2184
        %v2186 = vpop.f32.mrb[0].mxu0
        %2187 = vmatprep.mubr.bf16.mxu0 0
        %2188 = vmatmul.mubr.bf16.gmra.mrb[0].mxu0 %v2045
        %v2189 = vpop.f32.mrb[0].mxu0
        %v2190 = vadd.f32 0.0, %v2189
        %v2191 = vpop.f32.mrb[0].mxu0
        %v2192 = vpop.f32.mrb[0].mxu0
        %v2193 = vadd.f32 0.0, %v2192
        %v2194 = vpop.f32.mrb[0].mxu0
        %2195 = vmatprep.mubr.bf16.mxu0 0
        %2196 = vmatmul.mubr.bf16.gmra.mrb[0].mxu0 %v2048
        %v2197 = vpop.f32.mrb[0].mxu0
        %v2198 = vadd.f32 0.0, %v2197
        %v2199 = vpop.f32.mrb[0].mxu0
        %v2200 = vpop.f32.mrb[0].mxu0
        %v2201 = vadd.f32 0.0, %v2200
        %v2202 = vpop.f32.mrb[0].mxu0
        %2203 = vmatprep.mubr.bf16.mxu0 0
        %2204 = vmatmul.mubr.bf16.gmra.mrb[0].mxu0 %v2051
        %v2205 = vpop.f32.mrb[0].mxu0
        %v2206 = vadd.f32 0.0, %v2205
        %v2207 = vpop.f32.mrb[0].mxu0
        %v2208 = vpop.f32.mrb[0].mxu0
        %v2209 = vadd.f32 0.0, %v2208
        %v2210 = vpop.f32.mrb[0].mxu0
        %2211 = vmatprep.mubr.bf16.mxu0 0
        %2212 = vmatmul.mubr.bf16.gmra.mrb[0].mxu0 %v2054
        %v2213 = vpop.f32.mrb[0].mxu0
        %v2214 = vadd.f32 0.0, %v2213
        %v2215 = vpop.f32.mrb[0].mxu0
        %v2216 = vpop.f32.mrb[0].mxu0
        %v2217 = vadd.f32 0.0, %v2216
        %v2218 = vpop.f32.mrb[0].mxu0
        %2219 = vdwg.mxu0
        %v2220 = vadd.f32 %v1958, %v2094
        %v2221 = vadd.f32 %v1959, %v2097
        %v2222 = vadd.f32 %v1960, %v2102
        %v2223 = vadd.f32 %v1961, %v2105
        %v2224 = vadd.f32 %v1962, %v2110
        %v2225 = vadd.f32 %v1963, %v2113
        %v2226 = vadd.f32 %v1964, %v2118
        %v2227 = vadd.f32 %v1965, %v2121
        %v2228 = vadd.f32 %v1966, %v2126
        %v2229 = vadd.f32 %v1967, %v2129
        %v2230 = vadd.f32 %v1968, %v2134
        %v2231 = vadd.f32 %v1969, %v2137
        %v2232 = vadd.f32 %v1970, %v2142
        %v2233 = vadd.f32 %v1971, %v2145
        %v2234 = vadd.f32 %v1972, %v2150
        %v2235 = vadd.f32 %v1973, %v2153
        %v2236 = vadd.f32 %v1974, %v2158
        %v2237 = vadd.f32 %v1975, %v2161
        %v2238 = vadd.f32 %v1976, %v2166
        %v2239 = vadd.f32 %v1977, %v2169
        %v2240 = vadd.f32 %v1978, %v2174
        %v2241 = vadd.f32 %v1979, %v2177
        %v2242 = vadd.f32 %v1980, %v2182
        %v2243 = vadd.f32 %v1981, %v2185
        %v2244 = vadd.f32 %v1982, %v2190
        %v2245 = vadd.f32 %v1983, %v2193
        %v2246 = vadd.f32 %v1984, %v2198
        %v2247 = vadd.f32 %v1985, %v2201
        %v2248 = vadd.f32 %v1986, %v2206
        %v2249 = vadd.f32 %v1987, %v2209
        %v2250 = vadd.f32 %v1988, %v2214
        %v2251 = vadd.f32 %v1989, %v2217
        %2252 = vst.msk [vmem:[#allocation3] sm:$0xff] %vm677, %v2220
        %2253 = vst.msk [vmem:[#allocation3 + $0x8] sm:$0xff] %vm677, %v2221
        %2254 = vst.msk [vmem:[#allocation3 + $0x10] sm:$0xff] %vm677, %v2222
        %2255 = vst.msk [vmem:[#allocation3 + $0x18] sm:$0xff] %vm677, %v2223
        %2256 = vst.msk [vmem:[#allocation3 + $0x20] sm:$0xff] %vm677, %v2224
        %2257 = vst.msk [vmem:[#allocation3 + $0x28] sm:$0xff] %vm677, %v2225
        %2258 = vst.msk [vmem:[#allocation3 + $0x30] sm:$0xff] %vm677, %v2226
        %2259 = vst.msk [vmem:[#allocation3 + $0x38] sm:$0xff] %vm677, %v2227
        %2260 = vst.msk [vmem:[#allocation3 + $0x40] sm:$0xff] %vm677, %v2228
        %2261 = vst.msk [vmem:[#allocation3 + $0x48] sm:$0xff] %vm677, %v2229
        %2262 = vst.msk [vmem:[#allocation3 + $0x50] sm:$0xff] %vm677, %v2230
        %2263 = vst.msk [vmem:[#allocation3 + $0x58] sm:$0xff] %vm677, %v2231
        %2264 = vst.msk [vmem:[#allocation3 + $0x60] sm:$0xff] %vm677, %v2232
        %2265 = vst.msk [vmem:[#allocation3 + $0x68] sm:$0xff] %vm677, %v2233
        %2266 = vst.msk [vmem:[#allocation3 + $0x70] sm:$0xff] %vm677, %v2234
        %2267 = vst.msk [vmem:[#allocation3 + $0x78] sm:$0xff] %vm677, %v2235
        %2268 = vst.msk [vmem:[#allocation3 + $0x80] sm:$0xff] %vm677, %v2236
        %2269 = vst.msk [vmem:[#allocation3 + $0x88] sm:$0xff] %vm677, %v2237
        %2270 = vst.msk [vmem:[#allocation3 + $0x90] sm:$0xff] %vm677, %v2238
        %2271 = vst.msk [vmem:[#allocation3 + $0x98] sm:$0xff] %vm677, %v2239
        %2272 = vst.msk [vmem:[#allocation3 + $0xa0] sm:$0xff] %vm677, %v2240
        %2273 = vst.msk [vmem:[#allocation3 + $0xa8] sm:$0xff] %vm677, %v2241
        %2274 = vst.msk [vmem:[#allocation3 + $0xb0] sm:$0xff] %vm677, %v2242
        %2275 = vst.msk [vmem:[#allocation3 + $0xb8] sm:$0xff] %vm677, %v2243
        %2276 = vst.msk [vmem:[#allocation3 + $0xc0] sm:$0xff] %vm677, %v2244
        %2277 = vst.msk [vmem:[#allocation3 + $0xc8] sm:$0xff] %vm677, %v2245
        %2278 = vst.msk [vmem:[#allocation3 + $0xd0] sm:$0xff] %vm677, %v2246
        %2279 = vst.msk [vmem:[#allocation3 + $0xd8] sm:$0xff] %vm677, %v2247
        %2280 = vst.msk [vmem:[#allocation3 + $0xe0] sm:$0xff] %vm677, %v2248
        %2281 = vst.msk [vmem:[#allocation3 + $0xe8] sm:$0xff] %vm677, %v2249
        %2282 = vst.msk [vmem:[#allocation3 + $0xf0] sm:$0xff] %vm677, %v2250
        %2283 = vst.msk [vmem:[#allocation3 + $0xf8] sm:$0xff] %vm677, %v2251
        %s2284 = scalar_lea.vmem [#allocation2], 48
        %v2285 = vld [vmem:[%s2284] sm:$0xff]
        %v2286 = vld [vmem:[%s2284 + $0x8] sm:$0xff]
        %v2287 = vld [vmem:[%s2284 + $0x18] sm:$0xff]
        %v2288 = vld [vmem:[%s2284 + $0x20] sm:$0xff]
        %v2289 = vld [vmem:[%s2284 + $0x30] sm:$0xff]
        %v2290 = vld [vmem:[%s2284 + $0x38] sm:$0xff]
        %v2291 = vld [vmem:[%s2284 + $0x48] sm:$0xff]
        %v2292 = vld [vmem:[%s2284 + $0x50] sm:$0xff]
        %v2293 = vld [vmem:[%s2284 + $0x60] sm:$0xff]
        %v2294 = vld [vmem:[%s2284 + $0x68] sm:$0xff]
        %v2295 = vld [vmem:[%s2284 + $0x78] sm:$0xff]
        %v2296 = vld [vmem:[%s2284 + $0x80] sm:$0xff]
        %v2297 = vld [vmem:[%s2284 + $0x90] sm:$0xff]
        %v2298 = vld [vmem:[%s2284 + $0x98] sm:$0xff]
        %v2299 = vld [vmem:[%s2284 + $0xa8] sm:$0xff]
        %v2300 = vld [vmem:[%s2284 + $0xb0] sm:$0xff]
        %v2301 = vld [vmem:[%s2284 + $0xc0] sm:$0xff]
        %v2302 = vld [vmem:[%s2284 + $0xc8] sm:$0xff]
        %v2303 = vld [vmem:[%s2284 + $0xd8] sm:$0xff]
        %v2304 = vld [vmem:[%s2284 + $0xe0] sm:$0xff]
        %v2305 = vld [vmem:[%s2284 + $0xf0] sm:$0xff]
        %v2306 = vld [vmem:[%s2284 + $0xf8] sm:$0xff]
        %v2307 = vld [vmem:[%s2284 + $0x108] sm:$0xff]
        %v2308 = vld [vmem:[%s2284 + $0x110] sm:$0xff]
        %v2309 = vld [vmem:[%s2284 + $0x120] sm:$0xff]
        %v2310 = vld [vmem:[%s2284 + $0x128] sm:$0xff]
        %v2311 = vld [vmem:[%s2284 + $0x138] sm:$0xff]
        %v2312 = vld [vmem:[%s2284 + $0x140] sm:$0xff]
        %v2313 = vld [vmem:[%s2284 + $0x150] sm:$0xff]
        %v2314 = vld [vmem:[%s2284 + $0x158] sm:$0xff]
        %v2315 = vld [vmem:[%s2284 + $0x168] sm:$0xff]
        %v2316 = vld [vmem:[%s2284 + $0x170] sm:$0xff]
        %v2317 = vld [vmem:[%s2284 + $0x1] sm:$0xff]
        %v2318 = vld [vmem:[%s2284 + $0x9] sm:$0xff]
        %v2319 = vld [vmem:[%s2284 + $0x19] sm:$0xff]
        %v2320 = vld [vmem:[%s2284 + $0x21] sm:$0xff]
        %v2321 = vld [vmem:[%s2284 + $0x31] sm:$0xff]
        %v2322 = vld [vmem:[%s2284 + $0x39] sm:$0xff]
        %v2323 = vld [vmem:[%s2284 + $0x49] sm:$0xff]
        %v2324 = vld [vmem:[%s2284 + $0x51] sm:$0xff]
        %v2325 = vld [vmem:[%s2284 + $0x61] sm:$0xff]
        %v2326 = vld [vmem:[%s2284 + $0x69] sm:$0xff]
        %v2327 = vld [vmem:[%s2284 + $0x79] sm:$0xff]
        %v2328 = vld [vmem:[%s2284 + $0x81] sm:$0xff]
        %v2329 = vld [vmem:[%s2284 + $0x91] sm:$0xff]
        %v2330 = vld [vmem:[%s2284 + $0x99] sm:$0xff]
        %v2331 = vld [vmem:[%s2284 + $0xa9] sm:$0xff]
        %v2332 = vld [vmem:[%s2284 + $0xb1] sm:$0xff]
        %v2333 = vld [vmem:[%s2284 + $0xc1] sm:$0xff]
        %v2334 = vld [vmem:[%s2284 + $0xc9] sm:$0xff]
        %v2335 = vld [vmem:[%s2284 + $0xd9] sm:$0xff]
        %v2336 = vld [vmem:[%s2284 + $0xe1] sm:$0xff]
        %v2337 = vld [vmem:[%s2284 + $0xf1] sm:$0xff]
        %v2338 = vld [vmem:[%s2284 + $0xf9] sm:$0xff]
        %v2339 = vld [vmem:[%s2284 + $0x109] sm:$0xff]
        %v2340 = vld [vmem:[%s2284 + $0x111] sm:$0xff]
        %v2341 = vld [vmem:[%s2284 + $0x121] sm:$0xff]
        %v2342 = vld [vmem:[%s2284 + $0x129] sm:$0xff]
        %v2343 = vld [vmem:[%s2284 + $0x139] sm:$0xff]
        %v2344 = vld [vmem:[%s2284 + $0x141] sm:$0xff]
        %v2345 = vld [vmem:[%s2284 + $0x151] sm:$0xff]
        %v2346 = vld [vmem:[%s2284 + $0x159] sm:$0xff]
        %v2347 = vld [vmem:[%s2284 + $0x169] sm:$0xff]
        %v2348 = vld [vmem:[%s2284 + $0x171] sm:$0xff]
        %v2349 = vld [vmem:[%s2284 + $0x2] sm:$0xff]
        %v2350 = vld [vmem:[%s2284 + $0xa] sm:$0xff]
        %v2351 = vld [vmem:[%s2284 + $0x1a] sm:$0xff]
        %v2352 = vld [vmem:[%s2284 + $0x22] sm:$0xff]
        %v2353 = vld [vmem:[%s2284 + $0x32] sm:$0xff]
        %v2354 = vld [vmem:[%s2284 + $0x3a] sm:$0xff]
        %v2355 = vld [vmem:[%s2284 + $0x4a] sm:$0xff]
        %v2356 = vld [vmem:[%s2284 + $0x52] sm:$0xff]
        %v2357 = vld [vmem:[%s2284 + $0x62] sm:$0xff]
        %v2358 = vld [vmem:[%s2284 + $0x6a] sm:$0xff]
        %v2359 = vld [vmem:[%s2284 + $0x7a] sm:$0xff]
        %v2360 = vld [vmem:[%s2284 + $0x82] sm:$0xff]
        %v2361 = vld [vmem:[%s2284 + $0x92] sm:$0xff]
        %v2362 = vld [vmem:[%s2284 + $0x9a] sm:$0xff]
        %v2363 = vld [vmem:[%s2284 + $0xaa] sm:$0xff]
        %v2364 = vld [vmem:[%s2284 + $0xb2] sm:$0xff]
        %v2365 = vld [vmem:[%s2284 + $0xc2] sm:$0xff]
        %v2366 = vld [vmem:[%s2284 + $0xca] sm:$0xff]
        %v2367 = vld [vmem:[%s2284 + $0xda] sm:$0xff]
        %v2368 = vld [vmem:[%s2284 + $0xe2] sm:$0xff]
        %v2369 = vld [vmem:[%s2284 + $0xf2] sm:$0xff]
        %v2370 = vld [vmem:[%s2284 + $0xfa] sm:$0xff]
        %v2371 = vld [vmem:[%s2284 + $0x10a] sm:$0xff]
        %v2372 = vld [vmem:[%s2284 + $0x112] sm:$0xff]
        %v2373 = vld [vmem:[%s2284 + $0x122] sm:$0xff]
        %v2374 = vld [vmem:[%s2284 + $0x12a] sm:$0xff]
        %v2375 = vld [vmem:[%s2284 + $0x13a] sm:$0xff]
        %v2376 = vld [vmem:[%s2284 + $0x142] sm:$0xff]
        %v2377 = vld [vmem:[%s2284 + $0x152] sm:$0xff]
        %v2378 = vld [vmem:[%s2284 + $0x15a] sm:$0xff]
        %v2379 = vld [vmem:[%s2284 + $0x16a] sm:$0xff]
        %v2380 = vld [vmem:[%s2284 + $0x172] sm:$0xff]
        %2413 = vrot.lane.b32.xlu0 %v2317, 2
        %v2414 = vpop.permute.xlu0 %2413
        %2415 = vrot.lane.b32.xlu0 %v2318, 2
        %v2416 = vpop.permute.xlu0 %2415
        %2417 = vrot.lane.b32.xlu0 %v2319, 2
        %v2418 = vpop.permute.xlu0 %2417
        %2419 = vrot.lane.b32.xlu0 %v2320, 2
        %v2420 = vpop.permute.xlu0 %2419
        %2421 = vrot.lane.b32.xlu0 %v2321, 2
        %v2422 = vpop.permute.xlu0 %2421
        %2423 = vrot.lane.b32.xlu0 %v2322, 2
        %v2424 = vpop.permute.xlu0 %2423
        %2425 = vrot.lane.b32.xlu0 %v2323, 2
        %v2426 = vpop.permute.xlu0 %2425
        %2427 = vrot.lane.b32.xlu0 %v2324, 2
        %v2428 = vpop.permute.xlu0 %2427
        %2429 = vrot.lane.b32.xlu0 %v2325, 2
        %v2430 = vpop.permute.xlu0 %2429
        %2431 = vrot.lane.b32.xlu0 %v2326, 2
        %v2432 = vpop.permute.xlu0 %2431
        %2433 = vrot.lane.b32.xlu0 %v2327, 2
        %v2434 = vpop.permute.xlu0 %2433
        %2435 = vrot.lane.b32.xlu0 %v2328, 2
        %v2436 = vpop.permute.xlu0 %2435
        %2437 = vrot.lane.b32.xlu0 %v2329, 2
        %v2438 = vpop.permute.xlu0 %2437
        %2439 = vrot.lane.b32.xlu0 %v2330, 2
        %v2440 = vpop.permute.xlu0 %2439
        %2441 = vrot.lane.b32.xlu0 %v2331, 2
        %v2442 = vpop.permute.xlu0 %2441
        %2443 = vrot.lane.b32.xlu0 %v2332, 2
        %v2444 = vpop.permute.xlu0 %2443
        %2445 = vrot.lane.b32.xlu0 %v2333, 2
        %v2446 = vpop.permute.xlu0 %2445
        %2447 = vrot.lane.b32.xlu0 %v2334, 2
        %v2448 = vpop.permute.xlu0 %2447
        %2449 = vrot.lane.b32.xlu0 %v2335, 2
        %v2450 = vpop.permute.xlu0 %2449
        %2451 = vrot.lane.b32.xlu0 %v2336, 2
        %v2452 = vpop.permute.xlu0 %2451
        %2453 = vrot.lane.b32.xlu0 %v2337, 2
        %v2454 = vpop.permute.xlu0 %2453
        %2455 = vrot.lane.b32.xlu0 %v2338, 2
        %v2456 = vpop.permute.xlu0 %2455
        %2457 = vrot.lane.b32.xlu0 %v2339, 2
        %v2458 = vpop.permute.xlu0 %2457
        %2459 = vrot.lane.b32.xlu0 %v2340, 2
        %v2460 = vpop.permute.xlu0 %2459
        %2461 = vrot.lane.b32.xlu0 %v2341, 2
        %v2462 = vpop.permute.xlu0 %2461
        %2463 = vrot.lane.b32.xlu0 %v2342, 2
        %v2464 = vpop.permute.xlu0 %2463
        %2465 = vrot.lane.b32.xlu0 %v2343, 2
        %v2466 = vpop.permute.xlu0 %2465
        %2467 = vrot.lane.b32.xlu0 %v2344, 2
        %v2468 = vpop.permute.xlu0 %2467
        %2469 = vrot.lane.b32.xlu0 %v2345, 2
        %v2470 = vpop.permute.xlu0 %2469
        %2471 = vrot.lane.b32.xlu0 %v2346, 2
        %v2472 = vpop.permute.xlu0 %2471
        %2473 = vrot.lane.b32.xlu0 %v2347, 2
        %v2474 = vpop.permute.xlu0 %2473
        %2475 = vrot.lane.b32.xlu0 %v2348, 2
        %v2476 = vpop.permute.xlu0 %2475
        %2541 = vrot.lane.b32.xlu0 %v2349, 4
        %v2542 = vpop.permute.xlu0 %2541
        %2543 = vrot.lane.b32.xlu0 %v2350, 4
        %v2544 = vpop.permute.xlu0 %2543
        %2545 = vrot.lane.b32.xlu0 %v2351, 4
        %v2546 = vpop.permute.xlu0 %2545
        %2547 = vrot.lane.b32.xlu0 %v2352, 4
        %v2548 = vpop.permute.xlu0 %2547
        %2549 = vrot.lane.b32.xlu0 %v2353, 4
        %v2550 = vpop.permute.xlu0 %2549
        %2551 = vrot.lane.b32.xlu0 %v2354, 4
        %v2552 = vpop.permute.xlu0 %2551
        %2553 = vrot.lane.b32.xlu0 %v2355, 4
        %v2554 = vpop.permute.xlu0 %2553
        %2555 = vrot.lane.b32.xlu0 %v2356, 4
        %v2556 = vpop.permute.xlu0 %2555
        %2557 = vrot.lane.b32.xlu0 %v2357, 4
        %v2558 = vpop.permute.xlu0 %2557
        %2559 = vrot.lane.b32.xlu0 %v2358, 4
        %v2560 = vpop.permute.xlu0 %2559
        %2561 = vrot.lane.b32.xlu0 %v2359, 4
        %v2562 = vpop.permute.xlu0 %2561
        %2563 = vrot.lane.b32.xlu0 %v2360, 4
        %v2564 = vpop.permute.xlu0 %2563
        %2565 = vrot.lane.b32.xlu0 %v2361, 4
        %v2566 = vpop.permute.xlu0 %2565
        %2567 = vrot.lane.b32.xlu0 %v2362, 4
        %v2568 = vpop.permute.xlu0 %2567
        %2569 = vrot.lane.b32.xlu0 %v2363, 4
        %v2570 = vpop.permute.xlu0 %2569
        %2571 = vrot.lane.b32.xlu0 %v2364, 4
        %v2572 = vpop.permute.xlu0 %2571
        %2573 = vrot.lane.b32.xlu0 %v2365, 4
        %v2574 = vpop.permute.xlu0 %2573
        %2575 = vrot.lane.b32.xlu0 %v2366, 4
        %v2576 = vpop.permute.xlu0 %2575
        %2577 = vrot.lane.b32.xlu0 %v2367, 4
        %v2578 = vpop.permute.xlu0 %2577
        %2579 = vrot.lane.b32.xlu0 %v2368, 4
        %v2580 = vpop.permute.xlu0 %2579
        %2581 = vrot.lane.b32.xlu0 %v2369, 4
        %v2582 = vpop.permute.xlu0 %2581
        %2583 = vrot.lane.b32.xlu0 %v2370, 4
        %v2584 = vpop.permute.xlu0 %2583
        %2585 = vrot.lane.b32.xlu0 %v2371, 4
        %v2586 = vpop.permute.xlu0 %2585
        %2587 = vrot.lane.b32.xlu0 %v2372, 4
        %v2588 = vpop.permute.xlu0 %2587
        %2589 = vrot.lane.b32.xlu0 %v2373, 4
        %v2590 = vpop.permute.xlu0 %2589
        %2591 = vrot.lane.b32.xlu0 %v2374, 4
        %v2592 = vpop.permute.xlu0 %2591
        %2593 = vrot.lane.b32.xlu0 %v2375, 4
        %v2594 = vpop.permute.xlu0 %2593
        %2595 = vrot.lane.b32.xlu0 %v2376, 4
        %v2596 = vpop.permute.xlu0 %2595
        %2597 = vrot.lane.b32.xlu0 %v2377, 4
        %v2598 = vpop.permute.xlu0 %2597
        %2599 = vrot.lane.b32.xlu0 %v2378, 4
        %v2600 = vpop.permute.xlu0 %2599
        %2601 = vrot.lane.b32.xlu0 %v2379, 4
        %v2602 = vpop.permute.xlu0 %2601
        %2603 = vrot.lane.b32.xlu0 %v2380, 4
        %v2604 = vpop.permute.xlu0 %2603
        %v2637 = vsel %vm677, %v2285, %v2414
        %v2638 = vsel %vm677, %v2286, %v2416
        %v2639 = vsel %vm677, %v2287, %v2418
        %v2640 = vsel %vm677, %v2288, %v2420
        %v2641 = vsel %vm677, %v2289, %v2422
        %v2642 = vsel %vm677, %v2290, %v2424
        %v2643 = vsel %vm677, %v2291, %v2426
        %v2644 = vsel %vm677, %v2292, %v2428
        %v2645 = vsel %vm677, %v2293, %v2430
        %v2646 = vsel %vm677, %v2294, %v2432
        %v2647 = vsel %vm677, %v2295, %v2434
        %v2648 = vsel %vm677, %v2296, %v2436
        %v2649 = vsel %vm677, %v2297, %v2438
        %v2650 = vsel %vm677, %v2298, %v2440
        %v2651 = vsel %vm677, %v2299, %v2442
        %v2652 = vsel %vm677, %v2300, %v2444
        %v2653 = vsel %vm677, %v2301, %v2446
        %v2654 = vsel %vm677, %v2302, %v2448
        %v2655 = vsel %vm677, %v2303, %v2450
        %v2656 = vsel %vm677, %v2304, %v2452
        %v2657 = vsel %vm677, %v2305, %v2454
        %v2658 = vsel %vm677, %v2306, %v2456
        %v2659 = vsel %vm677, %v2307, %v2458
        %v2660 = vsel %vm677, %v2308, %v2460
        %v2661 = vsel %vm677, %v2309, %v2462
        %v2662 = vsel %vm677, %v2310, %v2464
        %v2663 = vsel %vm677, %v2311, %v2466
        %v2664 = vsel %vm677, %v2312, %v2468
        %v2665 = vsel %vm677, %v2313, %v2470
        %v2666 = vsel %vm677, %v2314, %v2472
        %v2667 = vsel %vm677, %v2315, %v2474
        %v2668 = vsel %vm677, %v2316, %v2476
        %v2669 = vsel %vm1182, %v2637, %v2542
        %v2670 = vsel %vm1182, %v2638, %v2544
        %v2671 = vsel %vm1182, %v2639, %v2546
        %v2672 = vsel %vm1182, %v2640, %v2548
        %v2673 = vsel %vm1182, %v2641, %v2550
        %v2674 = vsel %vm1182, %v2642, %v2552
        %v2675 = vsel %vm1182, %v2643, %v2554
        %v2676 = vsel %vm1182, %v2644, %v2556
        %v2677 = vsel %vm1182, %v2645, %v2558
        %v2678 = vsel %vm1182, %v2646, %v2560
        %v2679 = vsel %vm1182, %v2647, %v2562
        %v2680 = vsel %vm1182, %v2648, %v2564
        %v2681 = vsel %vm1182, %v2649, %v2566
        %v2682 = vsel %vm1182, %v2650, %v2568
        %v2683 = vsel %vm1182, %v2651, %v2570
        %v2684 = vsel %vm1182, %v2652, %v2572
        %v2685 = vsel %vm1182, %v2653, %v2574
        %v2686 = vsel %vm1182, %v2654, %v2576
        %v2687 = vsel %vm1182, %v2655, %v2578
        %v2688 = vsel %vm1182, %v2656, %v2580
        %v2689 = vsel %vm1182, %v2657, %v2582
        %v2690 = vsel %vm1182, %v2658, %v2584
        %v2691 = vsel %vm1182, %v2659, %v2586
        %v2692 = vsel %vm1182, %v2660, %v2588
        %v2693 = vsel %vm1182, %v2661, %v2590
        %v2694 = vsel %vm1182, %v2662, %v2592
        %v2695 = vsel %vm1182, %v2663, %v2594
        %v2696 = vsel %vm1182, %v2664, %v2596
        %v2697 = vsel %vm1182, %v2665, %v2598
        %v2698 = vsel %vm1182, %v2666, %v2600
        %v2699 = vsel %vm1182, %v2667, %v2602
        %v2700 = vsel %vm1182, %v2668, %v2604
        %v2701 = vld [vmem:[#allocation3] sm:$0xff]
        %v2702 = vld [vmem:[#allocation3 + $0x8] sm:$0xff]
        %v2703 = vld [vmem:[#allocation3 + $0x10] sm:$0xff]
        %v2704 = vld [vmem:[#allocation3 + $0x18] sm:$0xff]
        %v2705 = vld [vmem:[#allocation3 + $0x20] sm:$0xff]
        %v2706 = vld [vmem:[#allocation3 + $0x28] sm:$0xff]
        %v2707 = vld [vmem:[#allocation3 + $0x30] sm:$0xff]
        %v2708 = vld [vmem:[#allocation3 + $0x38] sm:$0xff]
        %v2709 = vld [vmem:[#allocation3 + $0x40] sm:$0xff]
        %v2710 = vld [vmem:[#allocation3 + $0x48] sm:$0xff]
        %v2711 = vld [vmem:[#allocation3 + $0x50] sm:$0xff]
        %v2712 = vld [vmem:[#allocation3 + $0x58] sm:$0xff]
        %v2713 = vld [vmem:[#allocation3 + $0x60] sm:$0xff]
        %v2714 = vld [vmem:[#allocation3 + $0x68] sm:$0xff]
        %v2715 = vld [vmem:[#allocation3 + $0x70] sm:$0xff]
        %v2716 = vld [vmem:[#allocation3 + $0x78] sm:$0xff]
        %v2717 = vld [vmem:[#allocation3 + $0x80] sm:$0xff]
        %v2718 = vld [vmem:[#allocation3 + $0x88] sm:$0xff]
        %v2719 = vld [vmem:[#allocation3 + $0x90] sm:$0xff]
        %v2720 = vld [vmem:[#allocation3 + $0x98] sm:$0xff]
        %v2721 = vld [vmem:[#allocation3 + $0xa0] sm:$0xff]
        %v2722 = vld [vmem:[#allocation3 + $0xa8] sm:$0xff]
        %v2723 = vld [vmem:[#allocation3 + $0xb0] sm:$0xff]
        %v2724 = vld [vmem:[#allocation3 + $0xb8] sm:$0xff]
        %v2725 = vld [vmem:[#allocation3 + $0xc0] sm:$0xff]
        %v2726 = vld [vmem:[#allocation3 + $0xc8] sm:$0xff]
        %v2727 = vld [vmem:[#allocation3 + $0xd0] sm:$0xff]
        %v2728 = vld [vmem:[#allocation3 + $0xd8] sm:$0xff]
        %v2729 = vld [vmem:[#allocation3 + $0xe0] sm:$0xff]
        %v2730 = vld [vmem:[#allocation3 + $0xe8] sm:$0xff]
        %v2731 = vld [vmem:[#allocation3 + $0xf0] sm:$0xff]
        %v2732 = vld [vmem:[#allocation3 + $0xf8] sm:$0xff]
        %v2733 = vpack.c.bf16 %v2670, %v2669
        %v2734 = vpack.c.bf16 %v2672, %v2671
        %v2735 = vpack.c.bf16 %v2674, %v2673
        %v2736 = vpack.c.bf16 %v2676, %v2675
        %v2737 = vpack.c.bf16 %v2678, %v2677
        %v2738 = vpack.c.bf16 %v2680, %v2679
        %v2739 = vpack.c.bf16 %v2682, %v2681
        %v2740 = vpack.c.bf16 %v2684, %v2683
        %v2741 = vpack.c.bf16 %v2686, %v2685
        %v2742 = vpack.c.bf16 %v2688, %v2687
        %v2743 = vpack.c.bf16 %v2690, %v2689
        %v2744 = vpack.c.bf16 %v2692, %v2691
        %v2745 = vpack.c.bf16 %v2694, %v2693
        %v2746 = vpack.c.bf16 %v2696, %v2695
        %v2747 = vpack.c.bf16 %v2698, %v2697
        %v2748 = vpack.c.bf16 %v2700, %v2699
        %s2749 = scalar_lea.vmem [#allocation10], 8
        %v2750 = vld [vmem:[%s2749] sm:$0x7]
        %v2752 = vsel %vm1264, %v2733, 0
        %v2755 = vsel %vm1264, %v2734, 0
        %v2758 = vsel %vm1264, %v2735, 0
        %v2761 = vsel %vm1264, %v2736, 0
        %v2764 = vsel %vm1264, %v2737, 0
        %v2767 = vsel %vm1264, %v2738, 0
        %v2770 = vsel %vm1264, %v2739, 0
        %v2773 = vsel %vm1264, %v2740, 0
        %v2776 = vsel %vm1264, %v2741, 0
        %v2779 = vsel %vm1264, %v2742, 0
        %v2782 = vsel %vm1264, %v2743, 0
        %v2785 = vsel %vm1264, %v2744, 0
        %v2788 = vsel %vm1264, %v2745, 0
        %v2791 = vsel %vm1264, %v2746, 0
        %v2794 = vsel %vm1264, %v2747, 0
        %v2797 = vsel %vm1264, %v2748, 0
        %v2800 = vsel %vm1313, %v2750, 0
        %2802 = vmatprep.subr.bf16.mxu0 0
        %2803 = vmatpush1.bf16.msra.mxu0 %v2800
        %2804 = vmatprep.subr.bf16.mxu0 0
        %2805 = vmatpush1.bf16.msra.mxu0 0
        %2806 = vmatprep.subr.bf16.mxu0 0
        %2807 = vmatpush1.bf16.msra.mxu0 0
        %2808 = vmatprep.subr.bf16.mxu0 0
        %2809 = vmatpush1.bf16.msra.mxu0 0
        %2810 = vmatprep.subr.bf16.mxu0 0
        %2811 = vmatpush1.bf16.msra.mxu0 0
        %2812 = vmatprep.subr.bf16.mxu0 0
        %2813 = vmatpush1.bf16.msra.mxu0 0
        %2814 = vmatprep.subr.bf16.mxu0 0
        %2815 = vmatpush1.bf16.msra.mxu0 0
        %2816 = vmatprep.subr.bf16.mxu0 0
        %2817 = vmatpush1.bf16.msra.mxu0 0
        %2818 = vmatprep.subr.bf16.mxu0 0
        %2819 = vmatpush1.bf16.msra.mxu0 0
        %2820 = vmatprep.subr.bf16.mxu0 0
        %2821 = vmatpush1.bf16.msra.mxu0 0
        %2822 = vmatprep.subr.bf16.mxu0 0
        %2823 = vmatpush1.bf16.msra.mxu0 0
        %2824 = vmatprep.subr.bf16.mxu0 0
        %2825 = vmatpush1.bf16.msra.mxu0 0
        %2826 = vmatprep.subr.bf16.mxu0 0
        %2827 = vmatpush1.bf16.msra.mxu0 0
        %2828 = vmatprep.subr.bf16.mxu0 0
        %2829 = vmatpush1.bf16.msra.mxu0 0
        %2830 = vmatprep.subr.bf16.mxu0 0
        %2831 = vmatpush1.bf16.msra.mxu0 0
        %2832 = vmatprep.subr.bf16.mxu0 0
        %2833 = vmatpush1.bf16.msra.mxu0 0
        %2834 = vmatprep.mubr.bf16.mxu0 0
        %2835 = vmatmul.mubr.bf16.gmra.mrb[0].mxu0 %v2752
        %v2836 = vpop.f32.mrb[0].mxu0
        %v2837 = vadd.f32 0.0, %v2836
        %v2838 = vpop.f32.mrb[0].mxu0
        %v2839 = vpop.f32.mrb[0].mxu0
        %v2840 = vadd.f32 0.0, %v2839
        %v2841 = vpop.f32.mrb[0].mxu0
        %2842 = vmatprep.mubr.bf16.mxu0 0
        %2843 = vmatmul.mubr.bf16.gmra.mrb[0].mxu0 %v2755
        %v2844 = vpop.f32.mrb[0].mxu0
        %v2845 = vadd.f32 0.0, %v2844
        %v2846 = vpop.f32.mrb[0].mxu0
        %v2847 = vpop.f32.mrb[0].mxu0
        %v2848 = vadd.f32 0.0, %v2847
        %v2849 = vpop.f32.mrb[0].mxu0
        %2850 = vmatprep.mubr.bf16.mxu0 0
        %2851 = vmatmul.mubr.bf16.gmra.mrb[0].mxu0 %v2758
        %v2852 = vpop.f32.mrb[0].mxu0
        %v2853 = vadd.f32 0.0, %v2852
        %v2854 = vpop.f32.mrb[0].mxu0
        %v2855 = vpop.f32.mrb[0].mxu0
        %v2856 = vadd.f32 0.0, %v2855
        %v2857 = vpop.f32.mrb[0].mxu0
        %2858 = vmatprep.mubr.bf16.mxu0 0
        %2859 = vmatmul.mubr.bf16.gmra.mrb[0].mxu0 %v2761
        %v2860 = vpop.f32.mrb[0].mxu0
        %v2861 = vadd.f32 0.0, %v2860
        %v2862 = vpop.f32.mrb[0].mxu0
        %v2863 = vpop.f32.mrb[0].mxu0
        %v2864 = vadd.f32 0.0, %v2863
        %v2865 = vpop.f32.mrb[0].mxu0
        %2866 = vmatprep.mubr.bf16.mxu0 0
        %2867 = vmatmul.mubr.bf16.gmra.mrb[0].mxu0 %v2764
        %v2868 = vpop.f32.mrb[0].mxu0
        %v2869 = vadd.f32 0.0, %v2868
        %v2870 = vpop.f32.mrb[0].mxu0
        %v2871 = vpop.f32.mrb[0].mxu0
        %v2872 = vadd.f32 0.0, %v2871
        %v2873 = vpop.f32.mrb[0].mxu0
        %2874 = vmatprep.mubr.bf16.mxu0 0
        %2875 = vmatmul.mubr.bf16.gmra.mrb[0].mxu0 %v2767
        %v2876 = vpop.f32.mrb[0].mxu0
        %v2877 = vadd.f32 0.0, %v2876
        %v2878 = vpop.f32.mrb[0].mxu0
        %v2879 = vpop.f32.mrb[0].mxu0
        %v2880 = vadd.f32 0.0, %v2879
        %v2881 = vpop.f32.mrb[0].mxu0
        %2882 = vmatprep.mubr.bf16.mxu0 0
        %2883 = vmatmul.mubr.bf16.gmra.mrb[0].mxu0 %v2770
        %v2884 = vpop.f32.mrb[0].mxu0
        %v2885 = vadd.f32 0.0, %v2884
        %v2886 = vpop.f32.mrb[0].mxu0
        %v2887 = vpop.f32.mrb[0].mxu0
        %v2888 = vadd.f32 0.0, %v2887
        %v2889 = vpop.f32.mrb[0].mxu0
        %2890 = vmatprep.mubr.bf16.mxu0 0
        %2891 = vmatmul.mubr.bf16.gmra.mrb[0].mxu0 %v2773
        %v2892 = vpop.f32.mrb[0].mxu0
        %v2893 = vadd.f32 0.0, %v2892
        %v2894 = vpop.f32.mrb[0].mxu0
        %v2895 = vpop.f32.mrb[0].mxu0
        %v2896 = vadd.f32 0.0, %v2895
        %v2897 = vpop.f32.mrb[0].mxu0
        %2898 = vmatprep.mubr.bf16.mxu0 0
        %2899 = vmatmul.mubr.bf16.gmra.mrb[0].mxu0 %v2776
        %v2900 = vpop.f32.mrb[0].mxu0
        %v2901 = vadd.f32 0.0, %v2900
        %v2902 = vpop.f32.mrb[0].mxu0
        %v2903 = vpop.f32.mrb[0].mxu0
        %v2904 = vadd.f32 0.0, %v2903
        %v2905 = vpop.f32.mrb[0].mxu0
        %2906 = vmatprep.mubr.bf16.mxu0 0
        %2907 = vmatmul.mubr.bf16.gmra.mrb[0].mxu0 %v2779
        %v2908 = vpop.f32.mrb[0].mxu0
        %v2909 = vadd.f32 0.0, %v2908
        %v2910 = vpop.f32.mrb[0].mxu0
        %v2911 = vpop.f32.mrb[0].mxu0
        %v2912 = vadd.f32 0.0, %v2911
        %v2913 = vpop.f32.mrb[0].mxu0
        %2914 = vmatprep.mubr.bf16.mxu0 0
        %2915 = vmatmul.mubr.bf16.gmra.mrb[0].mxu0 %v2782
        %v2916 = vpop.f32.mrb[0].mxu0
        %v2917 = vadd.f32 0.0, %v2916
        %v2918 = vpop.f32.mrb[0].mxu0
        %v2919 = vpop.f32.mrb[0].mxu0
        %v2920 = vadd.f32 0.0, %v2919
        %v2921 = vpop.f32.mrb[0].mxu0
        %2922 = vmatprep.mubr.bf16.mxu0 0
        %2923 = vmatmul.mubr.bf16.gmra.mrb[0].mxu0 %v2785
        %v2924 = vpop.f32.mrb[0].mxu0
        %v2925 = vadd.f32 0.0, %v2924
        %v2926 = vpop.f32.mrb[0].mxu0
        %v2927 = vpop.f32.mrb[0].mxu0
        %v2928 = vadd.f32 0.0, %v2927
        %v2929 = vpop.f32.mrb[0].mxu0
        %2930 = vmatprep.mubr.bf16.mxu0 0
        %2931 = vmatmul.mubr.bf16.gmra.mrb[0].mxu0 %v2788
        %v2932 = vpop.f32.mrb[0].mxu0
        %v2933 = vadd.f32 0.0, %v2932
        %v2934 = vpop.f32.mrb[0].mxu0
        %v2935 = vpop.f32.mrb[0].mxu0
        %v2936 = vadd.f32 0.0, %v2935
        %v2937 = vpop.f32.mrb[0].mxu0
        %2938 = vmatprep.mubr.bf16.mxu0 0
        %2939 = vmatmul.mubr.bf16.gmra.mrb[0].mxu0 %v2791
        %v2940 = vpop.f32.mrb[0].mxu0
        %v2941 = vadd.f32 0.0, %v2940
        %v2942 = vpop.f32.mrb[0].mxu0
        %v2943 = vpop.f32.mrb[0].mxu0
        %v2944 = vadd.f32 0.0, %v2943
        %v2945 = vpop.f32.mrb[0].mxu0
        %2946 = vmatprep.mubr.bf16.mxu0 0
        %2947 = vmatmul.mubr.bf16.gmra.mrb[0].mxu0 %v2794
        %v2948 = vpop.f32.mrb[0].mxu0
        %v2949 = vadd.f32 0.0, %v2948
        %v2950 = vpop.f32.mrb[0].mxu0
        %v2951 = vpop.f32.mrb[0].mxu0
        %v2952 = vadd.f32 0.0, %v2951
        %v2953 = vpop.f32.mrb[0].mxu0
        %2954 = vmatprep.mubr.bf16.mxu0 0
        %2955 = vmatmul.mubr.bf16.gmra.mrb[0].mxu0 %v2797
        %v2956 = vpop.f32.mrb[0].mxu0
        %v2957 = vadd.f32 0.0, %v2956
        %v2958 = vpop.f32.mrb[0].mxu0
        %v2959 = vpop.f32.mrb[0].mxu0
        %v2960 = vadd.f32 0.0, %v2959
        %v2961 = vpop.f32.mrb[0].mxu0
        %2962 = vdwg.mxu0
        %v2963 = vadd.f32 %v2701, %v2837
        %v2964 = vadd.f32 %v2702, %v2840
        %v2965 = vadd.f32 %v2703, %v2845
        %v2966 = vadd.f32 %v2704, %v2848
        %v2967 = vadd.f32 %v2705, %v2853
        %v2968 = vadd.f32 %v2706, %v2856
        %v2969 = vadd.f32 %v2707, %v2861
        %v2970 = vadd.f32 %v2708, %v2864
        %v2971 = vadd.f32 %v2709, %v2869
        %v2972 = vadd.f32 %v2710, %v2872
        %v2973 = vadd.f32 %v2711, %v2877
        %v2974 = vadd.f32 %v2712, %v2880
        %v2975 = vadd.f32 %v2713, %v2885
        %v2976 = vadd.f32 %v2714, %v2888
        %v2977 = vadd.f32 %v2715, %v2893
        %v2978 = vadd.f32 %v2716, %v2896
        %v2979 = vadd.f32 %v2717, %v2901
        %v2980 = vadd.f32 %v2718, %v2904
        %v2981 = vadd.f32 %v2719, %v2909
        %v2982 = vadd.f32 %v2720, %v2912
        %v2983 = vadd.f32 %v2721, %v2917
        %v2984 = vadd.f32 %v2722, %v2920
        %v2985 = vadd.f32 %v2723, %v2925
        %v2986 = vadd.f32 %v2724, %v2928
        %v2987 = vadd.f32 %v2725, %v2933
        %v2988 = vadd.f32 %v2726, %v2936
        %v2989 = vadd.f32 %v2727, %v2941
        %v2990 = vadd.f32 %v2728, %v2944
        %v2991 = vadd.f32 %v2729, %v2949
        %v2992 = vadd.f32 %v2730, %v2952
        %v2993 = vadd.f32 %v2731, %v2957
        %v2994 = vadd.f32 %v2732, %v2960
        %2995 = vst.msk [vmem:[#allocation3] sm:$0xff] %vm677, %v2963
        %2996 = vst.msk [vmem:[#allocation3 + $0x8] sm:$0xff] %vm677, %v2964
        %2997 = vst.msk [vmem:[#allocation3 + $0x10] sm:$0xff] %vm677, %v2965
        %2998 = vst.msk [vmem:[#allocation3 + $0x18] sm:$0xff] %vm677, %v2966
        %2999 = vst.msk [vmem:[#allocation3 + $0x20] sm:$0xff] %vm677, %v2967
        %3000 = vst.msk [vmem:[#allocation3 + $0x28] sm:$0xff] %vm677, %v2968
        %3001 = vst.msk [vmem:[#allocation3 + $0x30] sm:$0xff] %vm677, %v2969
        %3002 = vst.msk [vmem:[#allocation3 + $0x38] sm:$0xff] %vm677, %v2970
        %3003 = vst.msk [vmem:[#allocation3 + $0x40] sm:$0xff] %vm677, %v2971
        %3004 = vst.msk [vmem:[#allocation3 + $0x48] sm:$0xff] %vm677, %v2972
        %3005 = vst.msk [vmem:[#allocation3 + $0x50] sm:$0xff] %vm677, %v2973
        %3006 = vst.msk [vmem:[#allocation3 + $0x58] sm:$0xff] %vm677, %v2974
        %3007 = vst.msk [vmem:[#allocation3 + $0x60] sm:$0xff] %vm677, %v2975
        %3008 = vst.msk [vmem:[#allocation3 + $0x68] sm:$0xff] %vm677, %v2976
        %3009 = vst.msk [vmem:[#allocation3 + $0x70] sm:$0xff] %vm677, %v2977
        %3010 = vst.msk [vmem:[#allocation3 + $0x78] sm:$0xff] %vm677, %v2978
        %3011 = vst.msk [vmem:[#allocation3 + $0x80] sm:$0xff] %vm677, %v2979
        %3012 = vst.msk [vmem:[#allocation3 + $0x88] sm:$0xff] %vm677, %v2980
        %3013 = vst.msk [vmem:[#allocation3 + $0x90] sm:$0xff] %vm677, %v2981
        %3014 = vst.msk [vmem:[#allocation3 + $0x98] sm:$0xff] %vm677, %v2982
        %3015 = vst.msk [vmem:[#allocation3 + $0xa0] sm:$0xff] %vm677, %v2983
        %3016 = vst.msk [vmem:[#allocation3 + $0xa8] sm:$0xff] %vm677, %v2984
        %3017 = vst.msk [vmem:[#allocation3 + $0xb0] sm:$0xff] %vm677, %v2985
        %3018 = vst.msk [vmem:[#allocation3 + $0xb8] sm:$0xff] %vm677, %v2986
        %3019 = vst.msk [vmem:[#allocation3 + $0xc0] sm:$0xff] %vm677, %v2987
        %3020 = vst.msk [vmem:[#allocation3 + $0xc8] sm:$0xff] %vm677, %v2988
        %3021 = vst.msk [vmem:[#allocation3 + $0xd0] sm:$0xff] %vm677, %v2989
        %3022 = vst.msk [vmem:[#allocation3 + $0xd8] sm:$0xff] %vm677, %v2990
        %3023 = vst.msk [vmem:[#allocation3 + $0xe0] sm:$0xff] %vm677, %v2991
        %3024 = vst.msk [vmem:[#allocation3 + $0xe8] sm:$0xff] %vm677, %v2992
        %3025 = vst.msk [vmem:[#allocation3 + $0xf0] sm:$0xff] %vm677, %v2993
        %3026 = vst.msk [vmem:[#allocation3 + $0xf8] sm:$0xff] %vm677, %v2994
        %v3027 = vld [vmem:[#allocation3] sm:$0xff]
        %v3028 = vld [vmem:[#allocation3 + $0x8] sm:$0xff]
        %v3029 = vld [vmem:[#allocation3 + $0x10] sm:$0xff]
        %v3030 = vld [vmem:[#allocation3 + $0x18] sm:$0xff]
        %v3031 = vld [vmem:[#allocation3 + $0x20] sm:$0xff]
        %v3032 = vld [vmem:[#allocation3 + $0x28] sm:$0xff]
        %v3033 = vld [vmem:[#allocation3 + $0x30] sm:$0xff]
        %v3034 = vld [vmem:[#allocation3 + $0x38] sm:$0xff]
        %v3035 = vld [vmem:[#allocation3 + $0x40] sm:$0xff]
        %v3036 = vld [vmem:[#allocation3 + $0x48] sm:$0xff]
        %v3037 = vld [vmem:[#allocation3 + $0x50] sm:$0xff]
        %v3038 = vld [vmem:[#allocation3 + $0x58] sm:$0xff]
        %v3039 = vld [vmem:[#allocation3 + $0x60] sm:$0xff]
        %v3040 = vld [vmem:[#allocation3 + $0x68] sm:$0xff]
        %v3041 = vld [vmem:[#allocation3 + $0x70] sm:$0xff]
        %v3042 = vld [vmem:[#allocation3 + $0x78] sm:$0xff]
        %v3043 = vld [vmem:[#allocation3 + $0x80] sm:$0xff]
        %v3044 = vld [vmem:[#allocation3 + $0x88] sm:$0xff]
        %v3045 = vld [vmem:[#allocation3 + $0x90] sm:$0xff]
        %v3046 = vld [vmem:[#allocation3 + $0x98] sm:$0xff]
        %v3047 = vld [vmem:[#allocation3 + $0xa0] sm:$0xff]
        %v3048 = vld [vmem:[#allocation3 + $0xa8] sm:$0xff]
        %v3049 = vld [vmem:[#allocation3 + $0xb0] sm:$0xff]
        %v3050 = vld [vmem:[#allocation3 + $0xb8] sm:$0xff]
        %v3051 = vld [vmem:[#allocation3 + $0xc0] sm:$0xff]
        %v3052 = vld [vmem:[#allocation3 + $0xc8] sm:$0xff]
        %v3053 = vld [vmem:[#allocation3 + $0xd0] sm:$0xff]
        %v3054 = vld [vmem:[#allocation3 + $0xd8] sm:$0xff]
        %v3055 = vld [vmem:[#allocation3 + $0xe0] sm:$0xff]
        %v3056 = vld [vmem:[#allocation3 + $0xe8] sm:$0xff]
        %v3057 = vld [vmem:[#allocation3 + $0xf0] sm:$0xff]
        %v3058 = vld [vmem:[#allocation3 + $0xf8] sm:$0xff]
        %v3059 = vld [vmem:[%s436] sm:$0xff]
        %v3060 = vld [vmem:[%s436 + $0x8] sm:$0xff]
        %v3061 = vld [vmem:[%s436 + $0x10] sm:$0xff]
        %v3062 = vld [vmem:[%s436 + $0x18] sm:$0xff]
        %v3063 = vld [vmem:[%s436 + $0x20] sm:$0xff]
        %v3064 = vld [vmem:[%s436 + $0x28] sm:$0xff]
        %v3065 = vld [vmem:[%s436 + $0x30] sm:$0xff]
        %v3066 = vld [vmem:[%s436 + $0x38] sm:$0xff]
        %v3067 = vld [vmem:[%s436 + $0x40] sm:$0xff]
        %v3068 = vld [vmem:[%s436 + $0x48] sm:$0xff]
        %v3069 = vld [vmem:[%s436 + $0x50] sm:$0xff]
        %v3070 = vld [vmem:[%s436 + $0x58] sm:$0xff]
        %v3071 = vld [vmem:[%s436 + $0x60] sm:$0xff]
        %v3072 = vld [vmem:[%s436 + $0x68] sm:$0xff]
        %v3073 = vld [vmem:[%s436 + $0x70] sm:$0xff]
        %v3074 = vld [vmem:[%s436 + $0x78] sm:$0xff]
        %v3075 = vld [vmem:[%s436 + $0x80] sm:$0xff]
        %v3076 = vld [vmem:[%s436 + $0x88] sm:$0xff]
        %v3077 = vld [vmem:[%s436 + $0x90] sm:$0xff]
        %v3078 = vld [vmem:[%s436 + $0x98] sm:$0xff]
        %v3079 = vld [vmem:[%s436 + $0xa0] sm:$0xff]
        %v3080 = vld [vmem:[%s436 + $0xa8] sm:$0xff]
        %v3081 = vld [vmem:[%s436 + $0xb0] sm:$0xff]
        %v3082 = vld [vmem:[%s436 + $0xb8] sm:$0xff]
        %v3083 = vld [vmem:[%s436 + $0xc0] sm:$0xff]
        %v3084 = vld [vmem:[%s436 + $0xc8] sm:$0xff]
        %v3085 = vld [vmem:[%s436 + $0xd0] sm:$0xff]
        %v3086 = vld [vmem:[%s436 + $0xd8] sm:$0xff]
        %v3087 = vld [vmem:[%s436 + $0xe0] sm:$0xff]
        %v3088 = vld [vmem:[%s436 + $0xe8] sm:$0xff]
        %v3089 = vld [vmem:[%s436 + $0xf0] sm:$0xff]
        %v3090 = vld [vmem:[%s436 + $0xf8] sm:$0xff]
        %3123 = vrot.lane.b32.xlu0 %v503, 4
        %v3124 = vpop.permute.xlu0 %3123
        %3125 = vrot.lane.b32.xlu0 %v504, 4
        %v3126 = vpop.permute.xlu0 %3125
        %3127 = vrot.lane.b32.xlu0 %v505, 4
        %v3128 = vpop.permute.xlu0 %3127
        %3129 = vrot.lane.b32.xlu0 %v506, 4
        %v3130 = vpop.permute.xlu0 %3129
        %3131 = vrot.lane.b32.xlu0 %v507, 4
        %v3132 = vpop.permute.xlu0 %3131
        %3133 = vrot.lane.b32.xlu0 %v508, 4
        %v3134 = vpop.permute.xlu0 %3133
        %3135 = vrot.lane.b32.xlu0 %v509, 4
        %v3136 = vpop.permute.xlu0 %3135
        %3137 = vrot.lane.b32.xlu0 %v510, 4
        %v3138 = vpop.permute.xlu0 %3137
        %3139 = vrot.lane.b32.xlu0 %v511, 4
        %v3140 = vpop.permute.xlu0 %3139
        %3141 = vrot.lane.b32.xlu0 %v512, 4
        %v3142 = vpop.permute.xlu0 %3141
        %3143 = vrot.lane.b32.xlu0 %v513, 4
        %v3144 = vpop.permute.xlu0 %3143
        %3145 = vrot.lane.b32.xlu0 %v514, 4
        %v3146 = vpop.permute.xlu0 %3145
        %3147 = vrot.lane.b32.xlu0 %v515, 4
        %v3148 = vpop.permute.xlu0 %3147
        %3149 = vrot.lane.b32.xlu0 %v516, 4
        %v3150 = vpop.permute.xlu0 %3149
        %3151 = vrot.lane.b32.xlu0 %v517, 4
        %v3152 = vpop.permute.xlu0 %3151
        %3153 = vrot.lane.b32.xlu0 %v518, 4
        %v3154 = vpop.permute.xlu0 %3153
        %3155 = vrot.lane.b32.xlu0 %v519, 4
        %v3156 = vpop.permute.xlu0 %3155
        %3157 = vrot.lane.b32.xlu0 %v520, 4
        %v3158 = vpop.permute.xlu0 %3157
        %3159 = vrot.lane.b32.xlu0 %v521, 4
        %v3160 = vpop.permute.xlu0 %3159
        %3161 = vrot.lane.b32.xlu0 %v522, 4
        %v3162 = vpop.permute.xlu0 %3161
        %3163 = vrot.lane.b32.xlu0 %v523, 4
        %v3164 = vpop.permute.xlu0 %3163
        %3165 = vrot.lane.b32.xlu0 %v524, 4
        %v3166 = vpop.permute.xlu0 %3165
        %3167 = vrot.lane.b32.xlu0 %v525, 4
        %v3168 = vpop.permute.xlu0 %3167
        %3169 = vrot.lane.b32.xlu0 %v526, 4
        %v3170 = vpop.permute.xlu0 %3169
        %3171 = vrot.lane.b32.xlu0 %v527, 4
        %v3172 = vpop.permute.xlu0 %3171
        %3173 = vrot.lane.b32.xlu0 %v528, 4
        %v3174 = vpop.permute.xlu0 %3173
        %3175 = vrot.lane.b32.xlu0 %v529, 4
        %v3176 = vpop.permute.xlu0 %3175
        %3177 = vrot.lane.b32.xlu0 %v530, 4
        %v3178 = vpop.permute.xlu0 %3177
        %3179 = vrot.lane.b32.xlu0 %v531, 4
        %v3180 = vpop.permute.xlu0 %3179
        %3181 = vrot.lane.b32.xlu0 %v532, 4
        %v3182 = vpop.permute.xlu0 %3181
        %3183 = vrot.lane.b32.xlu0 %v533, 4
        %v3184 = vpop.permute.xlu0 %3183
        %3185 = vrot.lane.b32.xlu0 %v534, 4
        %v3186 = vpop.permute.xlu0 %3185
        %3251 = vrot.lane.b32.xlu0 %v3027, 6
        %v3252 = vpop.permute.xlu0 %3251
        %3253 = vrot.lane.b32.xlu0 %v3028, 6
        %v3254 = vpop.permute.xlu0 %3253
        %3255 = vrot.lane.b32.xlu0 %v3029, 6
        %v3256 = vpop.permute.xlu0 %3255
        %3257 = vrot.lane.b32.xlu0 %v3030, 6
        %v3258 = vpop.permute.xlu0 %3257
        %3259 = vrot.lane.b32.xlu0 %v3031, 6
        %v3260 = vpop.permute.xlu0 %3259
        %3261 = vrot.lane.b32.xlu0 %v3032, 6
        %v3262 = vpop.permute.xlu0 %3261
        %3263 = vrot.lane.b32.xlu0 %v3033, 6
        %v3264 = vpop.permute.xlu0 %3263
        %3265 = vrot.lane.b32.xlu0 %v3034, 6
        %v3266 = vpop.permute.xlu0 %3265
        %3267 = vrot.lane.b32.xlu0 %v3035, 6
        %v3268 = vpop.permute.xlu0 %3267
        %3269 = vrot.lane.b32.xlu0 %v3036, 6
        %v3270 = vpop.permute.xlu0 %3269
        %3271 = vrot.lane.b32.xlu0 %v3037, 6
        %v3272 = vpop.permute.xlu0 %3271
        %3273 = vrot.lane.b32.xlu0 %v3038, 6
        %v3274 = vpop.permute.xlu0 %3273
        %3275 = vrot.lane.b32.xlu0 %v3039, 6
        %v3276 = vpop.permute.xlu0 %3275
        %3277 = vrot.lane.b32.xlu0 %v3040, 6
        %v3278 = vpop.permute.xlu0 %3277
        %3279 = vrot.lane.b32.xlu0 %v3041, 6
        %v3280 = vpop.permute.xlu0 %3279
        %3281 = vrot.lane.b32.xlu0 %v3042, 6
        %v3282 = vpop.permute.xlu0 %3281
        %3283 = vrot.lane.b32.xlu0 %v3043, 6
        %v3284 = vpop.permute.xlu0 %3283
        %3285 = vrot.lane.b32.xlu0 %v3044, 6
        %v3286 = vpop.permute.xlu0 %3285
        %3287 = vrot.lane.b32.xlu0 %v3045, 6
        %v3288 = vpop.permute.xlu0 %3287
        %3289 = vrot.lane.b32.xlu0 %v3046, 6
        %v3290 = vpop.permute.xlu0 %3289
        %3291 = vrot.lane.b32.xlu0 %v3047, 6
        %v3292 = vpop.permute.xlu0 %3291
        %3293 = vrot.lane.b32.xlu0 %v3048, 6
        %v3294 = vpop.permute.xlu0 %3293
        %3295 = vrot.lane.b32.xlu0 %v3049, 6
        %v3296 = vpop.permute.xlu0 %3295
        %3297 = vrot.lane.b32.xlu0 %v3050, 6
        %v3298 = vpop.permute.xlu0 %3297
        %3299 = vrot.lane.b32.xlu0 %v3051, 6
        %v3300 = vpop.permute.xlu0 %3299
        %3301 = vrot.lane.b32.xlu0 %v3052, 6
        %v3302 = vpop.permute.xlu0 %3301
        %3303 = vrot.lane.b32.xlu0 %v3053, 6
        %v3304 = vpop.permute.xlu0 %3303
        %3305 = vrot.lane.b32.xlu0 %v3054, 6
        %v3306 = vpop.permute.xlu0 %3305
        %3307 = vrot.lane.b32.xlu0 %v3055, 6
        %v3308 = vpop.permute.xlu0 %3307
        %3309 = vrot.lane.b32.xlu0 %v3056, 6
        %v3310 = vpop.permute.xlu0 %3309
        %3311 = vrot.lane.b32.xlu0 %v3057, 6
        %v3312 = vpop.permute.xlu0 %3311
        %3313 = vrot.lane.b32.xlu0 %v3058, 6
        %v3314 = vpop.permute.xlu0 %3313
        %v3347 = vsel %vm1182, %v3059, %v3124
        %v3348 = vsel %vm1182, %v3060, %v3126
        %v3349 = vsel %vm1182, %v3061, %v3128
        %v3350 = vsel %vm1182, %v3062, %v3130
        %v3351 = vsel %vm1182, %v3063, %v3132
        %v3352 = vsel %vm1182, %v3064, %v3134
        %v3353 = vsel %vm1182, %v3065, %v3136
        %v3354 = vsel %vm1182, %v3066, %v3138
        %v3355 = vsel %vm1182, %v3067, %v3140
        %v3356 = vsel %vm1182, %v3068, %v3142
        %v3357 = vsel %vm1182, %v3069, %v3144
        %v3358 = vsel %vm1182, %v3070, %v3146
        %v3359 = vsel %vm1182, %v3071, %v3148
        %v3360 = vsel %vm1182, %v3072, %v3150
        %v3361 = vsel %vm1182, %v3073, %v3152
        %v3362 = vsel %vm1182, %v3074, %v3154
        %v3363 = vsel %vm1182, %v3075, %v3156
        %v3364 = vsel %vm1182, %v3076, %v3158
        %v3365 = vsel %vm1182, %v3077, %v3160
        %v3366 = vsel %vm1182, %v3078, %v3162
        %v3367 = vsel %vm1182, %v3079, %v3164
        %v3368 = vsel %vm1182, %v3080, %v3166
        %v3369 = vsel %vm1182, %v3081, %v3168
        %v3370 = vsel %vm1182, %v3082, %v3170
        %v3371 = vsel %vm1182, %v3083, %v3172
        %v3372 = vsel %vm1182, %v3084, %v3174
        %v3373 = vsel %vm1182, %v3085, %v3176
        %v3374 = vsel %vm1182, %v3086, %v3178
        %v3375 = vsel %vm1182, %v3087, %v3180
        %v3376 = vsel %vm1182, %v3088, %v3182
        %v3377 = vsel %vm1182, %v3089, %v3184
        %v3378 = vsel %vm1182, %v3090, %v3186
        %v3379 = vsel %vm1264, %v3347, %v3252
        %v3380 = vsel %vm1264, %v3348, %v3254
        %v3381 = vsel %vm1264, %v3349, %v3256
        %v3382 = vsel %vm1264, %v3350, %v3258
        %v3383 = vsel %vm1264, %v3351, %v3260
        %v3384 = vsel %vm1264, %v3352, %v3262
        %v3385 = vsel %vm1264, %v3353, %v3264
        %v3386 = vsel %vm1264, %v3354, %v3266
        %v3387 = vsel %vm1264, %v3355, %v3268
        %v3388 = vsel %vm1264, %v3356, %v3270
        %v3389 = vsel %vm1264, %v3357, %v3272
        %v3390 = vsel %vm1264, %v3358, %v3274
        %v3391 = vsel %vm1264, %v3359, %v3276
        %v3392 = vsel %vm1264, %v3360, %v3278
        %v3393 = vsel %vm1264, %v3361, %v3280
        %v3394 = vsel %vm1264, %v3362, %v3282
        %v3395 = vsel %vm1264, %v3363, %v3284
        %v3396 = vsel %vm1264, %v3364, %v3286
        %v3397 = vsel %vm1264, %v3365, %v3288
        %v3398 = vsel %vm1264, %v3366, %v3290
        %v3399 = vsel %vm1264, %v3367, %v3292
        %v3400 = vsel %vm1264, %v3368, %v3294
        %v3401 = vsel %vm1264, %v3369, %v3296
        %v3402 = vsel %vm1264, %v3370, %v3298
        %v3403 = vsel %vm1264, %v3371, %v3300
        %v3404 = vsel %vm1264, %v3372, %v3302
        %v3405 = vsel %vm1264, %v3373, %v3304
        %v3406 = vsel %vm1264, %v3374, %v3306
        %v3407 = vsel %vm1264, %v3375, %v3308
        %v3408 = vsel %vm1264, %v3376, %v3310
        %v3409 = vsel %vm1264, %v3377, %v3312
        %v3410 = vsel %vm1264, %v3378, %v3314
        %v3411 = vld [vmem:[#allocation14] sm:$0x1]
        %v3413 = vlaneseq
        %v3414 = vshrl.u32 %v3413, 7
        %v3415 = vsub.s32 0, %v3414
        %v3416 = vrot.slane %v3411, %v3415
        %v3418 = vmul.f32 %v535, %v3416
        %v3419 = vmul.f32 %v536, %v3416
        %v3420 = vmul.f32 %v537, %v3416
        %v3421 = vmul.f32 %v538, %v3416
        %v3422 = vmul.f32 %v539, %v3416
        %v3423 = vmul.f32 %v540, %v3416
        %v3424 = vmul.f32 %v541, %v3416
        %v3425 = vmul.f32 %v542, %v3416
        %v3426 = vmul.f32 %v543, %v3416
        %v3427 = vmul.f32 %v544, %v3416
        %v3428 = vmul.f32 %v545, %v3416
        %v3429 = vmul.f32 %v546, %v3416
        %v3430 = vmul.f32 %v547, %v3416
        %v3431 = vmul.f32 %v548, %v3416
        %v3432 = vmul.f32 %v549, %v3416
        %v3433 = vmul.f32 %v550, %v3416
        %v3434 = vmul.f32 %v551, %v3416
        %v3435 = vmul.f32 %v552, %v3416
        %v3436 = vmul.f32 %v553, %v3416
        %v3437 = vmul.f32 %v554, %v3416
        %v3438 = vmul.f32 %v555, %v3416
        %v3439 = vmul.f32 %v556, %v3416
        %v3440 = vmul.f32 %v557, %v3416
        %v3441 = vmul.f32 %v558, %v3416
        %v3442 = vmul.f32 %v559, %v3416
        %v3443 = vmul.f32 %v560, %v3416
        %v3444 = vmul.f32 %v561, %v3416
        %v3445 = vmul.f32 %v562, %v3416
        %v3446 = vmul.f32 %v563, %v3416
        %v3447 = vmul.f32 %v564, %v3416
        %v3448 = vmul.f32 %v565, %v3416
        %v3449 = vmul.f32 %v566, %v3416
        %v3450 = vld [vmem:[#allocation15] sm:$0x1]
        %v3452 = vlaneseq
        %v3453 = vshrl.u32 %v3452, 7
        %v3454 = vsub.s32 0, %v3453
        %v3455 = vrot.slane %v3450, %v3454
        %v3457 = vadd.f32 %v3418, %v3455
        %v3458 = vadd.f32 %v3419, %v3455
        %v3459 = vadd.f32 %v3420, %v3455
        %v3460 = vadd.f32 %v3421, %v3455
        %v3461 = vadd.f32 %v3422, %v3455
        %v3462 = vadd.f32 %v3423, %v3455
        %v3463 = vadd.f32 %v3424, %v3455
        %v3464 = vadd.f32 %v3425, %v3455
        %v3465 = vadd.f32 %v3426, %v3455
        %v3466 = vadd.f32 %v3427, %v3455
        %v3467 = vadd.f32 %v3428, %v3455
        %v3468 = vadd.f32 %v3429, %v3455
        %v3469 = vadd.f32 %v3430, %v3455
        %v3470 = vadd.f32 %v3431, %v3455
        %v3471 = vadd.f32 %v3432, %v3455
        %v3472 = vadd.f32 %v3433, %v3455
        %v3473 = vadd.f32 %v3434, %v3455
        %v3474 = vadd.f32 %v3435, %v3455
        %v3475 = vadd.f32 %v3436, %v3455
        %v3476 = vadd.f32 %v3437, %v3455
        %v3477 = vadd.f32 %v3438, %v3455
        %v3478 = vadd.f32 %v3439, %v3455
        %v3479 = vadd.f32 %v3440, %v3455
        %v3480 = vadd.f32 %v3441, %v3455
        %v3481 = vadd.f32 %v3442, %v3455
        %v3482 = vadd.f32 %v3443, %v3455
        %v3483 = vadd.f32 %v3444, %v3455
        %v3484 = vadd.f32 %v3445, %v3455
        %v3485 = vadd.f32 %v3446, %v3455
        %v3486 = vadd.f32 %v3447, %v3455
        %v3487 = vadd.f32 %v3448, %v3455
        %v3488 = vadd.f32 %v3449, %v3455
        %v3489 = vmax.f32 %v3457, 0.0
        %v3490 = vmax.f32 %v3458, 0.0
        %v3491 = vmax.f32 %v3459, 0.0
        %v3492 = vmax.f32 %v3460, 0.0
        %v3493 = vmax.f32 %v3461, 0.0
        %v3494 = vmax.f32 %v3462, 0.0
        %v3495 = vmax.f32 %v3463, 0.0
        %v3496 = vmax.f32 %v3464, 0.0
        %v3497 = vmax.f32 %v3465, 0.0
        %v3498 = vmax.f32 %v3466, 0.0
        %v3499 = vmax.f32 %v3467, 0.0
        %v3500 = vmax.f32 %v3468, 0.0
        %v3501 = vmax.f32 %v3469, 0.0
        %v3502 = vmax.f32 %v3470, 0.0
        %v3503 = vmax.f32 %v3471, 0.0
        %v3504 = vmax.f32 %v3472, 0.0
        %v3505 = vmax.f32 %v3473, 0.0
        %v3506 = vmax.f32 %v3474, 0.0
        %v3507 = vmax.f32 %v3475, 0.0
        %v3508 = vmax.f32 %v3476, 0.0
        %v3509 = vmax.f32 %v3477, 0.0
        %v3510 = vmax.f32 %v3478, 0.0
        %v3511 = vmax.f32 %v3479, 0.0
        %v3512 = vmax.f32 %v3480, 0.0
        %v3513 = vmax.f32 %v3481, 0.0
        %v3514 = vmax.f32 %v3482, 0.0
        %v3515 = vmax.f32 %v3483, 0.0
        %v3516 = vmax.f32 %v3484, 0.0
        %v3517 = vmax.f32 %v3485, 0.0
        %v3518 = vmax.f32 %v3486, 0.0
        %v3519 = vmax.f32 %v3487, 0.0
        %v3520 = vmax.f32 %v3488, 0.0
        %v3521 = vpack.c.bf16 %v3490, %v3489
        %v3522 = vpack.c.bf16 %v3492, %v3491
        %v3523 = vpack.c.bf16 %v3494, %v3493
        %v3524 = vpack.c.bf16 %v3496, %v3495
        %v3525 = vpack.c.bf16 %v3498, %v3497
        %v3526 = vpack.c.bf16 %v3500, %v3499
        %v3527 = vpack.c.bf16 %v3502, %v3501
        %v3528 = vpack.c.bf16 %v3504, %v3503
        %v3529 = vpack.c.bf16 %v3506, %v3505
        %v3530 = vpack.c.bf16 %v3508, %v3507
        %v3531 = vpack.c.bf16 %v3510, %v3509
        %v3532 = vpack.c.bf16 %v3512, %v3511
        %v3533 = vpack.c.bf16 %v3514, %v3513
        %v3534 = vpack.c.bf16 %v3516, %v3515
        %v3535 = vpack.c.bf16 %v3518, %v3517
        %v3536 = vpack.c.bf16 %v3520, %v3519
        %v3537 = vld [vmem:[#allocation16] sm:$0x3]
        %v3539 = vsel %vm1182, %v3521, 0
        %v3542 = vsel %vm1182, %v3522, 0
        %v3545 = vsel %vm1182, %v3523, 0
        %v3548 = vsel %vm1182, %v3524, 0
        %v3551 = vsel %vm1182, %v3525, 0
        %v3554 = vsel %vm1182, %v3526, 0
        %v3557 = vsel %vm1182, %v3527, 0
        %v3560 = vsel %vm1182, %v3528, 0
        %v3563 = vsel %vm1182, %v3529, 0
        %v3566 = vsel %vm1182, %v3530, 0
        %v3569 = vsel %vm1182, %v3531, 0
        %v3572 = vsel %vm1182, %v3532, 0
        %v3575 = vsel %vm1182, %v3533, 0
        %v3578 = vsel %vm1182, %v3534, 0
        %v3581 = vsel %vm1182, %v3535, 0
        %v3584 = vsel %vm1182, %v3536, 0
        %vm3586 = vcmask 1041408
        %v3588 = vsel %vm3586, %v3537, 0
        %3590 = vmatprep.subr.bf16.mxu0 0
        %3591 = vmatpush1.bf16.msra.mxu0 %v3588
        %3592 = vmatprep.subr.bf16.mxu0 0
        %3593 = vmatpush1.bf16.msra.mxu0 0
        %3594 = vmatprep.subr.bf16.mxu0 0
        %3595 = vmatpush1.bf16.msra.mxu0 0
        %3596 = vmatprep.subr.bf16.mxu0 0
        %3597 = vmatpush1.bf16.msra.mxu0 0
        %3598 = vmatprep.subr.bf16.mxu0 0
        %3599 = vmatpush1.bf16.msra.mxu0 0
        %3600 = vmatprep.subr.bf16.mxu0 0
        %3601 = vmatpush1.bf16.msra.mxu0 0
        %3602 = vmatprep.subr.bf16.mxu0 0
        %3603 = vmatpush1.bf16.msra.mxu0 0
        %3604 = vmatprep.subr.bf16.mxu0 0
        %3605 = vmatpush1.bf16.msra.mxu0 0
        %3606 = vmatprep.subr.bf16.mxu0 0
        %3607 = vmatpush1.bf16.msra.mxu0 0
        %3608 = vmatprep.subr.bf16.mxu0 0
        %3609 = vmatpush1.bf16.msra.mxu0 0
        %3610 = vmatprep.subr.bf16.mxu0 0
        %3611 = vmatpush1.bf16.msra.mxu0 0
        %3612 = vmatprep.subr.bf16.mxu0 0
        %3613 = vmatpush1.bf16.msra.mxu0 0
        %3614 = vmatprep.subr.bf16.mxu0 0
        %3615 = vmatpush1.bf16.msra.mxu0 0
        %3616 = vmatprep.subr.bf16.mxu0 0
        %3617 = vmatpush1.bf16.msra.mxu0 0
        %3618 = vmatprep.subr.bf16.mxu0 0
        %3619 = vmatpush1.bf16.msra.mxu0 0
        %3620 = vmatprep.subr.bf16.mxu0 0
        %3621 = vmatpush1.bf16.msra.mxu0 0
        %3622 = vmatprep.mubr.bf16.mxu0 0
        %3623 = vmatmul.mubr.bf16.gmra.mrb[0].mxu0 %v3539
        %v3624 = vpop.f32.mrb[0].mxu0
        %v3625 = vadd.f32 0.0, %v3624
        %v3626 = vpop.f32.mrb[0].mxu0
        %v3627 = vpop.f32.mrb[0].mxu0
        %v3628 = vadd.f32 0.0, %v3627
        %v3629 = vpop.f32.mrb[0].mxu0
        %3630 = vmatprep.mubr.bf16.mxu0 0
        %3631 = vmatmul.mubr.bf16.gmra.mrb[0].mxu0 %v3542
        %v3632 = vpop.f32.mrb[0].mxu0
        %v3633 = vadd.f32 0.0, %v3632
        %v3634 = vpop.f32.mrb[0].mxu0
        %v3635 = vpop.f32.mrb[0].mxu0
        %v3636 = vadd.f32 0.0, %v3635
        %v3637 = vpop.f32.mrb[0].mxu0
        %3638 = vmatprep.mubr.bf16.mxu0 0
        %3639 = vmatmul.mubr.bf16.gmra.mrb[0].mxu0 %v3545
        %v3640 = vpop.f32.mrb[0].mxu0
        %v3641 = vadd.f32 0.0, %v3640
        %v3642 = vpop.f32.mrb[0].mxu0
        %v3643 = vpop.f32.mrb[0].mxu0
        %v3644 = vadd.f32 0.0, %v3643
        %v3645 = vpop.f32.mrb[0].mxu0
        %3646 = vmatprep.mubr.bf16.mxu0 0
        %3647 = vmatmul.mubr.bf16.gmra.mrb[0].mxu0 %v3548
        %v3648 = vpop.f32.mrb[0].mxu0
        %v3649 = vadd.f32 0.0, %v3648
        %v3650 = vpop.f32.mrb[0].mxu0
        %v3651 = vpop.f32.mrb[0].mxu0
        %v3652 = vadd.f32 0.0, %v3651
        %v3653 = vpop.f32.mrb[0].mxu0
        %3654 = vmatprep.mubr.bf16.mxu0 0
        %3655 = vmatmul.mubr.bf16.gmra.mrb[0].mxu0 %v3551
        %v3656 = vpop.f32.mrb[0].mxu0
        %v3657 = vadd.f32 0.0, %v3656
        %v3658 = vpop.f32.mrb[0].mxu0
        %v3659 = vpop.f32.mrb[0].mxu0
        %v3660 = vadd.f32 0.0, %v3659
        %v3661 = vpop.f32.mrb[0].mxu0
        %3662 = vmatprep.mubr.bf16.mxu0 0
        %3663 = vmatmul.mubr.bf16.gmra.mrb[0].mxu0 %v3554
        %v3664 = vpop.f32.mrb[0].mxu0
        %v3665 = vadd.f32 0.0, %v3664
        %v3666 = vpop.f32.mrb[0].mxu0
        %v3667 = vpop.f32.mrb[0].mxu0
        %v3668 = vadd.f32 0.0, %v3667
        %v3669 = vpop.f32.mrb[0].mxu0
        %3670 = vmatprep.mubr.bf16.mxu0 0
        %3671 = vmatmul.mubr.bf16.gmra.mrb[0].mxu0 %v3557
        %v3672 = vpop.f32.mrb[0].mxu0
        %v3673 = vadd.f32 0.0, %v3672
        %v3674 = vpop.f32.mrb[0].mxu0
        %v3675 = vpop.f32.mrb[0].mxu0
        %v3676 = vadd.f32 0.0, %v3675
        %v3677 = vpop.f32.mrb[0].mxu0
        %3678 = vmatprep.mubr.bf16.mxu0 0
        %3679 = vmatmul.mubr.bf16.gmra.mrb[0].mxu0 %v3560
        %v3680 = vpop.f32.mrb[0].mxu0
        %v3681 = vadd.f32 0.0, %v3680
        %v3682 = vpop.f32.mrb[0].mxu0
        %v3683 = vpop.f32.mrb[0].mxu0
        %v3684 = vadd.f32 0.0, %v3683
        %v3685 = vpop.f32.mrb[0].mxu0
        %3686 = vmatprep.mubr.bf16.mxu0 0
        %3687 = vmatmul.mubr.bf16.gmra.mrb[0].mxu0 %v3563
        %v3688 = vpop.f32.mrb[0].mxu0
        %v3689 = vadd.f32 0.0, %v3688
        %v3690 = vpop.f32.mrb[0].mxu0
        %v3691 = vpop.f32.mrb[0].mxu0
        %v3692 = vadd.f32 0.0, %v3691
        %v3693 = vpop.f32.mrb[0].mxu0
        %3694 = vmatprep.mubr.bf16.mxu0 0
        %3695 = vmatmul.mubr.bf16.gmra.mrb[0].mxu0 %v3566
        %v3696 = vpop.f32.mrb[0].mxu0
        %v3697 = vadd.f32 0.0, %v3696
        %v3698 = vpop.f32.mrb[0].mxu0
        %v3699 = vpop.f32.mrb[0].mxu0
        %v3700 = vadd.f32 0.0, %v3699
        %v3701 = vpop.f32.mrb[0].mxu0
        %3702 = vmatprep.mubr.bf16.mxu0 0
        %3703 = vmatmul.mubr.bf16.gmra.mrb[0].mxu0 %v3569
        %v3704 = vpop.f32.mrb[0].mxu0
        %v3705 = vadd.f32 0.0, %v3704
        %v3706 = vpop.f32.mrb[0].mxu0
        %v3707 = vpop.f32.mrb[0].mxu0
        %v3708 = vadd.f32 0.0, %v3707
        %v3709 = vpop.f32.mrb[0].mxu0
        %3710 = vmatprep.mubr.bf16.mxu0 0
        %3711 = vmatmul.mubr.bf16.gmra.mrb[0].mxu0 %v3572
        %v3712 = vpop.f32.mrb[0].mxu0
        %v3713 = vadd.f32 0.0, %v3712
        %v3714 = vpop.f32.mrb[0].mxu0
        %v3715 = vpop.f32.mrb[0].mxu0
        %v3716 = vadd.f32 0.0, %v3715
        %v3717 = vpop.f32.mrb[0].mxu0
        %3718 = vmatprep.mubr.bf16.mxu0 0
        %3719 = vmatmul.mubr.bf16.gmra.mrb[0].mxu0 %v3575
        %v3720 = vpop.f32.mrb[0].mxu0
        %v3721 = vadd.f32 0.0, %v3720
        %v3722 = vpop.f32.mrb[0].mxu0
        %v3723 = vpop.f32.mrb[0].mxu0
        %v3724 = vadd.f32 0.0, %v3723
        %v3725 = vpop.f32.mrb[0].mxu0
        %3726 = vmatprep.mubr.bf16.mxu0 0
        %3727 = vmatmul.mubr.bf16.gmra.mrb[0].mxu0 %v3578
        %v3728 = vpop.f32.mrb[0].mxu0
        %v3729 = vadd.f32 0.0, %v3728
        %v3730 = vpop.f32.mrb[0].mxu0
        %v3731 = vpop.f32.mrb[0].mxu0
        %v3732 = vadd.f32 0.0, %v3731
        %v3733 = vpop.f32.mrb[0].mxu0
        %3734 = vmatprep.mubr.bf16.mxu0 0
        %3735 = vmatmul.mubr.bf16.gmra.mrb[0].mxu0 %v3581
        %v3736 = vpop.f32.mrb[0].mxu0
        %v3737 = vadd.f32 0.0, %v3736
        %v3738 = vpop.f32.mrb[0].mxu0
        %v3739 = vpop.f32.mrb[0].mxu0
        %v3740 = vadd.f32 0.0, %v3739
        %v3741 = vpop.f32.mrb[0].mxu0
        %3742 = vmatprep.mubr.bf16.mxu0 0
        %3743 = vmatmul.mubr.bf16.gmra.mrb[0].mxu0 %v3584
        %v3744 = vpop.f32.mrb[0].mxu0
        %v3745 = vadd.f32 0.0, %v3744
        %v3746 = vpop.f32.mrb[0].mxu0
        %v3747 = vpop.f32.mrb[0].mxu0
        %v3748 = vadd.f32 0.0, %v3747
        %v3749 = vpop.f32.mrb[0].mxu0
        %3750 = vdwg.mxu0
        %v3751 = vadd.f32 %v3379, %v3625
        %v3752 = vadd.f32 %v3380, %v3628
        %v3753 = vadd.f32 %v3381, %v3633
        %v3754 = vadd.f32 %v3382, %v3636
        %v3755 = vadd.f32 %v3383, %v3641
        %v3756 = vadd.f32 %v3384, %v3644
        %v3757 = vadd.f32 %v3385, %v3649
        %v3758 = vadd.f32 %v3386, %v3652
        %v3759 = vadd.f32 %v3387, %v3657
        %v3760 = vadd.f32 %v3388, %v3660
        %v3761 = vadd.f32 %v3389, %v3665
        %v3762 = vadd.f32 %v3390, %v3668
        %v3763 = vadd.f32 %v3391, %v3673
        %v3764 = vadd.f32 %v3392, %v3676
        %v3765 = vadd.f32 %v3393, %v3681
        %v3766 = vadd.f32 %v3394, %v3684
        %v3767 = vadd.f32 %v3395, %v3689
        %v3768 = vadd.f32 %v3396, %v3692
        %v3769 = vadd.f32 %v3397, %v3697
        %v3770 = vadd.f32 %v3398, %v3700
        %v3771 = vadd.f32 %v3399, %v3705
        %v3772 = vadd.f32 %v3400, %v3708
        %v3773 = vadd.f32 %v3401, %v3713
        %v3774 = vadd.f32 %v3402, %v3716
        %v3775 = vadd.f32 %v3403, %v3721
        %v3776 = vadd.f32 %v3404, %v3724
        %v3777 = vadd.f32 %v3405, %v3729
        %v3778 = vadd.f32 %v3406, %v3732
        %v3779 = vadd.f32 %v3407, %v3737
        %v3780 = vadd.f32 %v3408, %v3740
        %v3781 = vadd.f32 %v3409, %v3745
        %v3782 = vadd.f32 %v3410, %v3748
        %vm3783 = vcmask 64512
        %3784 = vst.msk [vmem:[%s501] sm:$0xff] %vm3783, %v3751
        %3785 = vst.msk [vmem:[%s501 + $0x8] sm:$0xff] %vm3783, %v3752
        %3786 = vst.msk [vmem:[%s501 + $0x10] sm:$0xff] %vm3783, %v3753
        %3787 = vst.msk [vmem:[%s501 + $0x18] sm:$0xff] %vm3783, %v3754
        %3788 = vst.msk [vmem:[%s501 + $0x20] sm:$0xff] %vm3783, %v3755
        %3789 = vst.msk [vmem:[%s501 + $0x28] sm:$0xff] %vm3783, %v3756
        %3790 = vst.msk [vmem:[%s501 + $0x30] sm:$0xff] %vm3783, %v3757
        %3791 = vst.msk [vmem:[%s501 + $0x38] sm:$0xff] %vm3783, %v3758
        %3792 = vst.msk [vmem:[%s501 + $0x40] sm:$0xff] %vm3783, %v3759
        %3793 = vst.msk [vmem:[%s501 + $0x48] sm:$0xff] %vm3783, %v3760
        %3794 = vst.msk [vmem:[%s501 + $0x50] sm:$0xff] %vm3783, %v3761
        %3795 = vst.msk [vmem:[%s501 + $0x58] sm:$0xff] %vm3783, %v3762
        %3796 = vst.msk [vmem:[%s501 + $0x60] sm:$0xff] %vm3783, %v3763
        %3797 = vst.msk [vmem:[%s501 + $0x68] sm:$0xff] %vm3783, %v3764
        %3798 = vst.msk [vmem:[%s501 + $0x70] sm:$0xff] %vm3783, %v3765
        %3799 = vst.msk [vmem:[%s501 + $0x78] sm:$0xff] %vm3783, %v3766
        %3800 = vst.msk [vmem:[%s501 + $0x80] sm:$0xff] %vm3783, %v3767
        %3801 = vst.msk [vmem:[%s501 + $0x88] sm:$0xff] %vm3783, %v3768
        %3802 = vst.msk [vmem:[%s501 + $0x90] sm:$0xff] %vm3783, %v3769
        %3803 = vst.msk [vmem:[%s501 + $0x98] sm:$0xff] %vm3783, %v3770
        %3804 = vst.msk [vmem:[%s501 + $0xa0] sm:$0xff] %vm3783, %v3771
        %3805 = vst.msk [vmem:[%s501 + $0xa8] sm:$0xff] %vm3783, %v3772
        %3806 = vst.msk [vmem:[%s501 + $0xb0] sm:$0xff] %vm3783, %v3773
        %3807 = vst.msk [vmem:[%s501 + $0xb8] sm:$0xff] %vm3783, %v3774
        %3808 = vst.msk [vmem:[%s501 + $0xc0] sm:$0xff] %vm3783, %v3775
        %3809 = vst.msk [vmem:[%s501 + $0xc8] sm:$0xff] %vm3783, %v3776
        %3810 = vst.msk [vmem:[%s501 + $0xd0] sm:$0xff] %vm3783, %v3777
        %3811 = vst.msk [vmem:[%s501 + $0xd8] sm:$0xff] %vm3783, %v3778
        %3812 = vst.msk [vmem:[%s501 + $0xe0] sm:$0xff] %vm3783, %v3779
        %3813 = vst.msk [vmem:[%s501 + $0xe8] sm:$0xff] %vm3783, %v3780
        %3814 = vst.msk [vmem:[%s501 + $0xf0] sm:$0xff] %vm3783, %v3781
        %3815 = vst.msk [vmem:[%s501 + $0xf8] sm:$0xff] %vm3783, %v3782
        %s3816 = sand.u32 %s241, 1
        %s3817 = scalar_lea.sflag [#allocation6], %s3816
        %s3818 = sand.u32 %s241, 1
        %s3819 = smul.addr %s3818, 256
        %s3820 = scalar_lea.vmem [#allocation18], %s3819
        // Predicated region
        $region93: #{conv_block_forward.5} parent=55 // pred_check
          %p3821 = pneg %p251
        $region94: #{conv_block_forward.5} parent=55 // pred_check_branch
          %3823 = sbr.rel (%p3821) target = $region96
        $region95: #{conv_block_forward.5} parent=55 // pred_region
          %s3825 = ssub.s32 4096, 4096
          %3826 = vsyncadd %s3817, %s3825
          %s3827 = smul.addr %s29, 32
          %s3828 = smul.addr %s3827, 128
          %s3829 = scalar_lea.hbm %s9, %s3828
          %s3830 = sshll.u32 %s3820, 4
          %s3831 = int_to_ptr.vmem [resolvable:$true] %s3830
          %3836 = dma.vmem_to_hbm [thread:$0]  %s3831, 4096, %s3829, %s3817, 128, 128, 8
        $region96: #{conv_block_forward.5} parent=55 // pred_fallthru
          _
      $region56: #{conv_block_forward.5} parent=5 // pred_fallthru
        _
      %p3837 = scmp.le.s32.totalorder 2, %s24
      // Predicated region
      $region97: #{conv_block_forward.5} parent=5 // pred_check
        %p3838 = pneg %p3837
      $region98: #{conv_block_forward.5} parent=5 // pred_check_branch
        %3840 = sbr.rel (%p3838) target = $region100
      $region99: #{conv_block_forward.5} parent=5 // pred_region
        %s3841 = ssub.s32 %s24, 2
        // Predicated region
        $region101: #{conv_block_forward.5} parent=99 // pred_check
          %p3842 = pneg %p257
        $region102: #{conv_block_forward.5} parent=99 // pred_check_branch
          %3844 = sbr.rel (%p3842) target = $region104
        $region103: #{conv_block_forward.5} parent=99 // pred_region
          %s3845 = sand.u32 %s242, 1
          %s3846 = scalar_lea.sflag [#allocation6], %s3845
          %s3847 = sand.u32 %s242, 1
          %s3848 = smul.addr %s3847, 256
          %s3849 = scalar_lea.vmem [#allocation18], %s3848
          %3850 = dma.done %s3846, 4096
        $region104: #{conv_block_forward.5} parent=99 // pred_fallthru
          _
      $region100: #{conv_block_forward.5} parent=5 // pred_fallthru
        _
    $region6: #{conv_block_forward.5} parent=1 // loop_footer
      %s28 = sadd.s32 1, %s24
    $region7: #{conv_block_forward.5} parent=1 // loop_footer_branch
      %23 = sbr.rel target = $region3
    $region8: #{conv_block_forward.5} parent=1 // loop_exit
      _
    %3851 = vsyncpa [#allocation5], 1
    %s3852 = scalar_lea.sflag [#allocation5], 1
    %3853 = vsyncpa %s3852, 1
    %3854 = vsyncpa [#allocation8], 1
    %3855 = vsyncpa [#allocation11], 1
    %3856 = vsyncpa [#allocation17], 1
    %3857 = vsyncpa [#allocation6], 1
    %s3858 = scalar_lea.sflag [#allocation6], 1
    %3859 = vsyncpa %s3858, 1

</llo_original>
